<compile_context>
chip_gen: v7x
topology: tpu7x:2x2x1
jax: 0.10.0
libtpu: 0.0.40
codegen_flags: <defaults>
</compile_context>

<pallas_src>
import functools

import jax
import jax.numpy as jnp
from jax import lax
from jax.experimental import pallas as pl
from jax.experimental.pallas import tpu as pltpu

RNN_DIM = 32            # h_dim / rnn_dim
INPUT_DIM = 2
OUTPUT_DIM = 2
GRID_SIZE = 8
GRID_CELLS = GRID_SIZE * GRID_SIZE   # 64
NEIGHBORHOOD = 2.0
BN_EPS = 1e-5


def _vmem():
    return pl.BlockSpec(memory_space=pltpu.MemorySpace.VMEM)


# ---------------------------------------------------------------------------
# single fused kernel: all timesteps
# ---------------------------------------------------------------------------
def _fused_forward_kernel(
    xproj_ref,    # (T, Np, 4H)      x @ W_ih^T + (b_ih+b_hh), gate order [i,f,o,g]
    maskw_ref,    # (T, Np*Np, G*H)  host-precomputed pair/cell mask (wide layout)
    whh_ref,      # (H, 4H)          recurrent weight (transposed, gates [i,f,o,g])
    wbig_ref,     # (H, G*H)         pool weight, col c*H+ko = (W_c h)[ko], bf16
    eoth_ref,     # (Np*Np, Np)      pair row i*Np+q -> one-hot of "other" ped q
    rowsum_ref,   # (Np, Np*Np)      sums pair rows back per current ped i
    colsum_ref,   # (G*H, H)         sums the G cell blocks onto output features
    bpool_ref,    # (1, H)
    gamma_ref,    # (1, H)           BatchNorm1d gamma
    beta_ref,     # (1, H)           BatchNorm1d beta
    rowmask_ref,  # (Np, 1)          1.0 for real peds, 0.0 for padding
    wout_ref,     # (H, 2)
    bout_ref,     # (1, 2)
    base_ref,     # (pred_len*Np, 2) positions added to the output-layer deltas
    out_ref,      # (pred_len*Np, 2)
    hstash_ref,   # scratch (pred_len*Np, H)
    *,
    obs_len, pred_len, n_real, n_pad, h_dim,
):
    N = n_pad
    H = h_dim
    H3 = 3 * H
    T = obs_len + pred_len - 1
    inv_n = 1.0 / float(n_real)

    # ---------------- loop-invariant loads / broadcasts (hoisted once) ------
    whh = whh_ref[...]
    wbig = wbig_ref[...]
    eoth = eoth_ref[...]
    rowsum = rowsum_ref[...]
    colsum = colsum_ref[...]
    bpool = jnp.broadcast_to(bpool_ref[...], (N, H))
    gamma = jnp.broadcast_to(gamma_ref[...], (N, H))
    beta = jnp.broadcast_to(beta_ref[...], (N, H))
    rmask = rowmask_ref[...]

    # ---------------- LSTM cell (gates permuted to [i, f, o | g]) -----------
    def lstm_step(t, h_in, c):
        gates = xproj_ref[t] + jnp.dot(h_in, whh,
                                       preferred_element_type=jnp.float32)
        ifo = jax.nn.sigmoid(gates[:, 0:H3])     # one sigmoid over 3H lanes
        g_g = jnp.tanh(gates[:, H3:])            # one tanh over H lanes
        i_g = ifo[:, 0:H]
        f_g = ifo[:, H:2 * H]
        o_g = ifo[:, 2 * H:H3]
        c_new = f_g * c + i_g * g_g
        h_new = o_g * jnp.tanh(c_new)
        return h_new, c_new

    # -------- social pooling + mlp_pool (Linear + BN(train) + ReLU) ---------
    # geometry is entirely in maskw (host-precomputed); kernel = matmuls only
    def social_pool_mlp(t, h):
        hw = jnp.dot(h.astype(wbig.dtype), wbig,
                     preferred_element_type=jnp.float32)              # (N,  G*H)
        hw_pair = jnp.dot(eoth, hw,
                          preferred_element_type=jnp.float32)         # (NN, G*H)
        contrib = maskw_ref[t] * hw_pair                              # (NN, G*H)
        pooled = jnp.dot(rowsum, contrib,
                         preferred_element_type=jnp.float32)          # (N,  G*H)
        y = jnp.dot(pooled, colsum,
                    preferred_element_type=jnp.float32) + bpool       # (N,  H)
        # BatchNorm1d, training-mode batch statistics over the n_real real peds
        mean = jnp.sum(y * rmask, axis=0, keepdims=True) * inv_n
        d = (y - mean) * rmask
        var = jnp.sum(d * d, axis=0, keepdims=True) * inv_n
        yn = (y - mean) * lax.rsqrt(var + BN_EPS) * gamma + beta
        return jnp.maximum(yn, 0.0)

    # ---------------- time recurrence (all steps inside the kernel) ---------
    # t = 0: default zero (h, c) state, no pooling
    zeros = jnp.zeros((N, H), jnp.float32)
    h, c = lstm_step(0, zeros, zeros)

    # observation steps without prediction output: t = 1 .. obs_len-2
    def obs_body(t, carry):
        h, c = carry
        return lstm_step(t, social_pool_mlp(t, h), c)

    h, c = lax.fori_loop(1, obs_len - 1, obs_body, (h, c))

    # steps whose hidden state produces a prediction: t = obs_len-1 .. T-1
    def pred_body(t, carry):
        h, c = carry
        h, c = lstm_step(t, social_pool_mlp(t, h), c)
        row0 = pl.multiple_of((t - (obs_len - 1)) * N, N)
        hstash_ref[pl.ds(row0, N), :] = h
        return (h, c)

    _ = lax.fori_loop(obs_len - 1, T, pred_body, (h, c))

    # batched output head: one matmul + one contiguous store
    out_ref[...] = (base_ref[...]
                    + jnp.dot(hstash_ref[...], wout_ref[...],
                              preferred_element_type=jnp.float32)
                    + bout_ref[...])


# ---------------------------------------------------------------------------
# host-side precompute: pair/cell mask for every timestep (teacher forcing)
# ---------------------------------------------------------------------------
def _build_pair_cell_mask(x_all, seq_id, h_dim):
    """x_all: (T, Np, 2); seq_id: (Np,) with -1 for padded peds."""
    T, n_pad, _ = x_all.shape
    G = GRID_CELLS
    half = NEIGHBORHOOD / 2.0
    cur = x_all[:, :, None, :]       # (T, Np, 1, 2): current ped i (owns grid)
    oth = x_all[:, None, :, :]       # (T, 1, Np, 2): other ped q
    tl_x = cur[..., 0] - half
    tl_y = cur[..., 1] + half
    br_x = cur[..., 0] + half
    br_y = cur[..., 1] - half
    ox, oy = oth[..., 0], oth[..., 1]
    cell_x = jnp.floor((ox - tl_x) / NEIGHBORHOOD * GRID_SIZE)
    cell_y = jnp.floor((tl_y - oy) / NEIGHBORHOOD * GRID_SIZE)
    cell = (cell_x + cell_y * GRID_SIZE).astype(jnp.int32)            # (T,Np,Np)
    oob = (ox >= br_x) | (ox <= tl_x) | (oy >= tl_y) | (oy <= br_y)
    same_seq = (seq_id[:, None] == seq_id[None, :]) & (seq_id[:, None] >= 0)
    not_self = ~jnp.eye(n_pad, dtype=bool)
    valid = (~oob) & same_seq[None] & not_self[None]                  # (T,Np,Np)
    onehot = (cell[..., None] == jnp.arange(G, dtype=jnp.int32)) & valid[..., None]
    onehot = onehot.reshape(T, n_pad * n_pad, G).astype(jnp.float32)  # (T,NN,G)
    # widen to the c*H + k_out column layout of the in-kernel pool matmul
    return jnp.repeat(onehot, h_dim, axis=2)                          # (T,NN,G*H)


# ---------------------------------------------------------------------------
# host wrapper: hoisted projections, geometry and layout transforms
# ---------------------------------------------------------------------------
def lstm_model_forward(obs_traj, pred_traj_gt, seq_start_end, params):
    obs_len, n_ped, _ = obs_traj.shape
    pred_len = pred_traj_gt.shape[0]
    assert obs_len >= 2
    H = RNN_DIM
    G = GRID_CELLS
    T = obs_len + pred_len - 1
    n_pad = ((n_ped + 7) // 8) * 8          # fill f32 sublanes

    # teacher-forced input positions (infer=False): obs_traj then pred_traj_gt[:-1]
    x_all = jnp.concatenate([obs_traj, pred_traj_gt[:pred_len - 1]], axis=0)
    x_all = jnp.pad(x_all, ((0, 0), (0, n_pad - n_ped), (0, 0)))

    # per-ped sequence id (-1 for padded peds -> never pooled)
    seq_id = jnp.full((n_pad,), -1.0, jnp.float32)
    for k, (s, e) in enumerate(seq_start_end):
        seq_id = seq_id.at[s:e].set(float(k))

    # gate permutation [i, f, g, o] -> [i, f, o, g] (merged activations in-kernel)
    perm = jnp.concatenate([jnp.arange(0, 2 * H), jnp.arange(3 * H, 4 * H),
                            jnp.arange(2 * H, 3 * H)])
    w_ih_t = params["w_ih"].T[:, perm]                       # (2, 4H)
    w_hh_t = params["w_hh"].T[:, perm]                       # (H, 4H)
    b_lstm = (params["b_ih"] + params["b_hh"])[perm][None]   # (1, 4H)

    # hoisted input projection for every step
    xproj = (x_all.reshape(T * n_pad, INPUT_DIM) @ w_ih_t
             + b_lstm).reshape(T, n_pad, 4 * H)

    # social-pooling geometry for every step (positions known under teacher forcing)
    maskw = _build_pair_cell_mask(x_all, seq_id, H)          # (T, NN, G*H)

    # pool weight rearranged so column c*H + k_out of (h @ wbig) equals
    # (W_pool[:, c*H:(c+1)*H] @ h)[k_out]; stored bf16 for full-rate MXU.
    w_pool = params["w_pool"]                                # (H, G*H)
    wbig = (w_pool.reshape(H, G, H).transpose(2, 1, 0)
            .reshape(H, G * H)).astype(jnp.bfloat16)

    # constant pair-structure / fold matrices
    eye_n = jnp.eye(n_pad, dtype=jnp.float32)
    eoth = jnp.tile(eye_n, (n_pad, 1))                       # (NN, Np)
    rowsum = jnp.repeat(eye_n, n_pad, axis=1)                # (Np, NN)
    colsum = jnp.tile(jnp.eye(H, dtype=jnp.float32), (G, 1)) # (G*H, H)

    rowmask = (jnp.arange(n_pad) < n_ped).astype(jnp.float32)[:, None]
    base = x_all[obs_len - 1:T].reshape(pred_len * n_pad, 2)

    kernel = functools.partial(
        _fused_forward_kernel,
        obs_len=obs_len, pred_len=pred_len,
        n_real=n_ped, n_pad=n_pad, h_dim=H)

    out = pl.pallas_call(
        kernel,
        out_shape=jax.ShapeDtypeStruct((pred_len * n_pad, OUTPUT_DIM),
                                       jnp.float32),
        in_specs=[_vmem()] * 14,
        out_specs=_vmem(),
        scratch_shapes=[pltpu.VMEM((pred_len * n_pad, H), jnp.float32)],
        compiler_params=pltpu.CompilerParams(
            vmem_limit_bytes=48 * 1024 * 1024),
    )(xproj, maskw, w_hh_t, wbig, eoth, rowsum, colsum,
      params["b_pool"][None], params["bn_gamma"][None], params["bn_beta"][None],
      rowmask, params["w_out"].T, params["b_out"][None], base)

    return out.reshape(pred_len, n_pad, OUTPUT_DIM)[:, :n_ped]


# ---------------------------------------------------------------------------
# deterministic synthetic parameters (PyTorch layouts from the module __init__)
# ---------------------------------------------------------------------------
def init_params(key):
    H = RNN_DIM
    G = GRID_CELLS
    ks = jax.random.split(key, 8)
    s = 0.1
    return {
        "w_ih": s * jax.random.normal(ks[0], (4 * H, INPUT_DIM), jnp.float32),
        "w_hh": s * jax.random.normal(ks[1], (4 * H, H), jnp.float32),
        "b_ih": s * jax.random.normal(ks[2], (4 * H,), jnp.float32),
        "b_hh": s * jax.random.normal(ks[3], (4 * H,), jnp.float32),
        "w_out": s * jax.random.normal(ks[4], (OUTPUT_DIM, H), jnp.float32),
        "b_out": s * jax.random.normal(ks[5], (OUTPUT_DIM,), jnp.float32),
        "w_pool": s * jax.random.normal(ks[6], (H, G * H), jnp.float32),
        "b_pool": s * jax.random.normal(ks[7], (H,), jnp.float32),
        "bn_gamma": jnp.ones((H,), jnp.float32),   # BatchNorm1d default init
        "bn_beta": jnp.zeros((H,), jnp.float32),
    }


if __name__ == "__main__":
    key = jax.random.PRNGKey(0)
    k1, k2, k3 = jax.random.split(key, 3)

    OBS_LEN, PRED_LEN = 4, 3
    N = 4                                   # total pedestrians
    seq_start_end = [(0, 2), (2, 4)]        # two sequences of 2 peds each

    params = init_params(k1)
    obs_traj = 0.5 * jax.random.normal(k2, (OBS_LEN, N, 2), jnp.float32)
    pred_traj_gt = 0.5 * jax.random.normal(k3, (PRED_LEN, N, 2), jnp.float32)

    pred_traj = lstm_model_forward(obs_traj, pred_traj_gt, seq_start_end, params)
    jax.block_until_ready(pred_traj)
    assert pred_traj.shape == (PRED_LEN, N, 2)
    print("KERNEL_OK")
</pallas_src>

<mosaic_0001>
module attributes {stable_mosaic.version = 11 : i64} {
  func.func @_fused_forward_kernel(%arg0: memref<6x8x128xf32, #tpu.memory_space<vmem>>, %arg1: memref<6x64x2048xf32, #tpu.memory_space<vmem>>, %arg2: memref<32x128xf32, #tpu.memory_space<vmem>>, %arg3: memref<32x2048xbf16, #tpu.memory_space<vmem>>, %arg4: memref<64x8xf32, #tpu.memory_space<vmem>>, %arg5: memref<8x64xf32, #tpu.memory_space<vmem>>, %arg6: memref<2048x32xf32, #tpu.memory_space<vmem>>, %arg7: memref<1x32xf32, #tpu.memory_space<vmem>>, %arg8: memref<1x32xf32, #tpu.memory_space<vmem>>, %arg9: memref<1x32xf32, #tpu.memory_space<vmem>>, %arg10: memref<8x1xf32, #tpu.memory_space<vmem>>, %arg11: memref<32x2xf32, #tpu.memory_space<vmem>>, %arg12: memref<1x2xf32, #tpu.memory_space<vmem>>, %arg13: memref<24x2xf32, #tpu.memory_space<vmem>>, %arg14: memref<24x2xf32, #tpu.memory_space<vmem>>, %arg15: memref<24x32xf32, #tpu.memory_space<vmem>>) attributes {dimension_semantics = [], scalar_prefetch = 0 : i64, scratch_operands = 1 : i64, tpu.core_type = #tpu.core_type<tc>} {
    %c0 = arith.constant 0 : index
    %c0_0 = arith.constant 0 : index
    %0 = vector.load %arg2[%c0, %c0_0] : memref<32x128xf32, #tpu.memory_space<vmem>>, vector<32x128xf32>
    %c0_1 = arith.constant 0 : index
    %c0_2 = arith.constant 0 : index
    %1 = vector.load %arg3[%c0_1, %c0_2] : memref<32x2048xbf16, #tpu.memory_space<vmem>>, vector<32x2048xbf16>
    %c0_3 = arith.constant 0 : index
    %c0_4 = arith.constant 0 : index
    %2 = vector.load %arg4[%c0_3, %c0_4] : memref<64x8xf32, #tpu.memory_space<vmem>>, vector<64x8xf32>
    %c0_5 = arith.constant 0 : index
    %c0_6 = arith.constant 0 : index
    %3 = vector.load %arg5[%c0_5, %c0_6] : memref<8x64xf32, #tpu.memory_space<vmem>>, vector<8x64xf32>
    %c0_7 = arith.constant 0 : index
    %c0_8 = arith.constant 0 : index
    %4 = vector.load %arg6[%c0_7, %c0_8] : memref<2048x32xf32, #tpu.memory_space<vmem>>, vector<2048x32xf32>
    %c0_9 = arith.constant 0 : index
    %c0_10 = arith.constant 0 : index
    %5 = vector.load %arg7[%c0_9, %c0_10] : memref<1x32xf32, #tpu.memory_space<vmem>>, vector<1x32xf32>
    %6 = vector.shape_cast %5 : vector<1x32xf32> to vector<1x32xf32>
    %7 = vector.broadcast %6 : vector<1x32xf32> to vector<8x32xf32>
    %c0_11 = arith.constant 0 : index
    %c0_12 = arith.constant 0 : index
    %8 = vector.load %arg8[%c0_11, %c0_12] : memref<1x32xf32, #tpu.memory_space<vmem>>, vector<1x32xf32>
    %9 = vector.shape_cast %8 : vector<1x32xf32> to vector<1x32xf32>
    %10 = vector.broadcast %9 : vector<1x32xf32> to vector<8x32xf32>
    %c0_13 = arith.constant 0 : index
    %c0_14 = arith.constant 0 : index
    %11 = vector.load %arg9[%c0_13, %c0_14] : memref<1x32xf32, #tpu.memory_space<vmem>>, vector<1x32xf32>
    %12 = vector.shape_cast %11 : vector<1x32xf32> to vector<1x32xf32>
    %13 = vector.broadcast %12 : vector<1x32xf32> to vector<8x32xf32>
    %c0_15 = arith.constant 0 : index
    %c0_16 = arith.constant 0 : index
    %14 = vector.load %arg10[%c0_15, %c0_16] : memref<8x1xf32, #tpu.memory_space<vmem>>, vector<8x1xf32>
    %cst = arith.constant 0.000000e+00 : f32
    %15 = vector.broadcast %cst : f32 to vector<8x32xf32>
    %c0_17 = arith.constant 0 : index
    %c0_18 = arith.constant 0 : index
    %c0_19 = arith.constant 0 : index
    %16 = vector.load %arg0[%c0_17, %c0_18, %c0_19] : memref<6x8x128xf32, #tpu.memory_space<vmem>>, vector<1x8x128xf32>
    %17 = vector.shape_cast %16 : vector<1x8x128xf32> to vector<8x128xf32>
    %cst_20 = arith.constant dense<0.000000e+00> : vector<8x128xf32>
    %18 = tpu.matmul %15, %0, %cst_20 {dimension_numbers = #tpu.dot_dimension_numbers<[1], [0], [0], [1], [0, 0, 1, 1], [], []>} : vector<8x32xf32>, vector<32x128xf32>, vector<8x128xf32> -> vector<8x128xf32>
    %19 = arith.addf %17, %18 : vector<8x128xf32>
    %20 = vector.extract_strided_slice %19 {offsets = [0, 0], sizes = [8, 96], strides = [1, 1]} : vector<8x128xf32> to vector<8x96xf32>
    %21 = arith.negf %20 : vector<8x96xf32>
    %22 = math.exp %21 : vector<8x96xf32>
    %cst_21 = arith.constant 1.000000e+00 : f32
    %23 = vector.broadcast %cst_21 : f32 to vector<8x96xf32>
    %24 = arith.addf %23, %22 : vector<8x96xf32>
    %25 = arith.divf %23, %24 : vector<8x96xf32>
    %26 = vector.extract_strided_slice %19 {offsets = [0, 96], sizes = [8, 32], strides = [1, 1]} : vector<8x128xf32> to vector<8x32xf32>
    %27 = math.tanh %26 : vector<8x32xf32>
    %28 = vector.extract_strided_slice %25 {offsets = [0, 0], sizes = [8, 32], strides = [1, 1]} : vector<8x96xf32> to vector<8x32xf32>
    %29 = vector.extract_strided_slice %25 {offsets = [0, 32], sizes = [8, 32], strides = [1, 1]} : vector<8x96xf32> to vector<8x32xf32>
    %30 = vector.extract_strided_slice %25 {offsets = [0, 64], sizes = [8, 32], strides = [1, 1]} : vector<8x96xf32> to vector<8x32xf32>
    %31 = arith.mulf %29, %15 : vector<8x32xf32>
    %32 = arith.mulf %28, %27 : vector<8x32xf32>
    %33 = arith.addf %31, %32 : vector<8x32xf32>
    %34 = math.tanh %33 : vector<8x32xf32>
    %35 = arith.mulf %30, %34 : vector<8x32xf32>
    %c1_i32 = arith.constant 1 : i32
    %c2_i32 = arith.constant 2 : i32
    %36 = arith.addi %c1_i32, %c2_i32 : i32
    %c1_i32_22 = arith.constant 1 : i32
    %37:2 = scf.for %arg16 = %c1_i32 to %36 step %c1_i32_22 iter_args(%arg17 = %35, %arg18 = %33) -> (vector<8x32xf32>, vector<8x32xf32>)  : i32 {
      %49 = arith.truncf %arg17 : vector<8x32xf32> to vector<8x32xbf16>
      %cst_38 = arith.constant dense<0.000000e+00> : vector<8x2048xf32>
      %50 = tpu.matmul %49, %1, %cst_38 {dimension_numbers = #tpu.dot_dimension_numbers<[1], [0], [0], [1], [0, 0, 1, 1], [], []>} : vector<8x32xbf16>, vector<32x2048xbf16>, vector<8x2048xf32> -> vector<8x2048xf32>
      %cst_39 = arith.constant dense<0.000000e+00> : vector<64x2048xf32>
      %51 = tpu.matmul %2, %50, %cst_39 {dimension_numbers = #tpu.dot_dimension_numbers<[1], [0], [0], [1], [0, 0, 1, 1], [], []>} : vector<64x8xf32>, vector<8x2048xf32>, vector<64x2048xf32> -> vector<64x2048xf32>
      %52 = arith.index_cast %arg16 : i32 to index
      %c0_40 = arith.constant 0 : index
      %c0_41 = arith.constant 0 : index
      %53 = vector.load %arg1[%52, %c0_40, %c0_41] : memref<6x64x2048xf32, #tpu.memory_space<vmem>>, vector<1x64x2048xf32>
      %54 = vector.shape_cast %53 : vector<1x64x2048xf32> to vector<64x2048xf32>
      %55 = arith.mulf %54, %51 : vector<64x2048xf32>
      %cst_42 = arith.constant dense<0.000000e+00> : vector<8x2048xf32>
      %56 = tpu.matmul %3, %55, %cst_42 {dimension_numbers = #tpu.dot_dimension_numbers<[1], [0], [0], [1], [0, 0, 1, 1], [], []>} : vector<8x64xf32>, vector<64x2048xf32>, vector<8x2048xf32> -> vector<8x2048xf32>
      %cst_43 = arith.constant dense<0.000000e+00> : vector<8x32xf32>
      %57 = tpu.matmul %56, %4, %cst_43 {dimension_numbers = #tpu.dot_dimension_numbers<[1], [0], [0], [1], [0, 0, 1, 1], [], []>} : vector<8x2048xf32>, vector<2048x32xf32>, vector<8x32xf32> -> vector<8x32xf32>
      %58 = arith.addf %57, %7 : vector<8x32xf32>
      %59 = vector.broadcast %14 : vector<8x1xf32> to vector<8x32xf32>
      %60 = arith.mulf %58, %59 : vector<8x32xf32>
      %cst_44 = arith.constant dense<0.000000e+00> : vector<32xf32>
      %61 = vector.multi_reduction <add>, %60, %cst_44 [0] : vector<8x32xf32> to vector<32xf32>
      %62 = vector.shape_cast %61 : vector<32xf32> to vector<1x32xf32>
      %cst_45 = arith.constant 2.500000e-01 : f32
      %63 = vector.broadcast %cst_45 : f32 to vector<1x32xf32>
      %64 = arith.mulf %62, %63 : vector<1x32xf32>
      %65 = vector.broadcast %64 : vector<1x32xf32> to vector<8x32xf32>
      %66 = arith.subf %58, %65 : vector<8x32xf32>
      %67 = vector.broadcast %14 : vector<8x1xf32> to vector<8x32xf32>
      %68 = arith.mulf %66, %67 : vector<8x32xf32>
      %69 = arith.mulf %68, %68 : vector<8x32xf32>
      %cst_46 = arith.constant dense<0.000000e+00> : vector<32xf32>
      %70 = vector.multi_reduction <add>, %69, %cst_46 [0] : vector<8x32xf32> to vector<32xf32>
      %71 = vector.shape_cast %70 : vector<32xf32> to vector<1x32xf32>
      %cst_47 = arith.constant 2.500000e-01 : f32
      %72 = vector.broadcast %cst_47 : f32 to vector<1x32xf32>
      %73 = arith.mulf %71, %72 : vector<1x32xf32>
      %74 = vector.broadcast %64 : vector<1x32xf32> to vector<8x32xf32>
      %75 = arith.subf %58, %74 : vector<8x32xf32>
      %cst_48 = arith.constant 9.99999974E-6 : f32
      %76 = vector.broadcast %cst_48 : f32 to vector<1x32xf32>
      %77 = arith.addf %73, %76 : vector<1x32xf32>
      %78 = math.rsqrt %77 : vector<1x32xf32>
      %79 = vector.broadcast %78 : vector<1x32xf32> to vector<8x32xf32>
      %80 = arith.mulf %75, %79 : vector<8x32xf32>
      %81 = arith.mulf %80, %10 : vector<8x32xf32>
      %82 = arith.addf %81, %13 : vector<8x32xf32>
      %cst_49 = arith.constant 0.000000e+00 : f32
      %83 = vector.broadcast %cst_49 : f32 to vector<8x32xf32>
      %84 = arith.maximumf %82, %83 : vector<8x32xf32>
      %85 = arith.index_cast %arg16 : i32 to index
      %c0_50 = arith.constant 0 : index
      %c0_51 = arith.constant 0 : index
      %86 = vector.load %arg0[%85, %c0_50, %c0_51] : memref<6x8x128xf32, #tpu.memory_space<vmem>>, vector<1x8x128xf32>
      %87 = vector.shape_cast %86 : vector<1x8x128xf32> to vector<8x128xf32>
      %cst_52 = arith.constant dense<0.000000e+00> : vector<8x128xf32>
      %88 = tpu.matmul %84, %0, %cst_52 {dimension_numbers = #tpu.dot_dimension_numbers<[1], [0], [0], [1], [0, 0, 1, 1], [], []>} : vector<8x32xf32>, vector<32x128xf32>, vector<8x128xf32> -> vector<8x128xf32>
      %89 = arith.addf %87, %88 : vector<8x128xf32>
      %90 = vector.extract_strided_slice %89 {offsets = [0, 0], sizes = [8, 96], strides = [1, 1]} : vector<8x128xf32> to vector<8x96xf32>
      %91 = arith.negf %90 : vector<8x96xf32>
      %92 = math.exp %91 : vector<8x96xf32>
      %cst_53 = arith.constant 1.000000e+00 : f32
      %93 = vector.broadcast %cst_53 : f32 to vector<8x96xf32>
      %94 = arith.addf %93, %92 : vector<8x96xf32>
      %95 = arith.divf %93, %94 : vector<8x96xf32>
      %96 = vector.extract_strided_slice %89 {offsets = [0, 96], sizes = [8, 32], strides = [1, 1]} : vector<8x128xf32> to vector<8x32xf32>
      %97 = math.tanh %96 : vector<8x32xf32>
      %98 = vector.extract_strided_slice %95 {offsets = [0, 0], sizes = [8, 32], strides = [1, 1]} : vector<8x96xf32> to vector<8x32xf32>
      %99 = vector.extract_strided_slice %95 {offsets = [0, 32], sizes = [8, 32], strides = [1, 1]} : vector<8x96xf32> to vector<8x32xf32>
      %100 = vector.extract_strided_slice %95 {offsets = [0, 64], sizes = [8, 32], strides = [1, 1]} : vector<8x96xf32> to vector<8x32xf32>
      %101 = arith.mulf %99, %arg18 : vector<8x32xf32>
      %102 = arith.mulf %98, %97 : vector<8x32xf32>
      %103 = arith.addf %101, %102 : vector<8x32xf32>
      %104 = math.tanh %103 : vector<8x32xf32>
      %105 = arith.mulf %100, %104 : vector<8x32xf32>
      scf.yield %105, %103 : vector<8x32xf32>, vector<8x32xf32>
    }
    %c2_i32_23 = arith.constant 2 : i32
    %c3_i32 = arith.constant 3 : i32
    %c3_i32_24 = arith.constant 3 : i32
    %38 = arith.addi %c3_i32, %c3_i32_24 : i32
    %c1_i32_25 = arith.constant 1 : i32
    %39:2 = scf.for %arg16 = %c3_i32 to %38 step %c1_i32_25 iter_args(%arg17 = %37#0, %arg18 = %37#1) -> (vector<8x32xf32>, vector<8x32xf32>)  : i32 {
      %49 = arith.truncf %arg17 : vector<8x32xf32> to vector<8x32xbf16>
      %cst_38 = arith.constant dense<0.000000e+00> : vector<8x2048xf32>
      %50 = tpu.matmul %49, %1, %cst_38 {dimension_numbers = #tpu.dot_dimension_numbers<[1], [0], [0], [1], [0, 0, 1, 1], [], []>} : vector<8x32xbf16>, vector<32x2048xbf16>, vector<8x2048xf32> -> vector<8x2048xf32>
      %cst_39 = arith.constant dense<0.000000e+00> : vector<64x2048xf32>
      %51 = tpu.matmul %2, %50, %cst_39 {dimension_numbers = #tpu.dot_dimension_numbers<[1], [0], [0], [1], [0, 0, 1, 1], [], []>} : vector<64x8xf32>, vector<8x2048xf32>, vector<64x2048xf32> -> vector<64x2048xf32>
      %52 = arith.index_cast %arg16 : i32 to index
      %c0_40 = arith.constant 0 : index
      %c0_41 = arith.constant 0 : index
      %53 = vector.load %arg1[%52, %c0_40, %c0_41] : memref<6x64x2048xf32, #tpu.memory_space<vmem>>, vector<1x64x2048xf32>
      %54 = vector.shape_cast %53 : vector<1x64x2048xf32> to vector<64x2048xf32>
      %55 = arith.mulf %54, %51 : vector<64x2048xf32>
      %cst_42 = arith.constant dense<0.000000e+00> : vector<8x2048xf32>
      %56 = tpu.matmul %3, %55, %cst_42 {dimension_numbers = #tpu.dot_dimension_numbers<[1], [0], [0], [1], [0, 0, 1, 1], [], []>} : vector<8x64xf32>, vector<64x2048xf32>, vector<8x2048xf32> -> vector<8x2048xf32>
      %cst_43 = arith.constant dense<0.000000e+00> : vector<8x32xf32>
      %57 = tpu.matmul %56, %4, %cst_43 {dimension_numbers = #tpu.dot_dimension_numbers<[1], [0], [0], [1], [0, 0, 1, 1], [], []>} : vector<8x2048xf32>, vector<2048x32xf32>, vector<8x32xf32> -> vector<8x32xf32>
      %58 = arith.addf %57, %7 : vector<8x32xf32>
      %59 = vector.broadcast %14 : vector<8x1xf32> to vector<8x32xf32>
      %60 = arith.mulf %58, %59 : vector<8x32xf32>
      %cst_44 = arith.constant dense<0.000000e+00> : vector<32xf32>
      %61 = vector.multi_reduction <add>, %60, %cst_44 [0] : vector<8x32xf32> to vector<32xf32>
      %62 = vector.shape_cast %61 : vector<32xf32> to vector<1x32xf32>
      %cst_45 = arith.constant 2.500000e-01 : f32
      %63 = vector.broadcast %cst_45 : f32 to vector<1x32xf32>
      %64 = arith.mulf %62, %63 : vector<1x32xf32>
      %65 = vector.broadcast %64 : vector<1x32xf32> to vector<8x32xf32>
      %66 = arith.subf %58, %65 : vector<8x32xf32>
      %67 = vector.broadcast %14 : vector<8x1xf32> to vector<8x32xf32>
      %68 = arith.mulf %66, %67 : vector<8x32xf32>
      %69 = arith.mulf %68, %68 : vector<8x32xf32>
      %cst_46 = arith.constant dense<0.000000e+00> : vector<32xf32>
      %70 = vector.multi_reduction <add>, %69, %cst_46 [0] : vector<8x32xf32> to vector<32xf32>
      %71 = vector.shape_cast %70 : vector<32xf32> to vector<1x32xf32>
      %cst_47 = arith.constant 2.500000e-01 : f32
      %72 = vector.broadcast %cst_47 : f32 to vector<1x32xf32>
      %73 = arith.mulf %71, %72 : vector<1x32xf32>
      %74 = vector.broadcast %64 : vector<1x32xf32> to vector<8x32xf32>
      %75 = arith.subf %58, %74 : vector<8x32xf32>
      %cst_48 = arith.constant 9.99999974E-6 : f32
      %76 = vector.broadcast %cst_48 : f32 to vector<1x32xf32>
      %77 = arith.addf %73, %76 : vector<1x32xf32>
      %78 = math.rsqrt %77 : vector<1x32xf32>
      %79 = vector.broadcast %78 : vector<1x32xf32> to vector<8x32xf32>
      %80 = arith.mulf %75, %79 : vector<8x32xf32>
      %81 = arith.mulf %80, %10 : vector<8x32xf32>
      %82 = arith.addf %81, %13 : vector<8x32xf32>
      %cst_49 = arith.constant 0.000000e+00 : f32
      %83 = vector.broadcast %cst_49 : f32 to vector<8x32xf32>
      %84 = arith.maximumf %82, %83 : vector<8x32xf32>
      %85 = arith.index_cast %arg16 : i32 to index
      %c0_50 = arith.constant 0 : index
      %c0_51 = arith.constant 0 : index
      %86 = vector.load %arg0[%85, %c0_50, %c0_51] : memref<6x8x128xf32, #tpu.memory_space<vmem>>, vector<1x8x128xf32>
      %87 = vector.shape_cast %86 : vector<1x8x128xf32> to vector<8x128xf32>
      %cst_52 = arith.constant dense<0.000000e+00> : vector<8x128xf32>
      %88 = tpu.matmul %84, %0, %cst_52 {dimension_numbers = #tpu.dot_dimension_numbers<[1], [0], [0], [1], [0, 0, 1, 1], [], []>} : vector<8x32xf32>, vector<32x128xf32>, vector<8x128xf32> -> vector<8x128xf32>
      %89 = arith.addf %87, %88 : vector<8x128xf32>
      %90 = vector.extract_strided_slice %89 {offsets = [0, 0], sizes = [8, 96], strides = [1, 1]} : vector<8x128xf32> to vector<8x96xf32>
      %91 = arith.negf %90 : vector<8x96xf32>
      %92 = math.exp %91 : vector<8x96xf32>
      %cst_53 = arith.constant 1.000000e+00 : f32
      %93 = vector.broadcast %cst_53 : f32 to vector<8x96xf32>
      %94 = arith.addf %93, %92 : vector<8x96xf32>
      %95 = arith.divf %93, %94 : vector<8x96xf32>
      %96 = vector.extract_strided_slice %89 {offsets = [0, 96], sizes = [8, 32], strides = [1, 1]} : vector<8x128xf32> to vector<8x32xf32>
      %97 = math.tanh %96 : vector<8x32xf32>
      %98 = vector.extract_strided_slice %95 {offsets = [0, 0], sizes = [8, 32], strides = [1, 1]} : vector<8x96xf32> to vector<8x32xf32>
      %99 = vector.extract_strided_slice %95 {offsets = [0, 32], sizes = [8, 32], strides = [1, 1]} : vector<8x96xf32> to vector<8x32xf32>
      %100 = vector.extract_strided_slice %95 {offsets = [0, 64], sizes = [8, 32], strides = [1, 1]} : vector<8x96xf32> to vector<8x32xf32>
      %101 = arith.mulf %99, %arg18 : vector<8x32xf32>
      %102 = arith.mulf %98, %97 : vector<8x32xf32>
      %103 = arith.addf %101, %102 : vector<8x32xf32>
      %104 = math.tanh %103 : vector<8x32xf32>
      %105 = arith.mulf %100, %104 : vector<8x32xf32>
      %c3_i32_54 = arith.constant 3 : i32
      %106 = arith.subi %arg16, %c3_i32_54 : i32
      %c8_i32 = arith.constant 8 : i32
      %107 = arith.muli %106, %c8_i32 : i32
      %108 = tpu.assume_multiple %107, 8 : i32
      %109 = arith.index_cast %108 : i32 to index
      %c0_55 = arith.constant 0 : index
      %110 = vector.load %arg15[%109, %c0_55] : memref<24x32xf32, #tpu.memory_space<vmem>>, vector<8x32xf32>
      tpu.vector_store %arg15[%109, %c0_55], %105 {strides = array<i32>} : memref<24x32xf32, #tpu.memory_space<vmem>>, vector<8x32xf32>,
      scf.yield %105, %103 : vector<8x32xf32>, vector<8x32xf32>
    }
    %c3_i32_26 = arith.constant 3 : i32
    %c0_27 = arith.constant 0 : index
    %c0_28 = arith.constant 0 : index
    %40 = vector.load %arg13[%c0_27, %c0_28] : memref<24x2xf32, #tpu.memory_space<vmem>>, vector<24x2xf32>
    %c0_29 = arith.constant 0 : index
    %c0_30 = arith.constant 0 : index
    %41 = vector.load %arg15[%c0_29, %c0_30] : memref<24x32xf32, #tpu.memory_space<vmem>>, vector<24x32xf32>
    %c0_31 = arith.constant 0 : index
    %c0_32 = arith.constant 0 : index
    %42 = vector.load %arg11[%c0_31, %c0_32] : memref<32x2xf32, #tpu.memory_space<vmem>>, vector<32x2xf32>
    %cst_33 = arith.constant dense<0.000000e+00> : vector<24x2xf32>
    %43 = tpu.matmul %41, %42, %cst_33 {dimension_numbers = #tpu.dot_dimension_numbers<[1], [0], [0], [1], [0, 0, 1, 1], [], []>} : vector<24x32xf32>, vector<32x2xf32>, vector<24x2xf32> -> vector<24x2xf32>
    %44 = arith.addf %40, %43 : vector<24x2xf32>
    %c0_34 = arith.constant 0 : index
    %c0_35 = arith.constant 0 : index
    %45 = vector.load %arg12[%c0_34, %c0_35] : memref<1x2xf32, #tpu.memory_space<vmem>>, vector<1x2xf32>
    %46 = vector.broadcast %45 : vector<1x2xf32> to vector<24x2xf32>
    %47 = arith.addf %44, %46 : vector<24x2xf32>
    %c0_36 = arith.constant 0 : index
    %c0_37 = arith.constant 0 : index
    %48 = vector.load %arg14[%c0_36, %c0_37] : memref<24x2xf32, #tpu.memory_space<vmem>>, vector<24x2xf32>
    tpu.vector_store %arg14[%c0_36, %c0_37], %47 {strides = array<i32>} : memref<24x2xf32, #tpu.memory_space<vmem>>, vector<24x2xf32>,
    return
  }
}

</mosaic_0001>

<llo_original>
// kernel: tpu_custom_call.1
$region0: #{tpu_custom_call.1}
  #allocation0 [shape = 'u32[]', space=smem, size = 0x4, offset = 0x4, fixed_abs, tag = 'smem constant byte address 0x4 - core index']
  #allocation1 [shape = 'u32[144,128]{1,0:T(1,128)}', space=vmem, size = 0x12000, scoped, tag = 'internal scratch']
  #allocation2 [shape = 'f32[24,32]{1,0:T(8,128)}', space=vmem, size = 0x3000, scoped, tag = 'scratch operand']
  %s0 = inlined_call_operand.hbm [shape: f32[6,8,128], index: 0, kind: input, shape index: {}]
  %s1 = inlined_call_operand.hbm [shape: f32[6,64,2048], index: 1, kind: input, shape index: {}]
  %s2 = inlined_call_operand.hbm [shape: f32[32,128], index: 2, kind: input, shape index: {}]
  %s3 = inlined_call_operand.hbm [shape: bf16[32,2048], index: 3, kind: input, shape index: {}]
  %s4 = inlined_call_operand.vmem [shape: f32[64,8], index: 4, kind: input, shape index: {}]
  %s5 = inlined_call_operand.hbm [shape: f32[8,64], index: 5, kind: input, shape index: {}]
  %s6 = inlined_call_operand.vmem [shape: f32[2048,32], index: 6, kind: input, shape index: {}]
  %s7 = inlined_call_operand.hbm [shape: f32[1,32], index: 7, kind: input, shape index: {}]
  %s8 = inlined_call_operand.hbm [shape: f32[1,32], index: 8, kind: input, shape index: {}]
  %s9 = inlined_call_operand.hbm [shape: f32[1,32], index: 9, kind: input, shape index: {}]
  %s10 = inlined_call_operand.vmem [shape: f32[8,1], index: 10, kind: input, shape index: {}]
  %s11 = inlined_call_operand.vmem [shape: f32[32,2], index: 11, kind: input, shape index: {}]
  %s12 = inlined_call_operand.hbm [shape: f32[1,2], index: 12, kind: input, shape index: {}]
  %s13 = inlined_call_operand.vmem [shape: f32[24,2], index: 13, kind: input, shape index: {}]
  %s14 = inlined_call_operand.vmem [shape: f32[24,2], index: 14, kind: output, shape index: {}]
  %s15 = sld [smem:[#allocation0]]
  $region116: #{tpu_custom_call.1} parent=0
    _
  %s17 = ssub.s32 1, %s15
  %s18 = scalar_select 0, %s17, %s15
  $region1: #{tpu_custom_call.1} parent=0
    #allocation3 [shape = 'u8[24576]{0}', space=vmem, size = 0x6000, scoped, tag = 'input window, operand 0, single buffered']
    #allocation4 [shape = 's32[1]{0}', space=sflag, size = 0x4, scoped, tag = 'scoped memory for tpu_custom_call.1']
    #allocation5 [shape = 'u8[3145728]{0}', space=vmem, size = 0x300000, scoped, tag = 'input window, operand 1, single buffered']
    #allocation6 [shape = 's32[1]{0}', space=sflag, size = 0x4, scoped, tag = 'scoped memory for tpu_custom_call.1']
    #allocation7 [shape = 'u8[16384]{0}', space=vmem, size = 0x4000, scoped, tag = 'input window, operand 2, single buffered']
    #allocation8 [shape = 'u8[131072]{0}', space=vmem, size = 0x20000, scoped, tag = 'input window, operand 3, single buffered']
    #allocation9 [shape = 's32[1]{0}', space=sflag, size = 0x4, scoped, tag = 'scoped memory for tpu_custom_call.1']
    #allocation10 [shape = 'u8[4096]{0}', space=vmem, size = 0x1000, scoped, tag = 'input window, operand 5, single buffered']
    #allocation11 [shape = 'u8[512]{0}', space=vmem, size = 0x400, scoped, tag = 'input window, operand 7, single buffered']
    #allocation12 [shape = 's32[1]{0}', space=sflag, size = 0x4, scoped, tag = 'scoped memory for tpu_custom_call.1']
    #allocation13 [shape = 'u8[512]{0}', space=vmem, size = 0x400, scoped, tag = 'input window, operand 8, single buffered']
    #allocation14 [shape = 'u8[512]{0}', space=vmem, size = 0x400, scoped, tag = 'input window, operand 9, single buffered']
    #allocation15 [shape = 's32[1]{0}', space=sflag, size = 0x4, scoped, tag = 'scoped memory for tpu_custom_call.1']
    #allocation16 [shape = 'u8[512]{0}', space=vmem, size = 0x400, scoped, tag = 'input window, operand 12, single buffered']
    %19 = vsyncpa [#allocation4], 0
    %20 = vsyncpa [#allocation6], 0
    %21 = vsyncpa [#allocation9], 0
    %22 = vsyncpa [#allocation12], 0
    %23 = vsyncpa [#allocation15], 0
    // Predicated region
    $region2: #{tpu_custom_call.1} parent=1 // pred_check
      _
    $region3: #{tpu_custom_call.1} parent=1 // pred_check_branch
      %25 = sbr.rel (0) target = $region5
    $region4: #{tpu_custom_call.1} parent=1 // pred_region
      %s27 = ssub.s32 768, 768
      %28 = vsyncadd [#allocation4], %s27
      %s29 = sshll.u32 [#allocation3], 4
      %s30 = int_to_ptr.vmem [resolvable:$true] %s29
      %35 = dma.hbm_to_vmem [thread:$0]  %s0, 768, %s30, [#allocation4], 128, 128, 8
    $region5: #{tpu_custom_call.1} parent=1 // pred_fallthru
      _
    // Predicated region
    $region6: #{tpu_custom_call.1} parent=1 // pred_check
      _
    $region7: #{tpu_custom_call.1} parent=1 // pred_check_branch
      %37 = sbr.rel (0) target = $region9
    $region8: #{tpu_custom_call.1} parent=1 // pred_region
      %s39 = ssub.s32 98304, 98304
      %40 = vsyncadd [#allocation6], %s39
      %s41 = sshll.u32 [#allocation5], 4
      %s42 = int_to_ptr.vmem [resolvable:$true] %s41
      %47 = dma.hbm_to_vmem [thread:$0]  %s1, 98304, %s42, [#allocation6], 2048, 2048, 128
    $region9: #{tpu_custom_call.1} parent=1 // pred_fallthru
      _
    // Predicated region
    $region10: #{tpu_custom_call.1} parent=1 // pred_check
      _
    $region11: #{tpu_custom_call.1} parent=1 // pred_check_branch
      %49 = sbr.rel (0) target = $region13
    $region12: #{tpu_custom_call.1} parent=1 // pred_region
      %s51 = ssub.s32 512, 512
      %52 = vsyncadd [#allocation6], %s51
      %s53 = sshll.u32 [#allocation7], 4
      %s54 = int_to_ptr.vmem [resolvable:$true] %s53
      %59 = dma.hbm_to_vmem [thread:$0]  %s2, 512, %s54, [#allocation6], 128, 128, 8
    $region13: #{tpu_custom_call.1} parent=1 // pred_fallthru
      _
    // Predicated region
    $region14: #{tpu_custom_call.1} parent=1 // pred_check
      _
    $region15: #{tpu_custom_call.1} parent=1 // pred_check_branch
      %61 = sbr.rel (0) target = $region17
    $region16: #{tpu_custom_call.1} parent=1 // pred_region
      %s63 = ssub.s32 4096, 4096
      %64 = vsyncadd [#allocation9], %s63
      %s65 = sshll.u32 [#allocation8], 4
      %s66 = int_to_ptr.vmem [resolvable:$true] %s65
      %71 = dma.hbm_to_vmem [thread:$0]  %s3, 4096, %s66, [#allocation9], 1024, 1024, 64
    $region17: #{tpu_custom_call.1} parent=1 // pred_fallthru
      _
    // Predicated region
    $region18: #{tpu_custom_call.1} parent=1 // pred_check
      _
    $region19: #{tpu_custom_call.1} parent=1 // pred_check_branch
      %73 = sbr.rel (0) target = $region21
    $region20: #{tpu_custom_call.1} parent=1 // pred_region
      _
    $region21: #{tpu_custom_call.1} parent=1 // pred_fallthru
      _
    // Predicated region
    $region22: #{tpu_custom_call.1} parent=1 // pred_check
      _
    $region23: #{tpu_custom_call.1} parent=1 // pred_check_branch
      %75 = sbr.rel (0) target = $region25
    $region24: #{tpu_custom_call.1} parent=1 // pred_region
      %s77 = ssub.s32 128, 128
      %78 = vsyncadd [#allocation9], %s77
      %s80 = sshll.u32 [#allocation10], 4
      %s81 = int_to_ptr.vmem [resolvable:$true] %s80
      %83 = dma.hbm_to_vmem [thread:$0]  %s5, 128, %s81, [#allocation9]
    $region25: #{tpu_custom_call.1} parent=1 // pred_fallthru
      _
    // Predicated region
    $region26: #{tpu_custom_call.1} parent=1 // pred_check
      _
    $region27: #{tpu_custom_call.1} parent=1 // pred_check_branch
      %85 = sbr.rel (0) target = $region29
    $region28: #{tpu_custom_call.1} parent=1 // pred_region
      _
    $region29: #{tpu_custom_call.1} parent=1 // pred_fallthru
      _
    // Predicated region
    $region30: #{tpu_custom_call.1} parent=1 // pred_check
      _
    $region31: #{tpu_custom_call.1} parent=1 // pred_check_branch
      %87 = sbr.rel (0) target = $region33
    $region32: #{tpu_custom_call.1} parent=1 // pred_region
      %s89 = ssub.s32 16, 16
      %90 = vsyncadd [#allocation12], %s89
      %s92 = sshll.u32 [#allocation11], 4
      %s93 = int_to_ptr.vmem [resolvable:$true] %s92
      %95 = dma.hbm_to_vmem [thread:$0]  %s7, 16, %s93, [#allocation12]
    $region33: #{tpu_custom_call.1} parent=1 // pred_fallthru
      _
    // Predicated region
    $region34: #{tpu_custom_call.1} parent=1 // pred_check
      _
    $region35: #{tpu_custom_call.1} parent=1 // pred_check_branch
      %97 = sbr.rel (0) target = $region37
    $region36: #{tpu_custom_call.1} parent=1 // pred_region
      %s99 = ssub.s32 16, 16
      %100 = vsyncadd [#allocation12], %s99
      %s102 = sshll.u32 [#allocation13], 4
      %s103 = int_to_ptr.vmem [resolvable:$true] %s102
      %105 = dma.hbm_to_vmem [thread:$0]  %s8, 16, %s103, [#allocation12]
    $region37: #{tpu_custom_call.1} parent=1 // pred_fallthru
      _
    // Predicated region
    $region38: #{tpu_custom_call.1} parent=1 // pred_check
      _
    $region39: #{tpu_custom_call.1} parent=1 // pred_check_branch
      %107 = sbr.rel (0) target = $region41
    $region40: #{tpu_custom_call.1} parent=1 // pred_region
      %s109 = ssub.s32 16, 16
      %110 = vsyncadd [#allocation15], %s109
      %s112 = sshll.u32 [#allocation14], 4
      %s113 = int_to_ptr.vmem [resolvable:$true] %s112
      %115 = dma.hbm_to_vmem [thread:$0]  %s9, 16, %s113, [#allocation15]
    $region41: #{tpu_custom_call.1} parent=1 // pred_fallthru
      _
    // Predicated region
    $region42: #{tpu_custom_call.1} parent=1 // pred_check
      _
    $region43: #{tpu_custom_call.1} parent=1 // pred_check_branch
      %117 = sbr.rel (0) target = $region45
    $region44: #{tpu_custom_call.1} parent=1 // pred_region
      _
    $region45: #{tpu_custom_call.1} parent=1 // pred_fallthru
      _
    // Predicated region
    $region46: #{tpu_custom_call.1} parent=1 // pred_check
      _
    $region47: #{tpu_custom_call.1} parent=1 // pred_check_branch
      %119 = sbr.rel (0) target = $region49
    $region48: #{tpu_custom_call.1} parent=1 // pred_region
      _
    $region49: #{tpu_custom_call.1} parent=1 // pred_fallthru
      _
    // Predicated region
    $region50: #{tpu_custom_call.1} parent=1 // pred_check
      _
    $region51: #{tpu_custom_call.1} parent=1 // pred_check_branch
      %121 = sbr.rel (0) target = $region53
    $region52: #{tpu_custom_call.1} parent=1 // pred_region
      %s123 = ssub.s32 16, 16
      %124 = vsyncadd [#allocation15], %s123
      %s126 = sshll.u32 [#allocation16], 4
      %s127 = int_to_ptr.vmem [resolvable:$true] %s126
      %129 = dma.hbm_to_vmem [thread:$0]  %s12, 16, %s127, [#allocation15]
    $region53: #{tpu_custom_call.1} parent=1 // pred_fallthru
      _
    // Predicated region
    $region54: #{tpu_custom_call.1} parent=1 // pred_check
      _
    $region55: #{tpu_custom_call.1} parent=1 // pred_check_branch
      %131 = sbr.rel (0) target = $region57
    $region56: #{tpu_custom_call.1} parent=1 // pred_region
      _
    $region57: #{tpu_custom_call.1} parent=1 // pred_fallthru
      _
    // Predicated region
    $region58: #{tpu_custom_call.1} parent=1 // pred_check
      _
    $region59: #{tpu_custom_call.1} parent=1 // pred_check_branch
      %133 = sbr.rel (0) target = $region61
    $region60: #{tpu_custom_call.1} parent=1 // pred_region
      %134 = dma.done [#allocation4], 768
    $region61: #{tpu_custom_call.1} parent=1 // pred_fallthru
      _
    // Predicated region
    $region62: #{tpu_custom_call.1} parent=1 // pred_check
      _
    $region63: #{tpu_custom_call.1} parent=1 // pred_check_branch
      %136 = sbr.rel (0) target = $region65
    $region64: #{tpu_custom_call.1} parent=1 // pred_region
      %137 = dma.done [#allocation6], 98304
    $region65: #{tpu_custom_call.1} parent=1 // pred_fallthru
      _
    // Predicated region
    $region66: #{tpu_custom_call.1} parent=1 // pred_check
      _
    $region67: #{tpu_custom_call.1} parent=1 // pred_check_branch
      %139 = sbr.rel (0) target = $region69
    $region68: #{tpu_custom_call.1} parent=1 // pred_region
      %140 = dma.done [#allocation6], 512
    $region69: #{tpu_custom_call.1} parent=1 // pred_fallthru
      _
    // Predicated region
    $region70: #{tpu_custom_call.1} parent=1 // pred_check
      _
    $region71: #{tpu_custom_call.1} parent=1 // pred_check_branch
      %142 = sbr.rel (0) target = $region73
    $region72: #{tpu_custom_call.1} parent=1 // pred_region
      %143 = dma.done [#allocation9], 4096
    $region73: #{tpu_custom_call.1} parent=1 // pred_fallthru
      _
    // Predicated region
    $region74: #{tpu_custom_call.1} parent=1 // pred_check
      _
    $region75: #{tpu_custom_call.1} parent=1 // pred_check_branch
      %145 = sbr.rel (0) target = $region77
    $region76: #{tpu_custom_call.1} parent=1 // pred_region
      %146 = dma.done [#allocation9], 128
    $region77: #{tpu_custom_call.1} parent=1 // pred_fallthru
      _
    // Predicated region
    $region78: #{tpu_custom_call.1} parent=1 // pred_check
      _
    $region79: #{tpu_custom_call.1} parent=1 // pred_check_branch
      %148 = sbr.rel (0) target = $region81
    $region80: #{tpu_custom_call.1} parent=1 // pred_region
      %149 = dma.done [#allocation12], 16
    $region81: #{tpu_custom_call.1} parent=1 // pred_fallthru
      _
    // Predicated region
    $region82: #{tpu_custom_call.1} parent=1 // pred_check
      _
    $region83: #{tpu_custom_call.1} parent=1 // pred_check_branch
      %151 = sbr.rel (0) target = $region85
    $region84: #{tpu_custom_call.1} parent=1 // pred_region
      %152 = dma.done [#allocation12], 16
    $region85: #{tpu_custom_call.1} parent=1 // pred_fallthru
      _
    // Predicated region
    $region86: #{tpu_custom_call.1} parent=1 // pred_check
      _
    $region87: #{tpu_custom_call.1} parent=1 // pred_check_branch
      %154 = sbr.rel (0) target = $region89
    $region88: #{tpu_custom_call.1} parent=1 // pred_region
      %155 = dma.done [#allocation15], 16
    $region89: #{tpu_custom_call.1} parent=1 // pred_fallthru
      _
    // Predicated region
    $region90: #{tpu_custom_call.1} parent=1 // pred_check
      _
    $region91: #{tpu_custom_call.1} parent=1 // pred_check_branch
      %157 = sbr.rel (0) target = $region93
    $region92: #{tpu_custom_call.1} parent=1 // pred_region
      %158 = dma.done [#allocation15], 16
    $region93: #{tpu_custom_call.1} parent=1 // pred_fallthru
      _
    %v160 = vld [vmem:[#allocation7] sm:$0xff]
    %v161 = vld [vmem:[#allocation7 + $0x8] sm:$0xff]
    %v162 = vld [vmem:[#allocation7 + $0x10] sm:$0xff]
    %v163 = vld [vmem:[#allocation7 + $0x18] sm:$0xff]
    %v164 = vld [vmem:[#allocation8] sm:$0xff]
    %v165 = vld [vmem:[#allocation8 + $0x8] sm:$0xff]
    %v166 = vld [vmem:[#allocation8 + $0x10] sm:$0xff]
    %v167 = vld [vmem:[#allocation8 + $0x18] sm:$0xff]
    %v168 = vld [vmem:[#allocation8 + $0x20] sm:$0xff]
    %v169 = vld [vmem:[#allocation8 + $0x28] sm:$0xff]
    %v170 = vld [vmem:[#allocation8 + $0x30] sm:$0xff]
    %v171 = vld [vmem:[#allocation8 + $0x38] sm:$0xff]
    %v172 = vld [vmem:[#allocation8 + $0x40] sm:$0xff]
    %v173 = vld [vmem:[#allocation8 + $0x48] sm:$0xff]
    %v174 = vld [vmem:[#allocation8 + $0x50] sm:$0xff]
    %v175 = vld [vmem:[#allocation8 + $0x58] sm:$0xff]
    %v176 = vld [vmem:[#allocation8 + $0x60] sm:$0xff]
    %v177 = vld [vmem:[#allocation8 + $0x68] sm:$0xff]
    %v178 = vld [vmem:[#allocation8 + $0x70] sm:$0xff]
    %v179 = vld [vmem:[#allocation8 + $0x78] sm:$0xff]
    %v180 = vld [vmem:[#allocation8 + $0x80] sm:$0xff]
    %v181 = vld [vmem:[#allocation8 + $0x88] sm:$0xff]
    %v182 = vld [vmem:[#allocation8 + $0x90] sm:$0xff]
    %v183 = vld [vmem:[#allocation8 + $0x98] sm:$0xff]
    %v184 = vld [vmem:[#allocation8 + $0xa0] sm:$0xff]
    %v185 = vld [vmem:[#allocation8 + $0xa8] sm:$0xff]
    %v186 = vld [vmem:[#allocation8 + $0xb0] sm:$0xff]
    %v187 = vld [vmem:[#allocation8 + $0xb8] sm:$0xff]
    %v188 = vld [vmem:[#allocation8 + $0xc0] sm:$0xff]
    %v189 = vld [vmem:[#allocation8 + $0xc8] sm:$0xff]
    %v190 = vld [vmem:[#allocation8 + $0xd0] sm:$0xff]
    %v191 = vld [vmem:[#allocation8 + $0xd8] sm:$0xff]
    %v192 = vld [vmem:[#allocation8 + $0xe0] sm:$0xff]
    %v193 = vld [vmem:[#allocation8 + $0xe8] sm:$0xff]
    %v194 = vld [vmem:[#allocation8 + $0xf0] sm:$0xff]
    %v195 = vld [vmem:[#allocation8 + $0xf8] sm:$0xff]
    %v196 = vld [vmem:[%s4] sm:$0xff]
    %v197 = vld [vmem:[%s4 + $0x8] sm:$0xff]
    %v198 = vld [vmem:[%s4 + $0x10] sm:$0xff]
    %v199 = vld [vmem:[%s4 + $0x18] sm:$0xff]
    %v200 = vld [vmem:[%s4 + $0x20] sm:$0xff]
    %v201 = vld [vmem:[%s4 + $0x28] sm:$0xff]
    %v202 = vld [vmem:[%s4 + $0x30] sm:$0xff]
    %v203 = vld [vmem:[%s4 + $0x38] sm:$0xff]
    %v204 = vld [vmem:[#allocation10] sm:$0xff]
    %v205 = vld [vmem:[%s6] sm:$0xff]
    %v206 = vld [vmem:[%s6 + $0x8] sm:$0xff]
    %v207 = vld [vmem:[%s6 + $0x10] sm:$0xff]
    %v208 = vld [vmem:[%s6 + $0x18] sm:$0xff]
    %v209 = vld [vmem:[%s6 + $0x20] sm:$0xff]
    %v210 = vld [vmem:[%s6 + $0x28] sm:$0xff]
    %v211 = vld [vmem:[%s6 + $0x30] sm:$0xff]
    %v212 = vld [vmem:[%s6 + $0x38] sm:$0xff]
    %v213 = vld [vmem:[%s6 + $0x40] sm:$0xff]
    %v214 = vld [vmem:[%s6 + $0x48] sm:$0xff]
    %v215 = vld [vmem:[%s6 + $0x50] sm:$0xff]
    %v216 = vld [vmem:[%s6 + $0x58] sm:$0xff]
    %v217 = vld [vmem:[%s6 + $0x60] sm:$0xff]
    %v218 = vld [vmem:[%s6 + $0x68] sm:$0xff]
    %v219 = vld [vmem:[%s6 + $0x70] sm:$0xff]
    %v220 = vld [vmem:[%s6 + $0x78] sm:$0xff]
    %v221 = vld [vmem:[%s6 + $0x80] sm:$0xff]
    %v222 = vld [vmem:[%s6 + $0x88] sm:$0xff]
    %v223 = vld [vmem:[%s6 + $0x90] sm:$0xff]
    %v224 = vld [vmem:[%s6 + $0x98] sm:$0xff]
    %v225 = vld [vmem:[%s6 + $0xa0] sm:$0xff]
    %v226 = vld [vmem:[%s6 + $0xa8] sm:$0xff]
    %v227 = vld [vmem:[%s6 + $0xb0] sm:$0xff]
    %v228 = vld [vmem:[%s6 + $0xb8] sm:$0xff]
    %v229 = vld [vmem:[%s6 + $0xc0] sm:$0xff]
    %v230 = vld [vmem:[%s6 + $0xc8] sm:$0xff]
    %v231 = vld [vmem:[%s6 + $0xd0] sm:$0xff]
    %v232 = vld [vmem:[%s6 + $0xd8] sm:$0xff]
    %v233 = vld [vmem:[%s6 + $0xe0] sm:$0xff]
    %v234 = vld [vmem:[%s6 + $0xe8] sm:$0xff]
    %v235 = vld [vmem:[%s6 + $0xf0] sm:$0xff]
    %v236 = vld [vmem:[%s6 + $0xf8] sm:$0xff]
    %v237 = vld [vmem:[%s6 + $0x100] sm:$0xff]
    %v238 = vld [vmem:[%s6 + $0x108] sm:$0xff]
    %v239 = vld [vmem:[%s6 + $0x110] sm:$0xff]
    %v240 = vld [vmem:[%s6 + $0x118] sm:$0xff]
    %v241 = vld [vmem:[%s6 + $0x120] sm:$0xff]
    %v242 = vld [vmem:[%s6 + $0x128] sm:$0xff]
    %v243 = vld [vmem:[%s6 + $0x130] sm:$0xff]
    %v244 = vld [vmem:[%s6 + $0x138] sm:$0xff]
    %v245 = vld [vmem:[%s6 + $0x140] sm:$0xff]
    %v246 = vld [vmem:[%s6 + $0x148] sm:$0xff]
    %v247 = vld [vmem:[%s6 + $0x150] sm:$0xff]
    %v248 = vld [vmem:[%s6 + $0x158] sm:$0xff]
    %v249 = vld [vmem:[%s6 + $0x160] sm:$0xff]
    %v250 = vld [vmem:[%s6 + $0x168] sm:$0xff]
    %v251 = vld [vmem:[%s6 + $0x170] sm:$0xff]
    %v252 = vld [vmem:[%s6 + $0x178] sm:$0xff]
    %v253 = vld [vmem:[%s6 + $0x180] sm:$0xff]
    %v254 = vld [vmem:[%s6 + $0x188] sm:$0xff]
    %v255 = vld [vmem:[%s6 + $0x190] sm:$0xff]
    %v256 = vld [vmem:[%s6 + $0x198] sm:$0xff]
    %v257 = vld [vmem:[%s6 + $0x1a0] sm:$0xff]
    %v258 = vld [vmem:[%s6 + $0x1a8] sm:$0xff]
    %v259 = vld [vmem:[%s6 + $0x1b0] sm:$0xff]
    %v260 = vld [vmem:[%s6 + $0x1b8] sm:$0xff]
    %v261 = vld [vmem:[%s6 + $0x1c0] sm:$0xff]
    %v262 = vld [vmem:[%s6 + $0x1c8] sm:$0xff]
    %v263 = vld [vmem:[%s6 + $0x1d0] sm:$0xff]
    %v264 = vld [vmem:[%s6 + $0x1d8] sm:$0xff]
    %v265 = vld [vmem:[%s6 + $0x1e0] sm:$0xff]
    %v266 = vld [vmem:[%s6 + $0x1e8] sm:$0xff]
    %v267 = vld [vmem:[%s6 + $0x1f0] sm:$0xff]
    %v268 = vld [vmem:[%s6 + $0x1f8] sm:$0xff]
    %v269 = vld [vmem:[%s6 + $0x200] sm:$0xff]
    %v270 = vld [vmem:[%s6 + $0x208] sm:$0xff]
    %v271 = vld [vmem:[%s6 + $0x210] sm:$0xff]
    %v272 = vld [vmem:[%s6 + $0x218] sm:$0xff]
    %v273 = vld [vmem:[%s6 + $0x220] sm:$0xff]
    %v274 = vld [vmem:[%s6 + $0x228] sm:$0xff]
    %v275 = vld [vmem:[%s6 + $0x230] sm:$0xff]
    %v276 = vld [vmem:[%s6 + $0x238] sm:$0xff]
    %v277 = vld [vmem:[%s6 + $0x240] sm:$0xff]
    %v278 = vld [vmem:[%s6 + $0x248] sm:$0xff]
    %v279 = vld [vmem:[%s6 + $0x250] sm:$0xff]
    %v280 = vld [vmem:[%s6 + $0x258] sm:$0xff]
    %v281 = vld [vmem:[%s6 + $0x260] sm:$0xff]
    %v282 = vld [vmem:[%s6 + $0x268] sm:$0xff]
    %v283 = vld [vmem:[%s6 + $0x270] sm:$0xff]
    %v284 = vld [vmem:[%s6 + $0x278] sm:$0xff]
    %v285 = vld [vmem:[%s6 + $0x280] sm:$0xff]
    %v286 = vld [vmem:[%s6 + $0x288] sm:$0xff]
    %v287 = vld [vmem:[%s6 + $0x290] sm:$0xff]
    %v288 = vld [vmem:[%s6 + $0x298] sm:$0xff]
    %v289 = vld [vmem:[%s6 + $0x2a0] sm:$0xff]
    %v290 = vld [vmem:[%s6 + $0x2a8] sm:$0xff]
    %v291 = vld [vmem:[%s6 + $0x2b0] sm:$0xff]
    %v292 = vld [vmem:[%s6 + $0x2b8] sm:$0xff]
    %v293 = vld [vmem:[%s6 + $0x2c0] sm:$0xff]
    %v294 = vld [vmem:[%s6 + $0x2c8] sm:$0xff]
    %v295 = vld [vmem:[%s6 + $0x2d0] sm:$0xff]
    %v296 = vld [vmem:[%s6 + $0x2d8] sm:$0xff]
    %v297 = vld [vmem:[%s6 + $0x2e0] sm:$0xff]
    %v298 = vld [vmem:[%s6 + $0x2e8] sm:$0xff]
    %v299 = vld [vmem:[%s6 + $0x2f0] sm:$0xff]
    %v300 = vld [vmem:[%s6 + $0x2f8] sm:$0xff]
    %v301 = vld [vmem:[%s6 + $0x300] sm:$0xff]
    %v302 = vld [vmem:[%s6 + $0x308] sm:$0xff]
    %v303 = vld [vmem:[%s6 + $0x310] sm:$0xff]
    %v304 = vld [vmem:[%s6 + $0x318] sm:$0xff]
    %v305 = vld [vmem:[%s6 + $0x320] sm:$0xff]
    %v306 = vld [vmem:[%s6 + $0x328] sm:$0xff]
    %v307 = vld [vmem:[%s6 + $0x330] sm:$0xff]
    %v308 = vld [vmem:[%s6 + $0x338] sm:$0xff]
    %v309 = vld [vmem:[%s6 + $0x340] sm:$0xff]
    %v310 = vld [vmem:[%s6 + $0x348] sm:$0xff]
    %v311 = vld [vmem:[%s6 + $0x350] sm:$0xff]
    %v312 = vld [vmem:[%s6 + $0x358] sm:$0xff]
    %v313 = vld [vmem:[%s6 + $0x360] sm:$0xff]
    %v314 = vld [vmem:[%s6 + $0x368] sm:$0xff]
    %v315 = vld [vmem:[%s6 + $0x370] sm:$0xff]
    %v316 = vld [vmem:[%s6 + $0x378] sm:$0xff]
    %v317 = vld [vmem:[%s6 + $0x380] sm:$0xff]
    %v318 = vld [vmem:[%s6 + $0x388] sm:$0xff]
    %v319 = vld [vmem:[%s6 + $0x390] sm:$0xff]
    %v320 = vld [vmem:[%s6 + $0x398] sm:$0xff]
    %v321 = vld [vmem:[%s6 + $0x3a0] sm:$0xff]
    %v322 = vld [vmem:[%s6 + $0x3a8] sm:$0xff]
    %v323 = vld [vmem:[%s6 + $0x3b0] sm:$0xff]
    %v324 = vld [vmem:[%s6 + $0x3b8] sm:$0xff]
    %v325 = vld [vmem:[%s6 + $0x3c0] sm:$0xff]
    %v326 = vld [vmem:[%s6 + $0x3c8] sm:$0xff]
    %v327 = vld [vmem:[%s6 + $0x3d0] sm:$0xff]
    %v328 = vld [vmem:[%s6 + $0x3d8] sm:$0xff]
    %v329 = vld [vmem:[%s6 + $0x3e0] sm:$0xff]
    %v330 = vld [vmem:[%s6 + $0x3e8] sm:$0xff]
    %v331 = vld [vmem:[%s6 + $0x3f0] sm:$0xff]
    %v332 = vld [vmem:[%s6 + $0x3f8] sm:$0xff]
    %v333 = vld [vmem:[%s6 + $0x400] sm:$0xff]
    %v334 = vld [vmem:[%s6 + $0x408] sm:$0xff]
    %v335 = vld [vmem:[%s6 + $0x410] sm:$0xff]
    %v336 = vld [vmem:[%s6 + $0x418] sm:$0xff]
    %v337 = vld [vmem:[%s6 + $0x420] sm:$0xff]
    %v338 = vld [vmem:[%s6 + $0x428] sm:$0xff]
    %v339 = vld [vmem:[%s6 + $0x430] sm:$0xff]
    %v340 = vld [vmem:[%s6 + $0x438] sm:$0xff]
    %v341 = vld [vmem:[%s6 + $0x440] sm:$0xff]
    %v342 = vld [vmem:[%s6 + $0x448] sm:$0xff]
    %v343 = vld [vmem:[%s6 + $0x450] sm:$0xff]
    %v344 = vld [vmem:[%s6 + $0x458] sm:$0xff]
    %v345 = vld [vmem:[%s6 + $0x460] sm:$0xff]
    %v346 = vld [vmem:[%s6 + $0x468] sm:$0xff]
    %v347 = vld [vmem:[%s6 + $0x470] sm:$0xff]
    %v348 = vld [vmem:[%s6 + $0x478] sm:$0xff]
    %v349 = vld [vmem:[%s6 + $0x480] sm:$0xff]
    %v350 = vld [vmem:[%s6 + $0x488] sm:$0xff]
    %v351 = vld [vmem:[%s6 + $0x490] sm:$0xff]
    %v352 = vld [vmem:[%s6 + $0x498] sm:$0xff]
    %v353 = vld [vmem:[%s6 + $0x4a0] sm:$0xff]
    %v354 = vld [vmem:[%s6 + $0x4a8] sm:$0xff]
    %v355 = vld [vmem:[%s6 + $0x4b0] sm:$0xff]
    %v356 = vld [vmem:[%s6 + $0x4b8] sm:$0xff]
    %v357 = vld [vmem:[%s6 + $0x4c0] sm:$0xff]
    %v358 = vld [vmem:[%s6 + $0x4c8] sm:$0xff]
    %v359 = vld [vmem:[%s6 + $0x4d0] sm:$0xff]
    %v360 = vld [vmem:[%s6 + $0x4d8] sm:$0xff]
    %v361 = vld [vmem:[%s6 + $0x4e0] sm:$0xff]
    %v362 = vld [vmem:[%s6 + $0x4e8] sm:$0xff]
    %v363 = vld [vmem:[%s6 + $0x4f0] sm:$0xff]
    %v364 = vld [vmem:[%s6 + $0x4f8] sm:$0xff]
    %v365 = vld [vmem:[%s6 + $0x500] sm:$0xff]
    %v366 = vld [vmem:[%s6 + $0x508] sm:$0xff]
    %v367 = vld [vmem:[%s6 + $0x510] sm:$0xff]
    %v368 = vld [vmem:[%s6 + $0x518] sm:$0xff]
    %v369 = vld [vmem:[%s6 + $0x520] sm:$0xff]
    %v370 = vld [vmem:[%s6 + $0x528] sm:$0xff]
    %v371 = vld [vmem:[%s6 + $0x530] sm:$0xff]
    %v372 = vld [vmem:[%s6 + $0x538] sm:$0xff]
    %v373 = vld [vmem:[%s6 + $0x540] sm:$0xff]
    %v374 = vld [vmem:[%s6 + $0x548] sm:$0xff]
    %v375 = vld [vmem:[%s6 + $0x550] sm:$0xff]
    %v376 = vld [vmem:[%s6 + $0x558] sm:$0xff]
    %v377 = vld [vmem:[%s6 + $0x560] sm:$0xff]
    %v378 = vld [vmem:[%s6 + $0x568] sm:$0xff]
    %v379 = vld [vmem:[%s6 + $0x570] sm:$0xff]
    %v380 = vld [vmem:[%s6 + $0x578] sm:$0xff]
    %v381 = vld [vmem:[%s6 + $0x580] sm:$0xff]
    %v382 = vld [vmem:[%s6 + $0x588] sm:$0xff]
    %v383 = vld [vmem:[%s6 + $0x590] sm:$0xff]
    %v384 = vld [vmem:[%s6 + $0x598] sm:$0xff]
    %v385 = vld [vmem:[%s6 + $0x5a0] sm:$0xff]
    %v386 = vld [vmem:[%s6 + $0x5a8] sm:$0xff]
    %v387 = vld [vmem:[%s6 + $0x5b0] sm:$0xff]
    %v388 = vld [vmem:[%s6 + $0x5b8] sm:$0xff]
    %v389 = vld [vmem:[%s6 + $0x5c0] sm:$0xff]
    %v390 = vld [vmem:[%s6 + $0x5c8] sm:$0xff]
    %v391 = vld [vmem:[%s6 + $0x5d0] sm:$0xff]
    %v392 = vld [vmem:[%s6 + $0x5d8] sm:$0xff]
    %v393 = vld [vmem:[%s6 + $0x5e0] sm:$0xff]
    %v394 = vld [vmem:[%s6 + $0x5e8] sm:$0xff]
    %v395 = vld [vmem:[%s6 + $0x5f0] sm:$0xff]
    %v396 = vld [vmem:[%s6 + $0x5f8] sm:$0xff]
    %v397 = vld [vmem:[%s6 + $0x600] sm:$0xff]
    %v398 = vld [vmem:[%s6 + $0x608] sm:$0xff]
    %v399 = vld [vmem:[%s6 + $0x610] sm:$0xff]
    %v400 = vld [vmem:[%s6 + $0x618] sm:$0xff]
    %v401 = vld [vmem:[%s6 + $0x620] sm:$0xff]
    %v402 = vld [vmem:[%s6 + $0x628] sm:$0xff]
    %v403 = vld [vmem:[%s6 + $0x630] sm:$0xff]
    %v404 = vld [vmem:[%s6 + $0x638] sm:$0xff]
    %v405 = vld [vmem:[%s6 + $0x640] sm:$0xff]
    %v406 = vld [vmem:[%s6 + $0x648] sm:$0xff]
    %v407 = vld [vmem:[%s6 + $0x650] sm:$0xff]
    %v408 = vld [vmem:[%s6 + $0x658] sm:$0xff]
    %v409 = vld [vmem:[%s6 + $0x660] sm:$0xff]
    %v410 = vld [vmem:[%s6 + $0x668] sm:$0xff]
    %v411 = vld [vmem:[%s6 + $0x670] sm:$0xff]
    %v412 = vld [vmem:[%s6 + $0x678] sm:$0xff]
    %v413 = vld [vmem:[%s6 + $0x680] sm:$0xff]
    %v414 = vld [vmem:[%s6 + $0x688] sm:$0xff]
    %v415 = vld [vmem:[%s6 + $0x690] sm:$0xff]
    %v416 = vld [vmem:[%s6 + $0x698] sm:$0xff]
    %v417 = vld [vmem:[%s6 + $0x6a0] sm:$0xff]
    %v418 = vld [vmem:[%s6 + $0x6a8] sm:$0xff]
    %v419 = vld [vmem:[%s6 + $0x6b0] sm:$0xff]
    %v420 = vld [vmem:[%s6 + $0x6b8] sm:$0xff]
    %v421 = vld [vmem:[%s6 + $0x6c0] sm:$0xff]
    %v422 = vld [vmem:[%s6 + $0x6c8] sm:$0xff]
    %v423 = vld [vmem:[%s6 + $0x6d0] sm:$0xff]
    %v424 = vld [vmem:[%s6 + $0x6d8] sm:$0xff]
    %v425 = vld [vmem:[%s6 + $0x6e0] sm:$0xff]
    %v426 = vld [vmem:[%s6 + $0x6e8] sm:$0xff]
    %v427 = vld [vmem:[%s6 + $0x6f0] sm:$0xff]
    %v428 = vld [vmem:[%s6 + $0x6f8] sm:$0xff]
    %v429 = vld [vmem:[%s6 + $0x700] sm:$0xff]
    %v430 = vld [vmem:[%s6 + $0x708] sm:$0xff]
    %v431 = vld [vmem:[%s6 + $0x710] sm:$0xff]
    %v432 = vld [vmem:[%s6 + $0x718] sm:$0xff]
    %v433 = vld [vmem:[%s6 + $0x720] sm:$0xff]
    %v434 = vld [vmem:[%s6 + $0x728] sm:$0xff]
    %v435 = vld [vmem:[%s6 + $0x730] sm:$0xff]
    %v436 = vld [vmem:[%s6 + $0x738] sm:$0xff]
    %v437 = vld [vmem:[%s6 + $0x740] sm:$0xff]
    %v438 = vld [vmem:[%s6 + $0x748] sm:$0xff]
    %v439 = vld [vmem:[%s6 + $0x750] sm:$0xff]
    %v440 = vld [vmem:[%s6 + $0x758] sm:$0xff]
    %v441 = vld [vmem:[%s6 + $0x760] sm:$0xff]
    %v442 = vld [vmem:[%s6 + $0x768] sm:$0xff]
    %v443 = vld [vmem:[%s6 + $0x770] sm:$0xff]
    %v444 = vld [vmem:[%s6 + $0x778] sm:$0xff]
    %v445 = vld [vmem:[%s6 + $0x780] sm:$0xff]
    %v446 = vld [vmem:[%s6 + $0x788] sm:$0xff]
    %v447 = vld [vmem:[%s6 + $0x790] sm:$0xff]
    %v448 = vld [vmem:[%s6 + $0x798] sm:$0xff]
    %v449 = vld [vmem:[%s6 + $0x7a0] sm:$0xff]
    %v450 = vld [vmem:[%s6 + $0x7a8] sm:$0xff]
    %v451 = vld [vmem:[%s6 + $0x7b0] sm:$0xff]
    %v452 = vld [vmem:[%s6 + $0x7b8] sm:$0xff]
    %v453 = vld [vmem:[%s6 + $0x7c0] sm:$0xff]
    %v454 = vld [vmem:[%s6 + $0x7c8] sm:$0xff]
    %v455 = vld [vmem:[%s6 + $0x7d0] sm:$0xff]
    %v456 = vld [vmem:[%s6 + $0x7d8] sm:$0xff]
    %v457 = vld [vmem:[%s6 + $0x7e0] sm:$0xff]
    %v458 = vld [vmem:[%s6 + $0x7e8] sm:$0xff]
    %v459 = vld [vmem:[%s6 + $0x7f0] sm:$0xff]
    %v460 = vld [vmem:[%s6 + $0x7f8] sm:$0xff]
    %v461 = vld [vmem:[#allocation11] sm:$0x1]
    %v463 = vlaneseq
    %v464 = vshrl.u32 %v463, 7
    %v465 = vsub.s32 0, %v464
    %v466 = vrot.slane %v461, %v465
    %v468 = vld [vmem:[#allocation13] sm:$0x1]
    %v470 = vlaneseq
    %v471 = vshrl.u32 %v470, 7
    %v472 = vsub.s32 0, %v471
    %v473 = vrot.slane %v468, %v472
    %v475 = vld [vmem:[#allocation14] sm:$0x1]
    %v477 = vlaneseq
    %v478 = vshrl.u32 %v477, 7
    %v479 = vsub.s32 0, %v478
    %v480 = vrot.slane %v475, %v479
    %v482 = vld [vmem:[%s10] sm:$0xff]
    %v483 = vld [vmem:[#allocation3] sm:$0xff]
    %vm484 = vcmask 261120
    %v486 = vsel %vm484, 0.0, 0
    %488 = vmatprep.subr.mxu0 0.0
    %489 = vmatpush1.msra.mxu0 %v160
    %490 = vmatprep.subr.mxu0 0.0
    %491 = vmatpush1.msra.mxu0 %v161
    %492 = vmatprep.subr.mxu0 0.0
    %493 = vmatpush1.msra.mxu0 %v162
    %494 = vmatprep.subr.mxu0 0.0
    %495 = vmatpush1.msra.mxu0 %v163
    %496 = vmatprep.subr.mxu0 0.0
    %497 = vmatpush1.msra.mxu0 0.0
    %498 = vmatprep.subr.mxu0 0.0
    %499 = vmatpush1.msra.mxu0 0.0
    %500 = vmatprep.subr.mxu0 0.0
    %501 = vmatpush1.msra.mxu0 0.0
    %502 = vmatprep.subr.mxu0 0.0
    %503 = vmatpush1.msra.mxu0 0.0
    %504 = vmatprep.subr.mxu0 0.0
    %505 = vmatpush1.msra.mxu0 0.0
    %506 = vmatprep.subr.mxu0 0.0
    %507 = vmatpush1.msra.mxu0 0.0
    %508 = vmatprep.subr.mxu0 0.0
    %509 = vmatpush1.msra.mxu0 0.0
    %510 = vmatprep.subr.mxu0 0.0
    %511 = vmatpush1.msra.mxu0 0.0
    %512 = vmatprep.subr.mxu0 0.0
    %513 = vmatpush1.msra.mxu0 0.0
    %514 = vmatprep.subr.mxu0 0.0
    %515 = vmatpush1.msra.mxu0 0.0
    %516 = vmatprep.subr.mxu0 0.0
    %517 = vmatpush1.msra.mxu0 0.0
    %518 = vmatprep.subr.mxu0 0.0
    %519 = vmatpush1.msra.mxu0 0.0
    %520 = vmatprep.subr.mxu0 0.0
    %521 = vmatpush1.msra.mxu0 0.0
    %522 = vmatprep.subr.mxu0 0.0
    %523 = vmatpush1.msra.mxu0 0.0
    %524 = vmatprep.subr.mxu0 0.0
    %525 = vmatpush1.msra.mxu0 0.0
    %526 = vmatprep.subr.mxu0 0.0
    %527 = vmatpush1.msra.mxu0 0.0
    %528 = vmatprep.subr.mxu0 0.0
    %529 = vmatpush1.msra.mxu0 0.0
    %530 = vmatprep.subr.mxu0 0.0
    %531 = vmatpush1.msra.mxu0 0.0
    %532 = vmatprep.subr.mxu0 0.0
    %533 = vmatpush1.msra.mxu0 0.0
    %534 = vmatprep.subr.mxu0 0.0
    %535 = vmatpush1.msra.mxu0 0.0
    %536 = vmatprep.subr.mxu0 0.0
    %537 = vmatpush1.msra.mxu0 0.0
    %538 = vmatprep.subr.mxu0 0.0
    %539 = vmatpush1.msra.mxu0 0.0
    %540 = vmatprep.subr.mxu0 0.0
    %541 = vmatpush1.msra.mxu0 0.0
    %542 = vmatprep.subr.mxu0 0.0
    %543 = vmatpush1.msra.mxu0 0.0
    %544 = vmatprep.subr.mxu0 0.0
    %545 = vmatpush1.msra.mxu0 0.0
    %546 = vmatprep.subr.mxu0 0.0
    %547 = vmatpush1.msra.mxu0 0.0
    %548 = vmatprep.subr.mxu0 0.0
    %549 = vmatpush1.msra.mxu0 0.0
    %550 = vmatprep.subr.mxu0 0.0
    %551 = vmatpush1.msra.mxu0 0.0
    %552 = vmatprep.mubr.f32.mxu0 0.0
    %553 = vmatmul.mubr.f32.gmra.mrb[0].mxu0 %v486
    %v554 = vpop.f32.mrb[0].mxu0
    %v555 = vadd.f32 0.0, %v554
    %v556 = vpop.f32.mrb[0].mxu0
    %557 = vdwg.mxu0
    %v558 = vadd.f32 %v483, %v555
    %v559 = vxor.u32 %v558, 2147483648
    %v560 = vmul.f32 %v559, 1.442695
    %v561 = vpow.pop %v560
    %v562 = vadd.f32 %v561, 1.0
    %v563 = vrcp.pop %v562
    %v564 = vmul.f32 1.0, %v563
    %v565 = vtanh.pop %v558
    %v566 = vmul.f32 %v564, 0.0
    %568 = vrot.lane.b32.xlu0 %v565, 32
    %v569 = vpop.permute.xlu0 %568
    %v571 = vmul.f32 %v564, %v569
    %573 = vrot.lane.b32.xlu0 %v571, 32
    %v574 = vpop.permute.xlu0 %573
    %v576 = vadd.f32 %v566, %v574
    %v577 = vtanh.pop %v576
    %579 = vrot.lane.b32.xlu0 %v577, 32
    %v580 = vpop.permute.xlu0 %579
    %v582 = vmul.f32 %v564, %v580
    loop: start=1, step=1, limit=3
    $region94: #{tpu_custom_call.1} parent=1 // loop_pre_header
      _
    $region95: #{tpu_custom_call.1} parent=1 // loop_header
      %s584 = sphi 1, %s588
      %p585 = scmp.ge.s32.totalorder %s584, 3
      %v589 = vphi %v582, %v3537
      %v590 = vphi %v576, %v3531
    $region96: #{tpu_custom_call.1} parent=1 // loop_header_branch
      %587 = sbr.rel (%p585) target = $region100
    $region97: #{tpu_custom_call.1} parent=1 // loop_body
      %v591 = vpack.c.bf16 %v589, %v589
      %593 = vrot.lane.b32.xlu0 %v591, 64
      %v594 = vpop.permute.xlu0 %593
      %v627 = vunpack.c.l.b16 %v164
      %v628 = vunpack.c.h.b16 %v164
      %v629 = vunpack.c.l.b16 %v165
      %v630 = vunpack.c.h.b16 %v165
      %v631 = vunpack.c.l.b16 %v166
      %v632 = vunpack.c.h.b16 %v166
      %v633 = vunpack.c.l.b16 %v167
      %v634 = vunpack.c.h.b16 %v167
      %v635 = vunpack.c.l.b16 %v168
      %v636 = vunpack.c.h.b16 %v168
      %v637 = vunpack.c.l.b16 %v169
      %v638 = vunpack.c.h.b16 %v169
      %v639 = vunpack.c.l.b16 %v170
      %v640 = vunpack.c.h.b16 %v170
      %v641 = vunpack.c.l.b16 %v171
      %v642 = vunpack.c.h.b16 %v171
      %v643 = vunpack.c.l.b16 %v172
      %v644 = vunpack.c.h.b16 %v172
      %v645 = vunpack.c.l.b16 %v173
      %v646 = vunpack.c.h.b16 %v173
      %v647 = vunpack.c.l.b16 %v174
      %v648 = vunpack.c.h.b16 %v174
      %v649 = vunpack.c.l.b16 %v175
      %v650 = vunpack.c.h.b16 %v175
      %v651 = vunpack.c.l.b16 %v176
      %v652 = vunpack.c.h.b16 %v176
      %v653 = vunpack.c.l.b16 %v177
      %v654 = vunpack.c.h.b16 %v177
      %v655 = vunpack.c.l.b16 %v178
      %v656 = vunpack.c.h.b16 %v178
      %v657 = vunpack.c.l.b16 %v179
      %v658 = vunpack.c.h.b16 %v179
      %v659 = vunpack.c.l.b16 %v180
      %v660 = vunpack.c.h.b16 %v180
      %v661 = vunpack.c.l.b16 %v181
      %v662 = vunpack.c.h.b16 %v181
      %v663 = vunpack.c.l.b16 %v182
      %v664 = vunpack.c.h.b16 %v182
      %v665 = vunpack.c.l.b16 %v183
      %v666 = vunpack.c.h.b16 %v183
      %v667 = vunpack.c.l.b16 %v184
      %v668 = vunpack.c.h.b16 %v184
      %v669 = vunpack.c.l.b16 %v185
      %v670 = vunpack.c.h.b16 %v185
      %v671 = vunpack.c.l.b16 %v186
      %v672 = vunpack.c.h.b16 %v186
      %v673 = vunpack.c.l.b16 %v187
      %v674 = vunpack.c.h.b16 %v187
      %v675 = vunpack.c.l.b16 %v188
      %v676 = vunpack.c.h.b16 %v188
      %v677 = vunpack.c.l.b16 %v189
      %v678 = vunpack.c.h.b16 %v189
      %v679 = vunpack.c.l.b16 %v190
      %v680 = vunpack.c.h.b16 %v190
      %v681 = vunpack.c.l.b16 %v191
      %v682 = vunpack.c.h.b16 %v191
      %v683 = vunpack.c.l.b16 %v192
      %v684 = vunpack.c.h.b16 %v192
      %v685 = vunpack.c.l.b16 %v193
      %v686 = vunpack.c.h.b16 %v193
      %v687 = vunpack.c.l.b16 %v194
      %v688 = vunpack.c.h.b16 %v194
      %v689 = vunpack.c.l.b16 %v195
      %v690 = vunpack.c.h.b16 %v195
      %v691 = vpack.c.b16 %v643, %v627
      %v692 = vpack.c.b16 %v644, %v628
      %v693 = vpack.c.b16 %v645, %v629
      %v694 = vpack.c.b16 %v646, %v630
      %v695 = vpack.c.b16 %v647, %v631
      %v696 = vpack.c.b16 %v648, %v632
      %v697 = vpack.c.b16 %v649, %v633
      %v698 = vpack.c.b16 %v650, %v634
      %v699 = vpack.c.b16 %v651, %v635
      %v700 = vpack.c.b16 %v652, %v636
      %v701 = vpack.c.b16 %v653, %v637
      %v702 = vpack.c.b16 %v654, %v638
      %v703 = vpack.c.b16 %v655, %v639
      %v704 = vpack.c.b16 %v656, %v640
      %v705 = vpack.c.b16 %v657, %v641
      %v706 = vpack.c.b16 %v658, %v642
      %v707 = vpack.c.b16 %v675, %v659
      %v708 = vpack.c.b16 %v676, %v660
      %v709 = vpack.c.b16 %v677, %v661
      %v710 = vpack.c.b16 %v678, %v662
      %v711 = vpack.c.b16 %v679, %v663
      %v712 = vpack.c.b16 %v680, %v664
      %v713 = vpack.c.b16 %v681, %v665
      %v714 = vpack.c.b16 %v682, %v666
      %v715 = vpack.c.b16 %v683, %v667
      %v716 = vpack.c.b16 %v684, %v668
      %v717 = vpack.c.b16 %v685, %v669
      %v718 = vpack.c.b16 %v686, %v670
      %v719 = vpack.c.b16 %v687, %v671
      %v720 = vpack.c.b16 %v688, %v672
      %v721 = vpack.c.b16 %v689, %v673
      %v722 = vpack.c.b16 %v690, %v674
      %v756 = vsel %vm484, %v594, 0
      %758 = vmatprep.subr.bf16.mxu0 %v692
      %759 = vmatpush1.bf16.msra.mxu0 %v691
      %760 = vmatprep.subr.bf16.mxu0 %v708
      %761 = vmatpush1.bf16.msra.mxu0 %v707
      %762 = vmatprep.subr.bf16.mxu0 0
      %763 = vmatpush1.bf16.msra.mxu0 0
      %764 = vmatprep.subr.bf16.mxu0 0
      %765 = vmatpush1.bf16.msra.mxu0 0
      %766 = vmatprep.subr.bf16.mxu0 0
      %767 = vmatpush1.bf16.msra.mxu0 0
      %768 = vmatprep.subr.bf16.mxu0 0
      %769 = vmatpush1.bf16.msra.mxu0 0
      %770 = vmatprep.subr.bf16.mxu0 0
      %771 = vmatpush1.bf16.msra.mxu0 0
      %772 = vmatprep.subr.bf16.mxu0 0
      %773 = vmatpush1.bf16.msra.mxu0 0
      %774 = vmatprep.subr.bf16.mxu0 0
      %775 = vmatpush1.bf16.msra.mxu0 0
      %776 = vmatprep.subr.bf16.mxu0 0
      %777 = vmatpush1.bf16.msra.mxu0 0
      %778 = vmatprep.subr.bf16.mxu0 0
      %779 = vmatpush1.bf16.msra.mxu0 0
      %780 = vmatprep.subr.bf16.mxu0 0
      %781 = vmatpush1.bf16.msra.mxu0 0
      %782 = vmatprep.subr.bf16.mxu0 0
      %783 = vmatpush1.bf16.msra.mxu0 0
      %784 = vmatprep.subr.bf16.mxu0 0
      %785 = vmatpush1.bf16.msra.mxu0 0
      %786 = vmatprep.subr.bf16.mxu0 0
      %787 = vmatpush1.bf16.msra.mxu0 0
      %788 = vmatprep.subr.bf16.mxu0 0
      %789 = vmatpush1.bf16.msra.mxu0 0
      %790 = vmatprep.mubr.bf16.mxu0 0
      %791 = vmatmul.mubr.bf16.gmra.mrb[0].mxu0 %v756
      %v792 = vpop.f32.mrb[0].mxu0
      %v793 = vadd.f32 0.0, %v792
      %v794 = vpop.f32.mrb[0].mxu0
      %v795 = vadd.f32 0.0, %v794
      %v796 = vpop.f32.mrb[0].mxu0
      %v797 = vpop.f32.mrb[0].mxu0
      %798 = vdwg.mxu0
      %799 = vmatprep.subr.bf16.mxu0 %v694
      %800 = vmatpush1.bf16.msra.mxu0 %v693
      %801 = vmatprep.subr.bf16.mxu0 %v710
      %802 = vmatpush1.bf16.msra.mxu0 %v709
      %803 = vmatprep.subr.bf16.mxu0 0
      %804 = vmatpush1.bf16.msra.mxu0 0
      %805 = vmatprep.subr.bf16.mxu0 0
      %806 = vmatpush1.bf16.msra.mxu0 0
      %807 = vmatprep.subr.bf16.mxu0 0
      %808 = vmatpush1.bf16.msra.mxu0 0
      %809 = vmatprep.subr.bf16.mxu0 0
      %810 = vmatpush1.bf16.msra.mxu0 0
      %811 = vmatprep.subr.bf16.mxu0 0
      %812 = vmatpush1.bf16.msra.mxu0 0
      %813 = vmatprep.subr.bf16.mxu0 0
      %814 = vmatpush1.bf16.msra.mxu0 0
      %815 = vmatprep.subr.bf16.mxu0 0
      %816 = vmatpush1.bf16.msra.mxu0 0
      %817 = vmatprep.subr.bf16.mxu0 0
      %818 = vmatpush1.bf16.msra.mxu0 0
      %819 = vmatprep.subr.bf16.mxu0 0
      %820 = vmatpush1.bf16.msra.mxu0 0
      %821 = vmatprep.subr.bf16.mxu0 0
      %822 = vmatpush1.bf16.msra.mxu0 0
      %823 = vmatprep.subr.bf16.mxu0 0
      %824 = vmatpush1.bf16.msra.mxu0 0
      %825 = vmatprep.subr.bf16.mxu0 0
      %826 = vmatpush1.bf16.msra.mxu0 0
      %827 = vmatprep.subr.bf16.mxu0 0
      %828 = vmatpush1.bf16.msra.mxu0 0
      %829 = vmatprep.subr.bf16.mxu0 0
      %830 = vmatpush1.bf16.msra.mxu0 0
      %831 = vmatprep.mubr.bf16.mxu0 0
      %832 = vmatmul.mubr.bf16.gmra.mrb[0].mxu0 %v756
      %v833 = vpop.f32.mrb[0].mxu0
      %v834 = vadd.f32 0.0, %v833
      %v835 = vpop.f32.mrb[0].mxu0
      %v836 = vadd.f32 0.0, %v835
      %v837 = vpop.f32.mrb[0].mxu0
      %v838 = vpop.f32.mrb[0].mxu0
      %839 = vdwg.mxu0
      %840 = vmatprep.subr.bf16.mxu0 %v696
      %841 = vmatpush1.bf16.msra.mxu0 %v695
      %842 = vmatprep.subr.bf16.mxu0 %v712
      %843 = vmatpush1.bf16.msra.mxu0 %v711
      %844 = vmatprep.subr.bf16.mxu0 0
      %845 = vmatpush1.bf16.msra.mxu0 0
      %846 = vmatprep.subr.bf16.mxu0 0
      %847 = vmatpush1.bf16.msra.mxu0 0
      %848 = vmatprep.subr.bf16.mxu0 0
      %849 = vmatpush1.bf16.msra.mxu0 0
      %850 = vmatprep.subr.bf16.mxu0 0
      %851 = vmatpush1.bf16.msra.mxu0 0
      %852 = vmatprep.subr.bf16.mxu0 0
      %853 = vmatpush1.bf16.msra.mxu0 0
      %854 = vmatprep.subr.bf16.mxu0 0
      %855 = vmatpush1.bf16.msra.mxu0 0
      %856 = vmatprep.subr.bf16.mxu0 0
      %857 = vmatpush1.bf16.msra.mxu0 0
      %858 = vmatprep.subr.bf16.mxu0 0
      %859 = vmatpush1.bf16.msra.mxu0 0
      %860 = vmatprep.subr.bf16.mxu0 0
      %861 = vmatpush1.bf16.msra.mxu0 0
      %862 = vmatprep.subr.bf16.mxu0 0
      %863 = vmatpush1.bf16.msra.mxu0 0
      %864 = vmatprep.subr.bf16.mxu0 0
      %865 = vmatpush1.bf16.msra.mxu0 0
      %866 = vmatprep.subr.bf16.mxu0 0
      %867 = vmatpush1.bf16.msra.mxu0 0
      %868 = vmatprep.subr.bf16.mxu0 0
      %869 = vmatpush1.bf16.msra.mxu0 0
      %870 = vmatprep.subr.bf16.mxu0 0
      %871 = vmatpush1.bf16.msra.mxu0 0
      %872 = vmatprep.mubr.bf16.mxu0 0
      %873 = vmatmul.mubr.bf16.gmra.mrb[0].mxu0 %v756
      %v874 = vpop.f32.mrb[0].mxu0
      %v875 = vadd.f32 0.0, %v874
      %v876 = vpop.f32.mrb[0].mxu0
      %v877 = vadd.f32 0.0, %v876
      %v878 = vpop.f32.mrb[0].mxu0
      %v879 = vpop.f32.mrb[0].mxu0
      %880 = vdwg.mxu0
      %881 = vmatprep.subr.bf16.mxu0 %v698
      %882 = vmatpush1.bf16.msra.mxu0 %v697
      %883 = vmatprep.subr.bf16.mxu0 %v714
      %884 = vmatpush1.bf16.msra.mxu0 %v713
      %885 = vmatprep.subr.bf16.mxu0 0
      %886 = vmatpush1.bf16.msra.mxu0 0
      %887 = vmatprep.subr.bf16.mxu0 0
      %888 = vmatpush1.bf16.msra.mxu0 0
      %889 = vmatprep.subr.bf16.mxu0 0
      %890 = vmatpush1.bf16.msra.mxu0 0
      %891 = vmatprep.subr.bf16.mxu0 0
      %892 = vmatpush1.bf16.msra.mxu0 0
      %893 = vmatprep.subr.bf16.mxu0 0
      %894 = vmatpush1.bf16.msra.mxu0 0
      %895 = vmatprep.subr.bf16.mxu0 0
      %896 = vmatpush1.bf16.msra.mxu0 0
      %897 = vmatprep.subr.bf16.mxu0 0
      %898 = vmatpush1.bf16.msra.mxu0 0
      %899 = vmatprep.subr.bf16.mxu0 0
      %900 = vmatpush1.bf16.msra.mxu0 0
      %901 = vmatprep.subr.bf16.mxu0 0
      %902 = vmatpush1.bf16.msra.mxu0 0
      %903 = vmatprep.subr.bf16.mxu0 0
      %904 = vmatpush1.bf16.msra.mxu0 0
      %905 = vmatprep.subr.bf16.mxu0 0
      %906 = vmatpush1.bf16.msra.mxu0 0
      %907 = vmatprep.subr.bf16.mxu0 0
      %908 = vmatpush1.bf16.msra.mxu0 0
      %909 = vmatprep.subr.bf16.mxu0 0
      %910 = vmatpush1.bf16.msra.mxu0 0
      %911 = vmatprep.subr.bf16.mxu0 0
      %912 = vmatpush1.bf16.msra.mxu0 0
      %913 = vmatprep.mubr.bf16.mxu0 0
      %914 = vmatmul.mubr.bf16.gmra.mrb[0].mxu0 %v756
      %v915 = vpop.f32.mrb[0].mxu0
      %v916 = vadd.f32 0.0, %v915
      %v917 = vpop.f32.mrb[0].mxu0
      %v918 = vadd.f32 0.0, %v917
      %v919 = vpop.f32.mrb[0].mxu0
      %v920 = vpop.f32.mrb[0].mxu0
      %921 = vdwg.mxu0
      %922 = vmatprep.subr.bf16.mxu0 %v700
      %923 = vmatpush1.bf16.msra.mxu0 %v699
      %924 = vmatprep.subr.bf16.mxu0 %v716
      %925 = vmatpush1.bf16.msra.mxu0 %v715
      %926 = vmatprep.subr.bf16.mxu0 0
      %927 = vmatpush1.bf16.msra.mxu0 0
      %928 = vmatprep.subr.bf16.mxu0 0
      %929 = vmatpush1.bf16.msra.mxu0 0
      %930 = vmatprep.subr.bf16.mxu0 0
      %931 = vmatpush1.bf16.msra.mxu0 0
      %932 = vmatprep.subr.bf16.mxu0 0
      %933 = vmatpush1.bf16.msra.mxu0 0
      %934 = vmatprep.subr.bf16.mxu0 0
      %935 = vmatpush1.bf16.msra.mxu0 0
      %936 = vmatprep.subr.bf16.mxu0 0
      %937 = vmatpush1.bf16.msra.mxu0 0
      %938 = vmatprep.subr.bf16.mxu0 0
      %939 = vmatpush1.bf16.msra.mxu0 0
      %940 = vmatprep.subr.bf16.mxu0 0
      %941 = vmatpush1.bf16.msra.mxu0 0
      %942 = vmatprep.subr.bf16.mxu0 0
      %943 = vmatpush1.bf16.msra.mxu0 0
      %944 = vmatprep.subr.bf16.mxu0 0
      %945 = vmatpush1.bf16.msra.mxu0 0
      %946 = vmatprep.subr.bf16.mxu0 0
      %947 = vmatpush1.bf16.msra.mxu0 0
      %948 = vmatprep.subr.bf16.mxu0 0
      %949 = vmatpush1.bf16.msra.mxu0 0
      %950 = vmatprep.subr.bf16.mxu0 0
      %951 = vmatpush1.bf16.msra.mxu0 0
      %952 = vmatprep.subr.bf16.mxu0 0
      %953 = vmatpush1.bf16.msra.mxu0 0
      %954 = vmatprep.mubr.bf16.mxu0 0
      %955 = vmatmul.mubr.bf16.gmra.mrb[0].mxu0 %v756
      %v956 = vpop.f32.mrb[0].mxu0
      %v957 = vadd.f32 0.0, %v956
      %v958 = vpop.f32.mrb[0].mxu0
      %v959 = vadd.f32 0.0, %v958
      %v960 = vpop.f32.mrb[0].mxu0
      %v961 = vpop.f32.mrb[0].mxu0
      %962 = vdwg.mxu0
      %963 = vmatprep.subr.bf16.mxu0 %v702
      %964 = vmatpush1.bf16.msra.mxu0 %v701
      %965 = vmatprep.subr.bf16.mxu0 %v718
      %966 = vmatpush1.bf16.msra.mxu0 %v717
      %967 = vmatprep.subr.bf16.mxu0 0
      %968 = vmatpush1.bf16.msra.mxu0 0
      %969 = vmatprep.subr.bf16.mxu0 0
      %970 = vmatpush1.bf16.msra.mxu0 0
      %971 = vmatprep.subr.bf16.mxu0 0
      %972 = vmatpush1.bf16.msra.mxu0 0
      %973 = vmatprep.subr.bf16.mxu0 0
      %974 = vmatpush1.bf16.msra.mxu0 0
      %975 = vmatprep.subr.bf16.mxu0 0
      %976 = vmatpush1.bf16.msra.mxu0 0
      %977 = vmatprep.subr.bf16.mxu0 0
      %978 = vmatpush1.bf16.msra.mxu0 0
      %979 = vmatprep.subr.bf16.mxu0 0
      %980 = vmatpush1.bf16.msra.mxu0 0
      %981 = vmatprep.subr.bf16.mxu0 0
      %982 = vmatpush1.bf16.msra.mxu0 0
      %983 = vmatprep.subr.bf16.mxu0 0
      %984 = vmatpush1.bf16.msra.mxu0 0
      %985 = vmatprep.subr.bf16.mxu0 0
      %986 = vmatpush1.bf16.msra.mxu0 0
      %987 = vmatprep.subr.bf16.mxu0 0
      %988 = vmatpush1.bf16.msra.mxu0 0
      %989 = vmatprep.subr.bf16.mxu0 0
      %990 = vmatpush1.bf16.msra.mxu0 0
      %991 = vmatprep.subr.bf16.mxu0 0
      %992 = vmatpush1.bf16.msra.mxu0 0
      %993 = vmatprep.subr.bf16.mxu0 0
      %994 = vmatpush1.bf16.msra.mxu0 0
      %995 = vmatprep.mubr.bf16.mxu0 0
      %996 = vmatmul.mubr.bf16.gmra.mrb[0].mxu0 %v756
      %v997 = vpop.f32.mrb[0].mxu0
      %v998 = vadd.f32 0.0, %v997
      %v999 = vpop.f32.mrb[0].mxu0
      %v1000 = vadd.f32 0.0, %v999
      %v1001 = vpop.f32.mrb[0].mxu0
      %v1002 = vpop.f32.mrb[0].mxu0
      %1003 = vdwg.mxu0
      %1004 = vmatprep.subr.bf16.mxu0 %v704
      %1005 = vmatpush1.bf16.msra.mxu0 %v703
      %1006 = vmatprep.subr.bf16.mxu0 %v720
      %1007 = vmatpush1.bf16.msra.mxu0 %v719
      %1008 = vmatprep.subr.bf16.mxu0 0
      %1009 = vmatpush1.bf16.msra.mxu0 0
      %1010 = vmatprep.subr.bf16.mxu0 0
      %1011 = vmatpush1.bf16.msra.mxu0 0
      %1012 = vmatprep.subr.bf16.mxu0 0
      %1013 = vmatpush1.bf16.msra.mxu0 0
      %1014 = vmatprep.subr.bf16.mxu0 0
      %1015 = vmatpush1.bf16.msra.mxu0 0
      %1016 = vmatprep.subr.bf16.mxu0 0
      %1017 = vmatpush1.bf16.msra.mxu0 0
      %1018 = vmatprep.subr.bf16.mxu0 0
      %1019 = vmatpush1.bf16.msra.mxu0 0
      %1020 = vmatprep.subr.bf16.mxu0 0
      %1021 = vmatpush1.bf16.msra.mxu0 0
      %1022 = vmatprep.subr.bf16.mxu0 0
      %1023 = vmatpush1.bf16.msra.mxu0 0
      %1024 = vmatprep.subr.bf16.mxu0 0
      %1025 = vmatpush1.bf16.msra.mxu0 0
      %1026 = vmatprep.subr.bf16.mxu0 0
      %1027 = vmatpush1.bf16.msra.mxu0 0
      %1028 = vmatprep.subr.bf16.mxu0 0
      %1029 = vmatpush1.bf16.msra.mxu0 0
      %1030 = vmatprep.subr.bf16.mxu0 0
      %1031 = vmatpush1.bf16.msra.mxu0 0
      %1032 = vmatprep.subr.bf16.mxu0 0
      %1033 = vmatpush1.bf16.msra.mxu0 0
      %1034 = vmatprep.subr.bf16.mxu0 0
      %1035 = vmatpush1.bf16.msra.mxu0 0
      %1036 = vmatprep.mubr.bf16.mxu0 0
      %1037 = vmatmul.mubr.bf16.gmra.mrb[0].mxu0 %v756
      %v1038 = vpop.f32.mrb[0].mxu0
      %v1039 = vadd.f32 0.0, %v1038
      %v1040 = vpop.f32.mrb[0].mxu0
      %v1041 = vadd.f32 0.0, %v1040
      %v1042 = vpop.f32.mrb[0].mxu0
      %v1043 = vpop.f32.mrb[0].mxu0
      %1044 = vdwg.mxu0
      %1045 = vmatprep.subr.bf16.mxu0 %v706
      %1046 = vmatpush1.bf16.msra.mxu0 %v705
      %1047 = vmatprep.subr.bf16.mxu0 %v722
      %1048 = vmatpush1.bf16.msra.mxu0 %v721
      %1049 = vmatprep.subr.bf16.mxu0 0
      %1050 = vmatpush1.bf16.msra.mxu0 0
      %1051 = vmatprep.subr.bf16.mxu0 0
      %1052 = vmatpush1.bf16.msra.mxu0 0
      %1053 = vmatprep.subr.bf16.mxu0 0
      %1054 = vmatpush1.bf16.msra.mxu0 0
      %1055 = vmatprep.subr.bf16.mxu0 0
      %1056 = vmatpush1.bf16.msra.mxu0 0
      %1057 = vmatprep.subr.bf16.mxu0 0
      %1058 = vmatpush1.bf16.msra.mxu0 0
      %1059 = vmatprep.subr.bf16.mxu0 0
      %1060 = vmatpush1.bf16.msra.mxu0 0
      %1061 = vmatprep.subr.bf16.mxu0 0
      %1062 = vmatpush1.bf16.msra.mxu0 0
      %1063 = vmatprep.subr.bf16.mxu0 0
      %1064 = vmatpush1.bf16.msra.mxu0 0
      %1065 = vmatprep.subr.bf16.mxu0 0
      %1066 = vmatpush1.bf16.msra.mxu0 0
      %1067 = vmatprep.subr.bf16.mxu0 0
      %1068 = vmatpush1.bf16.msra.mxu0 0
      %1069 = vmatprep.subr.bf16.mxu0 0
      %1070 = vmatpush1.bf16.msra.mxu0 0
      %1071 = vmatprep.subr.bf16.mxu0 0
      %1072 = vmatpush1.bf16.msra.mxu0 0
      %1073 = vmatprep.subr.bf16.mxu0 0
      %1074 = vmatpush1.bf16.msra.mxu0 0
      %1075 = vmatprep.subr.bf16.mxu0 0
      %1076 = vmatpush1.bf16.msra.mxu0 0
      %1077 = vmatprep.mubr.bf16.mxu0 0
      %1078 = vmatmul.mubr.bf16.gmra.mrb[0].mxu0 %v756
      %v1079 = vpop.f32.mrb[0].mxu0
      %v1080 = vadd.f32 0.0, %v1079
      %v1081 = vpop.f32.mrb[0].mxu0
      %v1082 = vadd.f32 0.0, %v1081
      %v1083 = vpop.f32.mrb[0].mxu0
      %v1084 = vpop.f32.mrb[0].mxu0
      %1085 = vdwg.mxu0
      %vm1086 = vcmask 64512
      %v1088 = vsel %vm1086, %v196, 0
      %v1091 = vsel %vm1086, %v197, 0
      %v1094 = vsel %vm1086, %v198, 0
      %v1097 = vsel %vm1086, %v199, 0
      %v1100 = vsel %vm1086, %v200, 0
      %v1103 = vsel %vm1086, %v201, 0
      %v1106 = vsel %vm1086, %v202, 0
      %v1109 = vsel %vm1086, %v203, 0
      %1111 = vmatprep.subr.mxu0 %v795
      %1112 = vmatpush1.msra.mxu0 %v793
      %1113 = vmatprep.subr.mxu0 0.0
      %1114 = vmatpush1.msra.mxu0 0.0
      %1115 = vmatprep.subr.mxu0 0.0
      %1116 = vmatpush1.msra.mxu0 0.0
      %1117 = vmatprep.subr.mxu0 0.0
      %1118 = vmatpush1.msra.mxu0 0.0
      %1119 = vmatprep.subr.mxu0 0.0
      %1120 = vmatpush1.msra.mxu0 0.0
      %1121 = vmatprep.subr.mxu0 0.0
      %1122 = vmatpush1.msra.mxu0 0.0
      %1123 = vmatprep.subr.mxu0 0.0
      %1124 = vmatpush1.msra.mxu0 0.0
      %1125 = vmatprep.subr.mxu0 0.0
      %1126 = vmatpush1.msra.mxu0 0.0
      %1127 = vmatprep.subr.mxu0 0.0
      %1128 = vmatpush1.msra.mxu0 0.0
      %1129 = vmatprep.subr.mxu0 0.0
      %1130 = vmatpush1.msra.mxu0 0.0
      %1131 = vmatprep.subr.mxu0 0.0
      %1132 = vmatpush1.msra.mxu0 0.0
      %1133 = vmatprep.subr.mxu0 0.0
      %1134 = vmatpush1.msra.mxu0 0.0
      %1135 = vmatprep.subr.mxu0 0.0
      %1136 = vmatpush1.msra.mxu0 0.0
      %1137 = vmatprep.subr.mxu0 0.0
      %1138 = vmatpush1.msra.mxu0 0.0
      %1139 = vmatprep.subr.mxu0 0.0
      %1140 = vmatpush1.msra.mxu0 0.0
      %1141 = vmatprep.subr.mxu0 0.0
      %1142 = vmatpush1.msra.mxu0 0.0
      %1143 = vmatprep.subr.mxu0 0.0
      %1144 = vmatpush1.msra.mxu0 0.0
      %1145 = vmatprep.subr.mxu0 0.0
      %1146 = vmatpush1.msra.mxu0 0.0
      %1147 = vmatprep.subr.mxu0 0.0
      %1148 = vmatpush1.msra.mxu0 0.0
      %1149 = vmatprep.subr.mxu0 0.0
      %1150 = vmatpush1.msra.mxu0 0.0
      %1151 = vmatprep.subr.mxu0 0.0
      %1152 = vmatpush1.msra.mxu0 0.0
      %1153 = vmatprep.subr.mxu0 0.0
      %1154 = vmatpush1.msra.mxu0 0.0
      %1155 = vmatprep.subr.mxu0 0.0
      %1156 = vmatpush1.msra.mxu0 0.0
      %1157 = vmatprep.subr.mxu0 0.0
      %1158 = vmatpush1.msra.mxu0 0.0
      %1159 = vmatprep.subr.mxu0 0.0
      %1160 = vmatpush1.msra.mxu0 0.0
      %1161 = vmatprep.subr.mxu0 0.0
      %1162 = vmatpush1.msra.mxu0 0.0
      %1163 = vmatprep.subr.mxu0 0.0
      %1164 = vmatpush1.msra.mxu0 0.0
      %1165 = vmatprep.subr.mxu0 0.0
      %1166 = vmatpush1.msra.mxu0 0.0
      %1167 = vmatprep.subr.mxu0 0.0
      %1168 = vmatpush1.msra.mxu0 0.0
      %1169 = vmatprep.subr.mxu0 0.0
      %1170 = vmatpush1.msra.mxu0 0.0
      %1171 = vmatprep.subr.mxu0 0.0
      %1172 = vmatpush1.msra.mxu0 0.0
      %1173 = vmatprep.subr.mxu0 0.0
      %1174 = vmatpush1.msra.mxu0 0.0
      %1175 = vmatprep.mubr.f32.mxu0 0.0
      %1176 = vmatmul.mubr.f32.gmra.mrb[0].mxu0 %v1088
      %v1177 = vpop.f32.mrb[0].mxu0
      %v1178 = vadd.f32 0.0, %v1177
      %v1179 = vpop.f32.mrb[0].mxu0
      %v1180 = vadd.f32 0.0, %v1179
      %1181 = vmatprep.mubr.f32.mxu0 0.0
      %1182 = vmatmul.mubr.f32.gmra.mrb[0].mxu0 %v1091
      %v1183 = vpop.f32.mrb[0].mxu0
      %v1184 = vadd.f32 0.0, %v1183
      %v1185 = vpop.f32.mrb[0].mxu0
      %v1186 = vadd.f32 0.0, %v1185
      %1187 = vmatprep.mubr.f32.mxu0 0.0
      %1188 = vmatmul.mubr.f32.gmra.mrb[0].mxu0 %v1094
      %v1189 = vpop.f32.mrb[0].mxu0
      %v1190 = vadd.f32 0.0, %v1189
      %v1191 = vpop.f32.mrb[0].mxu0
      %v1192 = vadd.f32 0.0, %v1191
      %1193 = vmatprep.mubr.f32.mxu0 0.0
      %1194 = vmatmul.mubr.f32.gmra.mrb[0].mxu0 %v1097
      %v1195 = vpop.f32.mrb[0].mxu0
      %v1196 = vadd.f32 0.0, %v1195
      %v1197 = vpop.f32.mrb[0].mxu0
      %v1198 = vadd.f32 0.0, %v1197
      %1199 = vmatprep.mubr.f32.mxu0 0.0
      %1200 = vmatmul.mubr.f32.gmra.mrb[0].mxu0 %v1100
      %v1201 = vpop.f32.mrb[0].mxu0
      %v1202 = vadd.f32 0.0, %v1201
      %v1203 = vpop.f32.mrb[0].mxu0
      %v1204 = vadd.f32 0.0, %v1203
      %1205 = vmatprep.mubr.f32.mxu0 0.0
      %1206 = vmatmul.mubr.f32.gmra.mrb[0].mxu0 %v1103
      %v1207 = vpop.f32.mrb[0].mxu0
      %v1208 = vadd.f32 0.0, %v1207
      %v1209 = vpop.f32.mrb[0].mxu0
      %v1210 = vadd.f32 0.0, %v1209
      %1211 = vmatprep.mubr.f32.mxu0 0.0
      %1212 = vmatmul.mubr.f32.gmra.mrb[0].mxu0 %v1106
      %v1213 = vpop.f32.mrb[0].mxu0
      %v1214 = vadd.f32 0.0, %v1213
      %v1215 = vpop.f32.mrb[0].mxu0
      %v1216 = vadd.f32 0.0, %v1215
      %1217 = vmatprep.mubr.f32.mxu0 0.0
      %1218 = vmatmul.mubr.f32.gmra.mrb[0].mxu0 %v1109
      %v1219 = vpop.f32.mrb[0].mxu0
      %v1220 = vadd.f32 0.0, %v1219
      %v1221 = vpop.f32.mrb[0].mxu0
      %v1222 = vadd.f32 0.0, %v1221
      %1223 = vdwg.mxu0
      %1224 = vmatprep.subr.mxu0 %v836
      %1225 = vmatpush1.msra.mxu0 %v834
      %1226 = vmatprep.subr.mxu0 0.0
      %1227 = vmatpush1.msra.mxu0 0.0
      %1228 = vmatprep.subr.mxu0 0.0
      %1229 = vmatpush1.msra.mxu0 0.0
      %1230 = vmatprep.subr.mxu0 0.0
      %1231 = vmatpush1.msra.mxu0 0.0
      %1232 = vmatprep.subr.mxu0 0.0
      %1233 = vmatpush1.msra.mxu0 0.0
      %1234 = vmatprep.subr.mxu0 0.0
      %1235 = vmatpush1.msra.mxu0 0.0
      %1236 = vmatprep.subr.mxu0 0.0
      %1237 = vmatpush1.msra.mxu0 0.0
      %1238 = vmatprep.subr.mxu0 0.0
      %1239 = vmatpush1.msra.mxu0 0.0
      %1240 = vmatprep.subr.mxu0 0.0
      %1241 = vmatpush1.msra.mxu0 0.0
      %1242 = vmatprep.subr.mxu0 0.0
      %1243 = vmatpush1.msra.mxu0 0.0
      %1244 = vmatprep.subr.mxu0 0.0
      %1245 = vmatpush1.msra.mxu0 0.0
      %1246 = vmatprep.subr.mxu0 0.0
      %1247 = vmatpush1.msra.mxu0 0.0
      %1248 = vmatprep.subr.mxu0 0.0
      %1249 = vmatpush1.msra.mxu0 0.0
      %1250 = vmatprep.subr.mxu0 0.0
      %1251 = vmatpush1.msra.mxu0 0.0
      %1252 = vmatprep.subr.mxu0 0.0
      %1253 = vmatpush1.msra.mxu0 0.0
      %1254 = vmatprep.subr.mxu0 0.0
      %1255 = vmatpush1.msra.mxu0 0.0
      %1256 = vmatprep.subr.mxu0 0.0
      %1257 = vmatpush1.msra.mxu0 0.0
      %1258 = vmatprep.subr.mxu0 0.0
      %1259 = vmatpush1.msra.mxu0 0.0
      %1260 = vmatprep.subr.mxu0 0.0
      %1261 = vmatpush1.msra.mxu0 0.0
      %1262 = vmatprep.subr.mxu0 0.0
      %1263 = vmatpush1.msra.mxu0 0.0
      %1264 = vmatprep.subr.mxu0 0.0
      %1265 = vmatpush1.msra.mxu0 0.0
      %1266 = vmatprep.subr.mxu0 0.0
      %1267 = vmatpush1.msra.mxu0 0.0
      %1268 = vmatprep.subr.mxu0 0.0
      %1269 = vmatpush1.msra.mxu0 0.0
      %1270 = vmatprep.subr.mxu0 0.0
      %1271 = vmatpush1.msra.mxu0 0.0
      %1272 = vmatprep.subr.mxu0 0.0
      %1273 = vmatpush1.msra.mxu0 0.0
      %1274 = vmatprep.subr.mxu0 0.0
      %1275 = vmatpush1.msra.mxu0 0.0
      %1276 = vmatprep.subr.mxu0 0.0
      %1277 = vmatpush1.msra.mxu0 0.0
      %1278 = vmatprep.subr.mxu0 0.0
      %1279 = vmatpush1.msra.mxu0 0.0
      %1280 = vmatprep.subr.mxu0 0.0
      %1281 = vmatpush1.msra.mxu0 0.0
      %1282 = vmatprep.subr.mxu0 0.0
      %1283 = vmatpush1.msra.mxu0 0.0
      %1284 = vmatprep.subr.mxu0 0.0
      %1285 = vmatpush1.msra.mxu0 0.0
      %1286 = vmatprep.subr.mxu0 0.0
      %1287 = vmatpush1.msra.mxu0 0.0
      %1288 = vmatprep.mubr.f32.mxu0 0.0
      %1289 = vmatmul.mubr.f32.gmra.mrb[0].mxu0 %v1088
      %v1290 = vpop.f32.mrb[0].mxu0
      %v1291 = vadd.f32 0.0, %v1290
      %v1292 = vpop.f32.mrb[0].mxu0
      %v1293 = vadd.f32 0.0, %v1292
      %1294 = vmatprep.mubr.f32.mxu0 0.0
      %1295 = vmatmul.mubr.f32.gmra.mrb[0].mxu0 %v1091
      %v1296 = vpop.f32.mrb[0].mxu0
      %v1297 = vadd.f32 0.0, %v1296
      %v1298 = vpop.f32.mrb[0].mxu0
      %v1299 = vadd.f32 0.0, %v1298
      %1300 = vmatprep.mubr.f32.mxu0 0.0
      %1301 = vmatmul.mubr.f32.gmra.mrb[0].mxu0 %v1094
      %v1302 = vpop.f32.mrb[0].mxu0
      %v1303 = vadd.f32 0.0, %v1302
      %v1304 = vpop.f32.mrb[0].mxu0
      %v1305 = vadd.f32 0.0, %v1304
      %1306 = vmatprep.mubr.f32.mxu0 0.0
      %1307 = vmatmul.mubr.f32.gmra.mrb[0].mxu0 %v1097
      %v1308 = vpop.f32.mrb[0].mxu0
      %v1309 = vadd.f32 0.0, %v1308
      %v1310 = vpop.f32.mrb[0].mxu0
      %v1311 = vadd.f32 0.0, %v1310
      %1312 = vmatprep.mubr.f32.mxu0 0.0
      %1313 = vmatmul.mubr.f32.gmra.mrb[0].mxu0 %v1100
      %v1314 = vpop.f32.mrb[0].mxu0
      %v1315 = vadd.f32 0.0, %v1314
      %v1316 = vpop.f32.mrb[0].mxu0
      %v1317 = vadd.f32 0.0, %v1316
      %1318 = vmatprep.mubr.f32.mxu0 0.0
      %1319 = vmatmul.mubr.f32.gmra.mrb[0].mxu0 %v1103
      %v1320 = vpop.f32.mrb[0].mxu0
      %v1321 = vadd.f32 0.0, %v1320
      %v1322 = vpop.f32.mrb[0].mxu0
      %v1323 = vadd.f32 0.0, %v1322
      %1324 = vmatprep.mubr.f32.mxu0 0.0
      %1325 = vmatmul.mubr.f32.gmra.mrb[0].mxu0 %v1106
      %v1326 = vpop.f32.mrb[0].mxu0
      %v1327 = vadd.f32 0.0, %v1326
      %v1328 = vpop.f32.mrb[0].mxu0
      %v1329 = vadd.f32 0.0, %v1328
      %1330 = vmatprep.mubr.f32.mxu0 0.0
      %1331 = vmatmul.mubr.f32.gmra.mrb[0].mxu0 %v1109
      %v1332 = vpop.f32.mrb[0].mxu0
      %v1333 = vadd.f32 0.0, %v1332
      %v1334 = vpop.f32.mrb[0].mxu0
      %v1335 = vadd.f32 0.0, %v1334
      %1336 = vdwg.mxu0
      %1337 = vmatprep.subr.mxu0 %v877
      %1338 = vmatpush1.msra.mxu0 %v875
      %1339 = vmatprep.subr.mxu0 0.0
      %1340 = vmatpush1.msra.mxu0 0.0
      %1341 = vmatprep.subr.mxu0 0.0
      %1342 = vmatpush1.msra.mxu0 0.0
      %1343 = vmatprep.subr.mxu0 0.0
      %1344 = vmatpush1.msra.mxu0 0.0
      %1345 = vmatprep.subr.mxu0 0.0
      %1346 = vmatpush1.msra.mxu0 0.0
      %1347 = vmatprep.subr.mxu0 0.0
      %1348 = vmatpush1.msra.mxu0 0.0
      %1349 = vmatprep.subr.mxu0 0.0
      %1350 = vmatpush1.msra.mxu0 0.0
      %1351 = vmatprep.subr.mxu0 0.0
      %1352 = vmatpush1.msra.mxu0 0.0
      %1353 = vmatprep.subr.mxu0 0.0
      %1354 = vmatpush1.msra.mxu0 0.0
      %1355 = vmatprep.subr.mxu0 0.0
      %1356 = vmatpush1.msra.mxu0 0.0
      %1357 = vmatprep.subr.mxu0 0.0
      %1358 = vmatpush1.msra.mxu0 0.0
      %1359 = vmatprep.subr.mxu0 0.0
      %1360 = vmatpush1.msra.mxu0 0.0
      %1361 = vmatprep.subr.mxu0 0.0
      %1362 = vmatpush1.msra.mxu0 0.0
      %1363 = vmatprep.subr.mxu0 0.0
      %1364 = vmatpush1.msra.mxu0 0.0
      %1365 = vmatprep.subr.mxu0 0.0
      %1366 = vmatpush1.msra.mxu0 0.0
      %1367 = vmatprep.subr.mxu0 0.0
      %1368 = vmatpush1.msra.mxu0 0.0
      %1369 = vmatprep.subr.mxu0 0.0
      %1370 = vmatpush1.msra.mxu0 0.0
      %1371 = vmatprep.subr.mxu0 0.0
      %1372 = vmatpush1.msra.mxu0 0.0
      %1373 = vmatprep.subr.mxu0 0.0
      %1374 = vmatpush1.msra.mxu0 0.0
      %1375 = vmatprep.subr.mxu0 0.0
      %1376 = vmatpush1.msra.mxu0 0.0
      %1377 = vmatprep.subr.mxu0 0.0
      %1378 = vmatpush1.msra.mxu0 0.0
      %1379 = vmatprep.subr.mxu0 0.0
      %1380 = vmatpush1.msra.mxu0 0.0
      %1381 = vmatprep.subr.mxu0 0.0
      %1382 = vmatpush1.msra.mxu0 0.0
      %1383 = vmatprep.subr.mxu0 0.0
      %1384 = vmatpush1.msra.mxu0 0.0
      %1385 = vmatprep.subr.mxu0 0.0
      %1386 = vmatpush1.msra.mxu0 0.0
      %1387 = vmatprep.subr.mxu0 0.0
      %1388 = vmatpush1.msra.mxu0 0.0
      %1389 = vmatprep.subr.mxu0 0.0
      %1390 = vmatpush1.msra.mxu0 0.0
      %1391 = vmatprep.subr.mxu0 0.0
      %1392 = vmatpush1.msra.mxu0 0.0
      %1393 = vmatprep.subr.mxu0 0.0
      %1394 = vmatpush1.msra.mxu0 0.0
      %1395 = vmatprep.subr.mxu0 0.0
      %1396 = vmatpush1.msra.mxu0 0.0
      %1397 = vmatprep.subr.mxu0 0.0
      %1398 = vmatpush1.msra.mxu0 0.0
      %1399 = vmatprep.subr.mxu0 0.0
      %1400 = vmatpush1.msra.mxu0 0.0
      %1401 = vmatprep.mubr.f32.mxu0 0.0
      %1402 = vmatmul.mubr.f32.gmra.mrb[0].mxu0 %v1088
      %v1403 = vpop.f32.mrb[0].mxu0
      %v1404 = vadd.f32 0.0, %v1403
      %v1405 = vpop.f32.mrb[0].mxu0
      %v1406 = vadd.f32 0.0, %v1405
      %1407 = vmatprep.mubr.f32.mxu0 0.0
      %1408 = vmatmul.mubr.f32.gmra.mrb[0].mxu0 %v1091
      %v1409 = vpop.f32.mrb[0].mxu0
      %v1410 = vadd.f32 0.0, %v1409
      %v1411 = vpop.f32.mrb[0].mxu0
      %v1412 = vadd.f32 0.0, %v1411
      %1413 = vmatprep.mubr.f32.mxu0 0.0
      %1414 = vmatmul.mubr.f32.gmra.mrb[0].mxu0 %v1094
      %v1415 = vpop.f32.mrb[0].mxu0
      %v1416 = vadd.f32 0.0, %v1415
      %v1417 = vpop.f32.mrb[0].mxu0
      %v1418 = vadd.f32 0.0, %v1417
      %1419 = vmatprep.mubr.f32.mxu0 0.0
      %1420 = vmatmul.mubr.f32.gmra.mrb[0].mxu0 %v1097
      %v1421 = vpop.f32.mrb[0].mxu0
      %v1422 = vadd.f32 0.0, %v1421
      %v1423 = vpop.f32.mrb[0].mxu0
      %v1424 = vadd.f32 0.0, %v1423
      %1425 = vmatprep.mubr.f32.mxu0 0.0
      %1426 = vmatmul.mubr.f32.gmra.mrb[0].mxu0 %v1100
      %v1427 = vpop.f32.mrb[0].mxu0
      %v1428 = vadd.f32 0.0, %v1427
      %v1429 = vpop.f32.mrb[0].mxu0
      %v1430 = vadd.f32 0.0, %v1429
      %1431 = vmatprep.mubr.f32.mxu0 0.0
      %1432 = vmatmul.mubr.f32.gmra.mrb[0].mxu0 %v1103
      %v1433 = vpop.f32.mrb[0].mxu0
      %v1434 = vadd.f32 0.0, %v1433
      %v1435 = vpop.f32.mrb[0].mxu0
      %v1436 = vadd.f32 0.0, %v1435
      %1437 = vmatprep.mubr.f32.mxu0 0.0
      %1438 = vmatmul.mubr.f32.gmra.mrb[0].mxu0 %v1106
      %v1439 = vpop.f32.mrb[0].mxu0
      %v1440 = vadd.f32 0.0, %v1439
      %v1441 = vpop.f32.mrb[0].mxu0
      %v1442 = vadd.f32 0.0, %v1441
      %1443 = vmatprep.mubr.f32.mxu0 0.0
      %1444 = vmatmul.mubr.f32.gmra.mrb[0].mxu0 %v1109
      %v1445 = vpop.f32.mrb[0].mxu0
      %v1446 = vadd.f32 0.0, %v1445
      %v1447 = vpop.f32.mrb[0].mxu0
      %v1448 = vadd.f32 0.0, %v1447
      %1449 = vdwg.mxu0
      %1450 = vmatprep.subr.mxu0 %v918
      %1451 = vmatpush1.msra.mxu0 %v916
      %1452 = vmatprep.subr.mxu0 0.0
      %1453 = vmatpush1.msra.mxu0 0.0
      %1454 = vmatprep.subr.mxu0 0.0
      %1455 = vmatpush1.msra.mxu0 0.0
      %1456 = vmatprep.subr.mxu0 0.0
      %1457 = vmatpush1.msra.mxu0 0.0
      %1458 = vmatprep.subr.mxu0 0.0
      %1459 = vmatpush1.msra.mxu0 0.0
      %1460 = vmatprep.subr.mxu0 0.0
      %1461 = vmatpush1.msra.mxu0 0.0
      %1462 = vmatprep.subr.mxu0 0.0
      %1463 = vmatpush1.msra.mxu0 0.0
      %1464 = vmatprep.subr.mxu0 0.0
      %1465 = vmatpush1.msra.mxu0 0.0
      %1466 = vmatprep.subr.mxu0 0.0
      %1467 = vmatpush1.msra.mxu0 0.0
      %1468 = vmatprep.subr.mxu0 0.0
      %1469 = vmatpush1.msra.mxu0 0.0
      %1470 = vmatprep.subr.mxu0 0.0
      %1471 = vmatpush1.msra.mxu0 0.0
      %1472 = vmatprep.subr.mxu0 0.0
      %1473 = vmatpush1.msra.mxu0 0.0
      %1474 = vmatprep.subr.mxu0 0.0
      %1475 = vmatpush1.msra.mxu0 0.0
      %1476 = vmatprep.subr.mxu0 0.0
      %1477 = vmatpush1.msra.mxu0 0.0
      %1478 = vmatprep.subr.mxu0 0.0
      %1479 = vmatpush1.msra.mxu0 0.0
      %1480 = vmatprep.subr.mxu0 0.0
      %1481 = vmatpush1.msra.mxu0 0.0
      %1482 = vmatprep.subr.mxu0 0.0
      %1483 = vmatpush1.msra.mxu0 0.0
      %1484 = vmatprep.subr.mxu0 0.0
      %1485 = vmatpush1.msra.mxu0 0.0
      %1486 = vmatprep.subr.mxu0 0.0
      %1487 = vmatpush1.msra.mxu0 0.0
      %1488 = vmatprep.subr.mxu0 0.0
      %1489 = vmatpush1.msra.mxu0 0.0
      %1490 = vmatprep.subr.mxu0 0.0
      %1491 = vmatpush1.msra.mxu0 0.0
      %1492 = vmatprep.subr.mxu0 0.0
      %1493 = vmatpush1.msra.mxu0 0.0
      %1494 = vmatprep.subr.mxu0 0.0
      %1495 = vmatpush1.msra.mxu0 0.0
      %1496 = vmatprep.subr.mxu0 0.0
      %1497 = vmatpush1.msra.mxu0 0.0
      %1498 = vmatprep.subr.mxu0 0.0
      %1499 = vmatpush1.msra.mxu0 0.0
      %1500 = vmatprep.subr.mxu0 0.0
      %1501 = vmatpush1.msra.mxu0 0.0
      %1502 = vmatprep.subr.mxu0 0.0
      %1503 = vmatpush1.msra.mxu0 0.0
      %1504 = vmatprep.subr.mxu0 0.0
      %1505 = vmatpush1.msra.mxu0 0.0
      %1506 = vmatprep.subr.mxu0 0.0
      %1507 = vmatpush1.msra.mxu0 0.0
      %1508 = vmatprep.subr.mxu0 0.0
      %1509 = vmatpush1.msra.mxu0 0.0
      %1510 = vmatprep.subr.mxu0 0.0
      %1511 = vmatpush1.msra.mxu0 0.0
      %1512 = vmatprep.subr.mxu0 0.0
      %1513 = vmatpush1.msra.mxu0 0.0
      %1514 = vmatprep.mubr.f32.mxu0 0.0
      %1515 = vmatmul.mubr.f32.gmra.mrb[0].mxu0 %v1088
      %v1516 = vpop.f32.mrb[0].mxu0
      %v1517 = vadd.f32 0.0, %v1516
      %v1518 = vpop.f32.mrb[0].mxu0
      %v1519 = vadd.f32 0.0, %v1518
      %1520 = vmatprep.mubr.f32.mxu0 0.0
      %1521 = vmatmul.mubr.f32.gmra.mrb[0].mxu0 %v1091
      %v1522 = vpop.f32.mrb[0].mxu0
      %v1523 = vadd.f32 0.0, %v1522
      %v1524 = vpop.f32.mrb[0].mxu0
      %v1525 = vadd.f32 0.0, %v1524
      %1526 = vmatprep.mubr.f32.mxu0 0.0
      %1527 = vmatmul.mubr.f32.gmra.mrb[0].mxu0 %v1094
      %v1528 = vpop.f32.mrb[0].mxu0
      %v1529 = vadd.f32 0.0, %v1528
      %v1530 = vpop.f32.mrb[0].mxu0
      %v1531 = vadd.f32 0.0, %v1530
      %1532 = vmatprep.mubr.f32.mxu0 0.0
      %1533 = vmatmul.mubr.f32.gmra.mrb[0].mxu0 %v1097
      %v1534 = vpop.f32.mrb[0].mxu0
      %v1535 = vadd.f32 0.0, %v1534
      %v1536 = vpop.f32.mrb[0].mxu0
      %v1537 = vadd.f32 0.0, %v1536
      %1538 = vmatprep.mubr.f32.mxu0 0.0
      %1539 = vmatmul.mubr.f32.gmra.mrb[0].mxu0 %v1100
      %v1540 = vpop.f32.mrb[0].mxu0
      %v1541 = vadd.f32 0.0, %v1540
      %v1542 = vpop.f32.mrb[0].mxu0
      %v1543 = vadd.f32 0.0, %v1542
      %1544 = vmatprep.mubr.f32.mxu0 0.0
      %1545 = vmatmul.mubr.f32.gmra.mrb[0].mxu0 %v1103
      %v1546 = vpop.f32.mrb[0].mxu0
      %v1547 = vadd.f32 0.0, %v1546
      %v1548 = vpop.f32.mrb[0].mxu0
      %v1549 = vadd.f32 0.0, %v1548
      %1550 = vmatprep.mubr.f32.mxu0 0.0
      %1551 = vmatmul.mubr.f32.gmra.mrb[0].mxu0 %v1106
      %v1552 = vpop.f32.mrb[0].mxu0
      %v1553 = vadd.f32 0.0, %v1552
      %v1554 = vpop.f32.mrb[0].mxu0
      %v1555 = vadd.f32 0.0, %v1554
      %1556 = vmatprep.mubr.f32.mxu0 0.0
      %1557 = vmatmul.mubr.f32.gmra.mrb[0].mxu0 %v1109
      %v1558 = vpop.f32.mrb[0].mxu0
      %v1559 = vadd.f32 0.0, %v1558
      %v1560 = vpop.f32.mrb[0].mxu0
      %v1561 = vadd.f32 0.0, %v1560
      %1562 = vdwg.mxu0
      %1563 = vmatprep.subr.mxu0 %v959
      %1564 = vmatpush1.msra.mxu0 %v957
      %1565 = vmatprep.subr.mxu0 0.0
      %1566 = vmatpush1.msra.mxu0 0.0
      %1567 = vmatprep.subr.mxu0 0.0
      %1568 = vmatpush1.msra.mxu0 0.0
      %1569 = vmatprep.subr.mxu0 0.0
      %1570 = vmatpush1.msra.mxu0 0.0
      %1571 = vmatprep.subr.mxu0 0.0
      %1572 = vmatpush1.msra.mxu0 0.0
      %1573 = vmatprep.subr.mxu0 0.0
      %1574 = vmatpush1.msra.mxu0 0.0
      %1575 = vmatprep.subr.mxu0 0.0
      %1576 = vmatpush1.msra.mxu0 0.0
      %1577 = vmatprep.subr.mxu0 0.0
      %1578 = vmatpush1.msra.mxu0 0.0
      %1579 = vmatprep.subr.mxu0 0.0
      %1580 = vmatpush1.msra.mxu0 0.0
      %1581 = vmatprep.subr.mxu0 0.0
      %1582 = vmatpush1.msra.mxu0 0.0
      %1583 = vmatprep.subr.mxu0 0.0
      %1584 = vmatpush1.msra.mxu0 0.0
      %1585 = vmatprep.subr.mxu0 0.0
      %1586 = vmatpush1.msra.mxu0 0.0
      %1587 = vmatprep.subr.mxu0 0.0
      %1588 = vmatpush1.msra.mxu0 0.0
      %1589 = vmatprep.subr.mxu0 0.0
      %1590 = vmatpush1.msra.mxu0 0.0
      %1591 = vmatprep.subr.mxu0 0.0
      %1592 = vmatpush1.msra.mxu0 0.0
      %1593 = vmatprep.subr.mxu0 0.0
      %1594 = vmatpush1.msra.mxu0 0.0
      %1595 = vmatprep.subr.mxu0 0.0
      %1596 = vmatpush1.msra.mxu0 0.0
      %1597 = vmatprep.subr.mxu0 0.0
      %1598 = vmatpush1.msra.mxu0 0.0
      %1599 = vmatprep.subr.mxu0 0.0
      %1600 = vmatpush1.msra.mxu0 0.0
      %1601 = vmatprep.subr.mxu0 0.0
      %1602 = vmatpush1.msra.mxu0 0.0
      %1603 = vmatprep.subr.mxu0 0.0
      %1604 = vmatpush1.msra.mxu0 0.0
      %1605 = vmatprep.subr.mxu0 0.0
      %1606 = vmatpush1.msra.mxu0 0.0
      %1607 = vmatprep.subr.mxu0 0.0
      %1608 = vmatpush1.msra.mxu0 0.0
      %1609 = vmatprep.subr.mxu0 0.0
      %1610 = vmatpush1.msra.mxu0 0.0
      %1611 = vmatprep.subr.mxu0 0.0
      %1612 = vmatpush1.msra.mxu0 0.0
      %1613 = vmatprep.subr.mxu0 0.0
      %1614 = vmatpush1.msra.mxu0 0.0
      %1615 = vmatprep.subr.mxu0 0.0
      %1616 = vmatpush1.msra.mxu0 0.0
      %1617 = vmatprep.subr.mxu0 0.0
      %1618 = vmatpush1.msra.mxu0 0.0
      %1619 = vmatprep.subr.mxu0 0.0
      %1620 = vmatpush1.msra.mxu0 0.0
      %1621 = vmatprep.subr.mxu0 0.0
      %1622 = vmatpush1.msra.mxu0 0.0
      %1623 = vmatprep.subr.mxu0 0.0
      %1624 = vmatpush1.msra.mxu0 0.0
      %1625 = vmatprep.subr.mxu0 0.0
      %1626 = vmatpush1.msra.mxu0 0.0
      %1627 = vmatprep.mubr.f32.mxu0 0.0
      %1628 = vmatmul.mubr.f32.gmra.mrb[0].mxu0 %v1088
      %v1629 = vpop.f32.mrb[0].mxu0
      %v1630 = vadd.f32 0.0, %v1629
      %v1631 = vpop.f32.mrb[0].mxu0
      %v1632 = vadd.f32 0.0, %v1631
      %1633 = vmatprep.mubr.f32.mxu0 0.0
      %1634 = vmatmul.mubr.f32.gmra.mrb[0].mxu0 %v1091
      %v1635 = vpop.f32.mrb[0].mxu0
      %v1636 = vadd.f32 0.0, %v1635
      %v1637 = vpop.f32.mrb[0].mxu0
      %v1638 = vadd.f32 0.0, %v1637
      %1639 = vmatprep.mubr.f32.mxu0 0.0
      %1640 = vmatmul.mubr.f32.gmra.mrb[0].mxu0 %v1094
      %v1641 = vpop.f32.mrb[0].mxu0
      %v1642 = vadd.f32 0.0, %v1641
      %v1643 = vpop.f32.mrb[0].mxu0
      %v1644 = vadd.f32 0.0, %v1643
      %1645 = vmatprep.mubr.f32.mxu0 0.0
      %1646 = vmatmul.mubr.f32.gmra.mrb[0].mxu0 %v1097
      %v1647 = vpop.f32.mrb[0].mxu0
      %v1648 = vadd.f32 0.0, %v1647
      %v1649 = vpop.f32.mrb[0].mxu0
      %v1650 = vadd.f32 0.0, %v1649
      %1651 = vmatprep.mubr.f32.mxu0 0.0
      %1652 = vmatmul.mubr.f32.gmra.mrb[0].mxu0 %v1100
      %v1653 = vpop.f32.mrb[0].mxu0
      %v1654 = vadd.f32 0.0, %v1653
      %v1655 = vpop.f32.mrb[0].mxu0
      %v1656 = vadd.f32 0.0, %v1655
      %1657 = vmatprep.mubr.f32.mxu0 0.0
      %1658 = vmatmul.mubr.f32.gmra.mrb[0].mxu0 %v1103
      %v1659 = vpop.f32.mrb[0].mxu0
      %v1660 = vadd.f32 0.0, %v1659
      %v1661 = vpop.f32.mrb[0].mxu0
      %v1662 = vadd.f32 0.0, %v1661
      %1663 = vmatprep.mubr.f32.mxu0 0.0
      %1664 = vmatmul.mubr.f32.gmra.mrb[0].mxu0 %v1106
      %v1665 = vpop.f32.mrb[0].mxu0
      %v1666 = vadd.f32 0.0, %v1665
      %v1667 = vpop.f32.mrb[0].mxu0
      %v1668 = vadd.f32 0.0, %v1667
      %1669 = vmatprep.mubr.f32.mxu0 0.0
      %1670 = vmatmul.mubr.f32.gmra.mrb[0].mxu0 %v1109
      %v1671 = vpop.f32.mrb[0].mxu0
      %v1672 = vadd.f32 0.0, %v1671
      %v1673 = vpop.f32.mrb[0].mxu0
      %v1674 = vadd.f32 0.0, %v1673
      %1675 = vdwg.mxu0
      %1676 = vmatprep.subr.mxu0 %v1000
      %1677 = vmatpush1.msra.mxu0 %v998
      %1678 = vmatprep.subr.mxu0 0.0
      %1679 = vmatpush1.msra.mxu0 0.0
      %1680 = vmatprep.subr.mxu0 0.0
      %1681 = vmatpush1.msra.mxu0 0.0
      %1682 = vmatprep.subr.mxu0 0.0
      %1683 = vmatpush1.msra.mxu0 0.0
      %1684 = vmatprep.subr.mxu0 0.0
      %1685 = vmatpush1.msra.mxu0 0.0
      %1686 = vmatprep.subr.mxu0 0.0
      %1687 = vmatpush1.msra.mxu0 0.0
      %1688 = vmatprep.subr.mxu0 0.0
      %1689 = vmatpush1.msra.mxu0 0.0
      %1690 = vmatprep.subr.mxu0 0.0
      %1691 = vmatpush1.msra.mxu0 0.0
      %1692 = vmatprep.subr.mxu0 0.0
      %1693 = vmatpush1.msra.mxu0 0.0
      %1694 = vmatprep.subr.mxu0 0.0
      %1695 = vmatpush1.msra.mxu0 0.0
      %1696 = vmatprep.subr.mxu0 0.0
      %1697 = vmatpush1.msra.mxu0 0.0
      %1698 = vmatprep.subr.mxu0 0.0
      %1699 = vmatpush1.msra.mxu0 0.0
      %1700 = vmatprep.subr.mxu0 0.0
      %1701 = vmatpush1.msra.mxu0 0.0
      %1702 = vmatprep.subr.mxu0 0.0
      %1703 = vmatpush1.msra.mxu0 0.0
      %1704 = vmatprep.subr.mxu0 0.0
      %1705 = vmatpush1.msra.mxu0 0.0
      %1706 = vmatprep.subr.mxu0 0.0
      %1707 = vmatpush1.msra.mxu0 0.0
      %1708 = vmatprep.subr.mxu0 0.0
      %1709 = vmatpush1.msra.mxu0 0.0
      %1710 = vmatprep.subr.mxu0 0.0
      %1711 = vmatpush1.msra.mxu0 0.0
      %1712 = vmatprep.subr.mxu0 0.0
      %1713 = vmatpush1.msra.mxu0 0.0
      %1714 = vmatprep.subr.mxu0 0.0
      %1715 = vmatpush1.msra.mxu0 0.0
      %1716 = vmatprep.subr.mxu0 0.0
      %1717 = vmatpush1.msra.mxu0 0.0
      %1718 = vmatprep.subr.mxu0 0.0
      %1719 = vmatpush1.msra.mxu0 0.0
      %1720 = vmatprep.subr.mxu0 0.0
      %1721 = vmatpush1.msra.mxu0 0.0
      %1722 = vmatprep.subr.mxu0 0.0
      %1723 = vmatpush1.msra.mxu0 0.0
      %1724 = vmatprep.subr.mxu0 0.0
      %1725 = vmatpush1.msra.mxu0 0.0
      %1726 = vmatprep.subr.mxu0 0.0
      %1727 = vmatpush1.msra.mxu0 0.0
      %1728 = vmatprep.subr.mxu0 0.0
      %1729 = vmatpush1.msra.mxu0 0.0
      %1730 = vmatprep.subr.mxu0 0.0
      %1731 = vmatpush1.msra.mxu0 0.0
      %1732 = vmatprep.subr.mxu0 0.0
      %1733 = vmatpush1.msra.mxu0 0.0
      %1734 = vmatprep.subr.mxu0 0.0
      %1735 = vmatpush1.msra.mxu0 0.0
      %1736 = vmatprep.subr.mxu0 0.0
      %1737 = vmatpush1.msra.mxu0 0.0
      %1738 = vmatprep.subr.mxu0 0.0
      %1739 = vmatpush1.msra.mxu0 0.0
      %1740 = vmatprep.mubr.f32.mxu0 0.0
      %1741 = vmatmul.mubr.f32.gmra.mrb[0].mxu0 %v1088
      %v1742 = vpop.f32.mrb[0].mxu0
      %v1743 = vadd.f32 0.0, %v1742
      %v1744 = vpop.f32.mrb[0].mxu0
      %v1745 = vadd.f32 0.0, %v1744
      %1746 = vmatprep.mubr.f32.mxu0 0.0
      %1747 = vmatmul.mubr.f32.gmra.mrb[0].mxu0 %v1091
      %v1748 = vpop.f32.mrb[0].mxu0
      %v1749 = vadd.f32 0.0, %v1748
      %v1750 = vpop.f32.mrb[0].mxu0
      %v1751 = vadd.f32 0.0, %v1750
      %1752 = vmatprep.mubr.f32.mxu0 0.0
      %1753 = vmatmul.mubr.f32.gmra.mrb[0].mxu0 %v1094
      %v1754 = vpop.f32.mrb[0].mxu0
      %v1755 = vadd.f32 0.0, %v1754
      %v1756 = vpop.f32.mrb[0].mxu0
      %v1757 = vadd.f32 0.0, %v1756
      %1758 = vmatprep.mubr.f32.mxu0 0.0
      %1759 = vmatmul.mubr.f32.gmra.mrb[0].mxu0 %v1097
      %v1760 = vpop.f32.mrb[0].mxu0
      %v1761 = vadd.f32 0.0, %v1760
      %v1762 = vpop.f32.mrb[0].mxu0
      %v1763 = vadd.f32 0.0, %v1762
      %1764 = vmatprep.mubr.f32.mxu0 0.0
      %1765 = vmatmul.mubr.f32.gmra.mrb[0].mxu0 %v1100
      %v1766 = vpop.f32.mrb[0].mxu0
      %v1767 = vadd.f32 0.0, %v1766
      %v1768 = vpop.f32.mrb[0].mxu0
      %v1769 = vadd.f32 0.0, %v1768
      %1770 = vmatprep.mubr.f32.mxu0 0.0
      %1771 = vmatmul.mubr.f32.gmra.mrb[0].mxu0 %v1103
      %v1772 = vpop.f32.mrb[0].mxu0
      %v1773 = vadd.f32 0.0, %v1772
      %v1774 = vpop.f32.mrb[0].mxu0
      %v1775 = vadd.f32 0.0, %v1774
      %1776 = vmatprep.mubr.f32.mxu0 0.0
      %1777 = vmatmul.mubr.f32.gmra.mrb[0].mxu0 %v1106
      %v1778 = vpop.f32.mrb[0].mxu0
      %v1779 = vadd.f32 0.0, %v1778
      %v1780 = vpop.f32.mrb[0].mxu0
      %v1781 = vadd.f32 0.0, %v1780
      %1782 = vmatprep.mubr.f32.mxu0 0.0
      %1783 = vmatmul.mubr.f32.gmra.mrb[0].mxu0 %v1109
      %v1784 = vpop.f32.mrb[0].mxu0
      %v1785 = vadd.f32 0.0, %v1784
      %v1786 = vpop.f32.mrb[0].mxu0
      %v1787 = vadd.f32 0.0, %v1786
      %1788 = vdwg.mxu0
      %1789 = vmatprep.subr.mxu0 %v1041
      %1790 = vmatpush1.msra.mxu0 %v1039
      %1791 = vmatprep.subr.mxu0 0.0
      %1792 = vmatpush1.msra.mxu0 0.0
      %1793 = vmatprep.subr.mxu0 0.0
      %1794 = vmatpush1.msra.mxu0 0.0
      %1795 = vmatprep.subr.mxu0 0.0
      %1796 = vmatpush1.msra.mxu0 0.0
      %1797 = vmatprep.subr.mxu0 0.0
      %1798 = vmatpush1.msra.mxu0 0.0
      %1799 = vmatprep.subr.mxu0 0.0
      %1800 = vmatpush1.msra.mxu0 0.0
      %1801 = vmatprep.subr.mxu0 0.0
      %1802 = vmatpush1.msra.mxu0 0.0
      %1803 = vmatprep.subr.mxu0 0.0
      %1804 = vmatpush1.msra.mxu0 0.0
      %1805 = vmatprep.subr.mxu0 0.0
      %1806 = vmatpush1.msra.mxu0 0.0
      %1807 = vmatprep.subr.mxu0 0.0
      %1808 = vmatpush1.msra.mxu0 0.0
      %1809 = vmatprep.subr.mxu0 0.0
      %1810 = vmatpush1.msra.mxu0 0.0
      %1811 = vmatprep.subr.mxu0 0.0
      %1812 = vmatpush1.msra.mxu0 0.0
      %1813 = vmatprep.subr.mxu0 0.0
      %1814 = vmatpush1.msra.mxu0 0.0
      %1815 = vmatprep.subr.mxu0 0.0
      %1816 = vmatpush1.msra.mxu0 0.0
      %1817 = vmatprep.subr.mxu0 0.0
      %1818 = vmatpush1.msra.mxu0 0.0
      %1819 = vmatprep.subr.mxu0 0.0
      %1820 = vmatpush1.msra.mxu0 0.0
      %1821 = vmatprep.subr.mxu0 0.0
      %1822 = vmatpush1.msra.mxu0 0.0
      %1823 = vmatprep.subr.mxu0 0.0
      %1824 = vmatpush1.msra.mxu0 0.0
      %1825 = vmatprep.subr.mxu0 0.0
      %1826 = vmatpush1.msra.mxu0 0.0
      %1827 = vmatprep.subr.mxu0 0.0
      %1828 = vmatpush1.msra.mxu0 0.0
      %1829 = vmatprep.subr.mxu0 0.0
      %1830 = vmatpush1.msra.mxu0 0.0
      %1831 = vmatprep.subr.mxu0 0.0
      %1832 = vmatpush1.msra.mxu0 0.0
      %1833 = vmatprep.subr.mxu0 0.0
      %1834 = vmatpush1.msra.mxu0 0.0
      %1835 = vmatprep.subr.mxu0 0.0
      %1836 = vmatpush1.msra.mxu0 0.0
      %1837 = vmatprep.subr.mxu0 0.0
      %1838 = vmatpush1.msra.mxu0 0.0
      %1839 = vmatprep.subr.mxu0 0.0
      %1840 = vmatpush1.msra.mxu0 0.0
      %1841 = vmatprep.subr.mxu0 0.0
      %1842 = vmatpush1.msra.mxu0 0.0
      %1843 = vmatprep.subr.mxu0 0.0
      %1844 = vmatpush1.msra.mxu0 0.0
      %1845 = vmatprep.subr.mxu0 0.0
      %1846 = vmatpush1.msra.mxu0 0.0
      %1847 = vmatprep.subr.mxu0 0.0
      %1848 = vmatpush1.msra.mxu0 0.0
      %1849 = vmatprep.subr.mxu0 0.0
      %1850 = vmatpush1.msra.mxu0 0.0
      %1851 = vmatprep.subr.mxu0 0.0
      %1852 = vmatpush1.msra.mxu0 0.0
      %1853 = vmatprep.mubr.f32.mxu0 0.0
      %1854 = vmatmul.mubr.f32.gmra.mrb[0].mxu0 %v1088
      %v1855 = vpop.f32.mrb[0].mxu0
      %v1856 = vadd.f32 0.0, %v1855
      %v1857 = vpop.f32.mrb[0].mxu0
      %v1858 = vadd.f32 0.0, %v1857
      %1859 = vmatprep.mubr.f32.mxu0 0.0
      %1860 = vmatmul.mubr.f32.gmra.mrb[0].mxu0 %v1091
      %v1861 = vpop.f32.mrb[0].mxu0
      %v1862 = vadd.f32 0.0, %v1861
      %v1863 = vpop.f32.mrb[0].mxu0
      %v1864 = vadd.f32 0.0, %v1863
      %1865 = vmatprep.mubr.f32.mxu0 0.0
      %1866 = vmatmul.mubr.f32.gmra.mrb[0].mxu0 %v1094
      %v1867 = vpop.f32.mrb[0].mxu0
      %v1868 = vadd.f32 0.0, %v1867
      %v1869 = vpop.f32.mrb[0].mxu0
      %v1870 = vadd.f32 0.0, %v1869
      %1871 = vmatprep.mubr.f32.mxu0 0.0
      %1872 = vmatmul.mubr.f32.gmra.mrb[0].mxu0 %v1097
      %v1873 = vpop.f32.mrb[0].mxu0
      %v1874 = vadd.f32 0.0, %v1873
      %v1875 = vpop.f32.mrb[0].mxu0
      %v1876 = vadd.f32 0.0, %v1875
      %1877 = vmatprep.mubr.f32.mxu0 0.0
      %1878 = vmatmul.mubr.f32.gmra.mrb[0].mxu0 %v1100
      %v1879 = vpop.f32.mrb[0].mxu0
      %v1880 = vadd.f32 0.0, %v1879
      %v1881 = vpop.f32.mrb[0].mxu0
      %v1882 = vadd.f32 0.0, %v1881
      %1883 = vmatprep.mubr.f32.mxu0 0.0
      %1884 = vmatmul.mubr.f32.gmra.mrb[0].mxu0 %v1103
      %v1885 = vpop.f32.mrb[0].mxu0
      %v1886 = vadd.f32 0.0, %v1885
      %v1887 = vpop.f32.mrb[0].mxu0
      %v1888 = vadd.f32 0.0, %v1887
      %1889 = vmatprep.mubr.f32.mxu0 0.0
      %1890 = vmatmul.mubr.f32.gmra.mrb[0].mxu0 %v1106
      %v1891 = vpop.f32.mrb[0].mxu0
      %v1892 = vadd.f32 0.0, %v1891
      %v1893 = vpop.f32.mrb[0].mxu0
      %v1894 = vadd.f32 0.0, %v1893
      %1895 = vmatprep.mubr.f32.mxu0 0.0
      %1896 = vmatmul.mubr.f32.gmra.mrb[0].mxu0 %v1109
      %v1897 = vpop.f32.mrb[0].mxu0
      %v1898 = vadd.f32 0.0, %v1897
      %v1899 = vpop.f32.mrb[0].mxu0
      %v1900 = vadd.f32 0.0, %v1899
      %1901 = vdwg.mxu0
      %1902 = vmatprep.subr.mxu0 %v1082
      %1903 = vmatpush1.msra.mxu0 %v1080
      %1904 = vmatprep.subr.mxu0 0.0
      %1905 = vmatpush1.msra.mxu0 0.0
      %1906 = vmatprep.subr.mxu0 0.0
      %1907 = vmatpush1.msra.mxu0 0.0
      %1908 = vmatprep.subr.mxu0 0.0
      %1909 = vmatpush1.msra.mxu0 0.0
      %1910 = vmatprep.subr.mxu0 0.0
      %1911 = vmatpush1.msra.mxu0 0.0
      %1912 = vmatprep.subr.mxu0 0.0
      %1913 = vmatpush1.msra.mxu0 0.0
      %1914 = vmatprep.subr.mxu0 0.0
      %1915 = vmatpush1.msra.mxu0 0.0
      %1916 = vmatprep.subr.mxu0 0.0
      %1917 = vmatpush1.msra.mxu0 0.0
      %1918 = vmatprep.subr.mxu0 0.0
      %1919 = vmatpush1.msra.mxu0 0.0
      %1920 = vmatprep.subr.mxu0 0.0
      %1921 = vmatpush1.msra.mxu0 0.0
      %1922 = vmatprep.subr.mxu0 0.0
      %1923 = vmatpush1.msra.mxu0 0.0
      %1924 = vmatprep.subr.mxu0 0.0
      %1925 = vmatpush1.msra.mxu0 0.0
      %1926 = vmatprep.subr.mxu0 0.0
      %1927 = vmatpush1.msra.mxu0 0.0
      %1928 = vmatprep.subr.mxu0 0.0
      %1929 = vmatpush1.msra.mxu0 0.0
      %1930 = vmatprep.subr.mxu0 0.0
      %1931 = vmatpush1.msra.mxu0 0.0
      %1932 = vmatprep.subr.mxu0 0.0
      %1933 = vmatpush1.msra.mxu0 0.0
      %1934 = vmatprep.subr.mxu0 0.0
      %1935 = vmatpush1.msra.mxu0 0.0
      %1936 = vmatprep.subr.mxu0 0.0
      %1937 = vmatpush1.msra.mxu0 0.0
      %1938 = vmatprep.subr.mxu0 0.0
      %1939 = vmatpush1.msra.mxu0 0.0
      %1940 = vmatprep.subr.mxu0 0.0
      %1941 = vmatpush1.msra.mxu0 0.0
      %1942 = vmatprep.subr.mxu0 0.0
      %1943 = vmatpush1.msra.mxu0 0.0
      %1944 = vmatprep.subr.mxu0 0.0
      %1945 = vmatpush1.msra.mxu0 0.0
      %1946 = vmatprep.subr.mxu0 0.0
      %1947 = vmatpush1.msra.mxu0 0.0
      %1948 = vmatprep.subr.mxu0 0.0
      %1949 = vmatpush1.msra.mxu0 0.0
      %1950 = vmatprep.subr.mxu0 0.0
      %1951 = vmatpush1.msra.mxu0 0.0
      %1952 = vmatprep.subr.mxu0 0.0
      %1953 = vmatpush1.msra.mxu0 0.0
      %1954 = vmatprep.subr.mxu0 0.0
      %1955 = vmatpush1.msra.mxu0 0.0
      %1956 = vmatprep.subr.mxu0 0.0
      %1957 = vmatpush1.msra.mxu0 0.0
      %1958 = vmatprep.subr.mxu0 0.0
      %1959 = vmatpush1.msra.mxu0 0.0
      %1960 = vmatprep.subr.mxu0 0.0
      %1961 = vmatpush1.msra.mxu0 0.0
      %1962 = vmatprep.subr.mxu0 0.0
      %1963 = vmatpush1.msra.mxu0 0.0
      %1964 = vmatprep.subr.mxu0 0.0
      %1965 = vmatpush1.msra.mxu0 0.0
      %1966 = vmatprep.mubr.f32.mxu0 0.0
      %1967 = vmatmul.mubr.f32.gmra.mrb[0].mxu0 %v1088
      %v1968 = vpop.f32.mrb[0].mxu0
      %v1969 = vadd.f32 0.0, %v1968
      %v1970 = vpop.f32.mrb[0].mxu0
      %v1971 = vadd.f32 0.0, %v1970
      %1972 = vmatprep.mubr.f32.mxu0 0.0
      %1973 = vmatmul.mubr.f32.gmra.mrb[0].mxu0 %v1091
      %v1974 = vpop.f32.mrb[0].mxu0
      %v1975 = vadd.f32 0.0, %v1974
      %v1976 = vpop.f32.mrb[0].mxu0
      %v1977 = vadd.f32 0.0, %v1976
      %1978 = vmatprep.mubr.f32.mxu0 0.0
      %1979 = vmatmul.mubr.f32.gmra.mrb[0].mxu0 %v1094
      %v1980 = vpop.f32.mrb[0].mxu0
      %v1981 = vadd.f32 0.0, %v1980
      %v1982 = vpop.f32.mrb[0].mxu0
      %v1983 = vadd.f32 0.0, %v1982
      %1984 = vmatprep.mubr.f32.mxu0 0.0
      %1985 = vmatmul.mubr.f32.gmra.mrb[0].mxu0 %v1097
      %v1986 = vpop.f32.mrb[0].mxu0
      %v1987 = vadd.f32 0.0, %v1986
      %v1988 = vpop.f32.mrb[0].mxu0
      %v1989 = vadd.f32 0.0, %v1988
      %1990 = vmatprep.mubr.f32.mxu0 0.0
      %1991 = vmatmul.mubr.f32.gmra.mrb[0].mxu0 %v1100
      %v1992 = vpop.f32.mrb[0].mxu0
      %v1993 = vadd.f32 0.0, %v1992
      %v1994 = vpop.f32.mrb[0].mxu0
      %v1995 = vadd.f32 0.0, %v1994
      %1996 = vmatprep.mubr.f32.mxu0 0.0
      %1997 = vmatmul.mubr.f32.gmra.mrb[0].mxu0 %v1103
      %v1998 = vpop.f32.mrb[0].mxu0
      %v1999 = vadd.f32 0.0, %v1998
      %v2000 = vpop.f32.mrb[0].mxu0
      %v2001 = vadd.f32 0.0, %v2000
      %2002 = vmatprep.mubr.f32.mxu0 0.0
      %2003 = vmatmul.mubr.f32.gmra.mrb[0].mxu0 %v1106
      %v2004 = vpop.f32.mrb[0].mxu0
      %v2005 = vadd.f32 0.0, %v2004
      %v2006 = vpop.f32.mrb[0].mxu0
      %v2007 = vadd.f32 0.0, %v2006
      %2008 = vmatprep.mubr.f32.mxu0 0.0
      %2009 = vmatmul.mubr.f32.gmra.mrb[0].mxu0 %v1109
      %v2010 = vpop.f32.mrb[0].mxu0
      %v2011 = vadd.f32 0.0, %v2010
      %v2012 = vpop.f32.mrb[0].mxu0
      %v2013 = vadd.f32 0.0, %v2012
      %2014 = vdwg.mxu0
      %s2015 = smul.u32 %s584, 128
      %s2016 = smul.addr %s2015, 8
      %s2017 = scalar_lea.vmem [#allocation5], %s2016
      %v2018 = vld [vmem:[%s2017] sm:$0xff]
      %v2019 = vld [vmem:[%s2017 + $0x8] sm:$0xff]
      %v2020 = vld [vmem:[%s2017 + $0x10] sm:$0xff]
      %v2021 = vld [vmem:[%s2017 + $0x18] sm:$0xff]
      %v2022 = vld [vmem:[%s2017 + $0x20] sm:$0xff]
      %v2023 = vld [vmem:[%s2017 + $0x28] sm:$0xff]
      %v2024 = vld [vmem:[%s2017 + $0x30] sm:$0xff]
      %v2025 = vld [vmem:[%s2017 + $0x38] sm:$0xff]
      %v2026 = vld [vmem:[%s2017 + $0x40] sm:$0xff]
      %v2027 = vld [vmem:[%s2017 + $0x48] sm:$0xff]
      %v2028 = vld [vmem:[%s2017 + $0x50] sm:$0xff]
      %v2029 = vld [vmem:[%s2017 + $0x58] sm:$0xff]
      %v2030 = vld [vmem:[%s2017 + $0x60] sm:$0xff]
      %v2031 = vld [vmem:[%s2017 + $0x68] sm:$0xff]
      %v2032 = vld [vmem:[%s2017 + $0x70] sm:$0xff]
      %v2033 = vld [vmem:[%s2017 + $0x78] sm:$0xff]
      %v2034 = vld [vmem:[%s2017 + $0x80] sm:$0xff]
      %v2035 = vld [vmem:[%s2017 + $0x88] sm:$0xff]
      %v2036 = vld [vmem:[%s2017 + $0x90] sm:$0xff]
      %v2037 = vld [vmem:[%s2017 + $0x98] sm:$0xff]
      %v2038 = vld [vmem:[%s2017 + $0xa0] sm:$0xff]
      %v2039 = vld [vmem:[%s2017 + $0xa8] sm:$0xff]
      %v2040 = vld [vmem:[%s2017 + $0xb0] sm:$0xff]
      %v2041 = vld [vmem:[%s2017 + $0xb8] sm:$0xff]
      %v2042 = vld [vmem:[%s2017 + $0xc0] sm:$0xff]
      %v2043 = vld [vmem:[%s2017 + $0xc8] sm:$0xff]
      %v2044 = vld [vmem:[%s2017 + $0xd0] sm:$0xff]
      %v2045 = vld [vmem:[%s2017 + $0xd8] sm:$0xff]
      %v2046 = vld [vmem:[%s2017 + $0xe0] sm:$0xff]
      %v2047 = vld [vmem:[%s2017 + $0xe8] sm:$0xff]
      %v2048 = vld [vmem:[%s2017 + $0xf0] sm:$0xff]
      %v2049 = vld [vmem:[%s2017 + $0xf8] sm:$0xff]
      %v2050 = vld [vmem:[%s2017 + $0x100] sm:$0xff]
      %v2051 = vld [vmem:[%s2017 + $0x108] sm:$0xff]
      %v2052 = vld [vmem:[%s2017 + $0x110] sm:$0xff]
      %v2053 = vld [vmem:[%s2017 + $0x118] sm:$0xff]
      %v2054 = vld [vmem:[%s2017 + $0x120] sm:$0xff]
      %v2055 = vld [vmem:[%s2017 + $0x128] sm:$0xff]
      %v2056 = vld [vmem:[%s2017 + $0x130] sm:$0xff]
      %v2057 = vld [vmem:[%s2017 + $0x138] sm:$0xff]
      %v2058 = vld [vmem:[%s2017 + $0x140] sm:$0xff]
      %v2059 = vld [vmem:[%s2017 + $0x148] sm:$0xff]
      %v2060 = vld [vmem:[%s2017 + $0x150] sm:$0xff]
      %v2061 = vld [vmem:[%s2017 + $0x158] sm:$0xff]
      %v2062 = vld [vmem:[%s2017 + $0x160] sm:$0xff]
      %v2063 = vld [vmem:[%s2017 + $0x168] sm:$0xff]
      %v2064 = vld [vmem:[%s2017 + $0x170] sm:$0xff]
      %v2065 = vld [vmem:[%s2017 + $0x178] sm:$0xff]
      %v2066 = vld [vmem:[%s2017 + $0x180] sm:$0xff]
      %v2067 = vld [vmem:[%s2017 + $0x188] sm:$0xff]
      %v2068 = vld [vmem:[%s2017 + $0x190] sm:$0xff]
      %v2069 = vld [vmem:[%s2017 + $0x198] sm:$0xff]
      %v2070 = vld [vmem:[%s2017 + $0x1a0] sm:$0xff]
      %v2071 = vld [vmem:[%s2017 + $0x1a8] sm:$0xff]
      %v2072 = vld [vmem:[%s2017 + $0x1b0] sm:$0xff]
      %v2073 = vld [vmem:[%s2017 + $0x1b8] sm:$0xff]
      %v2074 = vld [vmem:[%s2017 + $0x1c0] sm:$0xff]
      %v2075 = vld [vmem:[%s2017 + $0x1c8] sm:$0xff]
      %v2076 = vld [vmem:[%s2017 + $0x1d0] sm:$0xff]
      %v2077 = vld [vmem:[%s2017 + $0x1d8] sm:$0xff]
      %v2078 = vld [vmem:[%s2017 + $0x1e0] sm:$0xff]
      %v2079 = vld [vmem:[%s2017 + $0x1e8] sm:$0xff]
      %v2080 = vld [vmem:[%s2017 + $0x1f0] sm:$0xff]
      %v2081 = vld [vmem:[%s2017 + $0x1f8] sm:$0xff]
      %v2082 = vld [vmem:[%s2017 + $0x200] sm:$0xff]
      %v2083 = vld [vmem:[%s2017 + $0x208] sm:$0xff]
      %v2084 = vld [vmem:[%s2017 + $0x210] sm:$0xff]
      %v2085 = vld [vmem:[%s2017 + $0x218] sm:$0xff]
      %v2086 = vld [vmem:[%s2017 + $0x220] sm:$0xff]
      %v2087 = vld [vmem:[%s2017 + $0x228] sm:$0xff]
      %v2088 = vld [vmem:[%s2017 + $0x230] sm:$0xff]
      %v2089 = vld [vmem:[%s2017 + $0x238] sm:$0xff]
      %v2090 = vld [vmem:[%s2017 + $0x240] sm:$0xff]
      %v2091 = vld [vmem:[%s2017 + $0x248] sm:$0xff]
      %v2092 = vld [vmem:[%s2017 + $0x250] sm:$0xff]
      %v2093 = vld [vmem:[%s2017 + $0x258] sm:$0xff]
      %v2094 = vld [vmem:[%s2017 + $0x260] sm:$0xff]
      %v2095 = vld [vmem:[%s2017 + $0x268] sm:$0xff]
      %v2096 = vld [vmem:[%s2017 + $0x270] sm:$0xff]
      %v2097 = vld [vmem:[%s2017 + $0x278] sm:$0xff]
      %v2098 = vld [vmem:[%s2017 + $0x280] sm:$0xff]
      %v2099 = vld [vmem:[%s2017 + $0x288] sm:$0xff]
      %v2100 = vld [vmem:[%s2017 + $0x290] sm:$0xff]
      %v2101 = vld [vmem:[%s2017 + $0x298] sm:$0xff]
      %v2102 = vld [vmem:[%s2017 + $0x2a0] sm:$0xff]
      %v2103 = vld [vmem:[%s2017 + $0x2a8] sm:$0xff]
      %v2104 = vld [vmem:[%s2017 + $0x2b0] sm:$0xff]
      %v2105 = vld [vmem:[%s2017 + $0x2b8] sm:$0xff]
      %v2106 = vld [vmem:[%s2017 + $0x2c0] sm:$0xff]
      %v2107 = vld [vmem:[%s2017 + $0x2c8] sm:$0xff]
      %v2108 = vld [vmem:[%s2017 + $0x2d0] sm:$0xff]
      %v2109 = vld [vmem:[%s2017 + $0x2d8] sm:$0xff]
      %v2110 = vld [vmem:[%s2017 + $0x2e0] sm:$0xff]
      %v2111 = vld [vmem:[%s2017 + $0x2e8] sm:$0xff]
      %v2112 = vld [vmem:[%s2017 + $0x2f0] sm:$0xff]
      %v2113 = vld [vmem:[%s2017 + $0x2f8] sm:$0xff]
      %v2114 = vld [vmem:[%s2017 + $0x300] sm:$0xff]
      %v2115 = vld [vmem:[%s2017 + $0x308] sm:$0xff]
      %v2116 = vld [vmem:[%s2017 + $0x310] sm:$0xff]
      %v2117 = vld [vmem:[%s2017 + $0x318] sm:$0xff]
      %v2118 = vld [vmem:[%s2017 + $0x320] sm:$0xff]
      %v2119 = vld [vmem:[%s2017 + $0x328] sm:$0xff]
      %v2120 = vld [vmem:[%s2017 + $0x330] sm:$0xff]
      %v2121 = vld [vmem:[%s2017 + $0x338] sm:$0xff]
      %v2122 = vld [vmem:[%s2017 + $0x340] sm:$0xff]
      %v2123 = vld [vmem:[%s2017 + $0x348] sm:$0xff]
      %v2124 = vld [vmem:[%s2017 + $0x350] sm:$0xff]
      %v2125 = vld [vmem:[%s2017 + $0x358] sm:$0xff]
      %v2126 = vld [vmem:[%s2017 + $0x360] sm:$0xff]
      %v2127 = vld [vmem:[%s2017 + $0x368] sm:$0xff]
      %v2128 = vld [vmem:[%s2017 + $0x370] sm:$0xff]
      %v2129 = vld [vmem:[%s2017 + $0x378] sm:$0xff]
      %v2130 = vld [vmem:[%s2017 + $0x380] sm:$0xff]
      %v2131 = vld [vmem:[%s2017 + $0x388] sm:$0xff]
      %v2132 = vld [vmem:[%s2017 + $0x390] sm:$0xff]
      %v2133 = vld [vmem:[%s2017 + $0x398] sm:$0xff]
      %v2134 = vld [vmem:[%s2017 + $0x3a0] sm:$0xff]
      %v2135 = vld [vmem:[%s2017 + $0x3a8] sm:$0xff]
      %v2136 = vld [vmem:[%s2017 + $0x3b0] sm:$0xff]
      %v2137 = vld [vmem:[%s2017 + $0x3b8] sm:$0xff]
      %v2138 = vld [vmem:[%s2017 + $0x3c0] sm:$0xff]
      %v2139 = vld [vmem:[%s2017 + $0x3c8] sm:$0xff]
      %v2140 = vld [vmem:[%s2017 + $0x3d0] sm:$0xff]
      %v2141 = vld [vmem:[%s2017 + $0x3d8] sm:$0xff]
      %v2142 = vld [vmem:[%s2017 + $0x3e0] sm:$0xff]
      %v2143 = vld [vmem:[%s2017 + $0x3e8] sm:$0xff]
      %v2144 = vld [vmem:[%s2017 + $0x3f0] sm:$0xff]
      %v2145 = vld [vmem:[%s2017 + $0x3f8] sm:$0xff]
      %v2146 = vmul.f32 %v2018, %v1178
      %v2147 = vmul.f32 %v2019, %v1180
      %v2148 = vmul.f32 %v2020, %v1291
      %v2149 = vmul.f32 %v2021, %v1293
      %v2150 = vmul.f32 %v2022, %v1404
      %v2151 = vmul.f32 %v2023, %v1406
      %v2152 = vmul.f32 %v2024, %v1517
      %v2153 = vmul.f32 %v2025, %v1519
      %v2154 = vmul.f32 %v2026, %v1630
      %v2155 = vmul.f32 %v2027, %v1632
      %v2156 = vmul.f32 %v2028, %v1743
      %v2157 = vmul.f32 %v2029, %v1745
      %v2158 = vmul.f32 %v2030, %v1856
      %v2159 = vmul.f32 %v2031, %v1858
      %v2160 = vmul.f32 %v2032, %v1969
      %v2161 = vmul.f32 %v2033, %v1971
      %v2162 = vmul.f32 %v2034, %v1184
      %v2163 = vmul.f32 %v2035, %v1186
      %v2164 = vmul.f32 %v2036, %v1297
      %v2165 = vmul.f32 %v2037, %v1299
      %v2166 = vmul.f32 %v2038, %v1410
      %v2167 = vmul.f32 %v2039, %v1412
      %v2168 = vmul.f32 %v2040, %v1523
      %v2169 = vmul.f32 %v2041, %v1525
      %v2170 = vmul.f32 %v2042, %v1636
      %v2171 = vmul.f32 %v2043, %v1638
      %v2172 = vmul.f32 %v2044, %v1749
      %v2173 = vmul.f32 %v2045, %v1751
      %v2174 = vmul.f32 %v2046, %v1862
      %v2175 = vmul.f32 %v2047, %v1864
      %v2176 = vmul.f32 %v2048, %v1975
      %v2177 = vmul.f32 %v2049, %v1977
      %v2178 = vmul.f32 %v2050, %v1190
      %v2179 = vmul.f32 %v2051, %v1192
      %v2180 = vmul.f32 %v2052, %v1303
      %v2181 = vmul.f32 %v2053, %v1305
      %v2182 = vmul.f32 %v2054, %v1416
      %v2183 = vmul.f32 %v2055, %v1418
      %v2184 = vmul.f32 %v2056, %v1529
      %v2185 = vmul.f32 %v2057, %v1531
      %v2186 = vmul.f32 %v2058, %v1642
      %v2187 = vmul.f32 %v2059, %v1644
      %v2188 = vmul.f32 %v2060, %v1755
      %v2189 = vmul.f32 %v2061, %v1757
      %v2190 = vmul.f32 %v2062, %v1868
      %v2191 = vmul.f32 %v2063, %v1870
      %v2192 = vmul.f32 %v2064, %v1981
      %v2193 = vmul.f32 %v2065, %v1983
      %v2194 = vmul.f32 %v2066, %v1196
      %v2195 = vmul.f32 %v2067, %v1198
      %v2196 = vmul.f32 %v2068, %v1309
      %v2197 = vmul.f32 %v2069, %v1311
      %v2198 = vmul.f32 %v2070, %v1422
      %v2199 = vmul.f32 %v2071, %v1424
      %v2200 = vmul.f32 %v2072, %v1535
      %v2201 = vmul.f32 %v2073, %v1537
      %v2202 = vmul.f32 %v2074, %v1648
      %v2203 = vmul.f32 %v2075, %v1650
      %v2204 = vmul.f32 %v2076, %v1761
      %v2205 = vmul.f32 %v2077, %v1763
      %v2206 = vmul.f32 %v2078, %v1874
      %v2207 = vmul.f32 %v2079, %v1876
      %v2208 = vmul.f32 %v2080, %v1987
      %v2209 = vmul.f32 %v2081, %v1989
      %v2210 = vmul.f32 %v2082, %v1202
      %v2211 = vmul.f32 %v2083, %v1204
      %v2212 = vmul.f32 %v2084, %v1315
      %v2213 = vmul.f32 %v2085, %v1317
      %v2214 = vmul.f32 %v2086, %v1428
      %v2215 = vmul.f32 %v2087, %v1430
      %v2216 = vmul.f32 %v2088, %v1541
      %v2217 = vmul.f32 %v2089, %v1543
      %v2218 = vmul.f32 %v2090, %v1654
      %v2219 = vmul.f32 %v2091, %v1656
      %v2220 = vmul.f32 %v2092, %v1767
      %v2221 = vmul.f32 %v2093, %v1769
      %v2222 = vmul.f32 %v2094, %v1880
      %v2223 = vmul.f32 %v2095, %v1882
      %v2224 = vmul.f32 %v2096, %v1993
      %v2225 = vmul.f32 %v2097, %v1995
      %v2226 = vmul.f32 %v2098, %v1208
      %v2227 = vmul.f32 %v2099, %v1210
      %v2228 = vmul.f32 %v2100, %v1321
      %v2229 = vmul.f32 %v2101, %v1323
      %v2230 = vmul.f32 %v2102, %v1434
      %v2231 = vmul.f32 %v2103, %v1436
      %v2232 = vmul.f32 %v2104, %v1547
      %v2233 = vmul.f32 %v2105, %v1549
      %v2234 = vmul.f32 %v2106, %v1660
      %v2235 = vmul.f32 %v2107, %v1662
      %v2236 = vmul.f32 %v2108, %v1773
      %v2237 = vmul.f32 %v2109, %v1775
      %v2238 = vmul.f32 %v2110, %v1886
      %v2239 = vmul.f32 %v2111, %v1888
      %v2240 = vmul.f32 %v2112, %v1999
      %v2241 = vmul.f32 %v2113, %v2001
      %v2242 = vmul.f32 %v2114, %v1214
      %v2243 = vmul.f32 %v2115, %v1216
      %v2244 = vmul.f32 %v2116, %v1327
      %v2245 = vmul.f32 %v2117, %v1329
      %v2246 = vmul.f32 %v2118, %v1440
      %v2247 = vmul.f32 %v2119, %v1442
      %v2248 = vmul.f32 %v2120, %v1553
      %v2249 = vmul.f32 %v2121, %v1555
      %v2250 = vmul.f32 %v2122, %v1666
      %v2251 = vmul.f32 %v2123, %v1668
      %v2252 = vmul.f32 %v2124, %v1779
      %v2253 = vmul.f32 %v2125, %v1781
      %v2254 = vmul.f32 %v2126, %v1892
      %v2255 = vmul.f32 %v2127, %v1894
      %v2256 = vmul.f32 %v2128, %v2005
      %v2257 = vmul.f32 %v2129, %v2007
      %v2258 = vmul.f32 %v2130, %v1220
      %v2259 = vmul.f32 %v2131, %v1222
      %v2260 = vmul.f32 %v2132, %v1333
      %v2261 = vmul.f32 %v2133, %v1335
      %v2262 = vmul.f32 %v2134, %v1446
      %v2263 = vmul.f32 %v2135, %v1448
      %v2264 = vmul.f32 %v2136, %v1559
      %v2265 = vmul.f32 %v2137, %v1561
      %v2266 = vmul.f32 %v2138, %v1672
      %v2267 = vmul.f32 %v2139, %v1674
      %v2268 = vmul.f32 %v2140, %v1785
      %v2269 = vmul.f32 %v2141, %v1787
      %v2270 = vmul.f32 %v2142, %v1898
      %v2271 = vmul.f32 %v2143, %v1900
      %v2272 = vmul.f32 %v2144, %v2011
      %v2273 = vmul.f32 %v2145, %v2013
      %vm2274 = vcmask 523264
      %v2276 = vsel %vm2274, %v204, 0
      %2278 = vmatprep.subr.mxu0 %v2147
      %2279 = vmatpush1.msra.mxu0 %v2146
      %2280 = vmatprep.subr.mxu0 %v2163
      %2281 = vmatpush1.msra.mxu0 %v2162
      %2282 = vmatprep.subr.mxu0 %v2179
      %2283 = vmatpush1.msra.mxu0 %v2178
      %2284 = vmatprep.subr.mxu0 %v2195
      %2285 = vmatpush1.msra.mxu0 %v2194
      %2286 = vmatprep.subr.mxu0 %v2211
      %2287 = vmatpush1.msra.mxu0 %v2210
      %2288 = vmatprep.subr.mxu0 %v2227
      %2289 = vmatpush1.msra.mxu0 %v2226
      %2290 = vmatprep.subr.mxu0 %v2243
      %2291 = vmatpush1.msra.mxu0 %v2242
      %2292 = vmatprep.subr.mxu0 %v2259
      %2293 = vmatpush1.msra.mxu0 %v2258
      %2294 = vmatprep.subr.mxu0 0.0
      %2295 = vmatpush1.msra.mxu0 0.0
      %2296 = vmatprep.subr.mxu0 0.0
      %2297 = vmatpush1.msra.mxu0 0.0
      %2298 = vmatprep.subr.mxu0 0.0
      %2299 = vmatpush1.msra.mxu0 0.0
      %2300 = vmatprep.subr.mxu0 0.0
      %2301 = vmatpush1.msra.mxu0 0.0
      %2302 = vmatprep.subr.mxu0 0.0
      %2303 = vmatpush1.msra.mxu0 0.0
      %2304 = vmatprep.subr.mxu0 0.0
      %2305 = vmatpush1.msra.mxu0 0.0
      %2306 = vmatprep.subr.mxu0 0.0
      %2307 = vmatpush1.msra.mxu0 0.0
      %2308 = vmatprep.subr.mxu0 0.0
      %2309 = vmatpush1.msra.mxu0 0.0
      %2310 = vmatprep.subr.mxu0 0.0
      %2311 = vmatpush1.msra.mxu0 0.0
      %2312 = vmatprep.subr.mxu0 0.0
      %2313 = vmatpush1.msra.mxu0 0.0
      %2314 = vmatprep.subr.mxu0 0.0
      %2315 = vmatpush1.msra.mxu0 0.0
      %2316 = vmatprep.subr.mxu0 0.0
      %2317 = vmatpush1.msra.mxu0 0.0
      %2318 = vmatprep.subr.mxu0 0.0
      %2319 = vmatpush1.msra.mxu0 0.0
      %2320 = vmatprep.subr.mxu0 0.0
      %2321 = vmatpush1.msra.mxu0 0.0
      %2322 = vmatprep.subr.mxu0 0.0
      %2323 = vmatpush1.msra.mxu0 0.0
      %2324 = vmatprep.subr.mxu0 0.0
      %2325 = vmatpush1.msra.mxu0 0.0
      %2326 = vmatprep.subr.mxu0 0.0
      %2327 = vmatpush1.msra.mxu0 0.0
      %2328 = vmatprep.subr.mxu0 0.0
      %2329 = vmatpush1.msra.mxu0 0.0
      %2330 = vmatprep.subr.mxu0 0.0
      %2331 = vmatpush1.msra.mxu0 0.0
      %2332 = vmatprep.subr.mxu0 0.0
      %2333 = vmatpush1.msra.mxu0 0.0
      %2334 = vmatprep.subr.mxu0 0.0
      %2335 = vmatpush1.msra.mxu0 0.0
      %2336 = vmatprep.subr.mxu0 0.0
      %2337 = vmatpush1.msra.mxu0 0.0
      %2338 = vmatprep.subr.mxu0 0.0
      %2339 = vmatpush1.msra.mxu0 0.0
      %2340 = vmatprep.subr.mxu0 0.0
      %2341 = vmatpush1.msra.mxu0 0.0
      %2342 = vmatprep.mubr.f32.mxu0 0.0
      %2343 = vmatmul.mubr.f32.gmra.mrb[0].mxu0 %v2276
      %v2344 = vpop.f32.mrb[0].mxu0
      %v2345 = vadd.f32 0.0, %v2344
      %v2346 = vpop.f32.mrb[0].mxu0
      %v2347 = vadd.f32 0.0, %v2346
      %2348 = vdwg.mxu0
      %2349 = vmatprep.subr.mxu0 %v2149
      %2350 = vmatpush1.msra.mxu0 %v2148
      %2351 = vmatprep.subr.mxu0 %v2165
      %2352 = vmatpush1.msra.mxu0 %v2164
      %2353 = vmatprep.subr.mxu0 %v2181
      %2354 = vmatpush1.msra.mxu0 %v2180
      %2355 = vmatprep.subr.mxu0 %v2197
      %2356 = vmatpush1.msra.mxu0 %v2196
      %2357 = vmatprep.subr.mxu0 %v2213
      %2358 = vmatpush1.msra.mxu0 %v2212
      %2359 = vmatprep.subr.mxu0 %v2229
      %2360 = vmatpush1.msra.mxu0 %v2228
      %2361 = vmatprep.subr.mxu0 %v2245
      %2362 = vmatpush1.msra.mxu0 %v2244
      %2363 = vmatprep.subr.mxu0 %v2261
      %2364 = vmatpush1.msra.mxu0 %v2260
      %2365 = vmatprep.subr.mxu0 0.0
      %2366 = vmatpush1.msra.mxu0 0.0
      %2367 = vmatprep.subr.mxu0 0.0
      %2368 = vmatpush1.msra.mxu0 0.0
      %2369 = vmatprep.subr.mxu0 0.0
      %2370 = vmatpush1.msra.mxu0 0.0
      %2371 = vmatprep.subr.mxu0 0.0
      %2372 = vmatpush1.msra.mxu0 0.0
      %2373 = vmatprep.subr.mxu0 0.0
      %2374 = vmatpush1.msra.mxu0 0.0
      %2375 = vmatprep.subr.mxu0 0.0
      %2376 = vmatpush1.msra.mxu0 0.0
      %2377 = vmatprep.subr.mxu0 0.0
      %2378 = vmatpush1.msra.mxu0 0.0
      %2379 = vmatprep.subr.mxu0 0.0
      %2380 = vmatpush1.msra.mxu0 0.0
      %2381 = vmatprep.subr.mxu0 0.0
      %2382 = vmatpush1.msra.mxu0 0.0
      %2383 = vmatprep.subr.mxu0 0.0
      %2384 = vmatpush1.msra.mxu0 0.0
      %2385 = vmatprep.subr.mxu0 0.0
      %2386 = vmatpush1.msra.mxu0 0.0
      %2387 = vmatprep.subr.mxu0 0.0
      %2388 = vmatpush1.msra.mxu0 0.0
      %2389 = vmatprep.subr.mxu0 0.0
      %2390 = vmatpush1.msra.mxu0 0.0
      %2391 = vmatprep.subr.mxu0 0.0
      %2392 = vmatpush1.msra.mxu0 0.0
      %2393 = vmatprep.subr.mxu0 0.0
      %2394 = vmatpush1.msra.mxu0 0.0
      %2395 = vmatprep.subr.mxu0 0.0
      %2396 = vmatpush1.msra.mxu0 0.0
      %2397 = vmatprep.subr.mxu0 0.0
      %2398 = vmatpush1.msra.mxu0 0.0
      %2399 = vmatprep.subr.mxu0 0.0
      %2400 = vmatpush1.msra.mxu0 0.0
      %2401 = vmatprep.subr.mxu0 0.0
      %2402 = vmatpush1.msra.mxu0 0.0
      %2403 = vmatprep.subr.mxu0 0.0
      %2404 = vmatpush1.msra.mxu0 0.0
      %2405 = vmatprep.subr.mxu0 0.0
      %2406 = vmatpush1.msra.mxu0 0.0
      %2407 = vmatprep.subr.mxu0 0.0
      %2408 = vmatpush1.msra.mxu0 0.0
      %2409 = vmatprep.subr.mxu0 0.0
      %2410 = vmatpush1.msra.mxu0 0.0
      %2411 = vmatprep.subr.mxu0 0.0
      %2412 = vmatpush1.msra.mxu0 0.0
      %2413 = vmatprep.mubr.f32.mxu0 0.0
      %2414 = vmatmul.mubr.f32.gmra.mrb[0].mxu0 %v2276
      %v2415 = vpop.f32.mrb[0].mxu0
      %v2416 = vadd.f32 0.0, %v2415
      %v2417 = vpop.f32.mrb[0].mxu0
      %v2418 = vadd.f32 0.0, %v2417
      %2419 = vdwg.mxu0
      %2420 = vmatprep.subr.mxu0 %v2151
      %2421 = vmatpush1.msra.mxu0 %v2150
      %2422 = vmatprep.subr.mxu0 %v2167
      %2423 = vmatpush1.msra.mxu0 %v2166
      %2424 = vmatprep.subr.mxu0 %v2183
      %2425 = vmatpush1.msra.mxu0 %v2182
      %2426 = vmatprep.subr.mxu0 %v2199
      %2427 = vmatpush1.msra.mxu0 %v2198
      %2428 = vmatprep.subr.mxu0 %v2215
      %2429 = vmatpush1.msra.mxu0 %v2214
      %2430 = vmatprep.subr.mxu0 %v2231
      %2431 = vmatpush1.msra.mxu0 %v2230
      %2432 = vmatprep.subr.mxu0 %v2247
      %2433 = vmatpush1.msra.mxu0 %v2246
      %2434 = vmatprep.subr.mxu0 %v2263
      %2435 = vmatpush1.msra.mxu0 %v2262
      %2436 = vmatprep.subr.mxu0 0.0
      %2437 = vmatpush1.msra.mxu0 0.0
      %2438 = vmatprep.subr.mxu0 0.0
      %2439 = vmatpush1.msra.mxu0 0.0
      %2440 = vmatprep.subr.mxu0 0.0
      %2441 = vmatpush1.msra.mxu0 0.0
      %2442 = vmatprep.subr.mxu0 0.0
      %2443 = vmatpush1.msra.mxu0 0.0
      %2444 = vmatprep.subr.mxu0 0.0
      %2445 = vmatpush1.msra.mxu0 0.0
      %2446 = vmatprep.subr.mxu0 0.0
      %2447 = vmatpush1.msra.mxu0 0.0
      %2448 = vmatprep.subr.mxu0 0.0
      %2449 = vmatpush1.msra.mxu0 0.0
      %2450 = vmatprep.subr.mxu0 0.0
      %2451 = vmatpush1.msra.mxu0 0.0
      %2452 = vmatprep.subr.mxu0 0.0
      %2453 = vmatpush1.msra.mxu0 0.0
      %2454 = vmatprep.subr.mxu0 0.0
      %2455 = vmatpush1.msra.mxu0 0.0
      %2456 = vmatprep.subr.mxu0 0.0
      %2457 = vmatpush1.msra.mxu0 0.0
      %2458 = vmatprep.subr.mxu0 0.0
      %2459 = vmatpush1.msra.mxu0 0.0
      %2460 = vmatprep.subr.mxu0 0.0
      %2461 = vmatpush1.msra.mxu0 0.0
      %2462 = vmatprep.subr.mxu0 0.0
      %2463 = vmatpush1.msra.mxu0 0.0
      %2464 = vmatprep.subr.mxu0 0.0
      %2465 = vmatpush1.msra.mxu0 0.0
      %2466 = vmatprep.subr.mxu0 0.0
      %2467 = vmatpush1.msra.mxu0 0.0
      %2468 = vmatprep.subr.mxu0 0.0
      %2469 = vmatpush1.msra.mxu0 0.0
      %2470 = vmatprep.subr.mxu0 0.0
      %2471 = vmatpush1.msra.mxu0 0.0
      %2472 = vmatprep.subr.mxu0 0.0
      %2473 = vmatpush1.msra.mxu0 0.0
      %2474 = vmatprep.subr.mxu0 0.0
      %2475 = vmatpush1.msra.mxu0 0.0
      %2476 = vmatprep.subr.mxu0 0.0
      %2477 = vmatpush1.msra.mxu0 0.0
      %2478 = vmatprep.subr.mxu0 0.0
      %2479 = vmatpush1.msra.mxu0 0.0
      %2480 = vmatprep.subr.mxu0 0.0
      %2481 = vmatpush1.msra.mxu0 0.0
      %2482 = vmatprep.subr.mxu0 0.0
      %2483 = vmatpush1.msra.mxu0 0.0
      %2484 = vmatprep.mubr.f32.mxu0 0.0
      %2485 = vmatmul.mubr.f32.gmra.mrb[0].mxu0 %v2276
      %v2486 = vpop.f32.mrb[0].mxu0
      %v2487 = vadd.f32 0.0, %v2486
      %v2488 = vpop.f32.mrb[0].mxu0
      %v2489 = vadd.f32 0.0, %v2488
      %2490 = vdwg.mxu0
      %2491 = vmatprep.subr.mxu0 %v2153
      %2492 = vmatpush1.msra.mxu0 %v2152
      %2493 = vmatprep.subr.mxu0 %v2169
      %2494 = vmatpush1.msra.mxu0 %v2168
      %2495 = vmatprep.subr.mxu0 %v2185
      %2496 = vmatpush1.msra.mxu0 %v2184
      %2497 = vmatprep.subr.mxu0 %v2201
      %2498 = vmatpush1.msra.mxu0 %v2200
      %2499 = vmatprep.subr.mxu0 %v2217
      %2500 = vmatpush1.msra.mxu0 %v2216
      %2501 = vmatprep.subr.mxu0 %v2233
      %2502 = vmatpush1.msra.mxu0 %v2232
      %2503 = vmatprep.subr.mxu0 %v2249
      %2504 = vmatpush1.msra.mxu0 %v2248
      %2505 = vmatprep.subr.mxu0 %v2265
      %2506 = vmatpush1.msra.mxu0 %v2264
      %2507 = vmatprep.subr.mxu0 0.0
      %2508 = vmatpush1.msra.mxu0 0.0
      %2509 = vmatprep.subr.mxu0 0.0
      %2510 = vmatpush1.msra.mxu0 0.0
      %2511 = vmatprep.subr.mxu0 0.0
      %2512 = vmatpush1.msra.mxu0 0.0
      %2513 = vmatprep.subr.mxu0 0.0
      %2514 = vmatpush1.msra.mxu0 0.0
      %2515 = vmatprep.subr.mxu0 0.0
      %2516 = vmatpush1.msra.mxu0 0.0
      %2517 = vmatprep.subr.mxu0 0.0
      %2518 = vmatpush1.msra.mxu0 0.0
      %2519 = vmatprep.subr.mxu0 0.0
      %2520 = vmatpush1.msra.mxu0 0.0
      %2521 = vmatprep.subr.mxu0 0.0
      %2522 = vmatpush1.msra.mxu0 0.0
      %2523 = vmatprep.subr.mxu0 0.0
      %2524 = vmatpush1.msra.mxu0 0.0
      %2525 = vmatprep.subr.mxu0 0.0
      %2526 = vmatpush1.msra.mxu0 0.0
      %2527 = vmatprep.subr.mxu0 0.0
      %2528 = vmatpush1.msra.mxu0 0.0
      %2529 = vmatprep.subr.mxu0 0.0
      %2530 = vmatpush1.msra.mxu0 0.0
      %2531 = vmatprep.subr.mxu0 0.0
      %2532 = vmatpush1.msra.mxu0 0.0
      %2533 = vmatprep.subr.mxu0 0.0
      %2534 = vmatpush1.msra.mxu0 0.0
      %2535 = vmatprep.subr.mxu0 0.0
      %2536 = vmatpush1.msra.mxu0 0.0
      %2537 = vmatprep.subr.mxu0 0.0
      %2538 = vmatpush1.msra.mxu0 0.0
      %2539 = vmatprep.subr.mxu0 0.0
      %2540 = vmatpush1.msra.mxu0 0.0
      %2541 = vmatprep.subr.mxu0 0.0
      %2542 = vmatpush1.msra.mxu0 0.0
      %2543 = vmatprep.subr.mxu0 0.0
      %2544 = vmatpush1.msra.mxu0 0.0
      %2545 = vmatprep.subr.mxu0 0.0
      %2546 = vmatpush1.msra.mxu0 0.0
      %2547 = vmatprep.subr.mxu0 0.0
      %2548 = vmatpush1.msra.mxu0 0.0
      %2549 = vmatprep.subr.mxu0 0.0
      %2550 = vmatpush1.msra.mxu0 0.0
      %2551 = vmatprep.subr.mxu0 0.0
      %2552 = vmatpush1.msra.mxu0 0.0
      %2553 = vmatprep.subr.mxu0 0.0
      %2554 = vmatpush1.msra.mxu0 0.0
      %2555 = vmatprep.mubr.f32.mxu0 0.0
      %2556 = vmatmul.mubr.f32.gmra.mrb[0].mxu0 %v2276
      %v2557 = vpop.f32.mrb[0].mxu0
      %v2558 = vadd.f32 0.0, %v2557
      %v2559 = vpop.f32.mrb[0].mxu0
      %v2560 = vadd.f32 0.0, %v2559
      %2561 = vdwg.mxu0
      %2562 = vmatprep.subr.mxu0 %v2155
      %2563 = vmatpush1.msra.mxu0 %v2154
      %2564 = vmatprep.subr.mxu0 %v2171
      %2565 = vmatpush1.msra.mxu0 %v2170
      %2566 = vmatprep.subr.mxu0 %v2187
      %2567 = vmatpush1.msra.mxu0 %v2186
      %2568 = vmatprep.subr.mxu0 %v2203
      %2569 = vmatpush1.msra.mxu0 %v2202
      %2570 = vmatprep.subr.mxu0 %v2219
      %2571 = vmatpush1.msra.mxu0 %v2218
      %2572 = vmatprep.subr.mxu0 %v2235
      %2573 = vmatpush1.msra.mxu0 %v2234
      %2574 = vmatprep.subr.mxu0 %v2251
      %2575 = vmatpush1.msra.mxu0 %v2250
      %2576 = vmatprep.subr.mxu0 %v2267
      %2577 = vmatpush1.msra.mxu0 %v2266
      %2578 = vmatprep.subr.mxu0 0.0
      %2579 = vmatpush1.msra.mxu0 0.0
      %2580 = vmatprep.subr.mxu0 0.0
      %2581 = vmatpush1.msra.mxu0 0.0
      %2582 = vmatprep.subr.mxu0 0.0
      %2583 = vmatpush1.msra.mxu0 0.0
      %2584 = vmatprep.subr.mxu0 0.0
      %2585 = vmatpush1.msra.mxu0 0.0
      %2586 = vmatprep.subr.mxu0 0.0
      %2587 = vmatpush1.msra.mxu0 0.0
      %2588 = vmatprep.subr.mxu0 0.0
      %2589 = vmatpush1.msra.mxu0 0.0
      %2590 = vmatprep.subr.mxu0 0.0
      %2591 = vmatpush1.msra.mxu0 0.0
      %2592 = vmatprep.subr.mxu0 0.0
      %2593 = vmatpush1.msra.mxu0 0.0
      %2594 = vmatprep.subr.mxu0 0.0
      %2595 = vmatpush1.msra.mxu0 0.0
      %2596 = vmatprep.subr.mxu0 0.0
      %2597 = vmatpush1.msra.mxu0 0.0
      %2598 = vmatprep.subr.mxu0 0.0
      %2599 = vmatpush1.msra.mxu0 0.0
      %2600 = vmatprep.subr.mxu0 0.0
      %2601 = vmatpush1.msra.mxu0 0.0
      %2602 = vmatprep.subr.mxu0 0.0
      %2603 = vmatpush1.msra.mxu0 0.0
      %2604 = vmatprep.subr.mxu0 0.0
      %2605 = vmatpush1.msra.mxu0 0.0
      %2606 = vmatprep.subr.mxu0 0.0
      %2607 = vmatpush1.msra.mxu0 0.0
      %2608 = vmatprep.subr.mxu0 0.0
      %2609 = vmatpush1.msra.mxu0 0.0
      %2610 = vmatprep.subr.mxu0 0.0
      %2611 = vmatpush1.msra.mxu0 0.0
      %2612 = vmatprep.subr.mxu0 0.0
      %2613 = vmatpush1.msra.mxu0 0.0
      %2614 = vmatprep.subr.mxu0 0.0
      %2615 = vmatpush1.msra.mxu0 0.0
      %2616 = vmatprep.subr.mxu0 0.0
      %2617 = vmatpush1.msra.mxu0 0.0
      %2618 = vmatprep.subr.mxu0 0.0
      %2619 = vmatpush1.msra.mxu0 0.0
      %2620 = vmatprep.subr.mxu0 0.0
      %2621 = vmatpush1.msra.mxu0 0.0
      %2622 = vmatprep.subr.mxu0 0.0
      %2623 = vmatpush1.msra.mxu0 0.0
      %2624 = vmatprep.subr.mxu0 0.0
      %2625 = vmatpush1.msra.mxu0 0.0
      %2626 = vmatprep.mubr.f32.mxu0 0.0
      %2627 = vmatmul.mubr.f32.gmra.mrb[0].mxu0 %v2276
      %v2628 = vpop.f32.mrb[0].mxu0
      %v2629 = vadd.f32 0.0, %v2628
      %v2630 = vpop.f32.mrb[0].mxu0
      %v2631 = vadd.f32 0.0, %v2630
      %2632 = vdwg.mxu0
      %2633 = vmatprep.subr.mxu0 %v2157
      %2634 = vmatpush1.msra.mxu0 %v2156
      %2635 = vmatprep.subr.mxu0 %v2173
      %2636 = vmatpush1.msra.mxu0 %v2172
      %2637 = vmatprep.subr.mxu0 %v2189
      %2638 = vmatpush1.msra.mxu0 %v2188
      %2639 = vmatprep.subr.mxu0 %v2205
      %2640 = vmatpush1.msra.mxu0 %v2204
      %2641 = vmatprep.subr.mxu0 %v2221
      %2642 = vmatpush1.msra.mxu0 %v2220
      %2643 = vmatprep.subr.mxu0 %v2237
      %2644 = vmatpush1.msra.mxu0 %v2236
      %2645 = vmatprep.subr.mxu0 %v2253
      %2646 = vmatpush1.msra.mxu0 %v2252
      %2647 = vmatprep.subr.mxu0 %v2269
      %2648 = vmatpush1.msra.mxu0 %v2268
      %2649 = vmatprep.subr.mxu0 0.0
      %2650 = vmatpush1.msra.mxu0 0.0
      %2651 = vmatprep.subr.mxu0 0.0
      %2652 = vmatpush1.msra.mxu0 0.0
      %2653 = vmatprep.subr.mxu0 0.0
      %2654 = vmatpush1.msra.mxu0 0.0
      %2655 = vmatprep.subr.mxu0 0.0
      %2656 = vmatpush1.msra.mxu0 0.0
      %2657 = vmatprep.subr.mxu0 0.0
      %2658 = vmatpush1.msra.mxu0 0.0
      %2659 = vmatprep.subr.mxu0 0.0
      %2660 = vmatpush1.msra.mxu0 0.0
      %2661 = vmatprep.subr.mxu0 0.0
      %2662 = vmatpush1.msra.mxu0 0.0
      %2663 = vmatprep.subr.mxu0 0.0
      %2664 = vmatpush1.msra.mxu0 0.0
      %2665 = vmatprep.subr.mxu0 0.0
      %2666 = vmatpush1.msra.mxu0 0.0
      %2667 = vmatprep.subr.mxu0 0.0
      %2668 = vmatpush1.msra.mxu0 0.0
      %2669 = vmatprep.subr.mxu0 0.0
      %2670 = vmatpush1.msra.mxu0 0.0
      %2671 = vmatprep.subr.mxu0 0.0
      %2672 = vmatpush1.msra.mxu0 0.0
      %2673 = vmatprep.subr.mxu0 0.0
      %2674 = vmatpush1.msra.mxu0 0.0
      %2675 = vmatprep.subr.mxu0 0.0
      %2676 = vmatpush1.msra.mxu0 0.0
      %2677 = vmatprep.subr.mxu0 0.0
      %2678 = vmatpush1.msra.mxu0 0.0
      %2679 = vmatprep.subr.mxu0 0.0
      %2680 = vmatpush1.msra.mxu0 0.0
      %2681 = vmatprep.subr.mxu0 0.0
      %2682 = vmatpush1.msra.mxu0 0.0
      %2683 = vmatprep.subr.mxu0 0.0
      %2684 = vmatpush1.msra.mxu0 0.0
      %2685 = vmatprep.subr.mxu0 0.0
      %2686 = vmatpush1.msra.mxu0 0.0
      %2687 = vmatprep.subr.mxu0 0.0
      %2688 = vmatpush1.msra.mxu0 0.0
      %2689 = vmatprep.subr.mxu0 0.0
      %2690 = vmatpush1.msra.mxu0 0.0
      %2691 = vmatprep.subr.mxu0 0.0
      %2692 = vmatpush1.msra.mxu0 0.0
      %2693 = vmatprep.subr.mxu0 0.0
      %2694 = vmatpush1.msra.mxu0 0.0
      %2695 = vmatprep.subr.mxu0 0.0
      %2696 = vmatpush1.msra.mxu0 0.0
      %2697 = vmatprep.mubr.f32.mxu0 0.0
      %2698 = vmatmul.mubr.f32.gmra.mrb[0].mxu0 %v2276
      %v2699 = vpop.f32.mrb[0].mxu0
      %v2700 = vadd.f32 0.0, %v2699
      %v2701 = vpop.f32.mrb[0].mxu0
      %v2702 = vadd.f32 0.0, %v2701
      %2703 = vdwg.mxu0
      %2704 = vmatprep.subr.mxu0 %v2159
      %2705 = vmatpush1.msra.mxu0 %v2158
      %2706 = vmatprep.subr.mxu0 %v2175
      %2707 = vmatpush1.msra.mxu0 %v2174
      %2708 = vmatprep.subr.mxu0 %v2191
      %2709 = vmatpush1.msra.mxu0 %v2190
      %2710 = vmatprep.subr.mxu0 %v2207
      %2711 = vmatpush1.msra.mxu0 %v2206
      %2712 = vmatprep.subr.mxu0 %v2223
      %2713 = vmatpush1.msra.mxu0 %v2222
      %2714 = vmatprep.subr.mxu0 %v2239
      %2715 = vmatpush1.msra.mxu0 %v2238
      %2716 = vmatprep.subr.mxu0 %v2255
      %2717 = vmatpush1.msra.mxu0 %v2254
      %2718 = vmatprep.subr.mxu0 %v2271
      %2719 = vmatpush1.msra.mxu0 %v2270
      %2720 = vmatprep.subr.mxu0 0.0
      %2721 = vmatpush1.msra.mxu0 0.0
      %2722 = vmatprep.subr.mxu0 0.0
      %2723 = vmatpush1.msra.mxu0 0.0
      %2724 = vmatprep.subr.mxu0 0.0
      %2725 = vmatpush1.msra.mxu0 0.0
      %2726 = vmatprep.subr.mxu0 0.0
      %2727 = vmatpush1.msra.mxu0 0.0
      %2728 = vmatprep.subr.mxu0 0.0
      %2729 = vmatpush1.msra.mxu0 0.0
      %2730 = vmatprep.subr.mxu0 0.0
      %2731 = vmatpush1.msra.mxu0 0.0
      %2732 = vmatprep.subr.mxu0 0.0
      %2733 = vmatpush1.msra.mxu0 0.0
      %2734 = vmatprep.subr.mxu0 0.0
      %2735 = vmatpush1.msra.mxu0 0.0
      %2736 = vmatprep.subr.mxu0 0.0
      %2737 = vmatpush1.msra.mxu0 0.0
      %2738 = vmatprep.subr.mxu0 0.0
      %2739 = vmatpush1.msra.mxu0 0.0
      %2740 = vmatprep.subr.mxu0 0.0
      %2741 = vmatpush1.msra.mxu0 0.0
      %2742 = vmatprep.subr.mxu0 0.0
      %2743 = vmatpush1.msra.mxu0 0.0
      %2744 = vmatprep.subr.mxu0 0.0
      %2745 = vmatpush1.msra.mxu0 0.0
      %2746 = vmatprep.subr.mxu0 0.0
      %2747 = vmatpush1.msra.mxu0 0.0
      %2748 = vmatprep.subr.mxu0 0.0
      %2749 = vmatpush1.msra.mxu0 0.0
      %2750 = vmatprep.subr.mxu0 0.0
      %2751 = vmatpush1.msra.mxu0 0.0
      %2752 = vmatprep.subr.mxu0 0.0
      %2753 = vmatpush1.msra.mxu0 0.0
      %2754 = vmatprep.subr.mxu0 0.0
      %2755 = vmatpush1.msra.mxu0 0.0
      %2756 = vmatprep.subr.mxu0 0.0
      %2757 = vmatpush1.msra.mxu0 0.0
      %2758 = vmatprep.subr.mxu0 0.0
      %2759 = vmatpush1.msra.mxu0 0.0
      %2760 = vmatprep.subr.mxu0 0.0
      %2761 = vmatpush1.msra.mxu0 0.0
      %2762 = vmatprep.subr.mxu0 0.0
      %2763 = vmatpush1.msra.mxu0 0.0
      %2764 = vmatprep.subr.mxu0 0.0
      %2765 = vmatpush1.msra.mxu0 0.0
      %2766 = vmatprep.subr.mxu0 0.0
      %2767 = vmatpush1.msra.mxu0 0.0
      %2768 = vmatprep.mubr.f32.mxu0 0.0
      %2769 = vmatmul.mubr.f32.gmra.mrb[0].mxu0 %v2276
      %v2770 = vpop.f32.mrb[0].mxu0
      %v2771 = vadd.f32 0.0, %v2770
      %v2772 = vpop.f32.mrb[0].mxu0
      %v2773 = vadd.f32 0.0, %v2772
      %2774 = vdwg.mxu0
      %2775 = vmatprep.subr.mxu0 %v2161
      %2776 = vmatpush1.msra.mxu0 %v2160
      %2777 = vmatprep.subr.mxu0 %v2177
      %2778 = vmatpush1.msra.mxu0 %v2176
      %2779 = vmatprep.subr.mxu0 %v2193
      %2780 = vmatpush1.msra.mxu0 %v2192
      %2781 = vmatprep.subr.mxu0 %v2209
      %2782 = vmatpush1.msra.mxu0 %v2208
      %2783 = vmatprep.subr.mxu0 %v2225
      %2784 = vmatpush1.msra.mxu0 %v2224
      %2785 = vmatprep.subr.mxu0 %v2241
      %2786 = vmatpush1.msra.mxu0 %v2240
      %2787 = vmatprep.subr.mxu0 %v2257
      %2788 = vmatpush1.msra.mxu0 %v2256
      %2789 = vmatprep.subr.mxu0 %v2273
      %2790 = vmatpush1.msra.mxu0 %v2272
      %2791 = vmatprep.subr.mxu0 0.0
      %2792 = vmatpush1.msra.mxu0 0.0
      %2793 = vmatprep.subr.mxu0 0.0
      %2794 = vmatpush1.msra.mxu0 0.0
      %2795 = vmatprep.subr.mxu0 0.0
      %2796 = vmatpush1.msra.mxu0 0.0
      %2797 = vmatprep.subr.mxu0 0.0
      %2798 = vmatpush1.msra.mxu0 0.0
      %2799 = vmatprep.subr.mxu0 0.0
      %2800 = vmatpush1.msra.mxu0 0.0
      %2801 = vmatprep.subr.mxu0 0.0
      %2802 = vmatpush1.msra.mxu0 0.0
      %2803 = vmatprep.subr.mxu0 0.0
      %2804 = vmatpush1.msra.mxu0 0.0
      %2805 = vmatprep.subr.mxu0 0.0
      %2806 = vmatpush1.msra.mxu0 0.0
      %2807 = vmatprep.subr.mxu0 0.0
      %2808 = vmatpush1.msra.mxu0 0.0
      %2809 = vmatprep.subr.mxu0 0.0
      %2810 = vmatpush1.msra.mxu0 0.0
      %2811 = vmatprep.subr.mxu0 0.0
      %2812 = vmatpush1.msra.mxu0 0.0
      %2813 = vmatprep.subr.mxu0 0.0
      %2814 = vmatpush1.msra.mxu0 0.0
      %2815 = vmatprep.subr.mxu0 0.0
      %2816 = vmatpush1.msra.mxu0 0.0
      %2817 = vmatprep.subr.mxu0 0.0
      %2818 = vmatpush1.msra.mxu0 0.0
      %2819 = vmatprep.subr.mxu0 0.0
      %2820 = vmatpush1.msra.mxu0 0.0
      %2821 = vmatprep.subr.mxu0 0.0
      %2822 = vmatpush1.msra.mxu0 0.0
      %2823 = vmatprep.subr.mxu0 0.0
      %2824 = vmatpush1.msra.mxu0 0.0
      %2825 = vmatprep.subr.mxu0 0.0
      %2826 = vmatpush1.msra.mxu0 0.0
      %2827 = vmatprep.subr.mxu0 0.0
      %2828 = vmatpush1.msra.mxu0 0.0
      %2829 = vmatprep.subr.mxu0 0.0
      %2830 = vmatpush1.msra.mxu0 0.0
      %2831 = vmatprep.subr.mxu0 0.0
      %2832 = vmatpush1.msra.mxu0 0.0
      %2833 = vmatprep.subr.mxu0 0.0
      %2834 = vmatpush1.msra.mxu0 0.0
      %2835 = vmatprep.subr.mxu0 0.0
      %2836 = vmatpush1.msra.mxu0 0.0
      %2837 = vmatprep.subr.mxu0 0.0
      %2838 = vmatpush1.msra.mxu0 0.0
      %2839 = vmatprep.mubr.f32.mxu0 0.0
      %2840 = vmatmul.mubr.f32.gmra.mrb[0].mxu0 %v2276
      %v2841 = vpop.f32.mrb[0].mxu0
      %v2842 = vadd.f32 0.0, %v2841
      %v2843 = vpop.f32.mrb[0].mxu0
      %v2844 = vadd.f32 0.0, %v2843
      %2845 = vdwg.mxu0
      %2846 = vmatprep.subr.mxu0 0.0
      %2847 = vmatpush1.msra.mxu0 %v205
      %2848 = vmatprep.subr.mxu0 0.0
      %2849 = vmatpush1.msra.mxu0 %v206
      %2850 = vmatprep.subr.mxu0 0.0
      %2851 = vmatpush1.msra.mxu0 %v207
      %2852 = vmatprep.subr.mxu0 0.0
      %2853 = vmatpush1.msra.mxu0 %v208
      %2854 = vmatprep.subr.mxu0 0.0
      %2855 = vmatpush1.msra.mxu0 %v209
      %2856 = vmatprep.subr.mxu0 0.0
      %2857 = vmatpush1.msra.mxu0 %v210
      %2858 = vmatprep.subr.mxu0 0.0
      %2859 = vmatpush1.msra.mxu0 %v211
      %2860 = vmatprep.subr.mxu0 0.0
      %2861 = vmatpush1.msra.mxu0 %v212
      %2862 = vmatprep.subr.mxu0 0.0
      %2863 = vmatpush1.msra.mxu0 %v213
      %2864 = vmatprep.subr.mxu0 0.0
      %2865 = vmatpush1.msra.mxu0 %v214
      %2866 = vmatprep.subr.mxu0 0.0
      %2867 = vmatpush1.msra.mxu0 %v215
      %2868 = vmatprep.subr.mxu0 0.0
      %2869 = vmatpush1.msra.mxu0 %v216
      %2870 = vmatprep.subr.mxu0 0.0
      %2871 = vmatpush1.msra.mxu0 %v217
      %2872 = vmatprep.subr.mxu0 0.0
      %2873 = vmatpush1.msra.mxu0 %v218
      %2874 = vmatprep.subr.mxu0 0.0
      %2875 = vmatpush1.msra.mxu0 %v219
      %2876 = vmatprep.subr.mxu0 0.0
      %2877 = vmatpush1.msra.mxu0 %v220
      %2878 = vmatprep.subr.mxu0 0.0
      %2879 = vmatpush1.msra.mxu0 %v221
      %2880 = vmatprep.subr.mxu0 0.0
      %2881 = vmatpush1.msra.mxu0 %v222
      %2882 = vmatprep.subr.mxu0 0.0
      %2883 = vmatpush1.msra.mxu0 %v223
      %2884 = vmatprep.subr.mxu0 0.0
      %2885 = vmatpush1.msra.mxu0 %v224
      %2886 = vmatprep.subr.mxu0 0.0
      %2887 = vmatpush1.msra.mxu0 %v225
      %2888 = vmatprep.subr.mxu0 0.0
      %2889 = vmatpush1.msra.mxu0 %v226
      %2890 = vmatprep.subr.mxu0 0.0
      %2891 = vmatpush1.msra.mxu0 %v227
      %2892 = vmatprep.subr.mxu0 0.0
      %2893 = vmatpush1.msra.mxu0 %v228
      %2894 = vmatprep.subr.mxu0 0.0
      %2895 = vmatpush1.msra.mxu0 %v229
      %2896 = vmatprep.subr.mxu0 0.0
      %2897 = vmatpush1.msra.mxu0 %v230
      %2898 = vmatprep.subr.mxu0 0.0
      %2899 = vmatpush1.msra.mxu0 %v231
      %2900 = vmatprep.subr.mxu0 0.0
      %2901 = vmatpush1.msra.mxu0 %v232
      %2902 = vmatprep.subr.mxu0 0.0
      %2903 = vmatpush1.msra.mxu0 %v233
      %2904 = vmatprep.subr.mxu0 0.0
      %2905 = vmatpush1.msra.mxu0 %v234
      %2906 = vmatprep.subr.mxu0 0.0
      %2907 = vmatpush1.msra.mxu0 %v235
      %2908 = vmatprep.subr.mxu0 0.0
      %2909 = vmatpush1.msra.mxu0 %v236
      %2910 = vmatprep.mubr.f32.mxu0 %v2347
      %2911 = vmatmul.mubr.f32.gmra.mrb[0].mxu0 %v2345
      %v2912 = vpop.f32.mrb[0].mxu0
      %v2913 = vadd.f32 %v466, %v2912
      %v2914 = vpop.f32.mrb[0].mxu0
      %2915 = vdwg.mxu0
      %2916 = vmatprep.subr.mxu0 0.0
      %2917 = vmatpush1.msra.mxu0 %v237
      %2918 = vmatprep.subr.mxu0 0.0
      %2919 = vmatpush1.msra.mxu0 %v238
      %2920 = vmatprep.subr.mxu0 0.0
      %2921 = vmatpush1.msra.mxu0 %v239
      %2922 = vmatprep.subr.mxu0 0.0
      %2923 = vmatpush1.msra.mxu0 %v240
      %2924 = vmatprep.subr.mxu0 0.0
      %2925 = vmatpush1.msra.mxu0 %v241
      %2926 = vmatprep.subr.mxu0 0.0
      %2927 = vmatpush1.msra.mxu0 %v242
      %2928 = vmatprep.subr.mxu0 0.0
      %2929 = vmatpush1.msra.mxu0 %v243
      %2930 = vmatprep.subr.mxu0 0.0
      %2931 = vmatpush1.msra.mxu0 %v244
      %2932 = vmatprep.subr.mxu0 0.0
      %2933 = vmatpush1.msra.mxu0 %v245
      %2934 = vmatprep.subr.mxu0 0.0
      %2935 = vmatpush1.msra.mxu0 %v246
      %2936 = vmatprep.subr.mxu0 0.0
      %2937 = vmatpush1.msra.mxu0 %v247
      %2938 = vmatprep.subr.mxu0 0.0
      %2939 = vmatpush1.msra.mxu0 %v248
      %2940 = vmatprep.subr.mxu0 0.0
      %2941 = vmatpush1.msra.mxu0 %v249
      %2942 = vmatprep.subr.mxu0 0.0
      %2943 = vmatpush1.msra.mxu0 %v250
      %2944 = vmatprep.subr.mxu0 0.0
      %2945 = vmatpush1.msra.mxu0 %v251
      %2946 = vmatprep.subr.mxu0 0.0
      %2947 = vmatpush1.msra.mxu0 %v252
      %2948 = vmatprep.subr.mxu0 0.0
      %2949 = vmatpush1.msra.mxu0 %v253
      %2950 = vmatprep.subr.mxu0 0.0
      %2951 = vmatpush1.msra.mxu0 %v254
      %2952 = vmatprep.subr.mxu0 0.0
      %2953 = vmatpush1.msra.mxu0 %v255
      %2954 = vmatprep.subr.mxu0 0.0
      %2955 = vmatpush1.msra.mxu0 %v256
      %2956 = vmatprep.subr.mxu0 0.0
      %2957 = vmatpush1.msra.mxu0 %v257
      %2958 = vmatprep.subr.mxu0 0.0
      %2959 = vmatpush1.msra.mxu0 %v258
      %2960 = vmatprep.subr.mxu0 0.0
      %2961 = vmatpush1.msra.mxu0 %v259
      %2962 = vmatprep.subr.mxu0 0.0
      %2963 = vmatpush1.msra.mxu0 %v260
      %2964 = vmatprep.subr.mxu0 0.0
      %2965 = vmatpush1.msra.mxu0 %v261
      %2966 = vmatprep.subr.mxu0 0.0
      %2967 = vmatpush1.msra.mxu0 %v262
      %2968 = vmatprep.subr.mxu0 0.0
      %2969 = vmatpush1.msra.mxu0 %v263
      %2970 = vmatprep.subr.mxu0 0.0
      %2971 = vmatpush1.msra.mxu0 %v264
      %2972 = vmatprep.subr.mxu0 0.0
      %2973 = vmatpush1.msra.mxu0 %v265
      %2974 = vmatprep.subr.mxu0 0.0
      %2975 = vmatpush1.msra.mxu0 %v266
      %2976 = vmatprep.subr.mxu0 0.0
      %2977 = vmatpush1.msra.mxu0 %v267
      %2978 = vmatprep.subr.mxu0 0.0
      %2979 = vmatpush1.msra.mxu0 %v268
      %2980 = vmatprep.mubr.f32.mxu0 %v2418
      %2981 = vmatmul.mubr.f32.gmra.mrb[0].mxu0 %v2416
      %v2982 = vpop.f32.mrb[0].mxu0
      %v2983 = vadd.f32 %v2913, %v2982
      %v2984 = vpop.f32.mrb[0].mxu0
      %2985 = vdwg.mxu0
      %2986 = vmatprep.subr.mxu0 0.0
      %2987 = vmatpush1.msra.mxu0 %v269
      %2988 = vmatprep.subr.mxu0 0.0
      %2989 = vmatpush1.msra.mxu0 %v270
      %2990 = vmatprep.subr.mxu0 0.0
      %2991 = vmatpush1.msra.mxu0 %v271
      %2992 = vmatprep.subr.mxu0 0.0
      %2993 = vmatpush1.msra.mxu0 %v272
      %2994 = vmatprep.subr.mxu0 0.0
      %2995 = vmatpush1.msra.mxu0 %v273
      %2996 = vmatprep.subr.mxu0 0.0
      %2997 = vmatpush1.msra.mxu0 %v274
      %2998 = vmatprep.subr.mxu0 0.0
      %2999 = vmatpush1.msra.mxu0 %v275
      %3000 = vmatprep.subr.mxu0 0.0
      %3001 = vmatpush1.msra.mxu0 %v276
      %3002 = vmatprep.subr.mxu0 0.0
      %3003 = vmatpush1.msra.mxu0 %v277
      %3004 = vmatprep.subr.mxu0 0.0
      %3005 = vmatpush1.msra.mxu0 %v278
      %3006 = vmatprep.subr.mxu0 0.0
      %3007 = vmatpush1.msra.mxu0 %v279
      %3008 = vmatprep.subr.mxu0 0.0
      %3009 = vmatpush1.msra.mxu0 %v280
      %3010 = vmatprep.subr.mxu0 0.0
      %3011 = vmatpush1.msra.mxu0 %v281
      %3012 = vmatprep.subr.mxu0 0.0
      %3013 = vmatpush1.msra.mxu0 %v282
      %3014 = vmatprep.subr.mxu0 0.0
      %3015 = vmatpush1.msra.mxu0 %v283
      %3016 = vmatprep.subr.mxu0 0.0
      %3017 = vmatpush1.msra.mxu0 %v284
      %3018 = vmatprep.subr.mxu0 0.0
      %3019 = vmatpush1.msra.mxu0 %v285
      %3020 = vmatprep.subr.mxu0 0.0
      %3021 = vmatpush1.msra.mxu0 %v286
      %3022 = vmatprep.subr.mxu0 0.0
      %3023 = vmatpush1.msra.mxu0 %v287
      %3024 = vmatprep.subr.mxu0 0.0
      %3025 = vmatpush1.msra.mxu0 %v288
      %3026 = vmatprep.subr.mxu0 0.0
      %3027 = vmatpush1.msra.mxu0 %v289
      %3028 = vmatprep.subr.mxu0 0.0
      %3029 = vmatpush1.msra.mxu0 %v290
      %3030 = vmatprep.subr.mxu0 0.0
      %3031 = vmatpush1.msra.mxu0 %v291
      %3032 = vmatprep.subr.mxu0 0.0
      %3033 = vmatpush1.msra.mxu0 %v292
      %3034 = vmatprep.subr.mxu0 0.0
      %3035 = vmatpush1.msra.mxu0 %v293
      %3036 = vmatprep.subr.mxu0 0.0
      %3037 = vmatpush1.msra.mxu0 %v294
      %3038 = vmatprep.subr.mxu0 0.0
      %3039 = vmatpush1.msra.mxu0 %v295
      %3040 = vmatprep.subr.mxu0 0.0
      %3041 = vmatpush1.msra.mxu0 %v296
      %3042 = vmatprep.subr.mxu0 0.0
      %3043 = vmatpush1.msra.mxu0 %v297
      %3044 = vmatprep.subr.mxu0 0.0
      %3045 = vmatpush1.msra.mxu0 %v298
      %3046 = vmatprep.subr.mxu0 0.0
      %3047 = vmatpush1.msra.mxu0 %v299
      %3048 = vmatprep.subr.mxu0 0.0
      %3049 = vmatpush1.msra.mxu0 %v300
      %3050 = vmatprep.mubr.f32.mxu0 %v2489
      %3051 = vmatmul.mubr.f32.gmra.mrb[0].mxu0 %v2487
      %v3052 = vpop.f32.mrb[0].mxu0
      %v3053 = vadd.f32 %v2983, %v3052
      %v3054 = vpop.f32.mrb[0].mxu0
      %3055 = vdwg.mxu0
      %3056 = vmatprep.subr.mxu0 0.0
      %3057 = vmatpush1.msra.mxu0 %v301
      %3058 = vmatprep.subr.mxu0 0.0
      %3059 = vmatpush1.msra.mxu0 %v302
      %3060 = vmatprep.subr.mxu0 0.0
      %3061 = vmatpush1.msra.mxu0 %v303
      %3062 = vmatprep.subr.mxu0 0.0
      %3063 = vmatpush1.msra.mxu0 %v304
      %3064 = vmatprep.subr.mxu0 0.0
      %3065 = vmatpush1.msra.mxu0 %v305
      %3066 = vmatprep.subr.mxu0 0.0
      %3067 = vmatpush1.msra.mxu0 %v306
      %3068 = vmatprep.subr.mxu0 0.0
      %3069 = vmatpush1.msra.mxu0 %v307
      %3070 = vmatprep.subr.mxu0 0.0
      %3071 = vmatpush1.msra.mxu0 %v308
      %3072 = vmatprep.subr.mxu0 0.0
      %3073 = vmatpush1.msra.mxu0 %v309
      %3074 = vmatprep.subr.mxu0 0.0
      %3075 = vmatpush1.msra.mxu0 %v310
      %3076 = vmatprep.subr.mxu0 0.0
      %3077 = vmatpush1.msra.mxu0 %v311
      %3078 = vmatprep.subr.mxu0 0.0
      %3079 = vmatpush1.msra.mxu0 %v312
      %3080 = vmatprep.subr.mxu0 0.0
      %3081 = vmatpush1.msra.mxu0 %v313
      %3082 = vmatprep.subr.mxu0 0.0
      %3083 = vmatpush1.msra.mxu0 %v314
      %3084 = vmatprep.subr.mxu0 0.0
      %3085 = vmatpush1.msra.mxu0 %v315
      %3086 = vmatprep.subr.mxu0 0.0
      %3087 = vmatpush1.msra.mxu0 %v316
      %3088 = vmatprep.subr.mxu0 0.0
      %3089 = vmatpush1.msra.mxu0 %v317
      %3090 = vmatprep.subr.mxu0 0.0
      %3091 = vmatpush1.msra.mxu0 %v318
      %3092 = vmatprep.subr.mxu0 0.0
      %3093 = vmatpush1.msra.mxu0 %v319
      %3094 = vmatprep.subr.mxu0 0.0
      %3095 = vmatpush1.msra.mxu0 %v320
      %3096 = vmatprep.subr.mxu0 0.0
      %3097 = vmatpush1.msra.mxu0 %v321
      %3098 = vmatprep.subr.mxu0 0.0
      %3099 = vmatpush1.msra.mxu0 %v322
      %3100 = vmatprep.subr.mxu0 0.0
      %3101 = vmatpush1.msra.mxu0 %v323
      %3102 = vmatprep.subr.mxu0 0.0
      %3103 = vmatpush1.msra.mxu0 %v324
      %3104 = vmatprep.subr.mxu0 0.0
      %3105 = vmatpush1.msra.mxu0 %v325
      %3106 = vmatprep.subr.mxu0 0.0
      %3107 = vmatpush1.msra.mxu0 %v326
      %3108 = vmatprep.subr.mxu0 0.0
      %3109 = vmatpush1.msra.mxu0 %v327
      %3110 = vmatprep.subr.mxu0 0.0
      %3111 = vmatpush1.msra.mxu0 %v328
      %3112 = vmatprep.subr.mxu0 0.0
      %3113 = vmatpush1.msra.mxu0 %v329
      %3114 = vmatprep.subr.mxu0 0.0
      %3115 = vmatpush1.msra.mxu0 %v330
      %3116 = vmatprep.subr.mxu0 0.0
      %3117 = vmatpush1.msra.mxu0 %v331
      %3118 = vmatprep.subr.mxu0 0.0
      %3119 = vmatpush1.msra.mxu0 %v332
      %3120 = vmatprep.mubr.f32.mxu0 %v2560
      %3121 = vmatmul.mubr.f32.gmra.mrb[0].mxu0 %v2558
      %v3122 = vpop.f32.mrb[0].mxu0
      %v3123 = vadd.f32 %v3053, %v3122
      %v3124 = vpop.f32.mrb[0].mxu0
      %3125 = vdwg.mxu0
      %3126 = vmatprep.subr.mxu0 0.0
      %3127 = vmatpush1.msra.mxu0 %v333
      %3128 = vmatprep.subr.mxu0 0.0
      %3129 = vmatpush1.msra.mxu0 %v334
      %3130 = vmatprep.subr.mxu0 0.0
      %3131 = vmatpush1.msra.mxu0 %v335
      %3132 = vmatprep.subr.mxu0 0.0
      %3133 = vmatpush1.msra.mxu0 %v336
      %3134 = vmatprep.subr.mxu0 0.0
      %3135 = vmatpush1.msra.mxu0 %v337
      %3136 = vmatprep.subr.mxu0 0.0
      %3137 = vmatpush1.msra.mxu0 %v338
      %3138 = vmatprep.subr.mxu0 0.0
      %3139 = vmatpush1.msra.mxu0 %v339
      %3140 = vmatprep.subr.mxu0 0.0
      %3141 = vmatpush1.msra.mxu0 %v340
      %3142 = vmatprep.subr.mxu0 0.0
      %3143 = vmatpush1.msra.mxu0 %v341
      %3144 = vmatprep.subr.mxu0 0.0
      %3145 = vmatpush1.msra.mxu0 %v342
      %3146 = vmatprep.subr.mxu0 0.0
      %3147 = vmatpush1.msra.mxu0 %v343
      %3148 = vmatprep.subr.mxu0 0.0
      %3149 = vmatpush1.msra.mxu0 %v344
      %3150 = vmatprep.subr.mxu0 0.0
      %3151 = vmatpush1.msra.mxu0 %v345
      %3152 = vmatprep.subr.mxu0 0.0
      %3153 = vmatpush1.msra.mxu0 %v346
      %3154 = vmatprep.subr.mxu0 0.0
      %3155 = vmatpush1.msra.mxu0 %v347
      %3156 = vmatprep.subr.mxu0 0.0
      %3157 = vmatpush1.msra.mxu0 %v348
      %3158 = vmatprep.subr.mxu0 0.0
      %3159 = vmatpush1.msra.mxu0 %v349
      %3160 = vmatprep.subr.mxu0 0.0
      %3161 = vmatpush1.msra.mxu0 %v350
      %3162 = vmatprep.subr.mxu0 0.0
      %3163 = vmatpush1.msra.mxu0 %v351
      %3164 = vmatprep.subr.mxu0 0.0
      %3165 = vmatpush1.msra.mxu0 %v352
      %3166 = vmatprep.subr.mxu0 0.0
      %3167 = vmatpush1.msra.mxu0 %v353
      %3168 = vmatprep.subr.mxu0 0.0
      %3169 = vmatpush1.msra.mxu0 %v354
      %3170 = vmatprep.subr.mxu0 0.0
      %3171 = vmatpush1.msra.mxu0 %v355
      %3172 = vmatprep.subr.mxu0 0.0
      %3173 = vmatpush1.msra.mxu0 %v356
      %3174 = vmatprep.subr.mxu0 0.0
      %3175 = vmatpush1.msra.mxu0 %v357
      %3176 = vmatprep.subr.mxu0 0.0
      %3177 = vmatpush1.msra.mxu0 %v358
      %3178 = vmatprep.subr.mxu0 0.0
      %3179 = vmatpush1.msra.mxu0 %v359
      %3180 = vmatprep.subr.mxu0 0.0
      %3181 = vmatpush1.msra.mxu0 %v360
      %3182 = vmatprep.subr.mxu0 0.0
      %3183 = vmatpush1.msra.mxu0 %v361
      %3184 = vmatprep.subr.mxu0 0.0
      %3185 = vmatpush1.msra.mxu0 %v362
      %3186 = vmatprep.subr.mxu0 0.0
      %3187 = vmatpush1.msra.mxu0 %v363
      %3188 = vmatprep.subr.mxu0 0.0
      %3189 = vmatpush1.msra.mxu0 %v364
      %3190 = vmatprep.mubr.f32.mxu0 %v2631
      %3191 = vmatmul.mubr.f32.gmra.mrb[0].mxu0 %v2629
      %v3192 = vpop.f32.mrb[0].mxu0
      %v3193 = vadd.f32 %v3123, %v3192
      %v3194 = vpop.f32.mrb[0].mxu0
      %3195 = vdwg.mxu0
      %3196 = vmatprep.subr.mxu0 0.0
      %3197 = vmatpush1.msra.mxu0 %v365
      %3198 = vmatprep.subr.mxu0 0.0
      %3199 = vmatpush1.msra.mxu0 %v366
      %3200 = vmatprep.subr.mxu0 0.0
      %3201 = vmatpush1.msra.mxu0 %v367
      %3202 = vmatprep.subr.mxu0 0.0
      %3203 = vmatpush1.msra.mxu0 %v368
      %3204 = vmatprep.subr.mxu0 0.0
      %3205 = vmatpush1.msra.mxu0 %v369
      %3206 = vmatprep.subr.mxu0 0.0
      %3207 = vmatpush1.msra.mxu0 %v370
      %3208 = vmatprep.subr.mxu0 0.0
      %3209 = vmatpush1.msra.mxu0 %v371
      %3210 = vmatprep.subr.mxu0 0.0
      %3211 = vmatpush1.msra.mxu0 %v372
      %3212 = vmatprep.subr.mxu0 0.0
      %3213 = vmatpush1.msra.mxu0 %v373
      %3214 = vmatprep.subr.mxu0 0.0
      %3215 = vmatpush1.msra.mxu0 %v374
      %3216 = vmatprep.subr.mxu0 0.0
      %3217 = vmatpush1.msra.mxu0 %v375
      %3218 = vmatprep.subr.mxu0 0.0
      %3219 = vmatpush1.msra.mxu0 %v376
      %3220 = vmatprep.subr.mxu0 0.0
      %3221 = vmatpush1.msra.mxu0 %v377
      %3222 = vmatprep.subr.mxu0 0.0
      %3223 = vmatpush1.msra.mxu0 %v378
      %3224 = vmatprep.subr.mxu0 0.0
      %3225 = vmatpush1.msra.mxu0 %v379
      %3226 = vmatprep.subr.mxu0 0.0
      %3227 = vmatpush1.msra.mxu0 %v380
      %3228 = vmatprep.subr.mxu0 0.0
      %3229 = vmatpush1.msra.mxu0 %v381
      %3230 = vmatprep.subr.mxu0 0.0
      %3231 = vmatpush1.msra.mxu0 %v382
      %3232 = vmatprep.subr.mxu0 0.0
      %3233 = vmatpush1.msra.mxu0 %v383
      %3234 = vmatprep.subr.mxu0 0.0
      %3235 = vmatpush1.msra.mxu0 %v384
      %3236 = vmatprep.subr.mxu0 0.0
      %3237 = vmatpush1.msra.mxu0 %v385
      %3238 = vmatprep.subr.mxu0 0.0
      %3239 = vmatpush1.msra.mxu0 %v386
      %3240 = vmatprep.subr.mxu0 0.0
      %3241 = vmatpush1.msra.mxu0 %v387
      %3242 = vmatprep.subr.mxu0 0.0
      %3243 = vmatpush1.msra.mxu0 %v388
      %3244 = vmatprep.subr.mxu0 0.0
      %3245 = vmatpush1.msra.mxu0 %v389
      %3246 = vmatprep.subr.mxu0 0.0
      %3247 = vmatpush1.msra.mxu0 %v390
      %3248 = vmatprep.subr.mxu0 0.0
      %3249 = vmatpush1.msra.mxu0 %v391
      %3250 = vmatprep.subr.mxu0 0.0
      %3251 = vmatpush1.msra.mxu0 %v392
      %3252 = vmatprep.subr.mxu0 0.0
      %3253 = vmatpush1.msra.mxu0 %v393
      %3254 = vmatprep.subr.mxu0 0.0
      %3255 = vmatpush1.msra.mxu0 %v394
      %3256 = vmatprep.subr.mxu0 0.0
      %3257 = vmatpush1.msra.mxu0 %v395
      %3258 = vmatprep.subr.mxu0 0.0
      %3259 = vmatpush1.msra.mxu0 %v396
      %3260 = vmatprep.mubr.f32.mxu0 %v2702
      %3261 = vmatmul.mubr.f32.gmra.mrb[0].mxu0 %v2700
      %v3262 = vpop.f32.mrb[0].mxu0
      %v3263 = vadd.f32 %v3193, %v3262
      %v3264 = vpop.f32.mrb[0].mxu0
      %3265 = vdwg.mxu0
      %3266 = vmatprep.subr.mxu0 0.0
      %3267 = vmatpush1.msra.mxu0 %v397
      %3268 = vmatprep.subr.mxu0 0.0
      %3269 = vmatpush1.msra.mxu0 %v398
      %3270 = vmatprep.subr.mxu0 0.0
      %3271 = vmatpush1.msra.mxu0 %v399
      %3272 = vmatprep.subr.mxu0 0.0
      %3273 = vmatpush1.msra.mxu0 %v400
      %3274 = vmatprep.subr.mxu0 0.0
      %3275 = vmatpush1.msra.mxu0 %v401
      %3276 = vmatprep.subr.mxu0 0.0
      %3277 = vmatpush1.msra.mxu0 %v402
      %3278 = vmatprep.subr.mxu0 0.0
      %3279 = vmatpush1.msra.mxu0 %v403
      %3280 = vmatprep.subr.mxu0 0.0
      %3281 = vmatpush1.msra.mxu0 %v404
      %3282 = vmatprep.subr.mxu0 0.0
      %3283 = vmatpush1.msra.mxu0 %v405
      %3284 = vmatprep.subr.mxu0 0.0
      %3285 = vmatpush1.msra.mxu0 %v406
      %3286 = vmatprep.subr.mxu0 0.0
      %3287 = vmatpush1.msra.mxu0 %v407
      %3288 = vmatprep.subr.mxu0 0.0
      %3289 = vmatpush1.msra.mxu0 %v408
      %3290 = vmatprep.subr.mxu0 0.0
      %3291 = vmatpush1.msra.mxu0 %v409
      %3292 = vmatprep.subr.mxu0 0.0
      %3293 = vmatpush1.msra.mxu0 %v410
      %3294 = vmatprep.subr.mxu0 0.0
      %3295 = vmatpush1.msra.mxu0 %v411
      %3296 = vmatprep.subr.mxu0 0.0
      %3297 = vmatpush1.msra.mxu0 %v412
      %3298 = vmatprep.subr.mxu0 0.0
      %3299 = vmatpush1.msra.mxu0 %v413
      %3300 = vmatprep.subr.mxu0 0.0
      %3301 = vmatpush1.msra.mxu0 %v414
      %3302 = vmatprep.subr.mxu0 0.0
      %3303 = vmatpush1.msra.mxu0 %v415
      %3304 = vmatprep.subr.mxu0 0.0
      %3305 = vmatpush1.msra.mxu0 %v416
      %3306 = vmatprep.subr.mxu0 0.0
      %3307 = vmatpush1.msra.mxu0 %v417
      %3308 = vmatprep.subr.mxu0 0.0
      %3309 = vmatpush1.msra.mxu0 %v418
      %3310 = vmatprep.subr.mxu0 0.0
      %3311 = vmatpush1.msra.mxu0 %v419
      %3312 = vmatprep.subr.mxu0 0.0
      %3313 = vmatpush1.msra.mxu0 %v420
      %3314 = vmatprep.subr.mxu0 0.0
      %3315 = vmatpush1.msra.mxu0 %v421
      %3316 = vmatprep.subr.mxu0 0.0
      %3317 = vmatpush1.msra.mxu0 %v422
      %3318 = vmatprep.subr.mxu0 0.0
      %3319 = vmatpush1.msra.mxu0 %v423
      %3320 = vmatprep.subr.mxu0 0.0
      %3321 = vmatpush1.msra.mxu0 %v424
      %3322 = vmatprep.subr.mxu0 0.0
      %3323 = vmatpush1.msra.mxu0 %v425
      %3324 = vmatprep.subr.mxu0 0.0
      %3325 = vmatpush1.msra.mxu0 %v426
      %3326 = vmatprep.subr.mxu0 0.0
      %3327 = vmatpush1.msra.mxu0 %v427
      %3328 = vmatprep.subr.mxu0 0.0
      %3329 = vmatpush1.msra.mxu0 %v428
      %3330 = vmatprep.mubr.f32.mxu0 %v2773
      %3331 = vmatmul.mubr.f32.gmra.mrb[0].mxu0 %v2771
      %v3332 = vpop.f32.mrb[0].mxu0
      %v3333 = vadd.f32 %v3263, %v3332
      %v3334 = vpop.f32.mrb[0].mxu0
      %3335 = vdwg.mxu0
      %3336 = vmatprep.subr.mxu0 0.0
      %3337 = vmatpush1.msra.mxu0 %v429
      %3338 = vmatprep.subr.mxu0 0.0
      %3339 = vmatpush1.msra.mxu0 %v430
      %3340 = vmatprep.subr.mxu0 0.0
      %3341 = vmatpush1.msra.mxu0 %v431
      %3342 = vmatprep.subr.mxu0 0.0
      %3343 = vmatpush1.msra.mxu0 %v432
      %3344 = vmatprep.subr.mxu0 0.0
      %3345 = vmatpush1.msra.mxu0 %v433
      %3346 = vmatprep.subr.mxu0 0.0
      %3347 = vmatpush1.msra.mxu0 %v434
      %3348 = vmatprep.subr.mxu0 0.0
      %3349 = vmatpush1.msra.mxu0 %v435
      %3350 = vmatprep.subr.mxu0 0.0
      %3351 = vmatpush1.msra.mxu0 %v436
      %3352 = vmatprep.subr.mxu0 0.0
      %3353 = vmatpush1.msra.mxu0 %v437
      %3354 = vmatprep.subr.mxu0 0.0
      %3355 = vmatpush1.msra.mxu0 %v438
      %3356 = vmatprep.subr.mxu0 0.0
      %3357 = vmatpush1.msra.mxu0 %v439
      %3358 = vmatprep.subr.mxu0 0.0
      %3359 = vmatpush1.msra.mxu0 %v440
      %3360 = vmatprep.subr.mxu0 0.0
      %3361 = vmatpush1.msra.mxu0 %v441
      %3362 = vmatprep.subr.mxu0 0.0
      %3363 = vmatpush1.msra.mxu0 %v442
      %3364 = vmatprep.subr.mxu0 0.0
      %3365 = vmatpush1.msra.mxu0 %v443
      %3366 = vmatprep.subr.mxu0 0.0
      %3367 = vmatpush1.msra.mxu0 %v444
      %3368 = vmatprep.subr.mxu0 0.0
      %3369 = vmatpush1.msra.mxu0 %v445
      %3370 = vmatprep.subr.mxu0 0.0
      %3371 = vmatpush1.msra.mxu0 %v446
      %3372 = vmatprep.subr.mxu0 0.0
      %3373 = vmatpush1.msra.mxu0 %v447
      %3374 = vmatprep.subr.mxu0 0.0
      %3375 = vmatpush1.msra.mxu0 %v448
      %3376 = vmatprep.subr.mxu0 0.0
      %3377 = vmatpush1.msra.mxu0 %v449
      %3378 = vmatprep.subr.mxu0 0.0
      %3379 = vmatpush1.msra.mxu0 %v450
      %3380 = vmatprep.subr.mxu0 0.0
      %3381 = vmatpush1.msra.mxu0 %v451
      %3382 = vmatprep.subr.mxu0 0.0
      %3383 = vmatpush1.msra.mxu0 %v452
      %3384 = vmatprep.subr.mxu0 0.0
      %3385 = vmatpush1.msra.mxu0 %v453
      %3386 = vmatprep.subr.mxu0 0.0
      %3387 = vmatpush1.msra.mxu0 %v454
      %3388 = vmatprep.subr.mxu0 0.0
      %3389 = vmatpush1.msra.mxu0 %v455
      %3390 = vmatprep.subr.mxu0 0.0
      %3391 = vmatpush1.msra.mxu0 %v456
      %3392 = vmatprep.subr.mxu0 0.0
      %3393 = vmatpush1.msra.mxu0 %v457
      %3394 = vmatprep.subr.mxu0 0.0
      %3395 = vmatpush1.msra.mxu0 %v458
      %3396 = vmatprep.subr.mxu0 0.0
      %3397 = vmatpush1.msra.mxu0 %v459
      %3398 = vmatprep.subr.mxu0 0.0
      %3399 = vmatpush1.msra.mxu0 %v460
      %3400 = vmatprep.mubr.f32.mxu0 %v2844
      %3401 = vmatmul.mubr.f32.gmra.mrb[0].mxu0 %v2842
      %v3402 = vpop.f32.mrb[0].mxu0
      %v3403 = vadd.f32 %v3333, %v3402
      %v3404 = vpop.f32.mrb[0].mxu0
      %3405 = vdwg.mxu0
      %3407 = vset.pattern.permute.xlu0 0
      %3408 = vperm.xlu0 %3407, %v482
      %v3409 = vpop.permute.xlu0 %3408
      %v3411 = vmul.f32 %v3403, %v3409
      %v3412 = vsel %vm484, %v3411, 0.0
      %v3413 = vrot.slane %v3412, 4
      %v3414 = vadd.f32 %v3412, %v3413
      %v3415 = vrot.slane %v3414, 2
      %v3416 = vadd.f32 %v3414, %v3415
      %v3417 = vrot.slane %v3416, 1
      %v3418 = vadd.f32 %v3416, %v3417
      %v3419 = vmul.f32 %v3418, 0.25
      %v3420 = vsub.f32 %v3403, %v3419
      %v3421 = vmul.f32 %v3420, %v3409
      %v3422 = vmul.f32 %v3421, %v3421
      %v3423 = vsel %vm484, %v3422, 0.0
      %v3424 = vrot.slane %v3423, 4
      %v3425 = vadd.f32 %v3423, %v3424
      %v3426 = vrot.slane %v3425, 2
      %v3427 = vadd.f32 %v3425, %v3426
      %v3428 = vrot.slane %v3427, 1
      %v3429 = vadd.f32 %v3427, %v3428
      %v3430 = vmul.f32 %v3429, 0.25
      %v3431 = vadd.f32 %v3430, 1e-05
      %v3432 = vrsqrt.pop %v3431
      %v3433 = vmul.f32 %v3420, %v3432
      %v3434 = vmul.f32 %v3433, %v473
      %v3435 = vadd.f32 %v3434, %v480
      %v3436 = vmax.f32 %v3435, 0.0
      %s3437 = smul.u32 %s584, 8
      %s3438 = scalar_lea.vmem [#allocation3], %s3437
      %v3439 = vld [vmem:[%s3438] sm:$0xff]
      %v3441 = vsel %vm484, %v3436, 0
      %3443 = vmatprep.subr.mxu0 0.0
      %3444 = vmatpush1.msra.mxu0 %v160
      %3445 = vmatprep.subr.mxu0 0.0
      %3446 = vmatpush1.msra.mxu0 %v161
      %3447 = vmatprep.subr.mxu0 0.0
      %3448 = vmatpush1.msra.mxu0 %v162
      %3449 = vmatprep.subr.mxu0 0.0
      %3450 = vmatpush1.msra.mxu0 %v163
      %3451 = vmatprep.subr.mxu0 0.0
      %3452 = vmatpush1.msra.mxu0 0.0
      %3453 = vmatprep.subr.mxu0 0.0
      %3454 = vmatpush1.msra.mxu0 0.0
      %3455 = vmatprep.subr.mxu0 0.0
      %3456 = vmatpush1.msra.mxu0 0.0
      %3457 = vmatprep.subr.mxu0 0.0
      %3458 = vmatpush1.msra.mxu0 0.0
      %3459 = vmatprep.subr.mxu0 0.0
      %3460 = vmatpush1.msra.mxu0 0.0
      %3461 = vmatprep.subr.mxu0 0.0
      %3462 = vmatpush1.msra.mxu0 0.0
      %3463 = vmatprep.subr.mxu0 0.0
      %3464 = vmatpush1.msra.mxu0 0.0
      %3465 = vmatprep.subr.mxu0 0.0
      %3466 = vmatpush1.msra.mxu0 0.0
      %3467 = vmatprep.subr.mxu0 0.0
      %3468 = vmatpush1.msra.mxu0 0.0
      %3469 = vmatprep.subr.mxu0 0.0
      %3470 = vmatpush1.msra.mxu0 0.0
      %3471 = vmatprep.subr.mxu0 0.0
      %3472 = vmatpush1.msra.mxu0 0.0
      %3473 = vmatprep.subr.mxu0 0.0
      %3474 = vmatpush1.msra.mxu0 0.0
      %3475 = vmatprep.subr.mxu0 0.0
      %3476 = vmatpush1.msra.mxu0 0.0
      %3477 = vmatprep.subr.mxu0 0.0
      %3478 = vmatpush1.msra.mxu0 0.0
      %3479 = vmatprep.subr.mxu0 0.0
      %3480 = vmatpush1.msra.mxu0 0.0
      %3481 = vmatprep.subr.mxu0 0.0
      %3482 = vmatpush1.msra.mxu0 0.0
      %3483 = vmatprep.subr.mxu0 0.0
      %3484 = vmatpush1.msra.mxu0 0.0
      %3485 = vmatprep.subr.mxu0 0.0
      %3486 = vmatpush1.msra.mxu0 0.0
      %3487 = vmatprep.subr.mxu0 0.0
      %3488 = vmatpush1.msra.mxu0 0.0
      %3489 = vmatprep.subr.mxu0 0.0
      %3490 = vmatpush1.msra.mxu0 0.0
      %3491 = vmatprep.subr.mxu0 0.0
      %3492 = vmatpush1.msra.mxu0 0.0
      %3493 = vmatprep.subr.mxu0 0.0
      %3494 = vmatpush1.msra.mxu0 0.0
      %3495 = vmatprep.subr.mxu0 0.0
      %3496 = vmatpush1.msra.mxu0 0.0
      %3497 = vmatprep.subr.mxu0 0.0
      %3498 = vmatpush1.msra.mxu0 0.0
      %3499 = vmatprep.subr.mxu0 0.0
      %3500 = vmatpush1.msra.mxu0 0.0
      %3501 = vmatprep.subr.mxu0 0.0
      %3502 = vmatpush1.msra.mxu0 0.0
      %3503 = vmatprep.subr.mxu0 0.0
      %3504 = vmatpush1.msra.mxu0 0.0
      %3505 = vmatprep.subr.mxu0 0.0
      %3506 = vmatpush1.msra.mxu0 0.0
      %3507 = vmatprep.mubr.f32.mxu0 0.0
      %3508 = vmatmul.mubr.f32.gmra.mrb[0].mxu0 %v3441
      %v3509 = vpop.f32.mrb[0].mxu0
      %v3510 = vadd.f32 0.0, %v3509
      %v3511 = vpop.f32.mrb[0].mxu0
      %3512 = vdwg.mxu0
      %v3513 = vadd.f32 %v3439, %v3510
      %v3514 = vxor.u32 %v3513, 2147483648
      %v3515 = vmul.f32 %v3514, 1.442695
      %v3516 = vpow.pop %v3515
      %v3517 = vadd.f32 %v3516, 1.0
      %v3518 = vrcp.pop %v3517
      %v3519 = vmul.f32 1.0, %v3518
      %v3520 = vtanh.pop %v3513
      %v3521 = vmul.f32 %v3519, %v590
      %3523 = vrot.lane.b32.xlu0 %v3520, 32
      %v3524 = vpop.permute.xlu0 %3523
      %v3526 = vmul.f32 %v3519, %v3524
      %3528 = vrot.lane.b32.xlu0 %v3526, 32
      %v3529 = vpop.permute.xlu0 %3528
      %v3531 = vadd.f32 %v3521, %v3529
      %v3532 = vtanh.pop %v3531
      %3534 = vrot.lane.b32.xlu0 %v3532, 32
      %v3535 = vpop.permute.xlu0 %3534
      %v3537 = vmul.f32 %v3519, %v3535
    $region98: #{tpu_custom_call.1} parent=1 // loop_footer
      %s588 = sadd.s32 1, %s584
    $region99: #{tpu_custom_call.1} parent=1 // loop_footer_branch
      %583 = sbr.rel target = $region95
    $region100: #{tpu_custom_call.1} parent=1 // loop_exit
      _
    loop: start=3, step=1, limit=6
    $region101: #{tpu_custom_call.1} parent=1 // loop_pre_header
      _
    $region102: #{tpu_custom_call.1} parent=1 // loop_header
      %s3539 = sphi 3, %s3543
      %p3540 = scmp.ge.s32.totalorder %s3539, 6
      %v3544 = vphi %v589, %v6492
      %v3545 = vphi %v590, %v6486
    $region103: #{tpu_custom_call.1} parent=1 // loop_header_branch
      %3542 = sbr.rel (%p3540) target = $region107
    $region104: #{tpu_custom_call.1} parent=1 // loop_body
      %v3546 = vpack.c.bf16 %v3544, %v3544
      %3548 = vrot.lane.b32.xlu0 %v3546, 64
      %v3549 = vpop.permute.xlu0 %3548
      %v3582 = vunpack.c.l.b16 %v164
      %v3583 = vunpack.c.h.b16 %v164
      %v3584 = vunpack.c.l.b16 %v165
      %v3585 = vunpack.c.h.b16 %v165
      %v3586 = vunpack.c.l.b16 %v166
      %v3587 = vunpack.c.h.b16 %v166
      %v3588 = vunpack.c.l.b16 %v167
      %v3589 = vunpack.c.h.b16 %v167
      %v3590 = vunpack.c.l.b16 %v168
      %v3591 = vunpack.c.h.b16 %v168
      %v3592 = vunpack.c.l.b16 %v169
      %v3593 = vunpack.c.h.b16 %v169
      %v3594 = vunpack.c.l.b16 %v170
      %v3595 = vunpack.c.h.b16 %v170
      %v3596 = vunpack.c.l.b16 %v171
      %v3597 = vunpack.c.h.b16 %v171
      %v3598 = vunpack.c.l.b16 %v172
      %v3599 = vunpack.c.h.b16 %v172
      %v3600 = vunpack.c.l.b16 %v173
      %v3601 = vunpack.c.h.b16 %v173
      %v3602 = vunpack.c.l.b16 %v174
      %v3603 = vunpack.c.h.b16 %v174
      %v3604 = vunpack.c.l.b16 %v175
      %v3605 = vunpack.c.h.b16 %v175
      %v3606 = vunpack.c.l.b16 %v176
      %v3607 = vunpack.c.h.b16 %v176
      %v3608 = vunpack.c.l.b16 %v177
      %v3609 = vunpack.c.h.b16 %v177
      %v3610 = vunpack.c.l.b16 %v178
      %v3611 = vunpack.c.h.b16 %v178
      %v3612 = vunpack.c.l.b16 %v179
      %v3613 = vunpack.c.h.b16 %v179
      %v3614 = vunpack.c.l.b16 %v180
      %v3615 = vunpack.c.h.b16 %v180
      %v3616 = vunpack.c.l.b16 %v181
      %v3617 = vunpack.c.h.b16 %v181
      %v3618 = vunpack.c.l.b16 %v182
      %v3619 = vunpack.c.h.b16 %v182
      %v3620 = vunpack.c.l.b16 %v183
      %v3621 = vunpack.c.h.b16 %v183
      %v3622 = vunpack.c.l.b16 %v184
      %v3623 = vunpack.c.h.b16 %v184
      %v3624 = vunpack.c.l.b16 %v185
      %v3625 = vunpack.c.h.b16 %v185
      %v3626 = vunpack.c.l.b16 %v186
      %v3627 = vunpack.c.h.b16 %v186
      %v3628 = vunpack.c.l.b16 %v187
      %v3629 = vunpack.c.h.b16 %v187
      %v3630 = vunpack.c.l.b16 %v188
      %v3631 = vunpack.c.h.b16 %v188
      %v3632 = vunpack.c.l.b16 %v189
      %v3633 = vunpack.c.h.b16 %v189
      %v3634 = vunpack.c.l.b16 %v190
      %v3635 = vunpack.c.h.b16 %v190
      %v3636 = vunpack.c.l.b16 %v191
      %v3637 = vunpack.c.h.b16 %v191
      %v3638 = vunpack.c.l.b16 %v192
      %v3639 = vunpack.c.h.b16 %v192
      %v3640 = vunpack.c.l.b16 %v193
      %v3641 = vunpack.c.h.b16 %v193
      %v3642 = vunpack.c.l.b16 %v194
      %v3643 = vunpack.c.h.b16 %v194
      %v3644 = vunpack.c.l.b16 %v195
      %v3645 = vunpack.c.h.b16 %v195
      %v3646 = vpack.c.b16 %v3598, %v3582
      %v3647 = vpack.c.b16 %v3599, %v3583
      %v3648 = vpack.c.b16 %v3600, %v3584
      %v3649 = vpack.c.b16 %v3601, %v3585
      %v3650 = vpack.c.b16 %v3602, %v3586
      %v3651 = vpack.c.b16 %v3603, %v3587
      %v3652 = vpack.c.b16 %v3604, %v3588
      %v3653 = vpack.c.b16 %v3605, %v3589
      %v3654 = vpack.c.b16 %v3606, %v3590
      %v3655 = vpack.c.b16 %v3607, %v3591
      %v3656 = vpack.c.b16 %v3608, %v3592
      %v3657 = vpack.c.b16 %v3609, %v3593
      %v3658 = vpack.c.b16 %v3610, %v3594
      %v3659 = vpack.c.b16 %v3611, %v3595
      %v3660 = vpack.c.b16 %v3612, %v3596
      %v3661 = vpack.c.b16 %v3613, %v3597
      %v3662 = vpack.c.b16 %v3630, %v3614
      %v3663 = vpack.c.b16 %v3631, %v3615
      %v3664 = vpack.c.b16 %v3632, %v3616
      %v3665 = vpack.c.b16 %v3633, %v3617
      %v3666 = vpack.c.b16 %v3634, %v3618
      %v3667 = vpack.c.b16 %v3635, %v3619
      %v3668 = vpack.c.b16 %v3636, %v3620
      %v3669 = vpack.c.b16 %v3637, %v3621
      %v3670 = vpack.c.b16 %v3638, %v3622
      %v3671 = vpack.c.b16 %v3639, %v3623
      %v3672 = vpack.c.b16 %v3640, %v3624
      %v3673 = vpack.c.b16 %v3641, %v3625
      %v3674 = vpack.c.b16 %v3642, %v3626
      %v3675 = vpack.c.b16 %v3643, %v3627
      %v3676 = vpack.c.b16 %v3644, %v3628
      %v3677 = vpack.c.b16 %v3645, %v3629
      %v3711 = vsel %vm484, %v3549, 0
      %3713 = vmatprep.subr.bf16.mxu0 %v3647
      %3714 = vmatpush1.bf16.msra.mxu0 %v3646
      %3715 = vmatprep.subr.bf16.mxu0 %v3663
      %3716 = vmatpush1.bf16.msra.mxu0 %v3662
      %3717 = vmatprep.subr.bf16.mxu0 0
      %3718 = vmatpush1.bf16.msra.mxu0 0
      %3719 = vmatprep.subr.bf16.mxu0 0
      %3720 = vmatpush1.bf16.msra.mxu0 0
      %3721 = vmatprep.subr.bf16.mxu0 0
      %3722 = vmatpush1.bf16.msra.mxu0 0
      %3723 = vmatprep.subr.bf16.mxu0 0
      %3724 = vmatpush1.bf16.msra.mxu0 0
      %3725 = vmatprep.subr.bf16.mxu0 0
      %3726 = vmatpush1.bf16.msra.mxu0 0
      %3727 = vmatprep.subr.bf16.mxu0 0
      %3728 = vmatpush1.bf16.msra.mxu0 0
      %3729 = vmatprep.subr.bf16.mxu0 0
      %3730 = vmatpush1.bf16.msra.mxu0 0
      %3731 = vmatprep.subr.bf16.mxu0 0
      %3732 = vmatpush1.bf16.msra.mxu0 0
      %3733 = vmatprep.subr.bf16.mxu0 0
      %3734 = vmatpush1.bf16.msra.mxu0 0
      %3735 = vmatprep.subr.bf16.mxu0 0
      %3736 = vmatpush1.bf16.msra.mxu0 0
      %3737 = vmatprep.subr.bf16.mxu0 0
      %3738 = vmatpush1.bf16.msra.mxu0 0
      %3739 = vmatprep.subr.bf16.mxu0 0
      %3740 = vmatpush1.bf16.msra.mxu0 0
      %3741 = vmatprep.subr.bf16.mxu0 0
      %3742 = vmatpush1.bf16.msra.mxu0 0
      %3743 = vmatprep.subr.bf16.mxu0 0
      %3744 = vmatpush1.bf16.msra.mxu0 0
      %3745 = vmatprep.mubr.bf16.mxu0 0
      %3746 = vmatmul.mubr.bf16.gmra.mrb[0].mxu0 %v3711
      %v3747 = vpop.f32.mrb[0].mxu0
      %v3748 = vadd.f32 0.0, %v3747
      %v3749 = vpop.f32.mrb[0].mxu0
      %v3750 = vadd.f32 0.0, %v3749
      %v3751 = vpop.f32.mrb[0].mxu0
      %v3752 = vpop.f32.mrb[0].mxu0
      %3753 = vdwg.mxu0
      %3754 = vmatprep.subr.bf16.mxu0 %v3649
      %3755 = vmatpush1.bf16.msra.mxu0 %v3648
      %3756 = vmatprep.subr.bf16.mxu0 %v3665
      %3757 = vmatpush1.bf16.msra.mxu0 %v3664
      %3758 = vmatprep.subr.bf16.mxu0 0
      %3759 = vmatpush1.bf16.msra.mxu0 0
      %3760 = vmatprep.subr.bf16.mxu0 0
      %3761 = vmatpush1.bf16.msra.mxu0 0
      %3762 = vmatprep.subr.bf16.mxu0 0
      %3763 = vmatpush1.bf16.msra.mxu0 0
      %3764 = vmatprep.subr.bf16.mxu0 0
      %3765 = vmatpush1.bf16.msra.mxu0 0
      %3766 = vmatprep.subr.bf16.mxu0 0
      %3767 = vmatpush1.bf16.msra.mxu0 0
      %3768 = vmatprep.subr.bf16.mxu0 0
      %3769 = vmatpush1.bf16.msra.mxu0 0
      %3770 = vmatprep.subr.bf16.mxu0 0
      %3771 = vmatpush1.bf16.msra.mxu0 0
      %3772 = vmatprep.subr.bf16.mxu0 0
      %3773 = vmatpush1.bf16.msra.mxu0 0
      %3774 = vmatprep.subr.bf16.mxu0 0
      %3775 = vmatpush1.bf16.msra.mxu0 0
      %3776 = vmatprep.subr.bf16.mxu0 0
      %3777 = vmatpush1.bf16.msra.mxu0 0
      %3778 = vmatprep.subr.bf16.mxu0 0
      %3779 = vmatpush1.bf16.msra.mxu0 0
      %3780 = vmatprep.subr.bf16.mxu0 0
      %3781 = vmatpush1.bf16.msra.mxu0 0
      %3782 = vmatprep.subr.bf16.mxu0 0
      %3783 = vmatpush1.bf16.msra.mxu0 0
      %3784 = vmatprep.subr.bf16.mxu0 0
      %3785 = vmatpush1.bf16.msra.mxu0 0
      %3786 = vmatprep.mubr.bf16.mxu0 0
      %3787 = vmatmul.mubr.bf16.gmra.mrb[0].mxu0 %v3711
      %v3788 = vpop.f32.mrb[0].mxu0
      %v3789 = vadd.f32 0.0, %v3788
      %v3790 = vpop.f32.mrb[0].mxu0
      %v3791 = vadd.f32 0.0, %v3790
      %v3792 = vpop.f32.mrb[0].mxu0
      %v3793 = vpop.f32.mrb[0].mxu0
      %3794 = vdwg.mxu0
      %3795 = vmatprep.subr.bf16.mxu0 %v3651
      %3796 = vmatpush1.bf16.msra.mxu0 %v3650
      %3797 = vmatprep.subr.bf16.mxu0 %v3667
      %3798 = vmatpush1.bf16.msra.mxu0 %v3666
      %3799 = vmatprep.subr.bf16.mxu0 0
      %3800 = vmatpush1.bf16.msra.mxu0 0
      %3801 = vmatprep.subr.bf16.mxu0 0
      %3802 = vmatpush1.bf16.msra.mxu0 0
      %3803 = vmatprep.subr.bf16.mxu0 0
      %3804 = vmatpush1.bf16.msra.mxu0 0
      %3805 = vmatprep.subr.bf16.mxu0 0
      %3806 = vmatpush1.bf16.msra.mxu0 0
      %3807 = vmatprep.subr.bf16.mxu0 0
      %3808 = vmatpush1.bf16.msra.mxu0 0
      %3809 = vmatprep.subr.bf16.mxu0 0
      %3810 = vmatpush1.bf16.msra.mxu0 0
      %3811 = vmatprep.subr.bf16.mxu0 0
      %3812 = vmatpush1.bf16.msra.mxu0 0
      %3813 = vmatprep.subr.bf16.mxu0 0
      %3814 = vmatpush1.bf16.msra.mxu0 0
      %3815 = vmatprep.subr.bf16.mxu0 0
      %3816 = vmatpush1.bf16.msra.mxu0 0
      %3817 = vmatprep.subr.bf16.mxu0 0
      %3818 = vmatpush1.bf16.msra.mxu0 0
      %3819 = vmatprep.subr.bf16.mxu0 0
      %3820 = vmatpush1.bf16.msra.mxu0 0
      %3821 = vmatprep.subr.bf16.mxu0 0
      %3822 = vmatpush1.bf16.msra.mxu0 0
      %3823 = vmatprep.subr.bf16.mxu0 0
      %3824 = vmatpush1.bf16.msra.mxu0 0
      %3825 = vmatprep.subr.bf16.mxu0 0
      %3826 = vmatpush1.bf16.msra.mxu0 0
      %3827 = vmatprep.mubr.bf16.mxu0 0
      %3828 = vmatmul.mubr.bf16.gmra.mrb[0].mxu0 %v3711
      %v3829 = vpop.f32.mrb[0].mxu0
      %v3830 = vadd.f32 0.0, %v3829
      %v3831 = vpop.f32.mrb[0].mxu0
      %v3832 = vadd.f32 0.0, %v3831
      %v3833 = vpop.f32.mrb[0].mxu0
      %v3834 = vpop.f32.mrb[0].mxu0
      %3835 = vdwg.mxu0
      %3836 = vmatprep.subr.bf16.mxu0 %v3653
      %3837 = vmatpush1.bf16.msra.mxu0 %v3652
      %3838 = vmatprep.subr.bf16.mxu0 %v3669
      %3839 = vmatpush1.bf16.msra.mxu0 %v3668
      %3840 = vmatprep.subr.bf16.mxu0 0
      %3841 = vmatpush1.bf16.msra.mxu0 0
      %3842 = vmatprep.subr.bf16.mxu0 0
      %3843 = vmatpush1.bf16.msra.mxu0 0
      %3844 = vmatprep.subr.bf16.mxu0 0
      %3845 = vmatpush1.bf16.msra.mxu0 0
      %3846 = vmatprep.subr.bf16.mxu0 0
      %3847 = vmatpush1.bf16.msra.mxu0 0
      %3848 = vmatprep.subr.bf16.mxu0 0
      %3849 = vmatpush1.bf16.msra.mxu0 0
      %3850 = vmatprep.subr.bf16.mxu0 0
      %3851 = vmatpush1.bf16.msra.mxu0 0
      %3852 = vmatprep.subr.bf16.mxu0 0
      %3853 = vmatpush1.bf16.msra.mxu0 0
      %3854 = vmatprep.subr.bf16.mxu0 0
      %3855 = vmatpush1.bf16.msra.mxu0 0
      %3856 = vmatprep.subr.bf16.mxu0 0
      %3857 = vmatpush1.bf16.msra.mxu0 0
      %3858 = vmatprep.subr.bf16.mxu0 0
      %3859 = vmatpush1.bf16.msra.mxu0 0
      %3860 = vmatprep.subr.bf16.mxu0 0
      %3861 = vmatpush1.bf16.msra.mxu0 0
      %3862 = vmatprep.subr.bf16.mxu0 0
      %3863 = vmatpush1.bf16.msra.mxu0 0
      %3864 = vmatprep.subr.bf16.mxu0 0
      %3865 = vmatpush1.bf16.msra.mxu0 0
      %3866 = vmatprep.subr.bf16.mxu0 0
      %3867 = vmatpush1.bf16.msra.mxu0 0
      %3868 = vmatprep.mubr.bf16.mxu0 0
      %3869 = vmatmul.mubr.bf16.gmra.mrb[0].mxu0 %v3711
      %v3870 = vpop.f32.mrb[0].mxu0
      %v3871 = vadd.f32 0.0, %v3870
      %v3872 = vpop.f32.mrb[0].mxu0
      %v3873 = vadd.f32 0.0, %v3872
      %v3874 = vpop.f32.mrb[0].mxu0
      %v3875 = vpop.f32.mrb[0].mxu0
      %3876 = vdwg.mxu0
      %3877 = vmatprep.subr.bf16.mxu0 %v3655
      %3878 = vmatpush1.bf16.msra.mxu0 %v3654
      %3879 = vmatprep.subr.bf16.mxu0 %v3671
      %3880 = vmatpush1.bf16.msra.mxu0 %v3670
      %3881 = vmatprep.subr.bf16.mxu0 0
      %3882 = vmatpush1.bf16.msra.mxu0 0
      %3883 = vmatprep.subr.bf16.mxu0 0
      %3884 = vmatpush1.bf16.msra.mxu0 0
      %3885 = vmatprep.subr.bf16.mxu0 0
      %3886 = vmatpush1.bf16.msra.mxu0 0
      %3887 = vmatprep.subr.bf16.mxu0 0
      %3888 = vmatpush1.bf16.msra.mxu0 0
      %3889 = vmatprep.subr.bf16.mxu0 0
      %3890 = vmatpush1.bf16.msra.mxu0 0
      %3891 = vmatprep.subr.bf16.mxu0 0
      %3892 = vmatpush1.bf16.msra.mxu0 0
      %3893 = vmatprep.subr.bf16.mxu0 0
      %3894 = vmatpush1.bf16.msra.mxu0 0
      %3895 = vmatprep.subr.bf16.mxu0 0
      %3896 = vmatpush1.bf16.msra.mxu0 0
      %3897 = vmatprep.subr.bf16.mxu0 0
      %3898 = vmatpush1.bf16.msra.mxu0 0
      %3899 = vmatprep.subr.bf16.mxu0 0
      %3900 = vmatpush1.bf16.msra.mxu0 0
      %3901 = vmatprep.subr.bf16.mxu0 0
      %3902 = vmatpush1.bf16.msra.mxu0 0
      %3903 = vmatprep.subr.bf16.mxu0 0
      %3904 = vmatpush1.bf16.msra.mxu0 0
      %3905 = vmatprep.subr.bf16.mxu0 0
      %3906 = vmatpush1.bf16.msra.mxu0 0
      %3907 = vmatprep.subr.bf16.mxu0 0
      %3908 = vmatpush1.bf16.msra.mxu0 0
      %3909 = vmatprep.mubr.bf16.mxu0 0
      %3910 = vmatmul.mubr.bf16.gmra.mrb[0].mxu0 %v3711
      %v3911 = vpop.f32.mrb[0].mxu0
      %v3912 = vadd.f32 0.0, %v3911
      %v3913 = vpop.f32.mrb[0].mxu0
      %v3914 = vadd.f32 0.0, %v3913
      %v3915 = vpop.f32.mrb[0].mxu0
      %v3916 = vpop.f32.mrb[0].mxu0
      %3917 = vdwg.mxu0
      %3918 = vmatprep.subr.bf16.mxu0 %v3657
      %3919 = vmatpush1.bf16.msra.mxu0 %v3656
      %3920 = vmatprep.subr.bf16.mxu0 %v3673
      %3921 = vmatpush1.bf16.msra.mxu0 %v3672
      %3922 = vmatprep.subr.bf16.mxu0 0
      %3923 = vmatpush1.bf16.msra.mxu0 0
      %3924 = vmatprep.subr.bf16.mxu0 0
      %3925 = vmatpush1.bf16.msra.mxu0 0
      %3926 = vmatprep.subr.bf16.mxu0 0
      %3927 = vmatpush1.bf16.msra.mxu0 0
      %3928 = vmatprep.subr.bf16.mxu0 0
      %3929 = vmatpush1.bf16.msra.mxu0 0
      %3930 = vmatprep.subr.bf16.mxu0 0
      %3931 = vmatpush1.bf16.msra.mxu0 0
      %3932 = vmatprep.subr.bf16.mxu0 0
      %3933 = vmatpush1.bf16.msra.mxu0 0
      %3934 = vmatprep.subr.bf16.mxu0 0
      %3935 = vmatpush1.bf16.msra.mxu0 0
      %3936 = vmatprep.subr.bf16.mxu0 0
      %3937 = vmatpush1.bf16.msra.mxu0 0
      %3938 = vmatprep.subr.bf16.mxu0 0
      %3939 = vmatpush1.bf16.msra.mxu0 0
      %3940 = vmatprep.subr.bf16.mxu0 0
      %3941 = vmatpush1.bf16.msra.mxu0 0
      %3942 = vmatprep.subr.bf16.mxu0 0
      %3943 = vmatpush1.bf16.msra.mxu0 0
      %3944 = vmatprep.subr.bf16.mxu0 0
      %3945 = vmatpush1.bf16.msra.mxu0 0
      %3946 = vmatprep.subr.bf16.mxu0 0
      %3947 = vmatpush1.bf16.msra.mxu0 0
      %3948 = vmatprep.subr.bf16.mxu0 0
      %3949 = vmatpush1.bf16.msra.mxu0 0
      %3950 = vmatprep.mubr.bf16.mxu0 0
      %3951 = vmatmul.mubr.bf16.gmra.mrb[0].mxu0 %v3711
      %v3952 = vpop.f32.mrb[0].mxu0
      %v3953 = vadd.f32 0.0, %v3952
      %v3954 = vpop.f32.mrb[0].mxu0
      %v3955 = vadd.f32 0.0, %v3954
      %v3956 = vpop.f32.mrb[0].mxu0
      %v3957 = vpop.f32.mrb[0].mxu0
      %3958 = vdwg.mxu0
      %3959 = vmatprep.subr.bf16.mxu0 %v3659
      %3960 = vmatpush1.bf16.msra.mxu0 %v3658
      %3961 = vmatprep.subr.bf16.mxu0 %v3675
      %3962 = vmatpush1.bf16.msra.mxu0 %v3674
      %3963 = vmatprep.subr.bf16.mxu0 0
      %3964 = vmatpush1.bf16.msra.mxu0 0
      %3965 = vmatprep.subr.bf16.mxu0 0
      %3966 = vmatpush1.bf16.msra.mxu0 0
      %3967 = vmatprep.subr.bf16.mxu0 0
      %3968 = vmatpush1.bf16.msra.mxu0 0
      %3969 = vmatprep.subr.bf16.mxu0 0
      %3970 = vmatpush1.bf16.msra.mxu0 0
      %3971 = vmatprep.subr.bf16.mxu0 0
      %3972 = vmatpush1.bf16.msra.mxu0 0
      %3973 = vmatprep.subr.bf16.mxu0 0
      %3974 = vmatpush1.bf16.msra.mxu0 0
      %3975 = vmatprep.subr.bf16.mxu0 0
      %3976 = vmatpush1.bf16.msra.mxu0 0
      %3977 = vmatprep.subr.bf16.mxu0 0
      %3978 = vmatpush1.bf16.msra.mxu0 0
      %3979 = vmatprep.subr.bf16.mxu0 0
      %3980 = vmatpush1.bf16.msra.mxu0 0
      %3981 = vmatprep.subr.bf16.mxu0 0
      %3982 = vmatpush1.bf16.msra.mxu0 0
      %3983 = vmatprep.subr.bf16.mxu0 0
      %3984 = vmatpush1.bf16.msra.mxu0 0
      %3985 = vmatprep.subr.bf16.mxu0 0
      %3986 = vmatpush1.bf16.msra.mxu0 0
      %3987 = vmatprep.subr.bf16.mxu0 0
      %3988 = vmatpush1.bf16.msra.mxu0 0
      %3989 = vmatprep.subr.bf16.mxu0 0
      %3990 = vmatpush1.bf16.msra.mxu0 0
      %3991 = vmatprep.mubr.bf16.mxu0 0
      %3992 = vmatmul.mubr.bf16.gmra.mrb[0].mxu0 %v3711
      %v3993 = vpop.f32.mrb[0].mxu0
      %v3994 = vadd.f32 0.0, %v3993
      %v3995 = vpop.f32.mrb[0].mxu0
      %v3996 = vadd.f32 0.0, %v3995
      %v3997 = vpop.f32.mrb[0].mxu0
      %v3998 = vpop.f32.mrb[0].mxu0
      %3999 = vdwg.mxu0
      %4000 = vmatprep.subr.bf16.mxu0 %v3661
      %4001 = vmatpush1.bf16.msra.mxu0 %v3660
      %4002 = vmatprep.subr.bf16.mxu0 %v3677
      %4003 = vmatpush1.bf16.msra.mxu0 %v3676
      %4004 = vmatprep.subr.bf16.mxu0 0
      %4005 = vmatpush1.bf16.msra.mxu0 0
      %4006 = vmatprep.subr.bf16.mxu0 0
      %4007 = vmatpush1.bf16.msra.mxu0 0
      %4008 = vmatprep.subr.bf16.mxu0 0
      %4009 = vmatpush1.bf16.msra.mxu0 0
      %4010 = vmatprep.subr.bf16.mxu0 0
      %4011 = vmatpush1.bf16.msra.mxu0 0
      %4012 = vmatprep.subr.bf16.mxu0 0
      %4013 = vmatpush1.bf16.msra.mxu0 0
      %4014 = vmatprep.subr.bf16.mxu0 0
      %4015 = vmatpush1.bf16.msra.mxu0 0
      %4016 = vmatprep.subr.bf16.mxu0 0
      %4017 = vmatpush1.bf16.msra.mxu0 0
      %4018 = vmatprep.subr.bf16.mxu0 0
      %4019 = vmatpush1.bf16.msra.mxu0 0
      %4020 = vmatprep.subr.bf16.mxu0 0
      %4021 = vmatpush1.bf16.msra.mxu0 0
      %4022 = vmatprep.subr.bf16.mxu0 0
      %4023 = vmatpush1.bf16.msra.mxu0 0
      %4024 = vmatprep.subr.bf16.mxu0 0
      %4025 = vmatpush1.bf16.msra.mxu0 0
      %4026 = vmatprep.subr.bf16.mxu0 0
      %4027 = vmatpush1.bf16.msra.mxu0 0
      %4028 = vmatprep.subr.bf16.mxu0 0
      %4029 = vmatpush1.bf16.msra.mxu0 0
      %4030 = vmatprep.subr.bf16.mxu0 0
      %4031 = vmatpush1.bf16.msra.mxu0 0
      %4032 = vmatprep.mubr.bf16.mxu0 0
      %4033 = vmatmul.mubr.bf16.gmra.mrb[0].mxu0 %v3711
      %v4034 = vpop.f32.mrb[0].mxu0
      %v4035 = vadd.f32 0.0, %v4034
      %v4036 = vpop.f32.mrb[0].mxu0
      %v4037 = vadd.f32 0.0, %v4036
      %v4038 = vpop.f32.mrb[0].mxu0
      %v4039 = vpop.f32.mrb[0].mxu0
      %4040 = vdwg.mxu0
      %vm4041 = vcmask 64512
      %v4043 = vsel %vm4041, %v196, 0
      %v4046 = vsel %vm4041, %v197, 0
      %v4049 = vsel %vm4041, %v198, 0
      %v4052 = vsel %vm4041, %v199, 0
      %v4055 = vsel %vm4041, %v200, 0
      %v4058 = vsel %vm4041, %v201, 0
      %v4061 = vsel %vm4041, %v202, 0
      %v4064 = vsel %vm4041, %v203, 0
      %4066 = vmatprep.subr.mxu0 %v3750
      %4067 = vmatpush1.msra.mxu0 %v3748
      %4068 = vmatprep.subr.mxu0 0.0
      %4069 = vmatpush1.msra.mxu0 0.0
      %4070 = vmatprep.subr.mxu0 0.0
      %4071 = vmatpush1.msra.mxu0 0.0
      %4072 = vmatprep.subr.mxu0 0.0
      %4073 = vmatpush1.msra.mxu0 0.0
      %4074 = vmatprep.subr.mxu0 0.0
      %4075 = vmatpush1.msra.mxu0 0.0
      %4076 = vmatprep.subr.mxu0 0.0
      %4077 = vmatpush1.msra.mxu0 0.0
      %4078 = vmatprep.subr.mxu0 0.0
      %4079 = vmatpush1.msra.mxu0 0.0
      %4080 = vmatprep.subr.mxu0 0.0
      %4081 = vmatpush1.msra.mxu0 0.0
      %4082 = vmatprep.subr.mxu0 0.0
      %4083 = vmatpush1.msra.mxu0 0.0
      %4084 = vmatprep.subr.mxu0 0.0
      %4085 = vmatpush1.msra.mxu0 0.0
      %4086 = vmatprep.subr.mxu0 0.0
      %4087 = vmatpush1.msra.mxu0 0.0
      %4088 = vmatprep.subr.mxu0 0.0
      %4089 = vmatpush1.msra.mxu0 0.0
      %4090 = vmatprep.subr.mxu0 0.0
      %4091 = vmatpush1.msra.mxu0 0.0
      %4092 = vmatprep.subr.mxu0 0.0
      %4093 = vmatpush1.msra.mxu0 0.0
      %4094 = vmatprep.subr.mxu0 0.0
      %4095 = vmatpush1.msra.mxu0 0.0
      %4096 = vmatprep.subr.mxu0 0.0
      %4097 = vmatpush1.msra.mxu0 0.0
      %4098 = vmatprep.subr.mxu0 0.0
      %4099 = vmatpush1.msra.mxu0 0.0
      %4100 = vmatprep.subr.mxu0 0.0
      %4101 = vmatpush1.msra.mxu0 0.0
      %4102 = vmatprep.subr.mxu0 0.0
      %4103 = vmatpush1.msra.mxu0 0.0
      %4104 = vmatprep.subr.mxu0 0.0
      %4105 = vmatpush1.msra.mxu0 0.0
      %4106 = vmatprep.subr.mxu0 0.0
      %4107 = vmatpush1.msra.mxu0 0.0
      %4108 = vmatprep.subr.mxu0 0.0
      %4109 = vmatpush1.msra.mxu0 0.0
      %4110 = vmatprep.subr.mxu0 0.0
      %4111 = vmatpush1.msra.mxu0 0.0
      %4112 = vmatprep.subr.mxu0 0.0
      %4113 = vmatpush1.msra.mxu0 0.0
      %4114 = vmatprep.subr.mxu0 0.0
      %4115 = vmatpush1.msra.mxu0 0.0
      %4116 = vmatprep.subr.mxu0 0.0
      %4117 = vmatpush1.msra.mxu0 0.0
      %4118 = vmatprep.subr.mxu0 0.0
      %4119 = vmatpush1.msra.mxu0 0.0
      %4120 = vmatprep.subr.mxu0 0.0
      %4121 = vmatpush1.msra.mxu0 0.0
      %4122 = vmatprep.subr.mxu0 0.0
      %4123 = vmatpush1.msra.mxu0 0.0
      %4124 = vmatprep.subr.mxu0 0.0
      %4125 = vmatpush1.msra.mxu0 0.0
      %4126 = vmatprep.subr.mxu0 0.0
      %4127 = vmatpush1.msra.mxu0 0.0
      %4128 = vmatprep.subr.mxu0 0.0
      %4129 = vmatpush1.msra.mxu0 0.0
      %4130 = vmatprep.mubr.f32.mxu0 0.0
      %4131 = vmatmul.mubr.f32.gmra.mrb[0].mxu0 %v4043
      %v4132 = vpop.f32.mrb[0].mxu0
      %v4133 = vadd.f32 0.0, %v4132
      %v4134 = vpop.f32.mrb[0].mxu0
      %v4135 = vadd.f32 0.0, %v4134
      %4136 = vmatprep.mubr.f32.mxu0 0.0
      %4137 = vmatmul.mubr.f32.gmra.mrb[0].mxu0 %v4046
      %v4138 = vpop.f32.mrb[0].mxu0
      %v4139 = vadd.f32 0.0, %v4138
      %v4140 = vpop.f32.mrb[0].mxu0
      %v4141 = vadd.f32 0.0, %v4140
      %4142 = vmatprep.mubr.f32.mxu0 0.0
      %4143 = vmatmul.mubr.f32.gmra.mrb[0].mxu0 %v4049
      %v4144 = vpop.f32.mrb[0].mxu0
      %v4145 = vadd.f32 0.0, %v4144
      %v4146 = vpop.f32.mrb[0].mxu0
      %v4147 = vadd.f32 0.0, %v4146
      %4148 = vmatprep.mubr.f32.mxu0 0.0
      %4149 = vmatmul.mubr.f32.gmra.mrb[0].mxu0 %v4052
      %v4150 = vpop.f32.mrb[0].mxu0
      %v4151 = vadd.f32 0.0, %v4150
      %v4152 = vpop.f32.mrb[0].mxu0
      %v4153 = vadd.f32 0.0, %v4152
      %4154 = vmatprep.mubr.f32.mxu0 0.0
      %4155 = vmatmul.mubr.f32.gmra.mrb[0].mxu0 %v4055
      %v4156 = vpop.f32.mrb[0].mxu0
      %v4157 = vadd.f32 0.0, %v4156
      %v4158 = vpop.f32.mrb[0].mxu0
      %v4159 = vadd.f32 0.0, %v4158
      %4160 = vmatprep.mubr.f32.mxu0 0.0
      %4161 = vmatmul.mubr.f32.gmra.mrb[0].mxu0 %v4058
      %v4162 = vpop.f32.mrb[0].mxu0
      %v4163 = vadd.f32 0.0, %v4162
      %v4164 = vpop.f32.mrb[0].mxu0
      %v4165 = vadd.f32 0.0, %v4164
      %4166 = vmatprep.mubr.f32.mxu0 0.0
      %4167 = vmatmul.mubr.f32.gmra.mrb[0].mxu0 %v4061
      %v4168 = vpop.f32.mrb[0].mxu0
      %v4169 = vadd.f32 0.0, %v4168
      %v4170 = vpop.f32.mrb[0].mxu0
      %v4171 = vadd.f32 0.0, %v4170
      %4172 = vmatprep.mubr.f32.mxu0 0.0
      %4173 = vmatmul.mubr.f32.gmra.mrb[0].mxu0 %v4064
      %v4174 = vpop.f32.mrb[0].mxu0
      %v4175 = vadd.f32 0.0, %v4174
      %v4176 = vpop.f32.mrb[0].mxu0
      %v4177 = vadd.f32 0.0, %v4176
      %4178 = vdwg.mxu0
      %4179 = vmatprep.subr.mxu0 %v3791
      %4180 = vmatpush1.msra.mxu0 %v3789
      %4181 = vmatprep.subr.mxu0 0.0
      %4182 = vmatpush1.msra.mxu0 0.0
      %4183 = vmatprep.subr.mxu0 0.0
      %4184 = vmatpush1.msra.mxu0 0.0
      %4185 = vmatprep.subr.mxu0 0.0
      %4186 = vmatpush1.msra.mxu0 0.0
      %4187 = vmatprep.subr.mxu0 0.0
      %4188 = vmatpush1.msra.mxu0 0.0
      %4189 = vmatprep.subr.mxu0 0.0
      %4190 = vmatpush1.msra.mxu0 0.0
      %4191 = vmatprep.subr.mxu0 0.0
      %4192 = vmatpush1.msra.mxu0 0.0
      %4193 = vmatprep.subr.mxu0 0.0
      %4194 = vmatpush1.msra.mxu0 0.0
      %4195 = vmatprep.subr.mxu0 0.0
      %4196 = vmatpush1.msra.mxu0 0.0
      %4197 = vmatprep.subr.mxu0 0.0
      %4198 = vmatpush1.msra.mxu0 0.0
      %4199 = vmatprep.subr.mxu0 0.0
      %4200 = vmatpush1.msra.mxu0 0.0
      %4201 = vmatprep.subr.mxu0 0.0
      %4202 = vmatpush1.msra.mxu0 0.0
      %4203 = vmatprep.subr.mxu0 0.0
      %4204 = vmatpush1.msra.mxu0 0.0
      %4205 = vmatprep.subr.mxu0 0.0
      %4206 = vmatpush1.msra.mxu0 0.0
      %4207 = vmatprep.subr.mxu0 0.0
      %4208 = vmatpush1.msra.mxu0 0.0
      %4209 = vmatprep.subr.mxu0 0.0
      %4210 = vmatpush1.msra.mxu0 0.0
      %4211 = vmatprep.subr.mxu0 0.0
      %4212 = vmatpush1.msra.mxu0 0.0
      %4213 = vmatprep.subr.mxu0 0.0
      %4214 = vmatpush1.msra.mxu0 0.0
      %4215 = vmatprep.subr.mxu0 0.0
      %4216 = vmatpush1.msra.mxu0 0.0
      %4217 = vmatprep.subr.mxu0 0.0
      %4218 = vmatpush1.msra.mxu0 0.0
      %4219 = vmatprep.subr.mxu0 0.0
      %4220 = vmatpush1.msra.mxu0 0.0
      %4221 = vmatprep.subr.mxu0 0.0
      %4222 = vmatpush1.msra.mxu0 0.0
      %4223 = vmatprep.subr.mxu0 0.0
      %4224 = vmatpush1.msra.mxu0 0.0
      %4225 = vmatprep.subr.mxu0 0.0
      %4226 = vmatpush1.msra.mxu0 0.0
      %4227 = vmatprep.subr.mxu0 0.0
      %4228 = vmatpush1.msra.mxu0 0.0
      %4229 = vmatprep.subr.mxu0 0.0
      %4230 = vmatpush1.msra.mxu0 0.0
      %4231 = vmatprep.subr.mxu0 0.0
      %4232 = vmatpush1.msra.mxu0 0.0
      %4233 = vmatprep.subr.mxu0 0.0
      %4234 = vmatpush1.msra.mxu0 0.0
      %4235 = vmatprep.subr.mxu0 0.0
      %4236 = vmatpush1.msra.mxu0 0.0
      %4237 = vmatprep.subr.mxu0 0.0
      %4238 = vmatpush1.msra.mxu0 0.0
      %4239 = vmatprep.subr.mxu0 0.0
      %4240 = vmatpush1.msra.mxu0 0.0
      %4241 = vmatprep.subr.mxu0 0.0
      %4242 = vmatpush1.msra.mxu0 0.0
      %4243 = vmatprep.mubr.f32.mxu0 0.0
      %4244 = vmatmul.mubr.f32.gmra.mrb[0].mxu0 %v4043
      %v4245 = vpop.f32.mrb[0].mxu0
      %v4246 = vadd.f32 0.0, %v4245
      %v4247 = vpop.f32.mrb[0].mxu0
      %v4248 = vadd.f32 0.0, %v4247
      %4249 = vmatprep.mubr.f32.mxu0 0.0
      %4250 = vmatmul.mubr.f32.gmra.mrb[0].mxu0 %v4046
      %v4251 = vpop.f32.mrb[0].mxu0
      %v4252 = vadd.f32 0.0, %v4251
      %v4253 = vpop.f32.mrb[0].mxu0
      %v4254 = vadd.f32 0.0, %v4253
      %4255 = vmatprep.mubr.f32.mxu0 0.0
      %4256 = vmatmul.mubr.f32.gmra.mrb[0].mxu0 %v4049
      %v4257 = vpop.f32.mrb[0].mxu0
      %v4258 = vadd.f32 0.0, %v4257
      %v4259 = vpop.f32.mrb[0].mxu0
      %v4260 = vadd.f32 0.0, %v4259
      %4261 = vmatprep.mubr.f32.mxu0 0.0
      %4262 = vmatmul.mubr.f32.gmra.mrb[0].mxu0 %v4052
      %v4263 = vpop.f32.mrb[0].mxu0
      %v4264 = vadd.f32 0.0, %v4263
      %v4265 = vpop.f32.mrb[0].mxu0
      %v4266 = vadd.f32 0.0, %v4265
      %4267 = vmatprep.mubr.f32.mxu0 0.0
      %4268 = vmatmul.mubr.f32.gmra.mrb[0].mxu0 %v4055
      %v4269 = vpop.f32.mrb[0].mxu0
      %v4270 = vadd.f32 0.0, %v4269
      %v4271 = vpop.f32.mrb[0].mxu0
      %v4272 = vadd.f32 0.0, %v4271
      %4273 = vmatprep.mubr.f32.mxu0 0.0
      %4274 = vmatmul.mubr.f32.gmra.mrb[0].mxu0 %v4058
      %v4275 = vpop.f32.mrb[0].mxu0
      %v4276 = vadd.f32 0.0, %v4275
      %v4277 = vpop.f32.mrb[0].mxu0
      %v4278 = vadd.f32 0.0, %v4277
      %4279 = vmatprep.mubr.f32.mxu0 0.0
      %4280 = vmatmul.mubr.f32.gmra.mrb[0].mxu0 %v4061
      %v4281 = vpop.f32.mrb[0].mxu0
      %v4282 = vadd.f32 0.0, %v4281
      %v4283 = vpop.f32.mrb[0].mxu0
      %v4284 = vadd.f32 0.0, %v4283
      %4285 = vmatprep.mubr.f32.mxu0 0.0
      %4286 = vmatmul.mubr.f32.gmra.mrb[0].mxu0 %v4064
      %v4287 = vpop.f32.mrb[0].mxu0
      %v4288 = vadd.f32 0.0, %v4287
      %v4289 = vpop.f32.mrb[0].mxu0
      %v4290 = vadd.f32 0.0, %v4289
      %4291 = vdwg.mxu0
      %4292 = vmatprep.subr.mxu0 %v3832
      %4293 = vmatpush1.msra.mxu0 %v3830
      %4294 = vmatprep.subr.mxu0 0.0
      %4295 = vmatpush1.msra.mxu0 0.0
      %4296 = vmatprep.subr.mxu0 0.0
      %4297 = vmatpush1.msra.mxu0 0.0
      %4298 = vmatprep.subr.mxu0 0.0
      %4299 = vmatpush1.msra.mxu0 0.0
      %4300 = vmatprep.subr.mxu0 0.0
      %4301 = vmatpush1.msra.mxu0 0.0
      %4302 = vmatprep.subr.mxu0 0.0
      %4303 = vmatpush1.msra.mxu0 0.0
      %4304 = vmatprep.subr.mxu0 0.0
      %4305 = vmatpush1.msra.mxu0 0.0
      %4306 = vmatprep.subr.mxu0 0.0
      %4307 = vmatpush1.msra.mxu0 0.0
      %4308 = vmatprep.subr.mxu0 0.0
      %4309 = vmatpush1.msra.mxu0 0.0
      %4310 = vmatprep.subr.mxu0 0.0
      %4311 = vmatpush1.msra.mxu0 0.0
      %4312 = vmatprep.subr.mxu0 0.0
      %4313 = vmatpush1.msra.mxu0 0.0
      %4314 = vmatprep.subr.mxu0 0.0
      %4315 = vmatpush1.msra.mxu0 0.0
      %4316 = vmatprep.subr.mxu0 0.0
      %4317 = vmatpush1.msra.mxu0 0.0
      %4318 = vmatprep.subr.mxu0 0.0
      %4319 = vmatpush1.msra.mxu0 0.0
      %4320 = vmatprep.subr.mxu0 0.0
      %4321 = vmatpush1.msra.mxu0 0.0
      %4322 = vmatprep.subr.mxu0 0.0
      %4323 = vmatpush1.msra.mxu0 0.0
      %4324 = vmatprep.subr.mxu0 0.0
      %4325 = vmatpush1.msra.mxu0 0.0
      %4326 = vmatprep.subr.mxu0 0.0
      %4327 = vmatpush1.msra.mxu0 0.0
      %4328 = vmatprep.subr.mxu0 0.0
      %4329 = vmatpush1.msra.mxu0 0.0
      %4330 = vmatprep.subr.mxu0 0.0
      %4331 = vmatpush1.msra.mxu0 0.0
      %4332 = vmatprep.subr.mxu0 0.0
      %4333 = vmatpush1.msra.mxu0 0.0
      %4334 = vmatprep.subr.mxu0 0.0
      %4335 = vmatpush1.msra.mxu0 0.0
      %4336 = vmatprep.subr.mxu0 0.0
      %4337 = vmatpush1.msra.mxu0 0.0
      %4338 = vmatprep.subr.mxu0 0.0
      %4339 = vmatpush1.msra.mxu0 0.0
      %4340 = vmatprep.subr.mxu0 0.0
      %4341 = vmatpush1.msra.mxu0 0.0
      %4342 = vmatprep.subr.mxu0 0.0
      %4343 = vmatpush1.msra.mxu0 0.0
      %4344 = vmatprep.subr.mxu0 0.0
      %4345 = vmatpush1.msra.mxu0 0.0
      %4346 = vmatprep.subr.mxu0 0.0
      %4347 = vmatpush1.msra.mxu0 0.0
      %4348 = vmatprep.subr.mxu0 0.0
      %4349 = vmatpush1.msra.mxu0 0.0
      %4350 = vmatprep.subr.mxu0 0.0
      %4351 = vmatpush1.msra.mxu0 0.0
      %4352 = vmatprep.subr.mxu0 0.0
      %4353 = vmatpush1.msra.mxu0 0.0
      %4354 = vmatprep.subr.mxu0 0.0
      %4355 = vmatpush1.msra.mxu0 0.0
      %4356 = vmatprep.mubr.f32.mxu0 0.0
      %4357 = vmatmul.mubr.f32.gmra.mrb[0].mxu0 %v4043
      %v4358 = vpop.f32.mrb[0].mxu0
      %v4359 = vadd.f32 0.0, %v4358
      %v4360 = vpop.f32.mrb[0].mxu0
      %v4361 = vadd.f32 0.0, %v4360
      %4362 = vmatprep.mubr.f32.mxu0 0.0
      %4363 = vmatmul.mubr.f32.gmra.mrb[0].mxu0 %v4046
      %v4364 = vpop.f32.mrb[0].mxu0
      %v4365 = vadd.f32 0.0, %v4364
      %v4366 = vpop.f32.mrb[0].mxu0
      %v4367 = vadd.f32 0.0, %v4366
      %4368 = vmatprep.mubr.f32.mxu0 0.0
      %4369 = vmatmul.mubr.f32.gmra.mrb[0].mxu0 %v4049
      %v4370 = vpop.f32.mrb[0].mxu0
      %v4371 = vadd.f32 0.0, %v4370
      %v4372 = vpop.f32.mrb[0].mxu0
      %v4373 = vadd.f32 0.0, %v4372
      %4374 = vmatprep.mubr.f32.mxu0 0.0
      %4375 = vmatmul.mubr.f32.gmra.mrb[0].mxu0 %v4052
      %v4376 = vpop.f32.mrb[0].mxu0
      %v4377 = vadd.f32 0.0, %v4376
      %v4378 = vpop.f32.mrb[0].mxu0
      %v4379 = vadd.f32 0.0, %v4378
      %4380 = vmatprep.mubr.f32.mxu0 0.0
      %4381 = vmatmul.mubr.f32.gmra.mrb[0].mxu0 %v4055
      %v4382 = vpop.f32.mrb[0].mxu0
      %v4383 = vadd.f32 0.0, %v4382
      %v4384 = vpop.f32.mrb[0].mxu0
      %v4385 = vadd.f32 0.0, %v4384
      %4386 = vmatprep.mubr.f32.mxu0 0.0
      %4387 = vmatmul.mubr.f32.gmra.mrb[0].mxu0 %v4058
      %v4388 = vpop.f32.mrb[0].mxu0
      %v4389 = vadd.f32 0.0, %v4388
      %v4390 = vpop.f32.mrb[0].mxu0
      %v4391 = vadd.f32 0.0, %v4390
      %4392 = vmatprep.mubr.f32.mxu0 0.0
      %4393 = vmatmul.mubr.f32.gmra.mrb[0].mxu0 %v4061
      %v4394 = vpop.f32.mrb[0].mxu0
      %v4395 = vadd.f32 0.0, %v4394
      %v4396 = vpop.f32.mrb[0].mxu0
      %v4397 = vadd.f32 0.0, %v4396
      %4398 = vmatprep.mubr.f32.mxu0 0.0
      %4399 = vmatmul.mubr.f32.gmra.mrb[0].mxu0 %v4064
      %v4400 = vpop.f32.mrb[0].mxu0
      %v4401 = vadd.f32 0.0, %v4400
      %v4402 = vpop.f32.mrb[0].mxu0
      %v4403 = vadd.f32 0.0, %v4402
      %4404 = vdwg.mxu0
      %4405 = vmatprep.subr.mxu0 %v3873
      %4406 = vmatpush1.msra.mxu0 %v3871
      %4407 = vmatprep.subr.mxu0 0.0
      %4408 = vmatpush1.msra.mxu0 0.0
      %4409 = vmatprep.subr.mxu0 0.0
      %4410 = vmatpush1.msra.mxu0 0.0
      %4411 = vmatprep.subr.mxu0 0.0
      %4412 = vmatpush1.msra.mxu0 0.0
      %4413 = vmatprep.subr.mxu0 0.0
      %4414 = vmatpush1.msra.mxu0 0.0
      %4415 = vmatprep.subr.mxu0 0.0
      %4416 = vmatpush1.msra.mxu0 0.0
      %4417 = vmatprep.subr.mxu0 0.0
      %4418 = vmatpush1.msra.mxu0 0.0
      %4419 = vmatprep.subr.mxu0 0.0
      %4420 = vmatpush1.msra.mxu0 0.0
      %4421 = vmatprep.subr.mxu0 0.0
      %4422 = vmatpush1.msra.mxu0 0.0
      %4423 = vmatprep.subr.mxu0 0.0
      %4424 = vmatpush1.msra.mxu0 0.0
      %4425 = vmatprep.subr.mxu0 0.0
      %4426 = vmatpush1.msra.mxu0 0.0
      %4427 = vmatprep.subr.mxu0 0.0
      %4428 = vmatpush1.msra.mxu0 0.0
      %4429 = vmatprep.subr.mxu0 0.0
      %4430 = vmatpush1.msra.mxu0 0.0
      %4431 = vmatprep.subr.mxu0 0.0
      %4432 = vmatpush1.msra.mxu0 0.0
      %4433 = vmatprep.subr.mxu0 0.0
      %4434 = vmatpush1.msra.mxu0 0.0
      %4435 = vmatprep.subr.mxu0 0.0
      %4436 = vmatpush1.msra.mxu0 0.0
      %4437 = vmatprep.subr.mxu0 0.0
      %4438 = vmatpush1.msra.mxu0 0.0
      %4439 = vmatprep.subr.mxu0 0.0
      %4440 = vmatpush1.msra.mxu0 0.0
      %4441 = vmatprep.subr.mxu0 0.0
      %4442 = vmatpush1.msra.mxu0 0.0
      %4443 = vmatprep.subr.mxu0 0.0
      %4444 = vmatpush1.msra.mxu0 0.0
      %4445 = vmatprep.subr.mxu0 0.0
      %4446 = vmatpush1.msra.mxu0 0.0
      %4447 = vmatprep.subr.mxu0 0.0
      %4448 = vmatpush1.msra.mxu0 0.0
      %4449 = vmatprep.subr.mxu0 0.0
      %4450 = vmatpush1.msra.mxu0 0.0
      %4451 = vmatprep.subr.mxu0 0.0
      %4452 = vmatpush1.msra.mxu0 0.0
      %4453 = vmatprep.subr.mxu0 0.0
      %4454 = vmatpush1.msra.mxu0 0.0
      %4455 = vmatprep.subr.mxu0 0.0
      %4456 = vmatpush1.msra.mxu0 0.0
      %4457 = vmatprep.subr.mxu0 0.0
      %4458 = vmatpush1.msra.mxu0 0.0
      %4459 = vmatprep.subr.mxu0 0.0
      %4460 = vmatpush1.msra.mxu0 0.0
      %4461 = vmatprep.subr.mxu0 0.0
      %4462 = vmatpush1.msra.mxu0 0.0
      %4463 = vmatprep.subr.mxu0 0.0
      %4464 = vmatpush1.msra.mxu0 0.0
      %4465 = vmatprep.subr.mxu0 0.0
      %4466 = vmatpush1.msra.mxu0 0.0
      %4467 = vmatprep.subr.mxu0 0.0
      %4468 = vmatpush1.msra.mxu0 0.0
      %4469 = vmatprep.mubr.f32.mxu0 0.0
      %4470 = vmatmul.mubr.f32.gmra.mrb[0].mxu0 %v4043
      %v4471 = vpop.f32.mrb[0].mxu0
      %v4472 = vadd.f32 0.0, %v4471
      %v4473 = vpop.f32.mrb[0].mxu0
      %v4474 = vadd.f32 0.0, %v4473
      %4475 = vmatprep.mubr.f32.mxu0 0.0
      %4476 = vmatmul.mubr.f32.gmra.mrb[0].mxu0 %v4046
      %v4477 = vpop.f32.mrb[0].mxu0
      %v4478 = vadd.f32 0.0, %v4477
      %v4479 = vpop.f32.mrb[0].mxu0
      %v4480 = vadd.f32 0.0, %v4479
      %4481 = vmatprep.mubr.f32.mxu0 0.0
      %4482 = vmatmul.mubr.f32.gmra.mrb[0].mxu0 %v4049
      %v4483 = vpop.f32.mrb[0].mxu0
      %v4484 = vadd.f32 0.0, %v4483
      %v4485 = vpop.f32.mrb[0].mxu0
      %v4486 = vadd.f32 0.0, %v4485
      %4487 = vmatprep.mubr.f32.mxu0 0.0
      %4488 = vmatmul.mubr.f32.gmra.mrb[0].mxu0 %v4052
      %v4489 = vpop.f32.mrb[0].mxu0
      %v4490 = vadd.f32 0.0, %v4489
      %v4491 = vpop.f32.mrb[0].mxu0
      %v4492 = vadd.f32 0.0, %v4491
      %4493 = vmatprep.mubr.f32.mxu0 0.0
      %4494 = vmatmul.mubr.f32.gmra.mrb[0].mxu0 %v4055
      %v4495 = vpop.f32.mrb[0].mxu0
      %v4496 = vadd.f32 0.0, %v4495
      %v4497 = vpop.f32.mrb[0].mxu0
      %v4498 = vadd.f32 0.0, %v4497
      %4499 = vmatprep.mubr.f32.mxu0 0.0
      %4500 = vmatmul.mubr.f32.gmra.mrb[0].mxu0 %v4058
      %v4501 = vpop.f32.mrb[0].mxu0
      %v4502 = vadd.f32 0.0, %v4501
      %v4503 = vpop.f32.mrb[0].mxu0
      %v4504 = vadd.f32 0.0, %v4503
      %4505 = vmatprep.mubr.f32.mxu0 0.0
      %4506 = vmatmul.mubr.f32.gmra.mrb[0].mxu0 %v4061
      %v4507 = vpop.f32.mrb[0].mxu0
      %v4508 = vadd.f32 0.0, %v4507
      %v4509 = vpop.f32.mrb[0].mxu0
      %v4510 = vadd.f32 0.0, %v4509
      %4511 = vmatprep.mubr.f32.mxu0 0.0
      %4512 = vmatmul.mubr.f32.gmra.mrb[0].mxu0 %v4064
      %v4513 = vpop.f32.mrb[0].mxu0
      %v4514 = vadd.f32 0.0, %v4513
      %v4515 = vpop.f32.mrb[0].mxu0
      %v4516 = vadd.f32 0.0, %v4515
      %4517 = vdwg.mxu0
      %4518 = vmatprep.subr.mxu0 %v3914
      %4519 = vmatpush1.msra.mxu0 %v3912
      %4520 = vmatprep.subr.mxu0 0.0
      %4521 = vmatpush1.msra.mxu0 0.0
      %4522 = vmatprep.subr.mxu0 0.0
      %4523 = vmatpush1.msra.mxu0 0.0
      %4524 = vmatprep.subr.mxu0 0.0
      %4525 = vmatpush1.msra.mxu0 0.0
      %4526 = vmatprep.subr.mxu0 0.0
      %4527 = vmatpush1.msra.mxu0 0.0
      %4528 = vmatprep.subr.mxu0 0.0
      %4529 = vmatpush1.msra.mxu0 0.0
      %4530 = vmatprep.subr.mxu0 0.0
      %4531 = vmatpush1.msra.mxu0 0.0
      %4532 = vmatprep.subr.mxu0 0.0
      %4533 = vmatpush1.msra.mxu0 0.0
      %4534 = vmatprep.subr.mxu0 0.0
      %4535 = vmatpush1.msra.mxu0 0.0
      %4536 = vmatprep.subr.mxu0 0.0
      %4537 = vmatpush1.msra.mxu0 0.0
      %4538 = vmatprep.subr.mxu0 0.0
      %4539 = vmatpush1.msra.mxu0 0.0
      %4540 = vmatprep.subr.mxu0 0.0
      %4541 = vmatpush1.msra.mxu0 0.0
      %4542 = vmatprep.subr.mxu0 0.0
      %4543 = vmatpush1.msra.mxu0 0.0
      %4544 = vmatprep.subr.mxu0 0.0
      %4545 = vmatpush1.msra.mxu0 0.0
      %4546 = vmatprep.subr.mxu0 0.0
      %4547 = vmatpush1.msra.mxu0 0.0
      %4548 = vmatprep.subr.mxu0 0.0
      %4549 = vmatpush1.msra.mxu0 0.0
      %4550 = vmatprep.subr.mxu0 0.0
      %4551 = vmatpush1.msra.mxu0 0.0
      %4552 = vmatprep.subr.mxu0 0.0
      %4553 = vmatpush1.msra.mxu0 0.0
      %4554 = vmatprep.subr.mxu0 0.0
      %4555 = vmatpush1.msra.mxu0 0.0
      %4556 = vmatprep.subr.mxu0 0.0
      %4557 = vmatpush1.msra.mxu0 0.0
      %4558 = vmatprep.subr.mxu0 0.0
      %4559 = vmatpush1.msra.mxu0 0.0
      %4560 = vmatprep.subr.mxu0 0.0
      %4561 = vmatpush1.msra.mxu0 0.0
      %4562 = vmatprep.subr.mxu0 0.0
      %4563 = vmatpush1.msra.mxu0 0.0
      %4564 = vmatprep.subr.mxu0 0.0
      %4565 = vmatpush1.msra.mxu0 0.0
      %4566 = vmatprep.subr.mxu0 0.0
      %4567 = vmatpush1.msra.mxu0 0.0
      %4568 = vmatprep.subr.mxu0 0.0
      %4569 = vmatpush1.msra.mxu0 0.0
      %4570 = vmatprep.subr.mxu0 0.0
      %4571 = vmatpush1.msra.mxu0 0.0
      %4572 = vmatprep.subr.mxu0 0.0
      %4573 = vmatpush1.msra.mxu0 0.0
      %4574 = vmatprep.subr.mxu0 0.0
      %4575 = vmatpush1.msra.mxu0 0.0
      %4576 = vmatprep.subr.mxu0 0.0
      %4577 = vmatpush1.msra.mxu0 0.0
      %4578 = vmatprep.subr.mxu0 0.0
      %4579 = vmatpush1.msra.mxu0 0.0
      %4580 = vmatprep.subr.mxu0 0.0
      %4581 = vmatpush1.msra.mxu0 0.0
      %4582 = vmatprep.mubr.f32.mxu0 0.0
      %4583 = vmatmul.mubr.f32.gmra.mrb[0].mxu0 %v4043
      %v4584 = vpop.f32.mrb[0].mxu0
      %v4585 = vadd.f32 0.0, %v4584
      %v4586 = vpop.f32.mrb[0].mxu0
      %v4587 = vadd.f32 0.0, %v4586
      %4588 = vmatprep.mubr.f32.mxu0 0.0
      %4589 = vmatmul.mubr.f32.gmra.mrb[0].mxu0 %v4046
      %v4590 = vpop.f32.mrb[0].mxu0
      %v4591 = vadd.f32 0.0, %v4590
      %v4592 = vpop.f32.mrb[0].mxu0
      %v4593 = vadd.f32 0.0, %v4592
      %4594 = vmatprep.mubr.f32.mxu0 0.0
      %4595 = vmatmul.mubr.f32.gmra.mrb[0].mxu0 %v4049
      %v4596 = vpop.f32.mrb[0].mxu0
      %v4597 = vadd.f32 0.0, %v4596
      %v4598 = vpop.f32.mrb[0].mxu0
      %v4599 = vadd.f32 0.0, %v4598
      %4600 = vmatprep.mubr.f32.mxu0 0.0
      %4601 = vmatmul.mubr.f32.gmra.mrb[0].mxu0 %v4052
      %v4602 = vpop.f32.mrb[0].mxu0
      %v4603 = vadd.f32 0.0, %v4602
      %v4604 = vpop.f32.mrb[0].mxu0
      %v4605 = vadd.f32 0.0, %v4604
      %4606 = vmatprep.mubr.f32.mxu0 0.0
      %4607 = vmatmul.mubr.f32.gmra.mrb[0].mxu0 %v4055
      %v4608 = vpop.f32.mrb[0].mxu0
      %v4609 = vadd.f32 0.0, %v4608
      %v4610 = vpop.f32.mrb[0].mxu0
      %v4611 = vadd.f32 0.0, %v4610
      %4612 = vmatprep.mubr.f32.mxu0 0.0
      %4613 = vmatmul.mubr.f32.gmra.mrb[0].mxu0 %v4058
      %v4614 = vpop.f32.mrb[0].mxu0
      %v4615 = vadd.f32 0.0, %v4614
      %v4616 = vpop.f32.mrb[0].mxu0
      %v4617 = vadd.f32 0.0, %v4616
      %4618 = vmatprep.mubr.f32.mxu0 0.0
      %4619 = vmatmul.mubr.f32.gmra.mrb[0].mxu0 %v4061
      %v4620 = vpop.f32.mrb[0].mxu0
      %v4621 = vadd.f32 0.0, %v4620
      %v4622 = vpop.f32.mrb[0].mxu0
      %v4623 = vadd.f32 0.0, %v4622
      %4624 = vmatprep.mubr.f32.mxu0 0.0
      %4625 = vmatmul.mubr.f32.gmra.mrb[0].mxu0 %v4064
      %v4626 = vpop.f32.mrb[0].mxu0
      %v4627 = vadd.f32 0.0, %v4626
      %v4628 = vpop.f32.mrb[0].mxu0
      %v4629 = vadd.f32 0.0, %v4628
      %4630 = vdwg.mxu0
      %4631 = vmatprep.subr.mxu0 %v3955
      %4632 = vmatpush1.msra.mxu0 %v3953
      %4633 = vmatprep.subr.mxu0 0.0
      %4634 = vmatpush1.msra.mxu0 0.0
      %4635 = vmatprep.subr.mxu0 0.0
      %4636 = vmatpush1.msra.mxu0 0.0
      %4637 = vmatprep.subr.mxu0 0.0
      %4638 = vmatpush1.msra.mxu0 0.0
      %4639 = vmatprep.subr.mxu0 0.0
      %4640 = vmatpush1.msra.mxu0 0.0
      %4641 = vmatprep.subr.mxu0 0.0
      %4642 = vmatpush1.msra.mxu0 0.0
      %4643 = vmatprep.subr.mxu0 0.0
      %4644 = vmatpush1.msra.mxu0 0.0
      %4645 = vmatprep.subr.mxu0 0.0
      %4646 = vmatpush1.msra.mxu0 0.0
      %4647 = vmatprep.subr.mxu0 0.0
      %4648 = vmatpush1.msra.mxu0 0.0
      %4649 = vmatprep.subr.mxu0 0.0
      %4650 = vmatpush1.msra.mxu0 0.0
      %4651 = vmatprep.subr.mxu0 0.0
      %4652 = vmatpush1.msra.mxu0 0.0
      %4653 = vmatprep.subr.mxu0 0.0
      %4654 = vmatpush1.msra.mxu0 0.0
      %4655 = vmatprep.subr.mxu0 0.0
      %4656 = vmatpush1.msra.mxu0 0.0
      %4657 = vmatprep.subr.mxu0 0.0
      %4658 = vmatpush1.msra.mxu0 0.0
      %4659 = vmatprep.subr.mxu0 0.0
      %4660 = vmatpush1.msra.mxu0 0.0
      %4661 = vmatprep.subr.mxu0 0.0
      %4662 = vmatpush1.msra.mxu0 0.0
      %4663 = vmatprep.subr.mxu0 0.0
      %4664 = vmatpush1.msra.mxu0 0.0
      %4665 = vmatprep.subr.mxu0 0.0
      %4666 = vmatpush1.msra.mxu0 0.0
      %4667 = vmatprep.subr.mxu0 0.0
      %4668 = vmatpush1.msra.mxu0 0.0
      %4669 = vmatprep.subr.mxu0 0.0
      %4670 = vmatpush1.msra.mxu0 0.0
      %4671 = vmatprep.subr.mxu0 0.0
      %4672 = vmatpush1.msra.mxu0 0.0
      %4673 = vmatprep.subr.mxu0 0.0
      %4674 = vmatpush1.msra.mxu0 0.0
      %4675 = vmatprep.subr.mxu0 0.0
      %4676 = vmatpush1.msra.mxu0 0.0
      %4677 = vmatprep.subr.mxu0 0.0
      %4678 = vmatpush1.msra.mxu0 0.0
      %4679 = vmatprep.subr.mxu0 0.0
      %4680 = vmatpush1.msra.mxu0 0.0
      %4681 = vmatprep.subr.mxu0 0.0
      %4682 = vmatpush1.msra.mxu0 0.0
      %4683 = vmatprep.subr.mxu0 0.0
      %4684 = vmatpush1.msra.mxu0 0.0
      %4685 = vmatprep.subr.mxu0 0.0
      %4686 = vmatpush1.msra.mxu0 0.0
      %4687 = vmatprep.subr.mxu0 0.0
      %4688 = vmatpush1.msra.mxu0 0.0
      %4689 = vmatprep.subr.mxu0 0.0
      %4690 = vmatpush1.msra.mxu0 0.0
      %4691 = vmatprep.subr.mxu0 0.0
      %4692 = vmatpush1.msra.mxu0 0.0
      %4693 = vmatprep.subr.mxu0 0.0
      %4694 = vmatpush1.msra.mxu0 0.0
      %4695 = vmatprep.mubr.f32.mxu0 0.0
      %4696 = vmatmul.mubr.f32.gmra.mrb[0].mxu0 %v4043
      %v4697 = vpop.f32.mrb[0].mxu0
      %v4698 = vadd.f32 0.0, %v4697
      %v4699 = vpop.f32.mrb[0].mxu0
      %v4700 = vadd.f32 0.0, %v4699
      %4701 = vmatprep.mubr.f32.mxu0 0.0
      %4702 = vmatmul.mubr.f32.gmra.mrb[0].mxu0 %v4046
      %v4703 = vpop.f32.mrb[0].mxu0
      %v4704 = vadd.f32 0.0, %v4703
      %v4705 = vpop.f32.mrb[0].mxu0
      %v4706 = vadd.f32 0.0, %v4705
      %4707 = vmatprep.mubr.f32.mxu0 0.0
      %4708 = vmatmul.mubr.f32.gmra.mrb[0].mxu0 %v4049
      %v4709 = vpop.f32.mrb[0].mxu0
      %v4710 = vadd.f32 0.0, %v4709
      %v4711 = vpop.f32.mrb[0].mxu0
      %v4712 = vadd.f32 0.0, %v4711
      %4713 = vmatprep.mubr.f32.mxu0 0.0
      %4714 = vmatmul.mubr.f32.gmra.mrb[0].mxu0 %v4052
      %v4715 = vpop.f32.mrb[0].mxu0
      %v4716 = vadd.f32 0.0, %v4715
      %v4717 = vpop.f32.mrb[0].mxu0
      %v4718 = vadd.f32 0.0, %v4717
      %4719 = vmatprep.mubr.f32.mxu0 0.0
      %4720 = vmatmul.mubr.f32.gmra.mrb[0].mxu0 %v4055
      %v4721 = vpop.f32.mrb[0].mxu0
      %v4722 = vadd.f32 0.0, %v4721
      %v4723 = vpop.f32.mrb[0].mxu0
      %v4724 = vadd.f32 0.0, %v4723
      %4725 = vmatprep.mubr.f32.mxu0 0.0
      %4726 = vmatmul.mubr.f32.gmra.mrb[0].mxu0 %v4058
      %v4727 = vpop.f32.mrb[0].mxu0
      %v4728 = vadd.f32 0.0, %v4727
      %v4729 = vpop.f32.mrb[0].mxu0
      %v4730 = vadd.f32 0.0, %v4729
      %4731 = vmatprep.mubr.f32.mxu0 0.0
      %4732 = vmatmul.mubr.f32.gmra.mrb[0].mxu0 %v4061
      %v4733 = vpop.f32.mrb[0].mxu0
      %v4734 = vadd.f32 0.0, %v4733
      %v4735 = vpop.f32.mrb[0].mxu0
      %v4736 = vadd.f32 0.0, %v4735
      %4737 = vmatprep.mubr.f32.mxu0 0.0
      %4738 = vmatmul.mubr.f32.gmra.mrb[0].mxu0 %v4064
      %v4739 = vpop.f32.mrb[0].mxu0
      %v4740 = vadd.f32 0.0, %v4739
      %v4741 = vpop.f32.mrb[0].mxu0
      %v4742 = vadd.f32 0.0, %v4741
      %4743 = vdwg.mxu0
      %4744 = vmatprep.subr.mxu0 %v3996
      %4745 = vmatpush1.msra.mxu0 %v3994
      %4746 = vmatprep.subr.mxu0 0.0
      %4747 = vmatpush1.msra.mxu0 0.0
      %4748 = vmatprep.subr.mxu0 0.0
      %4749 = vmatpush1.msra.mxu0 0.0
      %4750 = vmatprep.subr.mxu0 0.0
      %4751 = vmatpush1.msra.mxu0 0.0
      %4752 = vmatprep.subr.mxu0 0.0
      %4753 = vmatpush1.msra.mxu0 0.0
      %4754 = vmatprep.subr.mxu0 0.0
      %4755 = vmatpush1.msra.mxu0 0.0
      %4756 = vmatprep.subr.mxu0 0.0
      %4757 = vmatpush1.msra.mxu0 0.0
      %4758 = vmatprep.subr.mxu0 0.0
      %4759 = vmatpush1.msra.mxu0 0.0
      %4760 = vmatprep.subr.mxu0 0.0
      %4761 = vmatpush1.msra.mxu0 0.0
      %4762 = vmatprep.subr.mxu0 0.0
      %4763 = vmatpush1.msra.mxu0 0.0
      %4764 = vmatprep.subr.mxu0 0.0
      %4765 = vmatpush1.msra.mxu0 0.0
      %4766 = vmatprep.subr.mxu0 0.0
      %4767 = vmatpush1.msra.mxu0 0.0
      %4768 = vmatprep.subr.mxu0 0.0
      %4769 = vmatpush1.msra.mxu0 0.0
      %4770 = vmatprep.subr.mxu0 0.0
      %4771 = vmatpush1.msra.mxu0 0.0
      %4772 = vmatprep.subr.mxu0 0.0
      %4773 = vmatpush1.msra.mxu0 0.0
      %4774 = vmatprep.subr.mxu0 0.0
      %4775 = vmatpush1.msra.mxu0 0.0
      %4776 = vmatprep.subr.mxu0 0.0
      %4777 = vmatpush1.msra.mxu0 0.0
      %4778 = vmatprep.subr.mxu0 0.0
      %4779 = vmatpush1.msra.mxu0 0.0
      %4780 = vmatprep.subr.mxu0 0.0
      %4781 = vmatpush1.msra.mxu0 0.0
      %4782 = vmatprep.subr.mxu0 0.0
      %4783 = vmatpush1.msra.mxu0 0.0
      %4784 = vmatprep.subr.mxu0 0.0
      %4785 = vmatpush1.msra.mxu0 0.0
      %4786 = vmatprep.subr.mxu0 0.0
      %4787 = vmatpush1.msra.mxu0 0.0
      %4788 = vmatprep.subr.mxu0 0.0
      %4789 = vmatpush1.msra.mxu0 0.0
      %4790 = vmatprep.subr.mxu0 0.0
      %4791 = vmatpush1.msra.mxu0 0.0
      %4792 = vmatprep.subr.mxu0 0.0
      %4793 = vmatpush1.msra.mxu0 0.0
      %4794 = vmatprep.subr.mxu0 0.0
      %4795 = vmatpush1.msra.mxu0 0.0
      %4796 = vmatprep.subr.mxu0 0.0
      %4797 = vmatpush1.msra.mxu0 0.0
      %4798 = vmatprep.subr.mxu0 0.0
      %4799 = vmatpush1.msra.mxu0 0.0
      %4800 = vmatprep.subr.mxu0 0.0
      %4801 = vmatpush1.msra.mxu0 0.0
      %4802 = vmatprep.subr.mxu0 0.0
      %4803 = vmatpush1.msra.mxu0 0.0
      %4804 = vmatprep.subr.mxu0 0.0
      %4805 = vmatpush1.msra.mxu0 0.0
      %4806 = vmatprep.subr.mxu0 0.0
      %4807 = vmatpush1.msra.mxu0 0.0
      %4808 = vmatprep.mubr.f32.mxu0 0.0
      %4809 = vmatmul.mubr.f32.gmra.mrb[0].mxu0 %v4043
      %v4810 = vpop.f32.mrb[0].mxu0
      %v4811 = vadd.f32 0.0, %v4810
      %v4812 = vpop.f32.mrb[0].mxu0
      %v4813 = vadd.f32 0.0, %v4812
      %4814 = vmatprep.mubr.f32.mxu0 0.0
      %4815 = vmatmul.mubr.f32.gmra.mrb[0].mxu0 %v4046
      %v4816 = vpop.f32.mrb[0].mxu0
      %v4817 = vadd.f32 0.0, %v4816
      %v4818 = vpop.f32.mrb[0].mxu0
      %v4819 = vadd.f32 0.0, %v4818
      %4820 = vmatprep.mubr.f32.mxu0 0.0
      %4821 = vmatmul.mubr.f32.gmra.mrb[0].mxu0 %v4049
      %v4822 = vpop.f32.mrb[0].mxu0
      %v4823 = vadd.f32 0.0, %v4822
      %v4824 = vpop.f32.mrb[0].mxu0
      %v4825 = vadd.f32 0.0, %v4824
      %4826 = vmatprep.mubr.f32.mxu0 0.0
      %4827 = vmatmul.mubr.f32.gmra.mrb[0].mxu0 %v4052
      %v4828 = vpop.f32.mrb[0].mxu0
      %v4829 = vadd.f32 0.0, %v4828
      %v4830 = vpop.f32.mrb[0].mxu0
      %v4831 = vadd.f32 0.0, %v4830
      %4832 = vmatprep.mubr.f32.mxu0 0.0
      %4833 = vmatmul.mubr.f32.gmra.mrb[0].mxu0 %v4055
      %v4834 = vpop.f32.mrb[0].mxu0
      %v4835 = vadd.f32 0.0, %v4834
      %v4836 = vpop.f32.mrb[0].mxu0
      %v4837 = vadd.f32 0.0, %v4836
      %4838 = vmatprep.mubr.f32.mxu0 0.0
      %4839 = vmatmul.mubr.f32.gmra.mrb[0].mxu0 %v4058
      %v4840 = vpop.f32.mrb[0].mxu0
      %v4841 = vadd.f32 0.0, %v4840
      %v4842 = vpop.f32.mrb[0].mxu0
      %v4843 = vadd.f32 0.0, %v4842
      %4844 = vmatprep.mubr.f32.mxu0 0.0
      %4845 = vmatmul.mubr.f32.gmra.mrb[0].mxu0 %v4061
      %v4846 = vpop.f32.mrb[0].mxu0
      %v4847 = vadd.f32 0.0, %v4846
      %v4848 = vpop.f32.mrb[0].mxu0
      %v4849 = vadd.f32 0.0, %v4848
      %4850 = vmatprep.mubr.f32.mxu0 0.0
      %4851 = vmatmul.mubr.f32.gmra.mrb[0].mxu0 %v4064
      %v4852 = vpop.f32.mrb[0].mxu0
      %v4853 = vadd.f32 0.0, %v4852
      %v4854 = vpop.f32.mrb[0].mxu0
      %v4855 = vadd.f32 0.0, %v4854
      %4856 = vdwg.mxu0
      %4857 = vmatprep.subr.mxu0 %v4037
      %4858 = vmatpush1.msra.mxu0 %v4035
      %4859 = vmatprep.subr.mxu0 0.0
      %4860 = vmatpush1.msra.mxu0 0.0
      %4861 = vmatprep.subr.mxu0 0.0
      %4862 = vmatpush1.msra.mxu0 0.0
      %4863 = vmatprep.subr.mxu0 0.0
      %4864 = vmatpush1.msra.mxu0 0.0
      %4865 = vmatprep.subr.mxu0 0.0
      %4866 = vmatpush1.msra.mxu0 0.0
      %4867 = vmatprep.subr.mxu0 0.0
      %4868 = vmatpush1.msra.mxu0 0.0
      %4869 = vmatprep.subr.mxu0 0.0
      %4870 = vmatpush1.msra.mxu0 0.0
      %4871 = vmatprep.subr.mxu0 0.0
      %4872 = vmatpush1.msra.mxu0 0.0
      %4873 = vmatprep.subr.mxu0 0.0
      %4874 = vmatpush1.msra.mxu0 0.0
      %4875 = vmatprep.subr.mxu0 0.0
      %4876 = vmatpush1.msra.mxu0 0.0
      %4877 = vmatprep.subr.mxu0 0.0
      %4878 = vmatpush1.msra.mxu0 0.0
      %4879 = vmatprep.subr.mxu0 0.0
      %4880 = vmatpush1.msra.mxu0 0.0
      %4881 = vmatprep.subr.mxu0 0.0
      %4882 = vmatpush1.msra.mxu0 0.0
      %4883 = vmatprep.subr.mxu0 0.0
      %4884 = vmatpush1.msra.mxu0 0.0
      %4885 = vmatprep.subr.mxu0 0.0
      %4886 = vmatpush1.msra.mxu0 0.0
      %4887 = vmatprep.subr.mxu0 0.0
      %4888 = vmatpush1.msra.mxu0 0.0
      %4889 = vmatprep.subr.mxu0 0.0
      %4890 = vmatpush1.msra.mxu0 0.0
      %4891 = vmatprep.subr.mxu0 0.0
      %4892 = vmatpush1.msra.mxu0 0.0
      %4893 = vmatprep.subr.mxu0 0.0
      %4894 = vmatpush1.msra.mxu0 0.0
      %4895 = vmatprep.subr.mxu0 0.0
      %4896 = vmatpush1.msra.mxu0 0.0
      %4897 = vmatprep.subr.mxu0 0.0
      %4898 = vmatpush1.msra.mxu0 0.0
      %4899 = vmatprep.subr.mxu0 0.0
      %4900 = vmatpush1.msra.mxu0 0.0
      %4901 = vmatprep.subr.mxu0 0.0
      %4902 = vmatpush1.msra.mxu0 0.0
      %4903 = vmatprep.subr.mxu0 0.0
      %4904 = vmatpush1.msra.mxu0 0.0
      %4905 = vmatprep.subr.mxu0 0.0
      %4906 = vmatpush1.msra.mxu0 0.0
      %4907 = vmatprep.subr.mxu0 0.0
      %4908 = vmatpush1.msra.mxu0 0.0
      %4909 = vmatprep.subr.mxu0 0.0
      %4910 = vmatpush1.msra.mxu0 0.0
      %4911 = vmatprep.subr.mxu0 0.0
      %4912 = vmatpush1.msra.mxu0 0.0
      %4913 = vmatprep.subr.mxu0 0.0
      %4914 = vmatpush1.msra.mxu0 0.0
      %4915 = vmatprep.subr.mxu0 0.0
      %4916 = vmatpush1.msra.mxu0 0.0
      %4917 = vmatprep.subr.mxu0 0.0
      %4918 = vmatpush1.msra.mxu0 0.0
      %4919 = vmatprep.subr.mxu0 0.0
      %4920 = vmatpush1.msra.mxu0 0.0
      %4921 = vmatprep.mubr.f32.mxu0 0.0
      %4922 = vmatmul.mubr.f32.gmra.mrb[0].mxu0 %v4043
      %v4923 = vpop.f32.mrb[0].mxu0
      %v4924 = vadd.f32 0.0, %v4923
      %v4925 = vpop.f32.mrb[0].mxu0
      %v4926 = vadd.f32 0.0, %v4925
      %4927 = vmatprep.mubr.f32.mxu0 0.0
      %4928 = vmatmul.mubr.f32.gmra.mrb[0].mxu0 %v4046
      %v4929 = vpop.f32.mrb[0].mxu0
      %v4930 = vadd.f32 0.0, %v4929
      %v4931 = vpop.f32.mrb[0].mxu0
      %v4932 = vadd.f32 0.0, %v4931
      %4933 = vmatprep.mubr.f32.mxu0 0.0
      %4934 = vmatmul.mubr.f32.gmra.mrb[0].mxu0 %v4049
      %v4935 = vpop.f32.mrb[0].mxu0
      %v4936 = vadd.f32 0.0, %v4935
      %v4937 = vpop.f32.mrb[0].mxu0
      %v4938 = vadd.f32 0.0, %v4937
      %4939 = vmatprep.mubr.f32.mxu0 0.0
      %4940 = vmatmul.mubr.f32.gmra.mrb[0].mxu0 %v4052
      %v4941 = vpop.f32.mrb[0].mxu0
      %v4942 = vadd.f32 0.0, %v4941
      %v4943 = vpop.f32.mrb[0].mxu0
      %v4944 = vadd.f32 0.0, %v4943
      %4945 = vmatprep.mubr.f32.mxu0 0.0
      %4946 = vmatmul.mubr.f32.gmra.mrb[0].mxu0 %v4055
      %v4947 = vpop.f32.mrb[0].mxu0
      %v4948 = vadd.f32 0.0, %v4947
      %v4949 = vpop.f32.mrb[0].mxu0
      %v4950 = vadd.f32 0.0, %v4949
      %4951 = vmatprep.mubr.f32.mxu0 0.0
      %4952 = vmatmul.mubr.f32.gmra.mrb[0].mxu0 %v4058
      %v4953 = vpop.f32.mrb[0].mxu0
      %v4954 = vadd.f32 0.0, %v4953
      %v4955 = vpop.f32.mrb[0].mxu0
      %v4956 = vadd.f32 0.0, %v4955
      %4957 = vmatprep.mubr.f32.mxu0 0.0
      %4958 = vmatmul.mubr.f32.gmra.mrb[0].mxu0 %v4061
      %v4959 = vpop.f32.mrb[0].mxu0
      %v4960 = vadd.f32 0.0, %v4959
      %v4961 = vpop.f32.mrb[0].mxu0
      %v4962 = vadd.f32 0.0, %v4961
      %4963 = vmatprep.mubr.f32.mxu0 0.0
      %4964 = vmatmul.mubr.f32.gmra.mrb[0].mxu0 %v4064
      %v4965 = vpop.f32.mrb[0].mxu0
      %v4966 = vadd.f32 0.0, %v4965
      %v4967 = vpop.f32.mrb[0].mxu0
      %v4968 = vadd.f32 0.0, %v4967
      %4969 = vdwg.mxu0
      %s4970 = smul.u32 %s3539, 128
      %s4971 = smul.addr %s4970, 8
      %s4972 = scalar_lea.vmem [#allocation5], %s4971
      %v4973 = vld [vmem:[%s4972] sm:$0xff]
      %v4974 = vld [vmem:[%s4972 + $0x8] sm:$0xff]
      %v4975 = vld [vmem:[%s4972 + $0x10] sm:$0xff]
      %v4976 = vld [vmem:[%s4972 + $0x18] sm:$0xff]
      %v4977 = vld [vmem:[%s4972 + $0x20] sm:$0xff]
      %v4978 = vld [vmem:[%s4972 + $0x28] sm:$0xff]
      %v4979 = vld [vmem:[%s4972 + $0x30] sm:$0xff]
      %v4980 = vld [vmem:[%s4972 + $0x38] sm:$0xff]
      %v4981 = vld [vmem:[%s4972 + $0x40] sm:$0xff]
      %v4982 = vld [vmem:[%s4972 + $0x48] sm:$0xff]
      %v4983 = vld [vmem:[%s4972 + $0x50] sm:$0xff]
      %v4984 = vld [vmem:[%s4972 + $0x58] sm:$0xff]
      %v4985 = vld [vmem:[%s4972 + $0x60] sm:$0xff]
      %v4986 = vld [vmem:[%s4972 + $0x68] sm:$0xff]
      %v4987 = vld [vmem:[%s4972 + $0x70] sm:$0xff]
      %v4988 = vld [vmem:[%s4972 + $0x78] sm:$0xff]
      %v4989 = vld [vmem:[%s4972 + $0x80] sm:$0xff]
      %v4990 = vld [vmem:[%s4972 + $0x88] sm:$0xff]
      %v4991 = vld [vmem:[%s4972 + $0x90] sm:$0xff]
      %v4992 = vld [vmem:[%s4972 + $0x98] sm:$0xff]
      %v4993 = vld [vmem:[%s4972 + $0xa0] sm:$0xff]
      %v4994 = vld [vmem:[%s4972 + $0xa8] sm:$0xff]
      %v4995 = vld [vmem:[%s4972 + $0xb0] sm:$0xff]
      %v4996 = vld [vmem:[%s4972 + $0xb8] sm:$0xff]
      %v4997 = vld [vmem:[%s4972 + $0xc0] sm:$0xff]
      %v4998 = vld [vmem:[%s4972 + $0xc8] sm:$0xff]
      %v4999 = vld [vmem:[%s4972 + $0xd0] sm:$0xff]
      %v5000 = vld [vmem:[%s4972 + $0xd8] sm:$0xff]
      %v5001 = vld [vmem:[%s4972 + $0xe0] sm:$0xff]
      %v5002 = vld [vmem:[%s4972 + $0xe8] sm:$0xff]
      %v5003 = vld [vmem:[%s4972 + $0xf0] sm:$0xff]
      %v5004 = vld [vmem:[%s4972 + $0xf8] sm:$0xff]
      %v5005 = vld [vmem:[%s4972 + $0x100] sm:$0xff]
      %v5006 = vld [vmem:[%s4972 + $0x108] sm:$0xff]
      %v5007 = vld [vmem:[%s4972 + $0x110] sm:$0xff]
      %v5008 = vld [vmem:[%s4972 + $0x118] sm:$0xff]
      %v5009 = vld [vmem:[%s4972 + $0x120] sm:$0xff]
      %v5010 = vld [vmem:[%s4972 + $0x128] sm:$0xff]
      %v5011 = vld [vmem:[%s4972 + $0x130] sm:$0xff]
      %v5012 = vld [vmem:[%s4972 + $0x138] sm:$0xff]
      %v5013 = vld [vmem:[%s4972 + $0x140] sm:$0xff]
      %v5014 = vld [vmem:[%s4972 + $0x148] sm:$0xff]
      %v5015 = vld [vmem:[%s4972 + $0x150] sm:$0xff]
      %v5016 = vld [vmem:[%s4972 + $0x158] sm:$0xff]
      %v5017 = vld [vmem:[%s4972 + $0x160] sm:$0xff]
      %v5018 = vld [vmem:[%s4972 + $0x168] sm:$0xff]
      %v5019 = vld [vmem:[%s4972 + $0x170] sm:$0xff]
      %v5020 = vld [vmem:[%s4972 + $0x178] sm:$0xff]
      %v5021 = vld [vmem:[%s4972 + $0x180] sm:$0xff]
      %v5022 = vld [vmem:[%s4972 + $0x188] sm:$0xff]
      %v5023 = vld [vmem:[%s4972 + $0x190] sm:$0xff]
      %v5024 = vld [vmem:[%s4972 + $0x198] sm:$0xff]
      %v5025 = vld [vmem:[%s4972 + $0x1a0] sm:$0xff]
      %v5026 = vld [vmem:[%s4972 + $0x1a8] sm:$0xff]
      %v5027 = vld [vmem:[%s4972 + $0x1b0] sm:$0xff]
      %v5028 = vld [vmem:[%s4972 + $0x1b8] sm:$0xff]
      %v5029 = vld [vmem:[%s4972 + $0x1c0] sm:$0xff]
      %v5030 = vld [vmem:[%s4972 + $0x1c8] sm:$0xff]
      %v5031 = vld [vmem:[%s4972 + $0x1d0] sm:$0xff]
      %v5032 = vld [vmem:[%s4972 + $0x1d8] sm:$0xff]
      %v5033 = vld [vmem:[%s4972 + $0x1e0] sm:$0xff]
      %v5034 = vld [vmem:[%s4972 + $0x1e8] sm:$0xff]
      %v5035 = vld [vmem:[%s4972 + $0x1f0] sm:$0xff]
      %v5036 = vld [vmem:[%s4972 + $0x1f8] sm:$0xff]
      %v5037 = vld [vmem:[%s4972 + $0x200] sm:$0xff]
      %v5038 = vld [vmem:[%s4972 + $0x208] sm:$0xff]
      %v5039 = vld [vmem:[%s4972 + $0x210] sm:$0xff]
      %v5040 = vld [vmem:[%s4972 + $0x218] sm:$0xff]
      %v5041 = vld [vmem:[%s4972 + $0x220] sm:$0xff]
      %v5042 = vld [vmem:[%s4972 + $0x228] sm:$0xff]
      %v5043 = vld [vmem:[%s4972 + $0x230] sm:$0xff]
      %v5044 = vld [vmem:[%s4972 + $0x238] sm:$0xff]
      %v5045 = vld [vmem:[%s4972 + $0x240] sm:$0xff]
      %v5046 = vld [vmem:[%s4972 + $0x248] sm:$0xff]
      %v5047 = vld [vmem:[%s4972 + $0x250] sm:$0xff]
      %v5048 = vld [vmem:[%s4972 + $0x258] sm:$0xff]
      %v5049 = vld [vmem:[%s4972 + $0x260] sm:$0xff]
      %v5050 = vld [vmem:[%s4972 + $0x268] sm:$0xff]
      %v5051 = vld [vmem:[%s4972 + $0x270] sm:$0xff]
      %v5052 = vld [vmem:[%s4972 + $0x278] sm:$0xff]
      %v5053 = vld [vmem:[%s4972 + $0x280] sm:$0xff]
      %v5054 = vld [vmem:[%s4972 + $0x288] sm:$0xff]
      %v5055 = vld [vmem:[%s4972 + $0x290] sm:$0xff]
      %v5056 = vld [vmem:[%s4972 + $0x298] sm:$0xff]
      %v5057 = vld [vmem:[%s4972 + $0x2a0] sm:$0xff]
      %v5058 = vld [vmem:[%s4972 + $0x2a8] sm:$0xff]
      %v5059 = vld [vmem:[%s4972 + $0x2b0] sm:$0xff]
      %v5060 = vld [vmem:[%s4972 + $0x2b8] sm:$0xff]
      %v5061 = vld [vmem:[%s4972 + $0x2c0] sm:$0xff]
      %v5062 = vld [vmem:[%s4972 + $0x2c8] sm:$0xff]
      %v5063 = vld [vmem:[%s4972 + $0x2d0] sm:$0xff]
      %v5064 = vld [vmem:[%s4972 + $0x2d8] sm:$0xff]
      %v5065 = vld [vmem:[%s4972 + $0x2e0] sm:$0xff]
      %v5066 = vld [vmem:[%s4972 + $0x2e8] sm:$0xff]
      %v5067 = vld [vmem:[%s4972 + $0x2f0] sm:$0xff]
      %v5068 = vld [vmem:[%s4972 + $0x2f8] sm:$0xff]
      %v5069 = vld [vmem:[%s4972 + $0x300] sm:$0xff]
      %v5070 = vld [vmem:[%s4972 + $0x308] sm:$0xff]
      %v5071 = vld [vmem:[%s4972 + $0x310] sm:$0xff]
      %v5072 = vld [vmem:[%s4972 + $0x318] sm:$0xff]
      %v5073 = vld [vmem:[%s4972 + $0x320] sm:$0xff]
      %v5074 = vld [vmem:[%s4972 + $0x328] sm:$0xff]
      %v5075 = vld [vmem:[%s4972 + $0x330] sm:$0xff]
      %v5076 = vld [vmem:[%s4972 + $0x338] sm:$0xff]
      %v5077 = vld [vmem:[%s4972 + $0x340] sm:$0xff]
      %v5078 = vld [vmem:[%s4972 + $0x348] sm:$0xff]
      %v5079 = vld [vmem:[%s4972 + $0x350] sm:$0xff]
      %v5080 = vld [vmem:[%s4972 + $0x358] sm:$0xff]
      %v5081 = vld [vmem:[%s4972 + $0x360] sm:$0xff]
      %v5082 = vld [vmem:[%s4972 + $0x368] sm:$0xff]
      %v5083 = vld [vmem:[%s4972 + $0x370] sm:$0xff]
      %v5084 = vld [vmem:[%s4972 + $0x378] sm:$0xff]
      %v5085 = vld [vmem:[%s4972 + $0x380] sm:$0xff]
      %v5086 = vld [vmem:[%s4972 + $0x388] sm:$0xff]
      %v5087 = vld [vmem:[%s4972 + $0x390] sm:$0xff]
      %v5088 = vld [vmem:[%s4972 + $0x398] sm:$0xff]
      %v5089 = vld [vmem:[%s4972 + $0x3a0] sm:$0xff]
      %v5090 = vld [vmem:[%s4972 + $0x3a8] sm:$0xff]
      %v5091 = vld [vmem:[%s4972 + $0x3b0] sm:$0xff]
      %v5092 = vld [vmem:[%s4972 + $0x3b8] sm:$0xff]
      %v5093 = vld [vmem:[%s4972 + $0x3c0] sm:$0xff]
      %v5094 = vld [vmem:[%s4972 + $0x3c8] sm:$0xff]
      %v5095 = vld [vmem:[%s4972 + $0x3d0] sm:$0xff]
      %v5096 = vld [vmem:[%s4972 + $0x3d8] sm:$0xff]
      %v5097 = vld [vmem:[%s4972 + $0x3e0] sm:$0xff]
      %v5098 = vld [vmem:[%s4972 + $0x3e8] sm:$0xff]
      %v5099 = vld [vmem:[%s4972 + $0x3f0] sm:$0xff]
      %v5100 = vld [vmem:[%s4972 + $0x3f8] sm:$0xff]
      %v5101 = vmul.f32 %v4973, %v4133
      %v5102 = vmul.f32 %v4974, %v4135
      %v5103 = vmul.f32 %v4975, %v4246
      %v5104 = vmul.f32 %v4976, %v4248
      %v5105 = vmul.f32 %v4977, %v4359
      %v5106 = vmul.f32 %v4978, %v4361
      %v5107 = vmul.f32 %v4979, %v4472
      %v5108 = vmul.f32 %v4980, %v4474
      %v5109 = vmul.f32 %v4981, %v4585
      %v5110 = vmul.f32 %v4982, %v4587
      %v5111 = vmul.f32 %v4983, %v4698
      %v5112 = vmul.f32 %v4984, %v4700
      %v5113 = vmul.f32 %v4985, %v4811
      %v5114 = vmul.f32 %v4986, %v4813
      %v5115 = vmul.f32 %v4987, %v4924
      %v5116 = vmul.f32 %v4988, %v4926
      %v5117 = vmul.f32 %v4989, %v4139
      %v5118 = vmul.f32 %v4990, %v4141
      %v5119 = vmul.f32 %v4991, %v4252
      %v5120 = vmul.f32 %v4992, %v4254
      %v5121 = vmul.f32 %v4993, %v4365
      %v5122 = vmul.f32 %v4994, %v4367
      %v5123 = vmul.f32 %v4995, %v4478
      %v5124 = vmul.f32 %v4996, %v4480
      %v5125 = vmul.f32 %v4997, %v4591
      %v5126 = vmul.f32 %v4998, %v4593
      %v5127 = vmul.f32 %v4999, %v4704
      %v5128 = vmul.f32 %v5000, %v4706
      %v5129 = vmul.f32 %v5001, %v4817
      %v5130 = vmul.f32 %v5002, %v4819
      %v5131 = vmul.f32 %v5003, %v4930
      %v5132 = vmul.f32 %v5004, %v4932
      %v5133 = vmul.f32 %v5005, %v4145
      %v5134 = vmul.f32 %v5006, %v4147
      %v5135 = vmul.f32 %v5007, %v4258
      %v5136 = vmul.f32 %v5008, %v4260
      %v5137 = vmul.f32 %v5009, %v4371
      %v5138 = vmul.f32 %v5010, %v4373
      %v5139 = vmul.f32 %v5011, %v4484
      %v5140 = vmul.f32 %v5012, %v4486
      %v5141 = vmul.f32 %v5013, %v4597
      %v5142 = vmul.f32 %v5014, %v4599
      %v5143 = vmul.f32 %v5015, %v4710
      %v5144 = vmul.f32 %v5016, %v4712
      %v5145 = vmul.f32 %v5017, %v4823
      %v5146 = vmul.f32 %v5018, %v4825
      %v5147 = vmul.f32 %v5019, %v4936
      %v5148 = vmul.f32 %v5020, %v4938
      %v5149 = vmul.f32 %v5021, %v4151
      %v5150 = vmul.f32 %v5022, %v4153
      %v5151 = vmul.f32 %v5023, %v4264
      %v5152 = vmul.f32 %v5024, %v4266
      %v5153 = vmul.f32 %v5025, %v4377
      %v5154 = vmul.f32 %v5026, %v4379
      %v5155 = vmul.f32 %v5027, %v4490
      %v5156 = vmul.f32 %v5028, %v4492
      %v5157 = vmul.f32 %v5029, %v4603
      %v5158 = vmul.f32 %v5030, %v4605
      %v5159 = vmul.f32 %v5031, %v4716
      %v5160 = vmul.f32 %v5032, %v4718
      %v5161 = vmul.f32 %v5033, %v4829
      %v5162 = vmul.f32 %v5034, %v4831
      %v5163 = vmul.f32 %v5035, %v4942
      %v5164 = vmul.f32 %v5036, %v4944
      %v5165 = vmul.f32 %v5037, %v4157
      %v5166 = vmul.f32 %v5038, %v4159
      %v5167 = vmul.f32 %v5039, %v4270
      %v5168 = vmul.f32 %v5040, %v4272
      %v5169 = vmul.f32 %v5041, %v4383
      %v5170 = vmul.f32 %v5042, %v4385
      %v5171 = vmul.f32 %v5043, %v4496
      %v5172 = vmul.f32 %v5044, %v4498
      %v5173 = vmul.f32 %v5045, %v4609
      %v5174 = vmul.f32 %v5046, %v4611
      %v5175 = vmul.f32 %v5047, %v4722
      %v5176 = vmul.f32 %v5048, %v4724
      %v5177 = vmul.f32 %v5049, %v4835
      %v5178 = vmul.f32 %v5050, %v4837
      %v5179 = vmul.f32 %v5051, %v4948
      %v5180 = vmul.f32 %v5052, %v4950
      %v5181 = vmul.f32 %v5053, %v4163
      %v5182 = vmul.f32 %v5054, %v4165
      %v5183 = vmul.f32 %v5055, %v4276
      %v5184 = vmul.f32 %v5056, %v4278
      %v5185 = vmul.f32 %v5057, %v4389
      %v5186 = vmul.f32 %v5058, %v4391
      %v5187 = vmul.f32 %v5059, %v4502
      %v5188 = vmul.f32 %v5060, %v4504
      %v5189 = vmul.f32 %v5061, %v4615
      %v5190 = vmul.f32 %v5062, %v4617
      %v5191 = vmul.f32 %v5063, %v4728
      %v5192 = vmul.f32 %v5064, %v4730
      %v5193 = vmul.f32 %v5065, %v4841
      %v5194 = vmul.f32 %v5066, %v4843
      %v5195 = vmul.f32 %v5067, %v4954
      %v5196 = vmul.f32 %v5068, %v4956
      %v5197 = vmul.f32 %v5069, %v4169
      %v5198 = vmul.f32 %v5070, %v4171
      %v5199 = vmul.f32 %v5071, %v4282
      %v5200 = vmul.f32 %v5072, %v4284
      %v5201 = vmul.f32 %v5073, %v4395
      %v5202 = vmul.f32 %v5074, %v4397
      %v5203 = vmul.f32 %v5075, %v4508
      %v5204 = vmul.f32 %v5076, %v4510
      %v5205 = vmul.f32 %v5077, %v4621
      %v5206 = vmul.f32 %v5078, %v4623
      %v5207 = vmul.f32 %v5079, %v4734
      %v5208 = vmul.f32 %v5080, %v4736
      %v5209 = vmul.f32 %v5081, %v4847
      %v5210 = vmul.f32 %v5082, %v4849
      %v5211 = vmul.f32 %v5083, %v4960
      %v5212 = vmul.f32 %v5084, %v4962
      %v5213 = vmul.f32 %v5085, %v4175
      %v5214 = vmul.f32 %v5086, %v4177
      %v5215 = vmul.f32 %v5087, %v4288
      %v5216 = vmul.f32 %v5088, %v4290
      %v5217 = vmul.f32 %v5089, %v4401
      %v5218 = vmul.f32 %v5090, %v4403
      %v5219 = vmul.f32 %v5091, %v4514
      %v5220 = vmul.f32 %v5092, %v4516
      %v5221 = vmul.f32 %v5093, %v4627
      %v5222 = vmul.f32 %v5094, %v4629
      %v5223 = vmul.f32 %v5095, %v4740
      %v5224 = vmul.f32 %v5096, %v4742
      %v5225 = vmul.f32 %v5097, %v4853
      %v5226 = vmul.f32 %v5098, %v4855
      %v5227 = vmul.f32 %v5099, %v4966
      %v5228 = vmul.f32 %v5100, %v4968
      %vm5229 = vcmask 523264
      %v5231 = vsel %vm5229, %v204, 0
      %5233 = vmatprep.subr.mxu0 %v5102
      %5234 = vmatpush1.msra.mxu0 %v5101
      %5235 = vmatprep.subr.mxu0 %v5118
      %5236 = vmatpush1.msra.mxu0 %v5117
      %5237 = vmatprep.subr.mxu0 %v5134
      %5238 = vmatpush1.msra.mxu0 %v5133
      %5239 = vmatprep.subr.mxu0 %v5150
      %5240 = vmatpush1.msra.mxu0 %v5149
      %5241 = vmatprep.subr.mxu0 %v5166
      %5242 = vmatpush1.msra.mxu0 %v5165
      %5243 = vmatprep.subr.mxu0 %v5182
      %5244 = vmatpush1.msra.mxu0 %v5181
      %5245 = vmatprep.subr.mxu0 %v5198
      %5246 = vmatpush1.msra.mxu0 %v5197
      %5247 = vmatprep.subr.mxu0 %v5214
      %5248 = vmatpush1.msra.mxu0 %v5213
      %5249 = vmatprep.subr.mxu0 0.0
      %5250 = vmatpush1.msra.mxu0 0.0
      %5251 = vmatprep.subr.mxu0 0.0
      %5252 = vmatpush1.msra.mxu0 0.0
      %5253 = vmatprep.subr.mxu0 0.0
      %5254 = vmatpush1.msra.mxu0 0.0
      %5255 = vmatprep.subr.mxu0 0.0
      %5256 = vmatpush1.msra.mxu0 0.0
      %5257 = vmatprep.subr.mxu0 0.0
      %5258 = vmatpush1.msra.mxu0 0.0
      %5259 = vmatprep.subr.mxu0 0.0
      %5260 = vmatpush1.msra.mxu0 0.0
      %5261 = vmatprep.subr.mxu0 0.0
      %5262 = vmatpush1.msra.mxu0 0.0
      %5263 = vmatprep.subr.mxu0 0.0
      %5264 = vmatpush1.msra.mxu0 0.0
      %5265 = vmatprep.subr.mxu0 0.0
      %5266 = vmatpush1.msra.mxu0 0.0
      %5267 = vmatprep.subr.mxu0 0.0
      %5268 = vmatpush1.msra.mxu0 0.0
      %5269 = vmatprep.subr.mxu0 0.0
      %5270 = vmatpush1.msra.mxu0 0.0
      %5271 = vmatprep.subr.mxu0 0.0
      %5272 = vmatpush1.msra.mxu0 0.0
      %5273 = vmatprep.subr.mxu0 0.0
      %5274 = vmatpush1.msra.mxu0 0.0
      %5275 = vmatprep.subr.mxu0 0.0
      %5276 = vmatpush1.msra.mxu0 0.0
      %5277 = vmatprep.subr.mxu0 0.0
      %5278 = vmatpush1.msra.mxu0 0.0
      %5279 = vmatprep.subr.mxu0 0.0
      %5280 = vmatpush1.msra.mxu0 0.0
      %5281 = vmatprep.subr.mxu0 0.0
      %5282 = vmatpush1.msra.mxu0 0.0
      %5283 = vmatprep.subr.mxu0 0.0
      %5284 = vmatpush1.msra.mxu0 0.0
      %5285 = vmatprep.subr.mxu0 0.0
      %5286 = vmatpush1.msra.mxu0 0.0
      %5287 = vmatprep.subr.mxu0 0.0
      %5288 = vmatpush1.msra.mxu0 0.0
      %5289 = vmatprep.subr.mxu0 0.0
      %5290 = vmatpush1.msra.mxu0 0.0
      %5291 = vmatprep.subr.mxu0 0.0
      %5292 = vmatpush1.msra.mxu0 0.0
      %5293 = vmatprep.subr.mxu0 0.0
      %5294 = vmatpush1.msra.mxu0 0.0
      %5295 = vmatprep.subr.mxu0 0.0
      %5296 = vmatpush1.msra.mxu0 0.0
      %5297 = vmatprep.mubr.f32.mxu0 0.0
      %5298 = vmatmul.mubr.f32.gmra.mrb[0].mxu0 %v5231
      %v5299 = vpop.f32.mrb[0].mxu0
      %v5300 = vadd.f32 0.0, %v5299
      %v5301 = vpop.f32.mrb[0].mxu0
      %v5302 = vadd.f32 0.0, %v5301
      %5303 = vdwg.mxu0
      %5304 = vmatprep.subr.mxu0 %v5104
      %5305 = vmatpush1.msra.mxu0 %v5103
      %5306 = vmatprep.subr.mxu0 %v5120
      %5307 = vmatpush1.msra.mxu0 %v5119
      %5308 = vmatprep.subr.mxu0 %v5136
      %5309 = vmatpush1.msra.mxu0 %v5135
      %5310 = vmatprep.subr.mxu0 %v5152
      %5311 = vmatpush1.msra.mxu0 %v5151
      %5312 = vmatprep.subr.mxu0 %v5168
      %5313 = vmatpush1.msra.mxu0 %v5167
      %5314 = vmatprep.subr.mxu0 %v5184
      %5315 = vmatpush1.msra.mxu0 %v5183
      %5316 = vmatprep.subr.mxu0 %v5200
      %5317 = vmatpush1.msra.mxu0 %v5199
      %5318 = vmatprep.subr.mxu0 %v5216
      %5319 = vmatpush1.msra.mxu0 %v5215
      %5320 = vmatprep.subr.mxu0 0.0
      %5321 = vmatpush1.msra.mxu0 0.0
      %5322 = vmatprep.subr.mxu0 0.0
      %5323 = vmatpush1.msra.mxu0 0.0
      %5324 = vmatprep.subr.mxu0 0.0
      %5325 = vmatpush1.msra.mxu0 0.0
      %5326 = vmatprep.subr.mxu0 0.0
      %5327 = vmatpush1.msra.mxu0 0.0
      %5328 = vmatprep.subr.mxu0 0.0
      %5329 = vmatpush1.msra.mxu0 0.0
      %5330 = vmatprep.subr.mxu0 0.0
      %5331 = vmatpush1.msra.mxu0 0.0
      %5332 = vmatprep.subr.mxu0 0.0
      %5333 = vmatpush1.msra.mxu0 0.0
      %5334 = vmatprep.subr.mxu0 0.0
      %5335 = vmatpush1.msra.mxu0 0.0
      %5336 = vmatprep.subr.mxu0 0.0
      %5337 = vmatpush1.msra.mxu0 0.0
      %5338 = vmatprep.subr.mxu0 0.0
      %5339 = vmatpush1.msra.mxu0 0.0
      %5340 = vmatprep.subr.mxu0 0.0
      %5341 = vmatpush1.msra.mxu0 0.0
      %5342 = vmatprep.subr.mxu0 0.0
      %5343 = vmatpush1.msra.mxu0 0.0
      %5344 = vmatprep.subr.mxu0 0.0
      %5345 = vmatpush1.msra.mxu0 0.0
      %5346 = vmatprep.subr.mxu0 0.0
      %5347 = vmatpush1.msra.mxu0 0.0
      %5348 = vmatprep.subr.mxu0 0.0
      %5349 = vmatpush1.msra.mxu0 0.0
      %5350 = vmatprep.subr.mxu0 0.0
      %5351 = vmatpush1.msra.mxu0 0.0
      %5352 = vmatprep.subr.mxu0 0.0
      %5353 = vmatpush1.msra.mxu0 0.0
      %5354 = vmatprep.subr.mxu0 0.0
      %5355 = vmatpush1.msra.mxu0 0.0
      %5356 = vmatprep.subr.mxu0 0.0
      %5357 = vmatpush1.msra.mxu0 0.0
      %5358 = vmatprep.subr.mxu0 0.0
      %5359 = vmatpush1.msra.mxu0 0.0
      %5360 = vmatprep.subr.mxu0 0.0
      %5361 = vmatpush1.msra.mxu0 0.0
      %5362 = vmatprep.subr.mxu0 0.0
      %5363 = vmatpush1.msra.mxu0 0.0
      %5364 = vmatprep.subr.mxu0 0.0
      %5365 = vmatpush1.msra.mxu0 0.0
      %5366 = vmatprep.subr.mxu0 0.0
      %5367 = vmatpush1.msra.mxu0 0.0
      %5368 = vmatprep.mubr.f32.mxu0 0.0
      %5369 = vmatmul.mubr.f32.gmra.mrb[0].mxu0 %v5231
      %v5370 = vpop.f32.mrb[0].mxu0
      %v5371 = vadd.f32 0.0, %v5370
      %v5372 = vpop.f32.mrb[0].mxu0
      %v5373 = vadd.f32 0.0, %v5372
      %5374 = vdwg.mxu0
      %5375 = vmatprep.subr.mxu0 %v5106
      %5376 = vmatpush1.msra.mxu0 %v5105
      %5377 = vmatprep.subr.mxu0 %v5122
      %5378 = vmatpush1.msra.mxu0 %v5121
      %5379 = vmatprep.subr.mxu0 %v5138
      %5380 = vmatpush1.msra.mxu0 %v5137
      %5381 = vmatprep.subr.mxu0 %v5154
      %5382 = vmatpush1.msra.mxu0 %v5153
      %5383 = vmatprep.subr.mxu0 %v5170
      %5384 = vmatpush1.msra.mxu0 %v5169
      %5385 = vmatprep.subr.mxu0 %v5186
      %5386 = vmatpush1.msra.mxu0 %v5185
      %5387 = vmatprep.subr.mxu0 %v5202
      %5388 = vmatpush1.msra.mxu0 %v5201
      %5389 = vmatprep.subr.mxu0 %v5218
      %5390 = vmatpush1.msra.mxu0 %v5217
      %5391 = vmatprep.subr.mxu0 0.0
      %5392 = vmatpush1.msra.mxu0 0.0
      %5393 = vmatprep.subr.mxu0 0.0
      %5394 = vmatpush1.msra.mxu0 0.0
      %5395 = vmatprep.subr.mxu0 0.0
      %5396 = vmatpush1.msra.mxu0 0.0
      %5397 = vmatprep.subr.mxu0 0.0
      %5398 = vmatpush1.msra.mxu0 0.0
      %5399 = vmatprep.subr.mxu0 0.0
      %5400 = vmatpush1.msra.mxu0 0.0
      %5401 = vmatprep.subr.mxu0 0.0
      %5402 = vmatpush1.msra.mxu0 0.0
      %5403 = vmatprep.subr.mxu0 0.0
      %5404 = vmatpush1.msra.mxu0 0.0
      %5405 = vmatprep.subr.mxu0 0.0
      %5406 = vmatpush1.msra.mxu0 0.0
      %5407 = vmatprep.subr.mxu0 0.0
      %5408 = vmatpush1.msra.mxu0 0.0
      %5409 = vmatprep.subr.mxu0 0.0
      %5410 = vmatpush1.msra.mxu0 0.0
      %5411 = vmatprep.subr.mxu0 0.0
      %5412 = vmatpush1.msra.mxu0 0.0
      %5413 = vmatprep.subr.mxu0 0.0
      %5414 = vmatpush1.msra.mxu0 0.0
      %5415 = vmatprep.subr.mxu0 0.0
      %5416 = vmatpush1.msra.mxu0 0.0
      %5417 = vmatprep.subr.mxu0 0.0
      %5418 = vmatpush1.msra.mxu0 0.0
      %5419 = vmatprep.subr.mxu0 0.0
      %5420 = vmatpush1.msra.mxu0 0.0
      %5421 = vmatprep.subr.mxu0 0.0
      %5422 = vmatpush1.msra.mxu0 0.0
      %5423 = vmatprep.subr.mxu0 0.0
      %5424 = vmatpush1.msra.mxu0 0.0
      %5425 = vmatprep.subr.mxu0 0.0
      %5426 = vmatpush1.msra.mxu0 0.0
      %5427 = vmatprep.subr.mxu0 0.0
      %5428 = vmatpush1.msra.mxu0 0.0
      %5429 = vmatprep.subr.mxu0 0.0
      %5430 = vmatpush1.msra.mxu0 0.0
      %5431 = vmatprep.subr.mxu0 0.0
      %5432 = vmatpush1.msra.mxu0 0.0
      %5433 = vmatprep.subr.mxu0 0.0
      %5434 = vmatpush1.msra.mxu0 0.0
      %5435 = vmatprep.subr.mxu0 0.0
      %5436 = vmatpush1.msra.mxu0 0.0
      %5437 = vmatprep.subr.mxu0 0.0
      %5438 = vmatpush1.msra.mxu0 0.0
      %5439 = vmatprep.mubr.f32.mxu0 0.0
      %5440 = vmatmul.mubr.f32.gmra.mrb[0].mxu0 %v5231
      %v5441 = vpop.f32.mrb[0].mxu0
      %v5442 = vadd.f32 0.0, %v5441
      %v5443 = vpop.f32.mrb[0].mxu0
      %v5444 = vadd.f32 0.0, %v5443
      %5445 = vdwg.mxu0
      %5446 = vmatprep.subr.mxu0 %v5108
      %5447 = vmatpush1.msra.mxu0 %v5107
      %5448 = vmatprep.subr.mxu0 %v5124
      %5449 = vmatpush1.msra.mxu0 %v5123
      %5450 = vmatprep.subr.mxu0 %v5140
      %5451 = vmatpush1.msra.mxu0 %v5139
      %5452 = vmatprep.subr.mxu0 %v5156
      %5453 = vmatpush1.msra.mxu0 %v5155
      %5454 = vmatprep.subr.mxu0 %v5172
      %5455 = vmatpush1.msra.mxu0 %v5171
      %5456 = vmatprep.subr.mxu0 %v5188
      %5457 = vmatpush1.msra.mxu0 %v5187
      %5458 = vmatprep.subr.mxu0 %v5204
      %5459 = vmatpush1.msra.mxu0 %v5203
      %5460 = vmatprep.subr.mxu0 %v5220
      %5461 = vmatpush1.msra.mxu0 %v5219
      %5462 = vmatprep.subr.mxu0 0.0
      %5463 = vmatpush1.msra.mxu0 0.0
      %5464 = vmatprep.subr.mxu0 0.0
      %5465 = vmatpush1.msra.mxu0 0.0
      %5466 = vmatprep.subr.mxu0 0.0
      %5467 = vmatpush1.msra.mxu0 0.0
      %5468 = vmatprep.subr.mxu0 0.0
      %5469 = vmatpush1.msra.mxu0 0.0
      %5470 = vmatprep.subr.mxu0 0.0
      %5471 = vmatpush1.msra.mxu0 0.0
      %5472 = vmatprep.subr.mxu0 0.0
      %5473 = vmatpush1.msra.mxu0 0.0
      %5474 = vmatprep.subr.mxu0 0.0
      %5475 = vmatpush1.msra.mxu0 0.0
      %5476 = vmatprep.subr.mxu0 0.0
      %5477 = vmatpush1.msra.mxu0 0.0
      %5478 = vmatprep.subr.mxu0 0.0
      %5479 = vmatpush1.msra.mxu0 0.0
      %5480 = vmatprep.subr.mxu0 0.0
      %5481 = vmatpush1.msra.mxu0 0.0
      %5482 = vmatprep.subr.mxu0 0.0
      %5483 = vmatpush1.msra.mxu0 0.0
      %5484 = vmatprep.subr.mxu0 0.0
      %5485 = vmatpush1.msra.mxu0 0.0
      %5486 = vmatprep.subr.mxu0 0.0
      %5487 = vmatpush1.msra.mxu0 0.0
      %5488 = vmatprep.subr.mxu0 0.0
      %5489 = vmatpush1.msra.mxu0 0.0
      %5490 = vmatprep.subr.mxu0 0.0
      %5491 = vmatpush1.msra.mxu0 0.0
      %5492 = vmatprep.subr.mxu0 0.0
      %5493 = vmatpush1.msra.mxu0 0.0
      %5494 = vmatprep.subr.mxu0 0.0
      %5495 = vmatpush1.msra.mxu0 0.0
      %5496 = vmatprep.subr.mxu0 0.0
      %5497 = vmatpush1.msra.mxu0 0.0
      %5498 = vmatprep.subr.mxu0 0.0
      %5499 = vmatpush1.msra.mxu0 0.0
      %5500 = vmatprep.subr.mxu0 0.0
      %5501 = vmatpush1.msra.mxu0 0.0
      %5502 = vmatprep.subr.mxu0 0.0
      %5503 = vmatpush1.msra.mxu0 0.0
      %5504 = vmatprep.subr.mxu0 0.0
      %5505 = vmatpush1.msra.mxu0 0.0
      %5506 = vmatprep.subr.mxu0 0.0
      %5507 = vmatpush1.msra.mxu0 0.0
      %5508 = vmatprep.subr.mxu0 0.0
      %5509 = vmatpush1.msra.mxu0 0.0
      %5510 = vmatprep.mubr.f32.mxu0 0.0
      %5511 = vmatmul.mubr.f32.gmra.mrb[0].mxu0 %v5231
      %v5512 = vpop.f32.mrb[0].mxu0
      %v5513 = vadd.f32 0.0, %v5512
      %v5514 = vpop.f32.mrb[0].mxu0
      %v5515 = vadd.f32 0.0, %v5514
      %5516 = vdwg.mxu0
      %5517 = vmatprep.subr.mxu0 %v5110
      %5518 = vmatpush1.msra.mxu0 %v5109
      %5519 = vmatprep.subr.mxu0 %v5126
      %5520 = vmatpush1.msra.mxu0 %v5125
      %5521 = vmatprep.subr.mxu0 %v5142
      %5522 = vmatpush1.msra.mxu0 %v5141
      %5523 = vmatprep.subr.mxu0 %v5158
      %5524 = vmatpush1.msra.mxu0 %v5157
      %5525 = vmatprep.subr.mxu0 %v5174
      %5526 = vmatpush1.msra.mxu0 %v5173
      %5527 = vmatprep.subr.mxu0 %v5190
      %5528 = vmatpush1.msra.mxu0 %v5189
      %5529 = vmatprep.subr.mxu0 %v5206
      %5530 = vmatpush1.msra.mxu0 %v5205
      %5531 = vmatprep.subr.mxu0 %v5222
      %5532 = vmatpush1.msra.mxu0 %v5221
      %5533 = vmatprep.subr.mxu0 0.0
      %5534 = vmatpush1.msra.mxu0 0.0
      %5535 = vmatprep.subr.mxu0 0.0
      %5536 = vmatpush1.msra.mxu0 0.0
      %5537 = vmatprep.subr.mxu0 0.0
      %5538 = vmatpush1.msra.mxu0 0.0
      %5539 = vmatprep.subr.mxu0 0.0
      %5540 = vmatpush1.msra.mxu0 0.0
      %5541 = vmatprep.subr.mxu0 0.0
      %5542 = vmatpush1.msra.mxu0 0.0
      %5543 = vmatprep.subr.mxu0 0.0
      %5544 = vmatpush1.msra.mxu0 0.0
      %5545 = vmatprep.subr.mxu0 0.0
      %5546 = vmatpush1.msra.mxu0 0.0
      %5547 = vmatprep.subr.mxu0 0.0
      %5548 = vmatpush1.msra.mxu0 0.0
      %5549 = vmatprep.subr.mxu0 0.0
      %5550 = vmatpush1.msra.mxu0 0.0
      %5551 = vmatprep.subr.mxu0 0.0
      %5552 = vmatpush1.msra.mxu0 0.0
      %5553 = vmatprep.subr.mxu0 0.0
      %5554 = vmatpush1.msra.mxu0 0.0
      %5555 = vmatprep.subr.mxu0 0.0
      %5556 = vmatpush1.msra.mxu0 0.0
      %5557 = vmatprep.subr.mxu0 0.0
      %5558 = vmatpush1.msra.mxu0 0.0
      %5559 = vmatprep.subr.mxu0 0.0
      %5560 = vmatpush1.msra.mxu0 0.0
      %5561 = vmatprep.subr.mxu0 0.0
      %5562 = vmatpush1.msra.mxu0 0.0
      %5563 = vmatprep.subr.mxu0 0.0
      %5564 = vmatpush1.msra.mxu0 0.0
      %5565 = vmatprep.subr.mxu0 0.0
      %5566 = vmatpush1.msra.mxu0 0.0
      %5567 = vmatprep.subr.mxu0 0.0
      %5568 = vmatpush1.msra.mxu0 0.0
      %5569 = vmatprep.subr.mxu0 0.0
      %5570 = vmatpush1.msra.mxu0 0.0
      %5571 = vmatprep.subr.mxu0 0.0
      %5572 = vmatpush1.msra.mxu0 0.0
      %5573 = vmatprep.subr.mxu0 0.0
      %5574 = vmatpush1.msra.mxu0 0.0
      %5575 = vmatprep.subr.mxu0 0.0
      %5576 = vmatpush1.msra.mxu0 0.0
      %5577 = vmatprep.subr.mxu0 0.0
      %5578 = vmatpush1.msra.mxu0 0.0
      %5579 = vmatprep.subr.mxu0 0.0
      %5580 = vmatpush1.msra.mxu0 0.0
      %5581 = vmatprep.mubr.f32.mxu0 0.0
      %5582 = vmatmul.mubr.f32.gmra.mrb[0].mxu0 %v5231
      %v5583 = vpop.f32.mrb[0].mxu0
      %v5584 = vadd.f32 0.0, %v5583
      %v5585 = vpop.f32.mrb[0].mxu0
      %v5586 = vadd.f32 0.0, %v5585
      %5587 = vdwg.mxu0
      %5588 = vmatprep.subr.mxu0 %v5112
      %5589 = vmatpush1.msra.mxu0 %v5111
      %5590 = vmatprep.subr.mxu0 %v5128
      %5591 = vmatpush1.msra.mxu0 %v5127
      %5592 = vmatprep.subr.mxu0 %v5144
      %5593 = vmatpush1.msra.mxu0 %v5143
      %5594 = vmatprep.subr.mxu0 %v5160
      %5595 = vmatpush1.msra.mxu0 %v5159
      %5596 = vmatprep.subr.mxu0 %v5176
      %5597 = vmatpush1.msra.mxu0 %v5175
      %5598 = vmatprep.subr.mxu0 %v5192
      %5599 = vmatpush1.msra.mxu0 %v5191
      %5600 = vmatprep.subr.mxu0 %v5208
      %5601 = vmatpush1.msra.mxu0 %v5207
      %5602 = vmatprep.subr.mxu0 %v5224
      %5603 = vmatpush1.msra.mxu0 %v5223
      %5604 = vmatprep.subr.mxu0 0.0
      %5605 = vmatpush1.msra.mxu0 0.0
      %5606 = vmatprep.subr.mxu0 0.0
      %5607 = vmatpush1.msra.mxu0 0.0
      %5608 = vmatprep.subr.mxu0 0.0
      %5609 = vmatpush1.msra.mxu0 0.0
      %5610 = vmatprep.subr.mxu0 0.0
      %5611 = vmatpush1.msra.mxu0 0.0
      %5612 = vmatprep.subr.mxu0 0.0
      %5613 = vmatpush1.msra.mxu0 0.0
      %5614 = vmatprep.subr.mxu0 0.0
      %5615 = vmatpush1.msra.mxu0 0.0
      %5616 = vmatprep.subr.mxu0 0.0
      %5617 = vmatpush1.msra.mxu0 0.0
      %5618 = vmatprep.subr.mxu0 0.0
      %5619 = vmatpush1.msra.mxu0 0.0
      %5620 = vmatprep.subr.mxu0 0.0
      %5621 = vmatpush1.msra.mxu0 0.0
      %5622 = vmatprep.subr.mxu0 0.0
      %5623 = vmatpush1.msra.mxu0 0.0
      %5624 = vmatprep.subr.mxu0 0.0
      %5625 = vmatpush1.msra.mxu0 0.0
      %5626 = vmatprep.subr.mxu0 0.0
      %5627 = vmatpush1.msra.mxu0 0.0
      %5628 = vmatprep.subr.mxu0 0.0
      %5629 = vmatpush1.msra.mxu0 0.0
      %5630 = vmatprep.subr.mxu0 0.0
      %5631 = vmatpush1.msra.mxu0 0.0
      %5632 = vmatprep.subr.mxu0 0.0
      %5633 = vmatpush1.msra.mxu0 0.0
      %5634 = vmatprep.subr.mxu0 0.0
      %5635 = vmatpush1.msra.mxu0 0.0
      %5636 = vmatprep.subr.mxu0 0.0
      %5637 = vmatpush1.msra.mxu0 0.0
      %5638 = vmatprep.subr.mxu0 0.0
      %5639 = vmatpush1.msra.mxu0 0.0
      %5640 = vmatprep.subr.mxu0 0.0
      %5641 = vmatpush1.msra.mxu0 0.0
      %5642 = vmatprep.subr.mxu0 0.0
      %5643 = vmatpush1.msra.mxu0 0.0
      %5644 = vmatprep.subr.mxu0 0.0
      %5645 = vmatpush1.msra.mxu0 0.0
      %5646 = vmatprep.subr.mxu0 0.0
      %5647 = vmatpush1.msra.mxu0 0.0
      %5648 = vmatprep.subr.mxu0 0.0
      %5649 = vmatpush1.msra.mxu0 0.0
      %5650 = vmatprep.subr.mxu0 0.0
      %5651 = vmatpush1.msra.mxu0 0.0
      %5652 = vmatprep.mubr.f32.mxu0 0.0
      %5653 = vmatmul.mubr.f32.gmra.mrb[0].mxu0 %v5231
      %v5654 = vpop.f32.mrb[0].mxu0
      %v5655 = vadd.f32 0.0, %v5654
      %v5656 = vpop.f32.mrb[0].mxu0
      %v5657 = vadd.f32 0.0, %v5656
      %5658 = vdwg.mxu0
      %5659 = vmatprep.subr.mxu0 %v5114
      %5660 = vmatpush1.msra.mxu0 %v5113
      %5661 = vmatprep.subr.mxu0 %v5130
      %5662 = vmatpush1.msra.mxu0 %v5129
      %5663 = vmatprep.subr.mxu0 %v5146
      %5664 = vmatpush1.msra.mxu0 %v5145
      %5665 = vmatprep.subr.mxu0 %v5162
      %5666 = vmatpush1.msra.mxu0 %v5161
      %5667 = vmatprep.subr.mxu0 %v5178
      %5668 = vmatpush1.msra.mxu0 %v5177
      %5669 = vmatprep.subr.mxu0 %v5194
      %5670 = vmatpush1.msra.mxu0 %v5193
      %5671 = vmatprep.subr.mxu0 %v5210
      %5672 = vmatpush1.msra.mxu0 %v5209
      %5673 = vmatprep.subr.mxu0 %v5226
      %5674 = vmatpush1.msra.mxu0 %v5225
      %5675 = vmatprep.subr.mxu0 0.0
      %5676 = vmatpush1.msra.mxu0 0.0
      %5677 = vmatprep.subr.mxu0 0.0
      %5678 = vmatpush1.msra.mxu0 0.0
      %5679 = vmatprep.subr.mxu0 0.0
      %5680 = vmatpush1.msra.mxu0 0.0
      %5681 = vmatprep.subr.mxu0 0.0
      %5682 = vmatpush1.msra.mxu0 0.0
      %5683 = vmatprep.subr.mxu0 0.0
      %5684 = vmatpush1.msra.mxu0 0.0
      %5685 = vmatprep.subr.mxu0 0.0
      %5686 = vmatpush1.msra.mxu0 0.0
      %5687 = vmatprep.subr.mxu0 0.0
      %5688 = vmatpush1.msra.mxu0 0.0
      %5689 = vmatprep.subr.mxu0 0.0
      %5690 = vmatpush1.msra.mxu0 0.0
      %5691 = vmatprep.subr.mxu0 0.0
      %5692 = vmatpush1.msra.mxu0 0.0
      %5693 = vmatprep.subr.mxu0 0.0
      %5694 = vmatpush1.msra.mxu0 0.0
      %5695 = vmatprep.subr.mxu0 0.0
      %5696 = vmatpush1.msra.mxu0 0.0
      %5697 = vmatprep.subr.mxu0 0.0
      %5698 = vmatpush1.msra.mxu0 0.0
      %5699 = vmatprep.subr.mxu0 0.0
      %5700 = vmatpush1.msra.mxu0 0.0
      %5701 = vmatprep.subr.mxu0 0.0
      %5702 = vmatpush1.msra.mxu0 0.0
      %5703 = vmatprep.subr.mxu0 0.0
      %5704 = vmatpush1.msra.mxu0 0.0
      %5705 = vmatprep.subr.mxu0 0.0
      %5706 = vmatpush1.msra.mxu0 0.0
      %5707 = vmatprep.subr.mxu0 0.0
      %5708 = vmatpush1.msra.mxu0 0.0
      %5709 = vmatprep.subr.mxu0 0.0
      %5710 = vmatpush1.msra.mxu0 0.0
      %5711 = vmatprep.subr.mxu0 0.0
      %5712 = vmatpush1.msra.mxu0 0.0
      %5713 = vmatprep.subr.mxu0 0.0
      %5714 = vmatpush1.msra.mxu0 0.0
      %5715 = vmatprep.subr.mxu0 0.0
      %5716 = vmatpush1.msra.mxu0 0.0
      %5717 = vmatprep.subr.mxu0 0.0
      %5718 = vmatpush1.msra.mxu0 0.0
      %5719 = vmatprep.subr.mxu0 0.0
      %5720 = vmatpush1.msra.mxu0 0.0
      %5721 = vmatprep.subr.mxu0 0.0
      %5722 = vmatpush1.msra.mxu0 0.0
      %5723 = vmatprep.mubr.f32.mxu0 0.0
      %5724 = vmatmul.mubr.f32.gmra.mrb[0].mxu0 %v5231
      %v5725 = vpop.f32.mrb[0].mxu0
      %v5726 = vadd.f32 0.0, %v5725
      %v5727 = vpop.f32.mrb[0].mxu0
      %v5728 = vadd.f32 0.0, %v5727
      %5729 = vdwg.mxu0
      %5730 = vmatprep.subr.mxu0 %v5116
      %5731 = vmatpush1.msra.mxu0 %v5115
      %5732 = vmatprep.subr.mxu0 %v5132
      %5733 = vmatpush1.msra.mxu0 %v5131
      %5734 = vmatprep.subr.mxu0 %v5148
      %5735 = vmatpush1.msra.mxu0 %v5147
      %5736 = vmatprep.subr.mxu0 %v5164
      %5737 = vmatpush1.msra.mxu0 %v5163
      %5738 = vmatprep.subr.mxu0 %v5180
      %5739 = vmatpush1.msra.mxu0 %v5179
      %5740 = vmatprep.subr.mxu0 %v5196
      %5741 = vmatpush1.msra.mxu0 %v5195
      %5742 = vmatprep.subr.mxu0 %v5212
      %5743 = vmatpush1.msra.mxu0 %v5211
      %5744 = vmatprep.subr.mxu0 %v5228
      %5745 = vmatpush1.msra.mxu0 %v5227
      %5746 = vmatprep.subr.mxu0 0.0
      %5747 = vmatpush1.msra.mxu0 0.0
      %5748 = vmatprep.subr.mxu0 0.0
      %5749 = vmatpush1.msra.mxu0 0.0
      %5750 = vmatprep.subr.mxu0 0.0
      %5751 = vmatpush1.msra.mxu0 0.0
      %5752 = vmatprep.subr.mxu0 0.0
      %5753 = vmatpush1.msra.mxu0 0.0
      %5754 = vmatprep.subr.mxu0 0.0
      %5755 = vmatpush1.msra.mxu0 0.0
      %5756 = vmatprep.subr.mxu0 0.0
      %5757 = vmatpush1.msra.mxu0 0.0
      %5758 = vmatprep.subr.mxu0 0.0
      %5759 = vmatpush1.msra.mxu0 0.0
      %5760 = vmatprep.subr.mxu0 0.0
      %5761 = vmatpush1.msra.mxu0 0.0
      %5762 = vmatprep.subr.mxu0 0.0
      %5763 = vmatpush1.msra.mxu0 0.0
      %5764 = vmatprep.subr.mxu0 0.0
      %5765 = vmatpush1.msra.mxu0 0.0
      %5766 = vmatprep.subr.mxu0 0.0
      %5767 = vmatpush1.msra.mxu0 0.0
      %5768 = vmatprep.subr.mxu0 0.0
      %5769 = vmatpush1.msra.mxu0 0.0
      %5770 = vmatprep.subr.mxu0 0.0
      %5771 = vmatpush1.msra.mxu0 0.0
      %5772 = vmatprep.subr.mxu0 0.0
      %5773 = vmatpush1.msra.mxu0 0.0
      %5774 = vmatprep.subr.mxu0 0.0
      %5775 = vmatpush1.msra.mxu0 0.0
      %5776 = vmatprep.subr.mxu0 0.0
      %5777 = vmatpush1.msra.mxu0 0.0
      %5778 = vmatprep.subr.mxu0 0.0
      %5779 = vmatpush1.msra.mxu0 0.0
      %5780 = vmatprep.subr.mxu0 0.0
      %5781 = vmatpush1.msra.mxu0 0.0
      %5782 = vmatprep.subr.mxu0 0.0
      %5783 = vmatpush1.msra.mxu0 0.0
      %5784 = vmatprep.subr.mxu0 0.0
      %5785 = vmatpush1.msra.mxu0 0.0
      %5786 = vmatprep.subr.mxu0 0.0
      %5787 = vmatpush1.msra.mxu0 0.0
      %5788 = vmatprep.subr.mxu0 0.0
      %5789 = vmatpush1.msra.mxu0 0.0
      %5790 = vmatprep.subr.mxu0 0.0
      %5791 = vmatpush1.msra.mxu0 0.0
      %5792 = vmatprep.subr.mxu0 0.0
      %5793 = vmatpush1.msra.mxu0 0.0
      %5794 = vmatprep.mubr.f32.mxu0 0.0
      %5795 = vmatmul.mubr.f32.gmra.mrb[0].mxu0 %v5231
      %v5796 = vpop.f32.mrb[0].mxu0
      %v5797 = vadd.f32 0.0, %v5796
      %v5798 = vpop.f32.mrb[0].mxu0
      %v5799 = vadd.f32 0.0, %v5798
      %5800 = vdwg.mxu0
      %5801 = vmatprep.subr.mxu0 0.0
      %5802 = vmatpush1.msra.mxu0 %v205
      %5803 = vmatprep.subr.mxu0 0.0
      %5804 = vmatpush1.msra.mxu0 %v206
      %5805 = vmatprep.subr.mxu0 0.0
      %5806 = vmatpush1.msra.mxu0 %v207
      %5807 = vmatprep.subr.mxu0 0.0
      %5808 = vmatpush1.msra.mxu0 %v208
      %5809 = vmatprep.subr.mxu0 0.0
      %5810 = vmatpush1.msra.mxu0 %v209
      %5811 = vmatprep.subr.mxu0 0.0
      %5812 = vmatpush1.msra.mxu0 %v210
      %5813 = vmatprep.subr.mxu0 0.0
      %5814 = vmatpush1.msra.mxu0 %v211
      %5815 = vmatprep.subr.mxu0 0.0
      %5816 = vmatpush1.msra.mxu0 %v212
      %5817 = vmatprep.subr.mxu0 0.0
      %5818 = vmatpush1.msra.mxu0 %v213
      %5819 = vmatprep.subr.mxu0 0.0
      %5820 = vmatpush1.msra.mxu0 %v214
      %5821 = vmatprep.subr.mxu0 0.0
      %5822 = vmatpush1.msra.mxu0 %v215
      %5823 = vmatprep.subr.mxu0 0.0
      %5824 = vmatpush1.msra.mxu0 %v216
      %5825 = vmatprep.subr.mxu0 0.0
      %5826 = vmatpush1.msra.mxu0 %v217
      %5827 = vmatprep.subr.mxu0 0.0
      %5828 = vmatpush1.msra.mxu0 %v218
      %5829 = vmatprep.subr.mxu0 0.0
      %5830 = vmatpush1.msra.mxu0 %v219
      %5831 = vmatprep.subr.mxu0 0.0
      %5832 = vmatpush1.msra.mxu0 %v220
      %5833 = vmatprep.subr.mxu0 0.0
      %5834 = vmatpush1.msra.mxu0 %v221
      %5835 = vmatprep.subr.mxu0 0.0
      %5836 = vmatpush1.msra.mxu0 %v222
      %5837 = vmatprep.subr.mxu0 0.0
      %5838 = vmatpush1.msra.mxu0 %v223
      %5839 = vmatprep.subr.mxu0 0.0
      %5840 = vmatpush1.msra.mxu0 %v224
      %5841 = vmatprep.subr.mxu0 0.0
      %5842 = vmatpush1.msra.mxu0 %v225
      %5843 = vmatprep.subr.mxu0 0.0
      %5844 = vmatpush1.msra.mxu0 %v226
      %5845 = vmatprep.subr.mxu0 0.0
      %5846 = vmatpush1.msra.mxu0 %v227
      %5847 = vmatprep.subr.mxu0 0.0
      %5848 = vmatpush1.msra.mxu0 %v228
      %5849 = vmatprep.subr.mxu0 0.0
      %5850 = vmatpush1.msra.mxu0 %v229
      %5851 = vmatprep.subr.mxu0 0.0
      %5852 = vmatpush1.msra.mxu0 %v230
      %5853 = vmatprep.subr.mxu0 0.0
      %5854 = vmatpush1.msra.mxu0 %v231
      %5855 = vmatprep.subr.mxu0 0.0
      %5856 = vmatpush1.msra.mxu0 %v232
      %5857 = vmatprep.subr.mxu0 0.0
      %5858 = vmatpush1.msra.mxu0 %v233
      %5859 = vmatprep.subr.mxu0 0.0
      %5860 = vmatpush1.msra.mxu0 %v234
      %5861 = vmatprep.subr.mxu0 0.0
      %5862 = vmatpush1.msra.mxu0 %v235
      %5863 = vmatprep.subr.mxu0 0.0
      %5864 = vmatpush1.msra.mxu0 %v236
      %5865 = vmatprep.mubr.f32.mxu0 %v5302
      %5866 = vmatmul.mubr.f32.gmra.mrb[0].mxu0 %v5300
      %v5867 = vpop.f32.mrb[0].mxu0
      %v5868 = vadd.f32 %v466, %v5867
      %v5869 = vpop.f32.mrb[0].mxu0
      %5870 = vdwg.mxu0
      %5871 = vmatprep.subr.mxu0 0.0
      %5872 = vmatpush1.msra.mxu0 %v237
      %5873 = vmatprep.subr.mxu0 0.0
      %5874 = vmatpush1.msra.mxu0 %v238
      %5875 = vmatprep.subr.mxu0 0.0
      %5876 = vmatpush1.msra.mxu0 %v239
      %5877 = vmatprep.subr.mxu0 0.0
      %5878 = vmatpush1.msra.mxu0 %v240
      %5879 = vmatprep.subr.mxu0 0.0
      %5880 = vmatpush1.msra.mxu0 %v241
      %5881 = vmatprep.subr.mxu0 0.0
      %5882 = vmatpush1.msra.mxu0 %v242
      %5883 = vmatprep.subr.mxu0 0.0
      %5884 = vmatpush1.msra.mxu0 %v243
      %5885 = vmatprep.subr.mxu0 0.0
      %5886 = vmatpush1.msra.mxu0 %v244
      %5887 = vmatprep.subr.mxu0 0.0
      %5888 = vmatpush1.msra.mxu0 %v245
      %5889 = vmatprep.subr.mxu0 0.0
      %5890 = vmatpush1.msra.mxu0 %v246
      %5891 = vmatprep.subr.mxu0 0.0
      %5892 = vmatpush1.msra.mxu0 %v247
      %5893 = vmatprep.subr.mxu0 0.0
      %5894 = vmatpush1.msra.mxu0 %v248
      %5895 = vmatprep.subr.mxu0 0.0
      %5896 = vmatpush1.msra.mxu0 %v249
      %5897 = vmatprep.subr.mxu0 0.0
      %5898 = vmatpush1.msra.mxu0 %v250
      %5899 = vmatprep.subr.mxu0 0.0
      %5900 = vmatpush1.msra.mxu0 %v251
      %5901 = vmatprep.subr.mxu0 0.0
      %5902 = vmatpush1.msra.mxu0 %v252
      %5903 = vmatprep.subr.mxu0 0.0
      %5904 = vmatpush1.msra.mxu0 %v253
      %5905 = vmatprep.subr.mxu0 0.0
      %5906 = vmatpush1.msra.mxu0 %v254
      %5907 = vmatprep.subr.mxu0 0.0
      %5908 = vmatpush1.msra.mxu0 %v255
      %5909 = vmatprep.subr.mxu0 0.0
      %5910 = vmatpush1.msra.mxu0 %v256
      %5911 = vmatprep.subr.mxu0 0.0
      %5912 = vmatpush1.msra.mxu0 %v257
      %5913 = vmatprep.subr.mxu0 0.0
      %5914 = vmatpush1.msra.mxu0 %v258
      %5915 = vmatprep.subr.mxu0 0.0
      %5916 = vmatpush1.msra.mxu0 %v259
      %5917 = vmatprep.subr.mxu0 0.0
      %5918 = vmatpush1.msra.mxu0 %v260
      %5919 = vmatprep.subr.mxu0 0.0
      %5920 = vmatpush1.msra.mxu0 %v261
      %5921 = vmatprep.subr.mxu0 0.0
      %5922 = vmatpush1.msra.mxu0 %v262
      %5923 = vmatprep.subr.mxu0 0.0
      %5924 = vmatpush1.msra.mxu0 %v263
      %5925 = vmatprep.subr.mxu0 0.0
      %5926 = vmatpush1.msra.mxu0 %v264
      %5927 = vmatprep.subr.mxu0 0.0
      %5928 = vmatpush1.msra.mxu0 %v265
      %5929 = vmatprep.subr.mxu0 0.0
      %5930 = vmatpush1.msra.mxu0 %v266
      %5931 = vmatprep.subr.mxu0 0.0
      %5932 = vmatpush1.msra.mxu0 %v267
      %5933 = vmatprep.subr.mxu0 0.0
      %5934 = vmatpush1.msra.mxu0 %v268
      %5935 = vmatprep.mubr.f32.mxu0 %v5373
      %5936 = vmatmul.mubr.f32.gmra.mrb[0].mxu0 %v5371
      %v5937 = vpop.f32.mrb[0].mxu0
      %v5938 = vadd.f32 %v5868, %v5937
      %v5939 = vpop.f32.mrb[0].mxu0
      %5940 = vdwg.mxu0
      %5941 = vmatprep.subr.mxu0 0.0
      %5942 = vmatpush1.msra.mxu0 %v269
      %5943 = vmatprep.subr.mxu0 0.0
      %5944 = vmatpush1.msra.mxu0 %v270
      %5945 = vmatprep.subr.mxu0 0.0
      %5946 = vmatpush1.msra.mxu0 %v271
      %5947 = vmatprep.subr.mxu0 0.0
      %5948 = vmatpush1.msra.mxu0 %v272
      %5949 = vmatprep.subr.mxu0 0.0
      %5950 = vmatpush1.msra.mxu0 %v273
      %5951 = vmatprep.subr.mxu0 0.0
      %5952 = vmatpush1.msra.mxu0 %v274
      %5953 = vmatprep.subr.mxu0 0.0
      %5954 = vmatpush1.msra.mxu0 %v275
      %5955 = vmatprep.subr.mxu0 0.0
      %5956 = vmatpush1.msra.mxu0 %v276
      %5957 = vmatprep.subr.mxu0 0.0
      %5958 = vmatpush1.msra.mxu0 %v277
      %5959 = vmatprep.subr.mxu0 0.0
      %5960 = vmatpush1.msra.mxu0 %v278
      %5961 = vmatprep.subr.mxu0 0.0
      %5962 = vmatpush1.msra.mxu0 %v279
      %5963 = vmatprep.subr.mxu0 0.0
      %5964 = vmatpush1.msra.mxu0 %v280
      %5965 = vmatprep.subr.mxu0 0.0
      %5966 = vmatpush1.msra.mxu0 %v281
      %5967 = vmatprep.subr.mxu0 0.0
      %5968 = vmatpush1.msra.mxu0 %v282
      %5969 = vmatprep.subr.mxu0 0.0
      %5970 = vmatpush1.msra.mxu0 %v283
      %5971 = vmatprep.subr.mxu0 0.0
      %5972 = vmatpush1.msra.mxu0 %v284
      %5973 = vmatprep.subr.mxu0 0.0
      %5974 = vmatpush1.msra.mxu0 %v285
      %5975 = vmatprep.subr.mxu0 0.0
      %5976 = vmatpush1.msra.mxu0 %v286
      %5977 = vmatprep.subr.mxu0 0.0
      %5978 = vmatpush1.msra.mxu0 %v287
      %5979 = vmatprep.subr.mxu0 0.0
      %5980 = vmatpush1.msra.mxu0 %v288
      %5981 = vmatprep.subr.mxu0 0.0
      %5982 = vmatpush1.msra.mxu0 %v289
      %5983 = vmatprep.subr.mxu0 0.0
      %5984 = vmatpush1.msra.mxu0 %v290
      %5985 = vmatprep.subr.mxu0 0.0
      %5986 = vmatpush1.msra.mxu0 %v291
      %5987 = vmatprep.subr.mxu0 0.0
      %5988 = vmatpush1.msra.mxu0 %v292
      %5989 = vmatprep.subr.mxu0 0.0
      %5990 = vmatpush1.msra.mxu0 %v293
      %5991 = vmatprep.subr.mxu0 0.0
      %5992 = vmatpush1.msra.mxu0 %v294
      %5993 = vmatprep.subr.mxu0 0.0
      %5994 = vmatpush1.msra.mxu0 %v295
      %5995 = vmatprep.subr.mxu0 0.0
      %5996 = vmatpush1.msra.mxu0 %v296
      %5997 = vmatprep.subr.mxu0 0.0
      %5998 = vmatpush1.msra.mxu0 %v297
      %5999 = vmatprep.subr.mxu0 0.0
      %6000 = vmatpush1.msra.mxu0 %v298
      %6001 = vmatprep.subr.mxu0 0.0
      %6002 = vmatpush1.msra.mxu0 %v299
      %6003 = vmatprep.subr.mxu0 0.0
      %6004 = vmatpush1.msra.mxu0 %v300
      %6005 = vmatprep.mubr.f32.mxu0 %v5444
      %6006 = vmatmul.mubr.f32.gmra.mrb[0].mxu0 %v5442
      %v6007 = vpop.f32.mrb[0].mxu0
      %v6008 = vadd.f32 %v5938, %v6007
      %v6009 = vpop.f32.mrb[0].mxu0
      %6010 = vdwg.mxu0
      %6011 = vmatprep.subr.mxu0 0.0
      %6012 = vmatpush1.msra.mxu0 %v301
      %6013 = vmatprep.subr.mxu0 0.0
      %6014 = vmatpush1.msra.mxu0 %v302
      %6015 = vmatprep.subr.mxu0 0.0
      %6016 = vmatpush1.msra.mxu0 %v303
      %6017 = vmatprep.subr.mxu0 0.0
      %6018 = vmatpush1.msra.mxu0 %v304
      %6019 = vmatprep.subr.mxu0 0.0
      %6020 = vmatpush1.msra.mxu0 %v305
      %6021 = vmatprep.subr.mxu0 0.0
      %6022 = vmatpush1.msra.mxu0 %v306
      %6023 = vmatprep.subr.mxu0 0.0
      %6024 = vmatpush1.msra.mxu0 %v307
      %6025 = vmatprep.subr.mxu0 0.0
      %6026 = vmatpush1.msra.mxu0 %v308
      %6027 = vmatprep.subr.mxu0 0.0
      %6028 = vmatpush1.msra.mxu0 %v309
      %6029 = vmatprep.subr.mxu0 0.0
      %6030 = vmatpush1.msra.mxu0 %v310
      %6031 = vmatprep.subr.mxu0 0.0
      %6032 = vmatpush1.msra.mxu0 %v311
      %6033 = vmatprep.subr.mxu0 0.0
      %6034 = vmatpush1.msra.mxu0 %v312
      %6035 = vmatprep.subr.mxu0 0.0
      %6036 = vmatpush1.msra.mxu0 %v313
      %6037 = vmatprep.subr.mxu0 0.0
      %6038 = vmatpush1.msra.mxu0 %v314
      %6039 = vmatprep.subr.mxu0 0.0
      %6040 = vmatpush1.msra.mxu0 %v315
      %6041 = vmatprep.subr.mxu0 0.0
      %6042 = vmatpush1.msra.mxu0 %v316
      %6043 = vmatprep.subr.mxu0 0.0
      %6044 = vmatpush1.msra.mxu0 %v317
      %6045 = vmatprep.subr.mxu0 0.0
      %6046 = vmatpush1.msra.mxu0 %v318
      %6047 = vmatprep.subr.mxu0 0.0
      %6048 = vmatpush1.msra.mxu0 %v319
      %6049 = vmatprep.subr.mxu0 0.0
      %6050 = vmatpush1.msra.mxu0 %v320
      %6051 = vmatprep.subr.mxu0 0.0
      %6052 = vmatpush1.msra.mxu0 %v321
      %6053 = vmatprep.subr.mxu0 0.0
      %6054 = vmatpush1.msra.mxu0 %v322
      %6055 = vmatprep.subr.mxu0 0.0
      %6056 = vmatpush1.msra.mxu0 %v323
      %6057 = vmatprep.subr.mxu0 0.0
      %6058 = vmatpush1.msra.mxu0 %v324
      %6059 = vmatprep.subr.mxu0 0.0
      %6060 = vmatpush1.msra.mxu0 %v325
      %6061 = vmatprep.subr.mxu0 0.0
      %6062 = vmatpush1.msra.mxu0 %v326
      %6063 = vmatprep.subr.mxu0 0.0
      %6064 = vmatpush1.msra.mxu0 %v327
      %6065 = vmatprep.subr.mxu0 0.0
      %6066 = vmatpush1.msra.mxu0 %v328
      %6067 = vmatprep.subr.mxu0 0.0
      %6068 = vmatpush1.msra.mxu0 %v329
      %6069 = vmatprep.subr.mxu0 0.0
      %6070 = vmatpush1.msra.mxu0 %v330
      %6071 = vmatprep.subr.mxu0 0.0
      %6072 = vmatpush1.msra.mxu0 %v331
      %6073 = vmatprep.subr.mxu0 0.0
      %6074 = vmatpush1.msra.mxu0 %v332
      %6075 = vmatprep.mubr.f32.mxu0 %v5515
      %6076 = vmatmul.mubr.f32.gmra.mrb[0].mxu0 %v5513
      %v6077 = vpop.f32.mrb[0].mxu0
      %v6078 = vadd.f32 %v6008, %v6077
      %v6079 = vpop.f32.mrb[0].mxu0
      %6080 = vdwg.mxu0
      %6081 = vmatprep.subr.mxu0 0.0
      %6082 = vmatpush1.msra.mxu0 %v333
      %6083 = vmatprep.subr.mxu0 0.0
      %6084 = vmatpush1.msra.mxu0 %v334
      %6085 = vmatprep.subr.mxu0 0.0
      %6086 = vmatpush1.msra.mxu0 %v335
      %6087 = vmatprep.subr.mxu0 0.0
      %6088 = vmatpush1.msra.mxu0 %v336
      %6089 = vmatprep.subr.mxu0 0.0
      %6090 = vmatpush1.msra.mxu0 %v337
      %6091 = vmatprep.subr.mxu0 0.0
      %6092 = vmatpush1.msra.mxu0 %v338
      %6093 = vmatprep.subr.mxu0 0.0
      %6094 = vmatpush1.msra.mxu0 %v339
      %6095 = vmatprep.subr.mxu0 0.0
      %6096 = vmatpush1.msra.mxu0 %v340
      %6097 = vmatprep.subr.mxu0 0.0
      %6098 = vmatpush1.msra.mxu0 %v341
      %6099 = vmatprep.subr.mxu0 0.0
      %6100 = vmatpush1.msra.mxu0 %v342
      %6101 = vmatprep.subr.mxu0 0.0
      %6102 = vmatpush1.msra.mxu0 %v343
      %6103 = vmatprep.subr.mxu0 0.0
      %6104 = vmatpush1.msra.mxu0 %v344
      %6105 = vmatprep.subr.mxu0 0.0
      %6106 = vmatpush1.msra.mxu0 %v345
      %6107 = vmatprep.subr.mxu0 0.0
      %6108 = vmatpush1.msra.mxu0 %v346
      %6109 = vmatprep.subr.mxu0 0.0
      %6110 = vmatpush1.msra.mxu0 %v347
      %6111 = vmatprep.subr.mxu0 0.0
      %6112 = vmatpush1.msra.mxu0 %v348
      %6113 = vmatprep.subr.mxu0 0.0
      %6114 = vmatpush1.msra.mxu0 %v349
      %6115 = vmatprep.subr.mxu0 0.0
      %6116 = vmatpush1.msra.mxu0 %v350
      %6117 = vmatprep.subr.mxu0 0.0
      %6118 = vmatpush1.msra.mxu0 %v351
      %6119 = vmatprep.subr.mxu0 0.0
      %6120 = vmatpush1.msra.mxu0 %v352
      %6121 = vmatprep.subr.mxu0 0.0
      %6122 = vmatpush1.msra.mxu0 %v353
      %6123 = vmatprep.subr.mxu0 0.0
      %6124 = vmatpush1.msra.mxu0 %v354
      %6125 = vmatprep.subr.mxu0 0.0
      %6126 = vmatpush1.msra.mxu0 %v355
      %6127 = vmatprep.subr.mxu0 0.0
      %6128 = vmatpush1.msra.mxu0 %v356
      %6129 = vmatprep.subr.mxu0 0.0
      %6130 = vmatpush1.msra.mxu0 %v357
      %6131 = vmatprep.subr.mxu0 0.0
      %6132 = vmatpush1.msra.mxu0 %v358
      %6133 = vmatprep.subr.mxu0 0.0
      %6134 = vmatpush1.msra.mxu0 %v359
      %6135 = vmatprep.subr.mxu0 0.0
      %6136 = vmatpush1.msra.mxu0 %v360
      %6137 = vmatprep.subr.mxu0 0.0
      %6138 = vmatpush1.msra.mxu0 %v361
      %6139 = vmatprep.subr.mxu0 0.0
      %6140 = vmatpush1.msra.mxu0 %v362
      %6141 = vmatprep.subr.mxu0 0.0
      %6142 = vmatpush1.msra.mxu0 %v363
      %6143 = vmatprep.subr.mxu0 0.0
      %6144 = vmatpush1.msra.mxu0 %v364
      %6145 = vmatprep.mubr.f32.mxu0 %v5586
      %6146 = vmatmul.mubr.f32.gmra.mrb[0].mxu0 %v5584
      %v6147 = vpop.f32.mrb[0].mxu0
      %v6148 = vadd.f32 %v6078, %v6147
      %v6149 = vpop.f32.mrb[0].mxu0
      %6150 = vdwg.mxu0
      %6151 = vmatprep.subr.mxu0 0.0
      %6152 = vmatpush1.msra.mxu0 %v365
      %6153 = vmatprep.subr.mxu0 0.0
      %6154 = vmatpush1.msra.mxu0 %v366
      %6155 = vmatprep.subr.mxu0 0.0
      %6156 = vmatpush1.msra.mxu0 %v367
      %6157 = vmatprep.subr.mxu0 0.0
      %6158 = vmatpush1.msra.mxu0 %v368
      %6159 = vmatprep.subr.mxu0 0.0
      %6160 = vmatpush1.msra.mxu0 %v369
      %6161 = vmatprep.subr.mxu0 0.0
      %6162 = vmatpush1.msra.mxu0 %v370
      %6163 = vmatprep.subr.mxu0 0.0
      %6164 = vmatpush1.msra.mxu0 %v371
      %6165 = vmatprep.subr.mxu0 0.0
      %6166 = vmatpush1.msra.mxu0 %v372
      %6167 = vmatprep.subr.mxu0 0.0
      %6168 = vmatpush1.msra.mxu0 %v373
      %6169 = vmatprep.subr.mxu0 0.0
      %6170 = vmatpush1.msra.mxu0 %v374
      %6171 = vmatprep.subr.mxu0 0.0
      %6172 = vmatpush1.msra.mxu0 %v375
      %6173 = vmatprep.subr.mxu0 0.0
      %6174 = vmatpush1.msra.mxu0 %v376
      %6175 = vmatprep.subr.mxu0 0.0
      %6176 = vmatpush1.msra.mxu0 %v377
      %6177 = vmatprep.subr.mxu0 0.0
      %6178 = vmatpush1.msra.mxu0 %v378
      %6179 = vmatprep.subr.mxu0 0.0
      %6180 = vmatpush1.msra.mxu0 %v379
      %6181 = vmatprep.subr.mxu0 0.0
      %6182 = vmatpush1.msra.mxu0 %v380
      %6183 = vmatprep.subr.mxu0 0.0
      %6184 = vmatpush1.msra.mxu0 %v381
      %6185 = vmatprep.subr.mxu0 0.0
      %6186 = vmatpush1.msra.mxu0 %v382
      %6187 = vmatprep.subr.mxu0 0.0
      %6188 = vmatpush1.msra.mxu0 %v383
      %6189 = vmatprep.subr.mxu0 0.0
      %6190 = vmatpush1.msra.mxu0 %v384
      %6191 = vmatprep.subr.mxu0 0.0
      %6192 = vmatpush1.msra.mxu0 %v385
      %6193 = vmatprep.subr.mxu0 0.0
      %6194 = vmatpush1.msra.mxu0 %v386
      %6195 = vmatprep.subr.mxu0 0.0
      %6196 = vmatpush1.msra.mxu0 %v387
      %6197 = vmatprep.subr.mxu0 0.0
      %6198 = vmatpush1.msra.mxu0 %v388
      %6199 = vmatprep.subr.mxu0 0.0
      %6200 = vmatpush1.msra.mxu0 %v389
      %6201 = vmatprep.subr.mxu0 0.0
      %6202 = vmatpush1.msra.mxu0 %v390
      %6203 = vmatprep.subr.mxu0 0.0
      %6204 = vmatpush1.msra.mxu0 %v391
      %6205 = vmatprep.subr.mxu0 0.0
      %6206 = vmatpush1.msra.mxu0 %v392
      %6207 = vmatprep.subr.mxu0 0.0
      %6208 = vmatpush1.msra.mxu0 %v393
      %6209 = vmatprep.subr.mxu0 0.0
      %6210 = vmatpush1.msra.mxu0 %v394
      %6211 = vmatprep.subr.mxu0 0.0
      %6212 = vmatpush1.msra.mxu0 %v395
      %6213 = vmatprep.subr.mxu0 0.0
      %6214 = vmatpush1.msra.mxu0 %v396
      %6215 = vmatprep.mubr.f32.mxu0 %v5657
      %6216 = vmatmul.mubr.f32.gmra.mrb[0].mxu0 %v5655
      %v6217 = vpop.f32.mrb[0].mxu0
      %v6218 = vadd.f32 %v6148, %v6217
      %v6219 = vpop.f32.mrb[0].mxu0
      %6220 = vdwg.mxu0
      %6221 = vmatprep.subr.mxu0 0.0
      %6222 = vmatpush1.msra.mxu0 %v397
      %6223 = vmatprep.subr.mxu0 0.0
      %6224 = vmatpush1.msra.mxu0 %v398
      %6225 = vmatprep.subr.mxu0 0.0
      %6226 = vmatpush1.msra.mxu0 %v399
      %6227 = vmatprep.subr.mxu0 0.0
      %6228 = vmatpush1.msra.mxu0 %v400
      %6229 = vmatprep.subr.mxu0 0.0
      %6230 = vmatpush1.msra.mxu0 %v401
      %6231 = vmatprep.subr.mxu0 0.0
      %6232 = vmatpush1.msra.mxu0 %v402
      %6233 = vmatprep.subr.mxu0 0.0
      %6234 = vmatpush1.msra.mxu0 %v403
      %6235 = vmatprep.subr.mxu0 0.0
      %6236 = vmatpush1.msra.mxu0 %v404
      %6237 = vmatprep.subr.mxu0 0.0
      %6238 = vmatpush1.msra.mxu0 %v405
      %6239 = vmatprep.subr.mxu0 0.0
      %6240 = vmatpush1.msra.mxu0 %v406
      %6241 = vmatprep.subr.mxu0 0.0
      %6242 = vmatpush1.msra.mxu0 %v407
      %6243 = vmatprep.subr.mxu0 0.0
      %6244 = vmatpush1.msra.mxu0 %v408
      %6245 = vmatprep.subr.mxu0 0.0
      %6246 = vmatpush1.msra.mxu0 %v409
      %6247 = vmatprep.subr.mxu0 0.0
      %6248 = vmatpush1.msra.mxu0 %v410
      %6249 = vmatprep.subr.mxu0 0.0
      %6250 = vmatpush1.msra.mxu0 %v411
      %6251 = vmatprep.subr.mxu0 0.0
      %6252 = vmatpush1.msra.mxu0 %v412
      %6253 = vmatprep.subr.mxu0 0.0
      %6254 = vmatpush1.msra.mxu0 %v413
      %6255 = vmatprep.subr.mxu0 0.0
      %6256 = vmatpush1.msra.mxu0 %v414
      %6257 = vmatprep.subr.mxu0 0.0
      %6258 = vmatpush1.msra.mxu0 %v415
      %6259 = vmatprep.subr.mxu0 0.0
      %6260 = vmatpush1.msra.mxu0 %v416
      %6261 = vmatprep.subr.mxu0 0.0
      %6262 = vmatpush1.msra.mxu0 %v417
      %6263 = vmatprep.subr.mxu0 0.0
      %6264 = vmatpush1.msra.mxu0 %v418
      %6265 = vmatprep.subr.mxu0 0.0
      %6266 = vmatpush1.msra.mxu0 %v419
      %6267 = vmatprep.subr.mxu0 0.0
      %6268 = vmatpush1.msra.mxu0 %v420
      %6269 = vmatprep.subr.mxu0 0.0
      %6270 = vmatpush1.msra.mxu0 %v421
      %6271 = vmatprep.subr.mxu0 0.0
      %6272 = vmatpush1.msra.mxu0 %v422
      %6273 = vmatprep.subr.mxu0 0.0
      %6274 = vmatpush1.msra.mxu0 %v423
      %6275 = vmatprep.subr.mxu0 0.0
      %6276 = vmatpush1.msra.mxu0 %v424
      %6277 = vmatprep.subr.mxu0 0.0
      %6278 = vmatpush1.msra.mxu0 %v425
      %6279 = vmatprep.subr.mxu0 0.0
      %6280 = vmatpush1.msra.mxu0 %v426
      %6281 = vmatprep.subr.mxu0 0.0
      %6282 = vmatpush1.msra.mxu0 %v427
      %6283 = vmatprep.subr.mxu0 0.0
      %6284 = vmatpush1.msra.mxu0 %v428
      %6285 = vmatprep.mubr.f32.mxu0 %v5728
      %6286 = vmatmul.mubr.f32.gmra.mrb[0].mxu0 %v5726
      %v6287 = vpop.f32.mrb[0].mxu0
      %v6288 = vadd.f32 %v6218, %v6287
      %v6289 = vpop.f32.mrb[0].mxu0
      %6290 = vdwg.mxu0
      %6291 = vmatprep.subr.mxu0 0.0
      %6292 = vmatpush1.msra.mxu0 %v429
      %6293 = vmatprep.subr.mxu0 0.0
      %6294 = vmatpush1.msra.mxu0 %v430
      %6295 = vmatprep.subr.mxu0 0.0
      %6296 = vmatpush1.msra.mxu0 %v431
      %6297 = vmatprep.subr.mxu0 0.0
      %6298 = vmatpush1.msra.mxu0 %v432
      %6299 = vmatprep.subr.mxu0 0.0
      %6300 = vmatpush1.msra.mxu0 %v433
      %6301 = vmatprep.subr.mxu0 0.0
      %6302 = vmatpush1.msra.mxu0 %v434
      %6303 = vmatprep.subr.mxu0 0.0
      %6304 = vmatpush1.msra.mxu0 %v435
      %6305 = vmatprep.subr.mxu0 0.0
      %6306 = vmatpush1.msra.mxu0 %v436
      %6307 = vmatprep.subr.mxu0 0.0
      %6308 = vmatpush1.msra.mxu0 %v437
      %6309 = vmatprep.subr.mxu0 0.0
      %6310 = vmatpush1.msra.mxu0 %v438
      %6311 = vmatprep.subr.mxu0 0.0
      %6312 = vmatpush1.msra.mxu0 %v439
      %6313 = vmatprep.subr.mxu0 0.0
      %6314 = vmatpush1.msra.mxu0 %v440
      %6315 = vmatprep.subr.mxu0 0.0
      %6316 = vmatpush1.msra.mxu0 %v441
      %6317 = vmatprep.subr.mxu0 0.0
      %6318 = vmatpush1.msra.mxu0 %v442
      %6319 = vmatprep.subr.mxu0 0.0
      %6320 = vmatpush1.msra.mxu0 %v443
      %6321 = vmatprep.subr.mxu0 0.0
      %6322 = vmatpush1.msra.mxu0 %v444
      %6323 = vmatprep.subr.mxu0 0.0
      %6324 = vmatpush1.msra.mxu0 %v445
      %6325 = vmatprep.subr.mxu0 0.0
      %6326 = vmatpush1.msra.mxu0 %v446
      %6327 = vmatprep.subr.mxu0 0.0
      %6328 = vmatpush1.msra.mxu0 %v447
      %6329 = vmatprep.subr.mxu0 0.0
      %6330 = vmatpush1.msra.mxu0 %v448
      %6331 = vmatprep.subr.mxu0 0.0
      %6332 = vmatpush1.msra.mxu0 %v449
      %6333 = vmatprep.subr.mxu0 0.0
      %6334 = vmatpush1.msra.mxu0 %v450
      %6335 = vmatprep.subr.mxu0 0.0
      %6336 = vmatpush1.msra.mxu0 %v451
      %6337 = vmatprep.subr.mxu0 0.0
      %6338 = vmatpush1.msra.mxu0 %v452
      %6339 = vmatprep.subr.mxu0 0.0
      %6340 = vmatpush1.msra.mxu0 %v453
      %6341 = vmatprep.subr.mxu0 0.0
      %6342 = vmatpush1.msra.mxu0 %v454
      %6343 = vmatprep.subr.mxu0 0.0
      %6344 = vmatpush1.msra.mxu0 %v455
      %6345 = vmatprep.subr.mxu0 0.0
      %6346 = vmatpush1.msra.mxu0 %v456
      %6347 = vmatprep.subr.mxu0 0.0
      %6348 = vmatpush1.msra.mxu0 %v457
      %6349 = vmatprep.subr.mxu0 0.0
      %6350 = vmatpush1.msra.mxu0 %v458
      %6351 = vmatprep.subr.mxu0 0.0
      %6352 = vmatpush1.msra.mxu0 %v459
      %6353 = vmatprep.subr.mxu0 0.0
      %6354 = vmatpush1.msra.mxu0 %v460
      %6355 = vmatprep.mubr.f32.mxu0 %v5799
      %6356 = vmatmul.mubr.f32.gmra.mrb[0].mxu0 %v5797
      %v6357 = vpop.f32.mrb[0].mxu0
      %v6358 = vadd.f32 %v6288, %v6357
      %v6359 = vpop.f32.mrb[0].mxu0
      %6360 = vdwg.mxu0
      %6362 = vset.pattern.permute.xlu0 0
      %6363 = vperm.xlu0 %6362, %v482
      %v6364 = vpop.permute.xlu0 %6363
      %v6366 = vmul.f32 %v6358, %v6364
      %v6367 = vsel %vm484, %v6366, 0.0
      %v6368 = vrot.slane %v6367, 4
      %v6369 = vadd.f32 %v6367, %v6368
      %v6370 = vrot.slane %v6369, 2
      %v6371 = vadd.f32 %v6369, %v6370
      %v6372 = vrot.slane %v6371, 1
      %v6373 = vadd.f32 %v6371, %v6372
      %v6374 = vmul.f32 %v6373, 0.25
      %v6375 = vsub.f32 %v6358, %v6374
      %v6376 = vmul.f32 %v6375, %v6364
      %v6377 = vmul.f32 %v6376, %v6376
      %v6378 = vsel %vm484, %v6377, 0.0
      %v6379 = vrot.slane %v6378, 4
      %v6380 = vadd.f32 %v6378, %v6379
      %v6381 = vrot.slane %v6380, 2
      %v6382 = vadd.f32 %v6380, %v6381
      %v6383 = vrot.slane %v6382, 1
      %v6384 = vadd.f32 %v6382, %v6383
      %v6385 = vmul.f32 %v6384, 0.25
      %v6386 = vadd.f32 %v6385, 1e-05
      %v6387 = vrsqrt.pop %v6386
      %v6388 = vmul.f32 %v6375, %v6387
      %v6389 = vmul.f32 %v6388, %v473
      %v6390 = vadd.f32 %v6389, %v480
      %v6391 = vmax.f32 %v6390, 0.0
      %s6392 = smul.u32 %s3539, 8
      %s6393 = scalar_lea.vmem [#allocation3], %s6392
      %v6394 = vld [vmem:[%s6393] sm:$0xff]
      %v6396 = vsel %vm484, %v6391, 0
      %6398 = vmatprep.subr.mxu0 0.0
      %6399 = vmatpush1.msra.mxu0 %v160
      %6400 = vmatprep.subr.mxu0 0.0
      %6401 = vmatpush1.msra.mxu0 %v161
      %6402 = vmatprep.subr.mxu0 0.0
      %6403 = vmatpush1.msra.mxu0 %v162
      %6404 = vmatprep.subr.mxu0 0.0
      %6405 = vmatpush1.msra.mxu0 %v163
      %6406 = vmatprep.subr.mxu0 0.0
      %6407 = vmatpush1.msra.mxu0 0.0
      %6408 = vmatprep.subr.mxu0 0.0
      %6409 = vmatpush1.msra.mxu0 0.0
      %6410 = vmatprep.subr.mxu0 0.0
      %6411 = vmatpush1.msra.mxu0 0.0
      %6412 = vmatprep.subr.mxu0 0.0
      %6413 = vmatpush1.msra.mxu0 0.0
      %6414 = vmatprep.subr.mxu0 0.0
      %6415 = vmatpush1.msra.mxu0 0.0
      %6416 = vmatprep.subr.mxu0 0.0
      %6417 = vmatpush1.msra.mxu0 0.0
      %6418 = vmatprep.subr.mxu0 0.0
      %6419 = vmatpush1.msra.mxu0 0.0
      %6420 = vmatprep.subr.mxu0 0.0
      %6421 = vmatpush1.msra.mxu0 0.0
      %6422 = vmatprep.subr.mxu0 0.0
      %6423 = vmatpush1.msra.mxu0 0.0
      %6424 = vmatprep.subr.mxu0 0.0
      %6425 = vmatpush1.msra.mxu0 0.0
      %6426 = vmatprep.subr.mxu0 0.0
      %6427 = vmatpush1.msra.mxu0 0.0
      %6428 = vmatprep.subr.mxu0 0.0
      %6429 = vmatpush1.msra.mxu0 0.0
      %6430 = vmatprep.subr.mxu0 0.0
      %6431 = vmatpush1.msra.mxu0 0.0
      %6432 = vmatprep.subr.mxu0 0.0
      %6433 = vmatpush1.msra.mxu0 0.0
      %6434 = vmatprep.subr.mxu0 0.0
      %6435 = vmatpush1.msra.mxu0 0.0
      %6436 = vmatprep.subr.mxu0 0.0
      %6437 = vmatpush1.msra.mxu0 0.0
      %6438 = vmatprep.subr.mxu0 0.0
      %6439 = vmatpush1.msra.mxu0 0.0
      %6440 = vmatprep.subr.mxu0 0.0
      %6441 = vmatpush1.msra.mxu0 0.0
      %6442 = vmatprep.subr.mxu0 0.0
      %6443 = vmatpush1.msra.mxu0 0.0
      %6444 = vmatprep.subr.mxu0 0.0
      %6445 = vmatpush1.msra.mxu0 0.0
      %6446 = vmatprep.subr.mxu0 0.0
      %6447 = vmatpush1.msra.mxu0 0.0
      %6448 = vmatprep.subr.mxu0 0.0
      %6449 = vmatpush1.msra.mxu0 0.0
      %6450 = vmatprep.subr.mxu0 0.0
      %6451 = vmatpush1.msra.mxu0 0.0
      %6452 = vmatprep.subr.mxu0 0.0
      %6453 = vmatpush1.msra.mxu0 0.0
      %6454 = vmatprep.subr.mxu0 0.0
      %6455 = vmatpush1.msra.mxu0 0.0
      %6456 = vmatprep.subr.mxu0 0.0
      %6457 = vmatpush1.msra.mxu0 0.0
      %6458 = vmatprep.subr.mxu0 0.0
      %6459 = vmatpush1.msra.mxu0 0.0
      %6460 = vmatprep.subr.mxu0 0.0
      %6461 = vmatpush1.msra.mxu0 0.0
      %6462 = vmatprep.mubr.f32.mxu0 0.0
      %6463 = vmatmul.mubr.f32.gmra.mrb[0].mxu0 %v6396
      %v6464 = vpop.f32.mrb[0].mxu0
      %v6465 = vadd.f32 0.0, %v6464
      %v6466 = vpop.f32.mrb[0].mxu0
      %6467 = vdwg.mxu0
      %v6468 = vadd.f32 %v6394, %v6465
      %v6469 = vxor.u32 %v6468, 2147483648
      %v6470 = vmul.f32 %v6469, 1.442695
      %v6471 = vpow.pop %v6470
      %v6472 = vadd.f32 %v6471, 1.0
      %v6473 = vrcp.pop %v6472
      %v6474 = vmul.f32 1.0, %v6473
      %v6475 = vtanh.pop %v6468
      %v6476 = vmul.f32 %v6474, %v3545
      %6478 = vrot.lane.b32.xlu0 %v6475, 32
      %v6479 = vpop.permute.xlu0 %6478
      %v6481 = vmul.f32 %v6474, %v6479
      %6483 = vrot.lane.b32.xlu0 %v6481, 32
      %v6484 = vpop.permute.xlu0 %6483
      %v6486 = vadd.f32 %v6476, %v6484
      %v6487 = vtanh.pop %v6486
      %6489 = vrot.lane.b32.xlu0 %v6487, 32
      %v6490 = vpop.permute.xlu0 %6489
      %v6492 = vmul.f32 %v6474, %v6490
      %s6493 = ssub.s32 %s3539, 3
      %s6494 = smul.u32 %s6493, 8
      %6496 = vrot.lane.b32.xlu0 %v6492, 64
      %v6497 = vpop.permute.xlu0 %6496
      %s6499 = scalar_lea.vmem [#allocation2], %s6494
      %6500 = vst.msk [vmem:[%s6499] sm:$0xff] %vm484, %v6497
    $region105: #{tpu_custom_call.1} parent=1 // loop_footer
      %s3543 = sadd.s32 1, %s3539
    $region106: #{tpu_custom_call.1} parent=1 // loop_footer_branch
      %3538 = sbr.rel target = $region102
    $region107: #{tpu_custom_call.1} parent=1 // loop_exit
      _
    %v6501 = vld [vmem:[%s13] sm:$0xff]
    %v6502 = vld [vmem:[%s13 + $0x8] sm:$0xff]
    %v6503 = vld [vmem:[%s13 + $0x10] sm:$0xff]
    %v6504 = vld [vmem:[#allocation2] sm:$0xff]
    %v6505 = vld [vmem:[#allocation2 + $0x8] sm:$0xff]
    %v6506 = vld [vmem:[#allocation2 + $0x10] sm:$0xff]
    %v6507 = vld [vmem:[%s11] sm:$0xff]
    %v6508 = vld [vmem:[%s11 + $0x8] sm:$0xff]
    %v6509 = vld [vmem:[%s11 + $0x10] sm:$0xff]
    %v6510 = vld [vmem:[%s11 + $0x18] sm:$0xff]
    %v6512 = vsel %vm484, %v6504, 0
    %v6515 = vsel %vm484, %v6505, 0
    %v6518 = vsel %vm484, %v6506, 0
    %6520 = vmatprep.subr.mxu0 0.0
    %6521 = vmatpush1.msra.mxu0 %v6507
    %6522 = vmatprep.subr.mxu0 0.0
    %6523 = vmatpush1.msra.mxu0 %v6508
    %6524 = vmatprep.subr.mxu0 0.0
    %6525 = vmatpush1.msra.mxu0 %v6509
    %6526 = vmatprep.subr.mxu0 0.0
    %6527 = vmatpush1.msra.mxu0 %v6510
    %6528 = vmatprep.subr.mxu0 0.0
    %6529 = vmatpush1.msra.mxu0 0.0
    %6530 = vmatprep.subr.mxu0 0.0
    %6531 = vmatpush1.msra.mxu0 0.0
    %6532 = vmatprep.subr.mxu0 0.0
    %6533 = vmatpush1.msra.mxu0 0.0
    %6534 = vmatprep.subr.mxu0 0.0
    %6535 = vmatpush1.msra.mxu0 0.0
    %6536 = vmatprep.subr.mxu0 0.0
    %6537 = vmatpush1.msra.mxu0 0.0
    %6538 = vmatprep.subr.mxu0 0.0
    %6539 = vmatpush1.msra.mxu0 0.0
    %6540 = vmatprep.subr.mxu0 0.0
    %6541 = vmatpush1.msra.mxu0 0.0
    %6542 = vmatprep.subr.mxu0 0.0
    %6543 = vmatpush1.msra.mxu0 0.0
    %6544 = vmatprep.subr.mxu0 0.0
    %6545 = vmatpush1.msra.mxu0 0.0
    %6546 = vmatprep.subr.mxu0 0.0
    %6547 = vmatpush1.msra.mxu0 0.0
    %6548 = vmatprep.subr.mxu0 0.0
    %6549 = vmatpush1.msra.mxu0 0.0
    %6550 = vmatprep.subr.mxu0 0.0
    %6551 = vmatpush1.msra.mxu0 0.0
    %6552 = vmatprep.subr.mxu0 0.0
    %6553 = vmatpush1.msra.mxu0 0.0
    %6554 = vmatprep.subr.mxu0 0.0
    %6555 = vmatpush1.msra.mxu0 0.0
    %6556 = vmatprep.subr.mxu0 0.0
    %6557 = vmatpush1.msra.mxu0 0.0
    %6558 = vmatprep.subr.mxu0 0.0
    %6559 = vmatpush1.msra.mxu0 0.0
    %6560 = vmatprep.subr.mxu0 0.0
    %6561 = vmatpush1.msra.mxu0 0.0
    %6562 = vmatprep.subr.mxu0 0.0
    %6563 = vmatpush1.msra.mxu0 0.0
    %6564 = vmatprep.subr.mxu0 0.0
    %6565 = vmatpush1.msra.mxu0 0.0
    %6566 = vmatprep.subr.mxu0 0.0
    %6567 = vmatpush1.msra.mxu0 0.0
    %6568 = vmatprep.subr.mxu0 0.0
    %6569 = vmatpush1.msra.mxu0 0.0
    %6570 = vmatprep.subr.mxu0 0.0
    %6571 = vmatpush1.msra.mxu0 0.0
    %6572 = vmatprep.subr.mxu0 0.0
    %6573 = vmatpush1.msra.mxu0 0.0
    %6574 = vmatprep.subr.mxu0 0.0
    %6575 = vmatpush1.msra.mxu0 0.0
    %6576 = vmatprep.subr.mxu0 0.0
    %6577 = vmatpush1.msra.mxu0 0.0
    %6578 = vmatprep.subr.mxu0 0.0
    %6579 = vmatpush1.msra.mxu0 0.0
    %6580 = vmatprep.subr.mxu0 0.0
    %6581 = vmatpush1.msra.mxu0 0.0
    %6582 = vmatprep.subr.mxu0 0.0
    %6583 = vmatpush1.msra.mxu0 0.0
    %6584 = vmatprep.mubr.f32.mxu0 0.0
    %6585 = vmatmul.mubr.f32.gmra.mrb[0].mxu0 %v6512
    %v6586 = vpop.f32.mrb[0].mxu0
    %v6587 = vadd.f32 0.0, %v6586
    %v6588 = vpop.f32.mrb[0].mxu0
    %6589 = vmatprep.mubr.f32.mxu0 0.0
    %6590 = vmatmul.mubr.f32.gmra.mrb[0].mxu0 %v6515
    %v6591 = vpop.f32.mrb[0].mxu0
    %v6592 = vadd.f32 0.0, %v6591
    %v6593 = vpop.f32.mrb[0].mxu0
    %6594 = vmatprep.mubr.f32.mxu0 0.0
    %6595 = vmatmul.mubr.f32.gmra.mrb[0].mxu0 %v6518
    %v6596 = vpop.f32.mrb[0].mxu0
    %v6597 = vadd.f32 0.0, %v6596
    %v6598 = vpop.f32.mrb[0].mxu0
    %6599 = vdwg.mxu0
    %v6600 = vadd.f32 %v6501, %v6587
    %v6601 = vadd.f32 %v6502, %v6592
    %v6602 = vadd.f32 %v6503, %v6597
    %v6603 = vld [vmem:[#allocation16] sm:$0x1]
    %v6605 = vlaneseq
    %v6606 = vshrl.u32 %v6605, 7
    %v6607 = vsub.s32 0, %v6606
    %v6608 = vrot.slane %v6603, %v6607
    %v6610 = vadd.f32 %v6600, %v6608
    %v6611 = vadd.f32 %v6601, %v6608
    %v6612 = vadd.f32 %v6602, %v6608
    %vm6613 = vcmask 15360
    %6614 = vst.msk [vmem:[%s14] sm:$0xff] %vm6613, %v6610
    %6615 = vst.msk [vmem:[%s14 + $0x8] sm:$0xff] %vm6613, %v6611
    %6616 = vst.msk [vmem:[%s14 + $0x10] sm:$0xff] %vm6613, %v6612
    // Predicated region
    $region108: #{tpu_custom_call.1} parent=1 // pred_check
      _
    $region109: #{tpu_custom_call.1} parent=1 // pred_check_branch
      %6618 = sbr.rel (0) target = $region111
    $region110: #{tpu_custom_call.1} parent=1 // pred_region
      _
    $region111: #{tpu_custom_call.1} parent=1 // pred_fallthru
      _
    // Predicated region
    $region112: #{tpu_custom_call.1} parent=1 // pred_check
      _
    $region113: #{tpu_custom_call.1} parent=1 // pred_check_branch
      %6620 = sbr.rel (0) target = $region115
    $region114: #{tpu_custom_call.1} parent=1 // pred_region
      _
    $region115: #{tpu_custom_call.1} parent=1 // pred_fallthru
      _
    %6621 = vsyncpa [#allocation4], 1
    %6622 = vsyncpa [#allocation6], 1
    %6623 = vsyncpa [#allocation9], 1
    %6624 = vsyncpa [#allocation12], 1
    %6625 = vsyncpa [#allocation15], 1

</llo_original>
